<compile_context>
chip_gen: v6e
topology: v6e:2x2x1
jax: 0.10.0
libtpu: 0.0.40
codegen_flags: <defaults>
</compile_context>

<pallas_src>
import jax
import jax.numpy as jnp
from jax.experimental import pallas as pl
from jax.experimental.pallas import tpu as pltpu

N_IN = 784
N_IN_PAD = 896      # 784 padded up to a multiple of 128 (7 * 128)
H1 = 1024
H2 = 512
N_OUT_PAD = 128     # final N=1 padded to a full 128-lane tile
TB = 256            # batch tile: >= MXU height on v6e/v7x, multiple of 8/128 rules


def _discriminator_kernel(x_ref, w1_ref, b1_ref, w2_ref, b2_ref,
                          w3_ref, b3_ref, o_ref):
    # Layer 1: (TB, 896)bf16 @ (896, 1024)bf16 -> f32 acc, +bias, ReLU
    h1 = jnp.dot(x_ref[...], w1_ref[...], preferred_element_type=jnp.float32)
    h1 = jnp.maximum(h1 + b1_ref[...], 0.0)
    # Layer 2: (TB, 1024)bf16 @ (1024, 512)bf16 -> f32 acc, +bias, ReLU
    h2 = jnp.dot(h1.astype(jnp.bfloat16), w2_ref[...],
                 preferred_element_type=jnp.float32)
    h2 = jnp.maximum(h2 + b2_ref[...], 0.0)
    # Layer 3 (N padded to 128): (TB, 512)bf16 @ (512, 128)bf16 -> f32, +bias, sigmoid
    logits = jnp.dot(h2.astype(jnp.bfloat16), w3_ref[...],
                     preferred_element_type=jnp.float32)
    o_ref[...] = jax.nn.sigmoid(logits + b3_ref[...])


def prepare_params(params):
    """Take logical params (weights already transposed to (in, out), biases (1, out))
    and produce kernel params: bf16 weights, K/N padding, f32 biases."""
    w1, b1, w2, b2, w3, b3 = params
    w1p = jnp.pad(w1, ((0, N_IN_PAD - N_IN), (0, 0))).astype(jnp.bfloat16)
    w2p = w2.astype(jnp.bfloat16)
    w3p = jnp.pad(w3, ((0, 0), (0, N_OUT_PAD - w3.shape[1]))).astype(jnp.bfloat16)
    b3p = jnp.pad(b3, ((0, 0), (0, N_OUT_PAD - b3.shape[1]))).astype(jnp.float32)
    return (w1p, b1.astype(jnp.float32), w2p, b2.astype(jnp.float32), w3p, b3p)


def discriminator_forward(x, kernel_params, tb=TB):
    """x: any shape that flattens to (-1, 784) (e.g. NCHW images (B,1,28,28)).
    kernel_params: output of prepare_params."""
    w1, b1, w2, b2, w3, b3 = kernel_params
    x2d = x.reshape(-1, N_IN)
    B = x2d.shape[0]
    n_tiles = pl.cdiv(B, tb)
    Bp = n_tiles * tb
    # Zero-pad rows to a multiple of TB and K to 896 so every tile is full-size.
    x_pad = jnp.pad(x2d.astype(jnp.bfloat16),
                    ((0, Bp - B), (0, N_IN_PAD - N_IN)))

    flops = 2 * Bp * (N_IN_PAD * H1 + H1 * H2 + H2 * N_OUT_PAD)
    bytes_accessed = (Bp * N_IN_PAD * 2                       # x (bf16)
                      + (N_IN_PAD * H1 + H1 * H2 + H2 * N_OUT_PAD) * 2  # weights (bf16)
                      + (H1 + H2 + N_OUT_PAD) * 4             # biases (f32)
                      + Bp * N_OUT_PAD * 4)                   # output (f32)

    def replicated(shape):
        return pl.BlockSpec(shape, lambda i: (0, 0))

    out = pl.pallas_call(
        _discriminator_kernel,
        out_shape=jax.ShapeDtypeStruct((Bp, N_OUT_PAD), jnp.float32),
        grid=(n_tiles,),
        in_specs=[
            pl.BlockSpec((tb, N_IN_PAD), lambda i: (i, 0)),   # x: tiled over batch
            replicated((N_IN_PAD, H1)), replicated((1, H1)),  # weights/biases resident
            replicated((H1, H2)),       replicated((1, H2)),
            replicated((H2, N_OUT_PAD)), replicated((1, N_OUT_PAD)),
        ],
        out_specs=pl.BlockSpec((tb, N_OUT_PAD), lambda i: (i, 0)),
        compiler_params=pltpu.CompilerParams(
            dimension_semantics=("parallel",),
            vmem_limit_bytes=48 << 20,
        ),
        cost_estimate=pl.CostEstimate(
            flops=flops,
            transcendentals=Bp * N_OUT_PAD,
            bytes_accessed=bytes_accessed,
        ),
    )(x_pad, w1, b1, w2, b2, w3, b3)

    # Strip batch padding and the lane padding of the final layer.
    return out[:B, :1]


def init_params(key):
    """Deterministic init mimicking PyTorch Linear default (uniform +-1/sqrt(fan_in)).
    Weights are stored already transposed to (in_features, out_features)."""
    dims = [(N_IN, H1), (H1, H2), (H2, 1)]
    params = []
    for (fan_in, fan_out) in dims:
        key, kw, kb = jax.random.split(key, 3)
        bound = 1.0 / jnp.sqrt(fan_in)
        w = jax.random.uniform(kw, (fan_in, fan_out), jnp.float32, -bound, bound)
        b = jax.random.uniform(kb, (1, fan_out), jnp.float32, -bound, bound)
        params += [w, b]
    return tuple(params)


if __name__ == "__main__":
    key = jax.random.PRNGKey(0)
    k_params, k_x = jax.random.split(key)

    raw_params = init_params(k_params)
    kernel_params = prepare_params(raw_params)

    # Small MNIST-like batch: NCHW (8, 1, 28, 28); forward flattens to (8, 784).
    x = jax.random.normal(k_x, (8, 1, 28, 28), dtype=jnp.float32)

    out = discriminator_forward(x, kernel_params)
    out = jax.block_until_ready(out)

    # Sanity checks: shape (8, 1), values in (0, 1), matches plain-JAX reference
    # computed with the same bf16-operand / f32-accumulate recipe.
    assert out.shape == (8, 1), out.shape
    assert bool(jnp.all((out > 0.0) & (out < 1.0)))

    w1, b1, w2, b2, w3, b3 = raw_params
    x2d = x.reshape(-1, N_IN).astype(jnp.bfloat16)
    h1 = jnp.maximum(
        jnp.dot(x2d, w1.astype(jnp.bfloat16), preferred_element_type=jnp.float32) + b1, 0.0)
    h2 = jnp.maximum(
        jnp.dot(h1.astype(jnp.bfloat16), w2.astype(jnp.bfloat16),
                preferred_element_type=jnp.float32) + b2, 0.0)
    ref = jax.nn.sigmoid(
        jnp.dot(h2.astype(jnp.bfloat16), w3.astype(jnp.bfloat16),
                preferred_element_type=jnp.float32) + b3)
    assert bool(jnp.max(jnp.abs(out - ref)) < 1e-3), float(jnp.max(jnp.abs(out - ref)))

    print("KERNEL_OK")
</pallas_src>

<mosaic_0001>
module attributes {stable_mosaic.version = 11 : i64} {
  func.func @_discriminator_kernel(%arg0: i32, %arg1: memref<256x896xbf16, #tpu.memory_space<vmem>>, %arg2: memref<896x1024xbf16, #tpu.memory_space<vmem>>, %arg3: memref<1x1024xf32, #tpu.memory_space<vmem>>, %arg4: memref<1024x512xbf16, #tpu.memory_space<vmem>>, %arg5: memref<1x512xf32, #tpu.memory_space<vmem>>, %arg6: memref<512x128xbf16, #tpu.memory_space<vmem>>, %arg7: memref<1x128xf32, #tpu.memory_space<vmem>>, %arg8: memref<256x128xf32, #tpu.memory_space<vmem>>) attributes {dimension_semantics = [#tpu.dimension_semantics<parallel>], iteration_bounds = array<i64: 1>, scalar_prefetch = 0 : i64, scratch_operands = 0 : i64, tpu.core_type = #tpu.core_type<tc>, window_params = [{transform_indices = @transform_0, window_bounds = array<i64: 256, 896>}, {pipeline_mode = #tpu.pipeline_mode<synchronous>, transform_indices = @transform_1, window_bounds = array<i64: 896, 1024>}, {pipeline_mode = #tpu.pipeline_mode<synchronous>, transform_indices = @transform_2, window_bounds = array<i64: 1, 1024>}, {pipeline_mode = #tpu.pipeline_mode<synchronous>, transform_indices = @transform_3, window_bounds = array<i64: 1024, 512>}, {pipeline_mode = #tpu.pipeline_mode<synchronous>, transform_indices = @transform_4, window_bounds = array<i64: 1, 512>}, {pipeline_mode = #tpu.pipeline_mode<synchronous>, transform_indices = @transform_5, window_bounds = array<i64: 512, 128>}, {pipeline_mode = #tpu.pipeline_mode<synchronous>, transform_indices = @transform_6, window_bounds = array<i64: 1, 128>}, {transform_indices = @transform_7, window_bounds = array<i64: 256, 128>}]} {
    %c0 = arith.constant 0 : index
    %c0_0 = arith.constant 0 : index
    %0 = vector.load %arg1[%c0, %c0_0] : memref<256x896xbf16, #tpu.memory_space<vmem>>, vector<256x896xbf16>
    %c0_1 = arith.constant 0 : index
    %c0_2 = arith.constant 0 : index
    %1 = vector.load %arg2[%c0_1, %c0_2] : memref<896x1024xbf16, #tpu.memory_space<vmem>>, vector<896x1024xbf16>
    %cst = arith.constant dense<0.000000e+00> : vector<256x1024xf32>
    %2 = tpu.matmul %0, %1, %cst {dimension_numbers = #tpu.dot_dimension_numbers<[1], [0], [0], [1], [0, 0, 1, 1], [], []>} : vector<256x896xbf16>, vector<896x1024xbf16>, vector<256x1024xf32> -> vector<256x1024xf32>
    %c0_3 = arith.constant 0 : index
    %c0_4 = arith.constant 0 : index
    %3 = vector.load %arg3[%c0_3, %c0_4] : memref<1x1024xf32, #tpu.memory_space<vmem>>, vector<1x1024xf32>
    %4 = vector.broadcast %3 : vector<1x1024xf32> to vector<256x1024xf32>
    %5 = arith.addf %2, %4 : vector<256x1024xf32>
    %cst_5 = arith.constant 0.000000e+00 : f32
    %6 = vector.broadcast %cst_5 : f32 to vector<256x1024xf32>
    %7 = arith.maximumf %5, %6 : vector<256x1024xf32>
    %8 = arith.truncf %7 : vector<256x1024xf32> to vector<256x1024xbf16>
    %c0_6 = arith.constant 0 : index
    %c0_7 = arith.constant 0 : index
    %9 = vector.load %arg4[%c0_6, %c0_7] : memref<1024x512xbf16, #tpu.memory_space<vmem>>, vector<1024x512xbf16>
    %cst_8 = arith.constant dense<0.000000e+00> : vector<256x512xf32>
    %10 = tpu.matmul %8, %9, %cst_8 {dimension_numbers = #tpu.dot_dimension_numbers<[1], [0], [0], [1], [0, 0, 1, 1], [], []>} : vector<256x1024xbf16>, vector<1024x512xbf16>, vector<256x512xf32> -> vector<256x512xf32>
    %c0_9 = arith.constant 0 : index
    %c0_10 = arith.constant 0 : index
    %11 = vector.load %arg5[%c0_9, %c0_10] : memref<1x512xf32, #tpu.memory_space<vmem>>, vector<1x512xf32>
    %12 = vector.broadcast %11 : vector<1x512xf32> to vector<256x512xf32>
    %13 = arith.addf %10, %12 : vector<256x512xf32>
    %cst_11 = arith.constant 0.000000e+00 : f32
    %14 = vector.broadcast %cst_11 : f32 to vector<256x512xf32>
    %15 = arith.maximumf %13, %14 : vector<256x512xf32>
    %16 = arith.truncf %15 : vector<256x512xf32> to vector<256x512xbf16>
    %c0_12 = arith.constant 0 : index
    %c0_13 = arith.constant 0 : index
    %17 = vector.load %arg6[%c0_12, %c0_13] : memref<512x128xbf16, #tpu.memory_space<vmem>>, vector<512x128xbf16>
    %cst_14 = arith.constant dense<0.000000e+00> : vector<256x128xf32>
    %18 = tpu.matmul %16, %17, %cst_14 {dimension_numbers = #tpu.dot_dimension_numbers<[1], [0], [0], [1], [0, 0, 1, 1], [], []>} : vector<256x512xbf16>, vector<512x128xbf16>, vector<256x128xf32> -> vector<256x128xf32>
    %c0_15 = arith.constant 0 : index
    %c0_16 = arith.constant 0 : index
    %19 = vector.load %arg7[%c0_15, %c0_16] : memref<1x128xf32, #tpu.memory_space<vmem>>, vector<1x128xf32>
    %20 = vector.broadcast %19 : vector<1x128xf32> to vector<256x128xf32>
    %21 = arith.addf %18, %20 : vector<256x128xf32>
    %22 = arith.negf %21 : vector<256x128xf32>
    %23 = math.exp %22 : vector<256x128xf32>
    %cst_17 = arith.constant 1.000000e+00 : f32
    %24 = vector.broadcast %cst_17 : f32 to vector<256x128xf32>
    %25 = arith.addf %24, %23 : vector<256x128xf32>
    %26 = arith.divf %24, %25 : vector<256x128xf32>
    %c0_18 = arith.constant 0 : index
    %c0_19 = arith.constant 0 : index
    %27 = vector.load %arg8[%c0_18, %c0_19] : memref<256x128xf32, #tpu.memory_space<vmem>>, vector<256x128xf32>
    tpu.vector_store %arg8[%c0_18, %c0_19], %26 {strides = array<i32>} : memref<256x128xf32, #tpu.memory_space<vmem>>, vector<256x128xf32>,
    return
  }
  func.func @transform_0(%arg0: i32) -> (i32, i32) {
    %c0_i32 = arith.constant 0 : i32
    %c0_i32_0 = arith.constant 0 : i32
    return %arg0, %c0_i32 : i32, i32
  }
  func.func @transform_1(%arg0: i32) -> (i32, i32) {
    %c0_i32 = arith.constant 0 : i32
    %c0_i32_0 = arith.constant 0 : i32
    %c0_i32_1 = arith.constant 0 : i32
    return %c0_i32, %c0_i32_0 : i32, i32
  }
  func.func @transform_2(%arg0: i32) -> (i32, i32) {
    %c0_i32 = arith.constant 0 : i32
    %c0_i32_0 = arith.constant 0 : i32
    %c0_i32_1 = arith.constant 0 : i32
    return %c0_i32, %c0_i32_0 : i32, i32
  }
  func.func @transform_3(%arg0: i32) -> (i32, i32) {
    %c0_i32 = arith.constant 0 : i32
    %c0_i32_0 = arith.constant 0 : i32
    %c0_i32_1 = arith.constant 0 : i32
    return %c0_i32, %c0_i32_0 : i32, i32
  }
  func.func @transform_4(%arg0: i32) -> (i32, i32) {
    %c0_i32 = arith.constant 0 : i32
    %c0_i32_0 = arith.constant 0 : i32
    %c0_i32_1 = arith.constant 0 : i32
    return %c0_i32, %c0_i32_0 : i32, i32
  }
  func.func @transform_5(%arg0: i32) -> (i32, i32) {
    %c0_i32 = arith.constant 0 : i32
    %c0_i32_0 = arith.constant 0 : i32
    %c0_i32_1 = arith.constant 0 : i32
    return %c0_i32, %c0_i32_0 : i32, i32
  }
  func.func @transform_6(%arg0: i32) -> (i32, i32) {
    %c0_i32 = arith.constant 0 : i32
    %c0_i32_0 = arith.constant 0 : i32
    %c0_i32_1 = arith.constant 0 : i32
    return %c0_i32, %c0_i32_0 : i32, i32
  }
  func.func @transform_7(%arg0: i32) -> (i32, i32) {
    %c0_i32 = arith.constant 0 : i32
    %c0_i32_0 = arith.constant 0 : i32
    return %arg0, %c0_i32 : i32, i32
  }
}

</mosaic_0001>

<llo_original>
// kernel: tpu_custom_call.1
$region0: #{tpu_custom_call.1}
  #allocation0 [shape = 'u32[]', space=smem, size = 0x4, offset = 0x4, fixed_abs, tag = 'smem constant byte address 0x4 - core index']
  #allocation1 [shape = 'u32[144,128]{1,0:T(1,128)}', space=vmem, size = 0x12000, scoped, tag = 'internal scratch']
  %s0 = inlined_call_operand.hbm [shape: bf16[256,896], index: 0, kind: input, shape index: {}]
  %s1 = inlined_call_operand.hbm [shape: bf16[896,1024], index: 1, kind: input, shape index: {}]
  %s2 = inlined_call_operand.hbm [shape: f32[1,1024], index: 2, kind: input, shape index: {}]
  %s3 = inlined_call_operand.hbm [shape: bf16[1024,512], index: 3, kind: input, shape index: {}]
  %s4 = inlined_call_operand.hbm [shape: f32[1,512], index: 4, kind: input, shape index: {}]
  %s5 = inlined_call_operand.hbm [shape: bf16[512,128], index: 5, kind: input, shape index: {}]
  %s6 = inlined_call_operand.hbm [shape: f32[1,128], index: 6, kind: input, shape index: {}]
  %s7 = inlined_call_operand.hbm [shape: f32[256,128], index: 7, kind: output, shape index: {}]
  %s8 = sld [smem:[#allocation0]]
  $region66: #{tpu_custom_call.1} parent=0
    _
  %s10 = ssub.s32 1, %s8
  %s11 = scalar_select 0, %s10, %s8
  $region1: #{tpu_custom_call.1} parent=0
    #allocation2 [shape = 'u8[458752]{0}', space=vmem, size = 0x70000, scoped, tag = 'input window, operand 0, single buffered']
    #allocation3 [shape = 's32[1]{0}', space=sflag, size = 0x4, scoped, tag = 'scoped memory for tpu_custom_call.1']
    #allocation4 [shape = 's32[1]{0}', space=sflag, size = 0x4, scoped, tag = 'scoped memory for tpu_custom_call.1']
    #allocation5 [shape = 'u8[1835008]{0}', space=vmem, size = 0x1c0000, scoped, tag = 'input window, operand 1, single buffered']
    #allocation6 [shape = 's32[1]{0}', space=sflag, size = 0x4, scoped, tag = 'scoped memory for tpu_custom_call.1']
    #allocation7 [shape = 'u8[4096]{0}', space=vmem, size = 0x1000, scoped, tag = 'input window, operand 2, single buffered']
    #allocation8 [shape = 'u8[1048576]{0}', space=vmem, size = 0x100000, scoped, tag = 'input window, operand 3, single buffered']
    #allocation9 [shape = 's32[1]{0}', space=sflag, size = 0x4, scoped, tag = 'scoped memory for tpu_custom_call.1']
    #allocation10 [shape = 'u8[2048]{0}', space=vmem, size = 0x800, scoped, tag = 'input window, operand 4, single buffered']
    #allocation11 [shape = 'u8[131072]{0}', space=vmem, size = 0x20000, scoped, tag = 'input window, operand 5, single buffered']
    #allocation12 [shape = 's32[1]{0}', space=sflag, size = 0x4, scoped, tag = 'scoped memory for tpu_custom_call.1']
    #allocation13 [shape = 'u8[512]{0}', space=vmem, size = 0x400, scoped, tag = 'input window, operand 6, single buffered']
    #allocation14 [shape = 'u8[131072]{0}', space=vmem, size = 0x20000, scoped, tag = 'output window, operand 0, single buffered']
    %12 = vsyncpa [#allocation3], 0
    %13 = vsyncpa [#allocation6], 0
    %14 = vsyncpa [#allocation9], 0
    %15 = vsyncpa [#allocation12], 0
    %16 = vsyncpa [#allocation4], 0
    // Predicated region
    $region2: #{tpu_custom_call.1} parent=1 // pred_check
      _
    $region3: #{tpu_custom_call.1} parent=1 // pred_check_branch
      %18 = sbr.rel (0) target = $region5
    $region4: #{tpu_custom_call.1} parent=1 // pred_region
      %s20 = ssub.s32 14336, 14336
      %21 = vsyncadd [#allocation3], %s20
      %s22 = sshll.u32 [#allocation2], 4
      %s23 = int_to_ptr.vmem [resolvable:$true] %s22
      %28 = dma.hbm_to_vmem [thread:$0]  %s0, 14336, %s23, [#allocation3], 448, 448, 28
    $region5: #{tpu_custom_call.1} parent=1 // pred_fallthru
      _
    // Predicated region
    $region6: #{tpu_custom_call.1} parent=1 // pred_check
      _
    $region7: #{tpu_custom_call.1} parent=1 // pred_check_branch
      %30 = sbr.rel (0) target = $region9
    $region8: #{tpu_custom_call.1} parent=1 // pred_region
      %s32 = ssub.s32 57344, 57344
      %33 = vsyncadd [#allocation6], %s32
      %s34 = sshll.u32 [#allocation5], 4
      %s35 = int_to_ptr.vmem [resolvable:$true] %s34
      %40 = dma.hbm_to_vmem [thread:$0]  %s1, 57344, %s35, [#allocation6], 512, 512, 32
    $region9: #{tpu_custom_call.1} parent=1 // pred_fallthru
      _
    // Predicated region
    $region10: #{tpu_custom_call.1} parent=1 // pred_check
      _
    $region11: #{tpu_custom_call.1} parent=1 // pred_check_branch
      %42 = sbr.rel (0) target = $region13
    $region12: #{tpu_custom_call.1} parent=1 // pred_region
      %s44 = ssub.s32 128, 128
      %45 = vsyncadd [#allocation6], %s44
      %s47 = sshll.u32 [#allocation7], 4
      %s48 = int_to_ptr.vmem [resolvable:$true] %s47
      %50 = dma.hbm_to_vmem [thread:$0]  %s2, 128, %s48, [#allocation6]
    $region13: #{tpu_custom_call.1} parent=1 // pred_fallthru
      _
    // Predicated region
    $region14: #{tpu_custom_call.1} parent=1 // pred_check
      _
    $region15: #{tpu_custom_call.1} parent=1 // pred_check_branch
      %52 = sbr.rel (0) target = $region17
    $region16: #{tpu_custom_call.1} parent=1 // pred_region
      %s54 = ssub.s32 32768, 32768
      %55 = vsyncadd [#allocation9], %s54
      %s56 = sshll.u32 [#allocation8], 4
      %s57 = int_to_ptr.vmem [resolvable:$true] %s56
      %62 = dma.hbm_to_vmem [thread:$0]  %s3, 32768, %s57, [#allocation9], 256, 256, 16
    $region17: #{tpu_custom_call.1} parent=1 // pred_fallthru
      _
    // Predicated region
    $region18: #{tpu_custom_call.1} parent=1 // pred_check
      _
    $region19: #{tpu_custom_call.1} parent=1 // pred_check_branch
      %64 = sbr.rel (0) target = $region21
    $region20: #{tpu_custom_call.1} parent=1 // pred_region
      %s66 = ssub.s32 64, 64
      %67 = vsyncadd [#allocation9], %s66
      %s69 = sshll.u32 [#allocation10], 4
      %s70 = int_to_ptr.vmem [resolvable:$true] %s69
      %72 = dma.hbm_to_vmem [thread:$0]  %s4, 64, %s70, [#allocation9]
    $region21: #{tpu_custom_call.1} parent=1 // pred_fallthru
      _
    // Predicated region
    $region22: #{tpu_custom_call.1} parent=1 // pred_check
      _
    $region23: #{tpu_custom_call.1} parent=1 // pred_check_branch
      %74 = sbr.rel (0) target = $region25
    $region24: #{tpu_custom_call.1} parent=1 // pred_region
      %s76 = ssub.s32 4096, 4096
      %77 = vsyncadd [#allocation12], %s76
      %s78 = sshll.u32 [#allocation11], 4
      %s79 = int_to_ptr.vmem [resolvable:$true] %s78
      %84 = dma.hbm_to_vmem [thread:$0]  %s5, 4096, %s79, [#allocation12], 64, 64, 4
    $region25: #{tpu_custom_call.1} parent=1 // pred_fallthru
      _
    // Predicated region
    $region26: #{tpu_custom_call.1} parent=1 // pred_check
      _
    $region27: #{tpu_custom_call.1} parent=1 // pred_check_branch
      %86 = sbr.rel (0) target = $region29
    $region28: #{tpu_custom_call.1} parent=1 // pred_region
      %s88 = ssub.s32 16, 16
      %89 = vsyncadd [#allocation12], %s88
      %s91 = sshll.u32 [#allocation13], 4
      %s92 = int_to_ptr.vmem [resolvable:$true] %s91
      %94 = dma.hbm_to_vmem [thread:$0]  %s6, 16, %s92, [#allocation12]
    $region29: #{tpu_custom_call.1} parent=1 // pred_fallthru
      _
    // Predicated region
    $region30: #{tpu_custom_call.1} parent=1 // pred_check
      _
    $region31: #{tpu_custom_call.1} parent=1 // pred_check_branch
      %96 = sbr.rel (0) target = $region33
    $region32: #{tpu_custom_call.1} parent=1 // pred_region
      %97 = dma.done [#allocation3], 14336
    $region33: #{tpu_custom_call.1} parent=1 // pred_fallthru
      _
    // Predicated region
    $region34: #{tpu_custom_call.1} parent=1 // pred_check
      _
    $region35: #{tpu_custom_call.1} parent=1 // pred_check_branch
      %99 = sbr.rel (0) target = $region37
    $region36: #{tpu_custom_call.1} parent=1 // pred_region
      %100 = dma.done [#allocation6], 57344
    $region37: #{tpu_custom_call.1} parent=1 // pred_fallthru
      _
    // Predicated region
    $region38: #{tpu_custom_call.1} parent=1 // pred_check
      _
    $region39: #{tpu_custom_call.1} parent=1 // pred_check_branch
      %102 = sbr.rel (0) target = $region41
    $region40: #{tpu_custom_call.1} parent=1 // pred_region
      %103 = dma.done [#allocation6], 128
    $region41: #{tpu_custom_call.1} parent=1 // pred_fallthru
      _
    // Predicated region
    $region42: #{tpu_custom_call.1} parent=1 // pred_check
      _
    $region43: #{tpu_custom_call.1} parent=1 // pred_check_branch
      %105 = sbr.rel (0) target = $region45
    $region44: #{tpu_custom_call.1} parent=1 // pred_region
      %106 = dma.done [#allocation9], 32768
    $region45: #{tpu_custom_call.1} parent=1 // pred_fallthru
      _
    // Predicated region
    $region46: #{tpu_custom_call.1} parent=1 // pred_check
      _
    $region47: #{tpu_custom_call.1} parent=1 // pred_check_branch
      %108 = sbr.rel (0) target = $region49
    $region48: #{tpu_custom_call.1} parent=1 // pred_region
      %109 = dma.done [#allocation9], 64
    $region49: #{tpu_custom_call.1} parent=1 // pred_fallthru
      _
    // Predicated region
    $region50: #{tpu_custom_call.1} parent=1 // pred_check
      _
    $region51: #{tpu_custom_call.1} parent=1 // pred_check_branch
      %111 = sbr.rel (0) target = $region53
    $region52: #{tpu_custom_call.1} parent=1 // pred_region
      %112 = dma.done [#allocation12], 4096
    $region53: #{tpu_custom_call.1} parent=1 // pred_fallthru
      _
    // Predicated region
    $region54: #{tpu_custom_call.1} parent=1 // pred_check
      _
    $region55: #{tpu_custom_call.1} parent=1 // pred_check_branch
      %114 = sbr.rel (0) target = $region57
    $region56: #{tpu_custom_call.1} parent=1 // pred_region
      %115 = dma.done [#allocation12], 16
    $region57: #{tpu_custom_call.1} parent=1 // pred_fallthru
      _
    %v117 = vld [vmem:[#allocation2] sm:$0xff]
    %v118 = vld [vmem:[#allocation2 + $0x8] sm:$0xff]
    %v119 = vld [vmem:[#allocation2 + $0x10] sm:$0xff]
    %v120 = vld [vmem:[#allocation2 + $0x18] sm:$0xf]
    %v121 = vld [vmem:[#allocation2 + $0x1c] sm:$0xff]
    %v122 = vld [vmem:[#allocation2 + $0x24] sm:$0xff]
    %v123 = vld [vmem:[#allocation2 + $0x2c] sm:$0xff]
    %v124 = vld [vmem:[#allocation2 + $0x34] sm:$0xf]
    %v125 = vld [vmem:[#allocation2 + $0x38] sm:$0xff]
    %v126 = vld [vmem:[#allocation2 + $0x40] sm:$0xff]
    %v127 = vld [vmem:[#allocation2 + $0x48] sm:$0xff]
    %v128 = vld [vmem:[#allocation2 + $0x50] sm:$0xf]
    %v129 = vld [vmem:[#allocation2 + $0x54] sm:$0xff]
    %v130 = vld [vmem:[#allocation2 + $0x5c] sm:$0xff]
    %v131 = vld [vmem:[#allocation2 + $0x64] sm:$0xff]
    %v132 = vld [vmem:[#allocation2 + $0x6c] sm:$0xf]
    %v133 = vld [vmem:[#allocation2 + $0x70] sm:$0xff]
    %v134 = vld [vmem:[#allocation2 + $0x78] sm:$0xff]
    %v135 = vld [vmem:[#allocation2 + $0x80] sm:$0xff]
    %v136 = vld [vmem:[#allocation2 + $0x88] sm:$0xf]
    %v137 = vld [vmem:[#allocation2 + $0x8c] sm:$0xff]
    %v138 = vld [vmem:[#allocation2 + $0x94] sm:$0xff]
    %v139 = vld [vmem:[#allocation2 + $0x9c] sm:$0xff]
    %v140 = vld [vmem:[#allocation2 + $0xa4] sm:$0xf]
    %v141 = vld [vmem:[#allocation2 + $0xa8] sm:$0xff]
    %v142 = vld [vmem:[#allocation2 + $0xb0] sm:$0xff]
    %v143 = vld [vmem:[#allocation2 + $0xb8] sm:$0xff]
    %v144 = vld [vmem:[#allocation2 + $0xc0] sm:$0xf]
    %v145 = vld [vmem:[#allocation2 + $0xc4] sm:$0xff]
    %v146 = vld [vmem:[#allocation2 + $0xcc] sm:$0xff]
    %v147 = vld [vmem:[#allocation2 + $0xd4] sm:$0xff]
    %v148 = vld [vmem:[#allocation2 + $0xdc] sm:$0xf]
    %v149 = vld [vmem:[#allocation2 + $0xe0] sm:$0xff]
    %v150 = vld [vmem:[#allocation2 + $0xe8] sm:$0xff]
    %v151 = vld [vmem:[#allocation2 + $0xf0] sm:$0xff]
    %v152 = vld [vmem:[#allocation2 + $0xf8] sm:$0xf]
    %v153 = vld [vmem:[#allocation2 + $0xfc] sm:$0xff]
    %v154 = vld [vmem:[#allocation2 + $0x104] sm:$0xff]
    %v155 = vld [vmem:[#allocation2 + $0x10c] sm:$0xff]
    %v156 = vld [vmem:[#allocation2 + $0x114] sm:$0xf]
    %v157 = vld [vmem:[#allocation2 + $0x118] sm:$0xff]
    %v158 = vld [vmem:[#allocation2 + $0x120] sm:$0xff]
    %v159 = vld [vmem:[#allocation2 + $0x128] sm:$0xff]
    %v160 = vld [vmem:[#allocation2 + $0x130] sm:$0xf]
    %v161 = vld [vmem:[#allocation2 + $0x134] sm:$0xff]
    %v162 = vld [vmem:[#allocation2 + $0x13c] sm:$0xff]
    %v163 = vld [vmem:[#allocation2 + $0x144] sm:$0xff]
    %v164 = vld [vmem:[#allocation2 + $0x14c] sm:$0xf]
    %v165 = vld [vmem:[#allocation2 + $0x150] sm:$0xff]
    %v166 = vld [vmem:[#allocation2 + $0x158] sm:$0xff]
    %v167 = vld [vmem:[#allocation2 + $0x160] sm:$0xff]
    %v168 = vld [vmem:[#allocation2 + $0x168] sm:$0xf]
    %v169 = vld [vmem:[#allocation2 + $0x16c] sm:$0xff]
    %v170 = vld [vmem:[#allocation2 + $0x174] sm:$0xff]
    %v171 = vld [vmem:[#allocation2 + $0x17c] sm:$0xff]
    %v172 = vld [vmem:[#allocation2 + $0x184] sm:$0xf]
    %v173 = vld [vmem:[#allocation2 + $0x188] sm:$0xff]
    %v174 = vld [vmem:[#allocation2 + $0x190] sm:$0xff]
    %v175 = vld [vmem:[#allocation2 + $0x198] sm:$0xff]
    %v176 = vld [vmem:[#allocation2 + $0x1a0] sm:$0xf]
    %v177 = vld [vmem:[#allocation2 + $0x1a4] sm:$0xff]
    %v178 = vld [vmem:[#allocation2 + $0x1ac] sm:$0xff]
    %v179 = vld [vmem:[#allocation2 + $0x1b4] sm:$0xff]
    %v180 = vld [vmem:[#allocation2 + $0x1bc] sm:$0xf]
    %v181 = vld [vmem:[#allocation2 + $0x1c0] sm:$0xff]
    %v182 = vld [vmem:[#allocation2 + $0x1c8] sm:$0xff]
    %v183 = vld [vmem:[#allocation2 + $0x1d0] sm:$0xff]
    %v184 = vld [vmem:[#allocation2 + $0x1d8] sm:$0xf]
    %v185 = vld [vmem:[#allocation2 + $0x1dc] sm:$0xff]
    %v186 = vld [vmem:[#allocation2 + $0x1e4] sm:$0xff]
    %v187 = vld [vmem:[#allocation2 + $0x1ec] sm:$0xff]
    %v188 = vld [vmem:[#allocation2 + $0x1f4] sm:$0xf]
    %v189 = vld [vmem:[#allocation2 + $0x1f8] sm:$0xff]
    %v190 = vld [vmem:[#allocation2 + $0x200] sm:$0xff]
    %v191 = vld [vmem:[#allocation2 + $0x208] sm:$0xff]
    %v192 = vld [vmem:[#allocation2 + $0x210] sm:$0xf]
    %v193 = vld [vmem:[#allocation2 + $0x214] sm:$0xff]
    %v194 = vld [vmem:[#allocation2 + $0x21c] sm:$0xff]
    %v195 = vld [vmem:[#allocation2 + $0x224] sm:$0xff]
    %v196 = vld [vmem:[#allocation2 + $0x22c] sm:$0xf]
    %v197 = vld [vmem:[#allocation2 + $0x230] sm:$0xff]
    %v198 = vld [vmem:[#allocation2 + $0x238] sm:$0xff]
    %v199 = vld [vmem:[#allocation2 + $0x240] sm:$0xff]
    %v200 = vld [vmem:[#allocation2 + $0x248] sm:$0xf]
    %v201 = vld [vmem:[#allocation2 + $0x24c] sm:$0xff]
    %v202 = vld [vmem:[#allocation2 + $0x254] sm:$0xff]
    %v203 = vld [vmem:[#allocation2 + $0x25c] sm:$0xff]
    %v204 = vld [vmem:[#allocation2 + $0x264] sm:$0xf]
    %v205 = vld [vmem:[#allocation2 + $0x268] sm:$0xff]
    %v206 = vld [vmem:[#allocation2 + $0x270] sm:$0xff]
    %v207 = vld [vmem:[#allocation2 + $0x278] sm:$0xff]
    %v208 = vld [vmem:[#allocation2 + $0x280] sm:$0xf]
    %v209 = vld [vmem:[#allocation2 + $0x284] sm:$0xff]
    %v210 = vld [vmem:[#allocation2 + $0x28c] sm:$0xff]
    %v211 = vld [vmem:[#allocation2 + $0x294] sm:$0xff]
    %v212 = vld [vmem:[#allocation2 + $0x29c] sm:$0xf]
    %v213 = vld [vmem:[#allocation2 + $0x2a0] sm:$0xff]
    %v214 = vld [vmem:[#allocation2 + $0x2a8] sm:$0xff]
    %v215 = vld [vmem:[#allocation2 + $0x2b0] sm:$0xff]
    %v216 = vld [vmem:[#allocation2 + $0x2b8] sm:$0xf]
    %v217 = vld [vmem:[#allocation2 + $0x2bc] sm:$0xff]
    %v218 = vld [vmem:[#allocation2 + $0x2c4] sm:$0xff]
    %v219 = vld [vmem:[#allocation2 + $0x2cc] sm:$0xff]
    %v220 = vld [vmem:[#allocation2 + $0x2d4] sm:$0xf]
    %v221 = vld [vmem:[#allocation2 + $0x2d8] sm:$0xff]
    %v222 = vld [vmem:[#allocation2 + $0x2e0] sm:$0xff]
    %v223 = vld [vmem:[#allocation2 + $0x2e8] sm:$0xff]
    %v224 = vld [vmem:[#allocation2 + $0x2f0] sm:$0xf]
    %v225 = vld [vmem:[#allocation2 + $0x2f4] sm:$0xff]
    %v226 = vld [vmem:[#allocation2 + $0x2fc] sm:$0xff]
    %v227 = vld [vmem:[#allocation2 + $0x304] sm:$0xff]
    %v228 = vld [vmem:[#allocation2 + $0x30c] sm:$0xf]
    %v229 = vld [vmem:[#allocation2 + $0x310] sm:$0xff]
    %v230 = vld [vmem:[#allocation2 + $0x318] sm:$0xff]
    %v231 = vld [vmem:[#allocation2 + $0x320] sm:$0xff]
    %v232 = vld [vmem:[#allocation2 + $0x328] sm:$0xf]
    %v233 = vld [vmem:[#allocation2 + $0x32c] sm:$0xff]
    %v234 = vld [vmem:[#allocation2 + $0x334] sm:$0xff]
    %v235 = vld [vmem:[#allocation2 + $0x33c] sm:$0xff]
    %v236 = vld [vmem:[#allocation2 + $0x344] sm:$0xf]
    %v237 = vld [vmem:[#allocation2 + $0x348] sm:$0xff]
    %v238 = vld [vmem:[#allocation2 + $0x350] sm:$0xff]
    %v239 = vld [vmem:[#allocation2 + $0x358] sm:$0xff]
    %v240 = vld [vmem:[#allocation2 + $0x360] sm:$0xf]
    %v241 = vld [vmem:[#allocation2 + $0x364] sm:$0xff]
    %v242 = vld [vmem:[#allocation2 + $0x36c] sm:$0xff]
    %v243 = vld [vmem:[#allocation2 + $0x374] sm:$0xff]
    %v244 = vld [vmem:[#allocation2 + $0x37c] sm:$0xf]
    %v245 = vld [vmem:[#allocation5] sm:$0xff]
    %v246 = vld [vmem:[#allocation5 + $0x8] sm:$0xff]
    %v247 = vld [vmem:[#allocation5 + $0x10] sm:$0xff]
    %v248 = vld [vmem:[#allocation5 + $0x18] sm:$0xff]
    %v249 = vld [vmem:[#allocation5 + $0x20] sm:$0xff]
    %v250 = vld [vmem:[#allocation5 + $0x28] sm:$0xff]
    %v251 = vld [vmem:[#allocation5 + $0x30] sm:$0xff]
    %v252 = vld [vmem:[#allocation5 + $0x38] sm:$0xff]
    %v253 = vld [vmem:[#allocation5 + $0x40] sm:$0xff]
    %v254 = vld [vmem:[#allocation5 + $0x48] sm:$0xff]
    %v255 = vld [vmem:[#allocation5 + $0x50] sm:$0xff]
    %v256 = vld [vmem:[#allocation5 + $0x58] sm:$0xff]
    %v257 = vld [vmem:[#allocation5 + $0x60] sm:$0xff]
    %v258 = vld [vmem:[#allocation5 + $0x68] sm:$0xff]
    %v259 = vld [vmem:[#allocation5 + $0x70] sm:$0xff]
    %v260 = vld [vmem:[#allocation5 + $0x78] sm:$0xff]
    %v261 = vld [vmem:[#allocation5 + $0x80] sm:$0xff]
    %v262 = vld [vmem:[#allocation5 + $0x88] sm:$0xff]
    %v263 = vld [vmem:[#allocation5 + $0x90] sm:$0xff]
    %v264 = vld [vmem:[#allocation5 + $0x98] sm:$0xff]
    %v265 = vld [vmem:[#allocation5 + $0xa0] sm:$0xff]
    %v266 = vld [vmem:[#allocation5 + $0xa8] sm:$0xff]
    %v267 = vld [vmem:[#allocation5 + $0xb0] sm:$0xff]
    %v268 = vld [vmem:[#allocation5 + $0xb8] sm:$0xff]
    %v269 = vld [vmem:[#allocation5 + $0xc0] sm:$0xff]
    %v270 = vld [vmem:[#allocation5 + $0xc8] sm:$0xff]
    %v271 = vld [vmem:[#allocation5 + $0xd0] sm:$0xff]
    %v272 = vld [vmem:[#allocation5 + $0xd8] sm:$0xff]
    %v273 = vld [vmem:[#allocation5 + $0xe0] sm:$0xff]
    %v274 = vld [vmem:[#allocation5 + $0xe8] sm:$0xff]
    %v275 = vld [vmem:[#allocation5 + $0xf0] sm:$0xff]
    %v276 = vld [vmem:[#allocation5 + $0xf8] sm:$0xff]
    %v277 = vld [vmem:[#allocation5 + $0x100] sm:$0xff]
    %v278 = vld [vmem:[#allocation5 + $0x108] sm:$0xff]
    %v279 = vld [vmem:[#allocation5 + $0x110] sm:$0xff]
    %v280 = vld [vmem:[#allocation5 + $0x118] sm:$0xff]
    %v281 = vld [vmem:[#allocation5 + $0x120] sm:$0xff]
    %v282 = vld [vmem:[#allocation5 + $0x128] sm:$0xff]
    %v283 = vld [vmem:[#allocation5 + $0x130] sm:$0xff]
    %v284 = vld [vmem:[#allocation5 + $0x138] sm:$0xff]
    %v285 = vld [vmem:[#allocation5 + $0x140] sm:$0xff]
    %v286 = vld [vmem:[#allocation5 + $0x148] sm:$0xff]
    %v287 = vld [vmem:[#allocation5 + $0x150] sm:$0xff]
    %v288 = vld [vmem:[#allocation5 + $0x158] sm:$0xff]
    %v289 = vld [vmem:[#allocation5 + $0x160] sm:$0xff]
    %v290 = vld [vmem:[#allocation5 + $0x168] sm:$0xff]
    %v291 = vld [vmem:[#allocation5 + $0x170] sm:$0xff]
    %v292 = vld [vmem:[#allocation5 + $0x178] sm:$0xff]
    %v293 = vld [vmem:[#allocation5 + $0x180] sm:$0xff]
    %v294 = vld [vmem:[#allocation5 + $0x188] sm:$0xff]
    %v295 = vld [vmem:[#allocation5 + $0x190] sm:$0xff]
    %v296 = vld [vmem:[#allocation5 + $0x198] sm:$0xff]
    %v297 = vld [vmem:[#allocation5 + $0x1a0] sm:$0xff]
    %v298 = vld [vmem:[#allocation5 + $0x1a8] sm:$0xff]
    %v299 = vld [vmem:[#allocation5 + $0x1b0] sm:$0xff]
    %v300 = vld [vmem:[#allocation5 + $0x1b8] sm:$0xff]
    %v301 = vld [vmem:[#allocation5 + $0x1c0] sm:$0xff]
    %v302 = vld [vmem:[#allocation5 + $0x1c8] sm:$0xff]
    %v303 = vld [vmem:[#allocation5 + $0x1d0] sm:$0xff]
    %v304 = vld [vmem:[#allocation5 + $0x1d8] sm:$0xff]
    %v305 = vld [vmem:[#allocation5 + $0x1e0] sm:$0xff]
    %v306 = vld [vmem:[#allocation5 + $0x1e8] sm:$0xff]
    %v307 = vld [vmem:[#allocation5 + $0x1f0] sm:$0xff]
    %v308 = vld [vmem:[#allocation5 + $0x1f8] sm:$0xff]
    %v309 = vld [vmem:[#allocation5 + $0x200] sm:$0xff]
    %v310 = vld [vmem:[#allocation5 + $0x208] sm:$0xff]
    %v311 = vld [vmem:[#allocation5 + $0x210] sm:$0xff]
    %v312 = vld [vmem:[#allocation5 + $0x218] sm:$0xff]
    %v313 = vld [vmem:[#allocation5 + $0x220] sm:$0xff]
    %v314 = vld [vmem:[#allocation5 + $0x228] sm:$0xff]
    %v315 = vld [vmem:[#allocation5 + $0x230] sm:$0xff]
    %v316 = vld [vmem:[#allocation5 + $0x238] sm:$0xff]
    %v317 = vld [vmem:[#allocation5 + $0x240] sm:$0xff]
    %v318 = vld [vmem:[#allocation5 + $0x248] sm:$0xff]
    %v319 = vld [vmem:[#allocation5 + $0x250] sm:$0xff]
    %v320 = vld [vmem:[#allocation5 + $0x258] sm:$0xff]
    %v321 = vld [vmem:[#allocation5 + $0x260] sm:$0xff]
    %v322 = vld [vmem:[#allocation5 + $0x268] sm:$0xff]
    %v323 = vld [vmem:[#allocation5 + $0x270] sm:$0xff]
    %v324 = vld [vmem:[#allocation5 + $0x278] sm:$0xff]
    %v325 = vld [vmem:[#allocation5 + $0x280] sm:$0xff]
    %v326 = vld [vmem:[#allocation5 + $0x288] sm:$0xff]
    %v327 = vld [vmem:[#allocation5 + $0x290] sm:$0xff]
    %v328 = vld [vmem:[#allocation5 + $0x298] sm:$0xff]
    %v329 = vld [vmem:[#allocation5 + $0x2a0] sm:$0xff]
    %v330 = vld [vmem:[#allocation5 + $0x2a8] sm:$0xff]
    %v331 = vld [vmem:[#allocation5 + $0x2b0] sm:$0xff]
    %v332 = vld [vmem:[#allocation5 + $0x2b8] sm:$0xff]
    %v333 = vld [vmem:[#allocation5 + $0x2c0] sm:$0xff]
    %v334 = vld [vmem:[#allocation5 + $0x2c8] sm:$0xff]
    %v335 = vld [vmem:[#allocation5 + $0x2d0] sm:$0xff]
    %v336 = vld [vmem:[#allocation5 + $0x2d8] sm:$0xff]
    %v337 = vld [vmem:[#allocation5 + $0x2e0] sm:$0xff]
    %v338 = vld [vmem:[#allocation5 + $0x2e8] sm:$0xff]
    %v339 = vld [vmem:[#allocation5 + $0x2f0] sm:$0xff]
    %v340 = vld [vmem:[#allocation5 + $0x2f8] sm:$0xff]
    %v341 = vld [vmem:[#allocation5 + $0x300] sm:$0xff]
    %v342 = vld [vmem:[#allocation5 + $0x308] sm:$0xff]
    %v343 = vld [vmem:[#allocation5 + $0x310] sm:$0xff]
    %v344 = vld [vmem:[#allocation5 + $0x318] sm:$0xff]
    %v345 = vld [vmem:[#allocation5 + $0x320] sm:$0xff]
    %v346 = vld [vmem:[#allocation5 + $0x328] sm:$0xff]
    %v347 = vld [vmem:[#allocation5 + $0x330] sm:$0xff]
    %v348 = vld [vmem:[#allocation5 + $0x338] sm:$0xff]
    %v349 = vld [vmem:[#allocation5 + $0x340] sm:$0xff]
    %v350 = vld [vmem:[#allocation5 + $0x348] sm:$0xff]
    %v351 = vld [vmem:[#allocation5 + $0x350] sm:$0xff]
    %v352 = vld [vmem:[#allocation5 + $0x358] sm:$0xff]
    %v353 = vld [vmem:[#allocation5 + $0x360] sm:$0xff]
    %v354 = vld [vmem:[#allocation5 + $0x368] sm:$0xff]
    %v355 = vld [vmem:[#allocation5 + $0x370] sm:$0xff]
    %v356 = vld [vmem:[#allocation5 + $0x378] sm:$0xff]
    %v357 = vld [vmem:[#allocation5 + $0x380] sm:$0xff]
    %v358 = vld [vmem:[#allocation5 + $0x388] sm:$0xff]
    %v359 = vld [vmem:[#allocation5 + $0x390] sm:$0xff]
    %v360 = vld [vmem:[#allocation5 + $0x398] sm:$0xff]
    %v361 = vld [vmem:[#allocation5 + $0x3a0] sm:$0xff]
    %v362 = vld [vmem:[#allocation5 + $0x3a8] sm:$0xff]
    %v363 = vld [vmem:[#allocation5 + $0x3b0] sm:$0xff]
    %v364 = vld [vmem:[#allocation5 + $0x3b8] sm:$0xff]
    %v365 = vld [vmem:[#allocation5 + $0x3c0] sm:$0xff]
    %v366 = vld [vmem:[#allocation5 + $0x3c8] sm:$0xff]
    %v367 = vld [vmem:[#allocation5 + $0x3d0] sm:$0xff]
    %v368 = vld [vmem:[#allocation5 + $0x3d8] sm:$0xff]
    %v369 = vld [vmem:[#allocation5 + $0x3e0] sm:$0xff]
    %v370 = vld [vmem:[#allocation5 + $0x3e8] sm:$0xff]
    %v371 = vld [vmem:[#allocation5 + $0x3f0] sm:$0xff]
    %v372 = vld [vmem:[#allocation5 + $0x3f8] sm:$0xff]
    %v373 = vld [vmem:[#allocation5 + $0x400] sm:$0xff]
    %v374 = vld [vmem:[#allocation5 + $0x408] sm:$0xff]
    %v375 = vld [vmem:[#allocation5 + $0x410] sm:$0xff]
    %v376 = vld [vmem:[#allocation5 + $0x418] sm:$0xff]
    %v377 = vld [vmem:[#allocation5 + $0x420] sm:$0xff]
    %v378 = vld [vmem:[#allocation5 + $0x428] sm:$0xff]
    %v379 = vld [vmem:[#allocation5 + $0x430] sm:$0xff]
    %v380 = vld [vmem:[#allocation5 + $0x438] sm:$0xff]
    %v381 = vld [vmem:[#allocation5 + $0x440] sm:$0xff]
    %v382 = vld [vmem:[#allocation5 + $0x448] sm:$0xff]
    %v383 = vld [vmem:[#allocation5 + $0x450] sm:$0xff]
    %v384 = vld [vmem:[#allocation5 + $0x458] sm:$0xff]
    %v385 = vld [vmem:[#allocation5 + $0x460] sm:$0xff]
    %v386 = vld [vmem:[#allocation5 + $0x468] sm:$0xff]
    %v387 = vld [vmem:[#allocation5 + $0x470] sm:$0xff]
    %v388 = vld [vmem:[#allocation5 + $0x478] sm:$0xff]
    %v389 = vld [vmem:[#allocation5 + $0x480] sm:$0xff]
    %v390 = vld [vmem:[#allocation5 + $0x488] sm:$0xff]
    %v391 = vld [vmem:[#allocation5 + $0x490] sm:$0xff]
    %v392 = vld [vmem:[#allocation5 + $0x498] sm:$0xff]
    %v393 = vld [vmem:[#allocation5 + $0x4a0] sm:$0xff]
    %v394 = vld [vmem:[#allocation5 + $0x4a8] sm:$0xff]
    %v395 = vld [vmem:[#allocation5 + $0x4b0] sm:$0xff]
    %v396 = vld [vmem:[#allocation5 + $0x4b8] sm:$0xff]
    %v397 = vld [vmem:[#allocation5 + $0x4c0] sm:$0xff]
    %v398 = vld [vmem:[#allocation5 + $0x4c8] sm:$0xff]
    %v399 = vld [vmem:[#allocation5 + $0x4d0] sm:$0xff]
    %v400 = vld [vmem:[#allocation5 + $0x4d8] sm:$0xff]
    %v401 = vld [vmem:[#allocation5 + $0x4e0] sm:$0xff]
    %v402 = vld [vmem:[#allocation5 + $0x4e8] sm:$0xff]
    %v403 = vld [vmem:[#allocation5 + $0x4f0] sm:$0xff]
    %v404 = vld [vmem:[#allocation5 + $0x4f8] sm:$0xff]
    %v405 = vld [vmem:[#allocation5 + $0x500] sm:$0xff]
    %v406 = vld [vmem:[#allocation5 + $0x508] sm:$0xff]
    %v407 = vld [vmem:[#allocation5 + $0x510] sm:$0xff]
    %v408 = vld [vmem:[#allocation5 + $0x518] sm:$0xff]
    %v409 = vld [vmem:[#allocation5 + $0x520] sm:$0xff]
    %v410 = vld [vmem:[#allocation5 + $0x528] sm:$0xff]
    %v411 = vld [vmem:[#allocation5 + $0x530] sm:$0xff]
    %v412 = vld [vmem:[#allocation5 + $0x538] sm:$0xff]
    %v413 = vld [vmem:[#allocation5 + $0x540] sm:$0xff]
    %v414 = vld [vmem:[#allocation5 + $0x548] sm:$0xff]
    %v415 = vld [vmem:[#allocation5 + $0x550] sm:$0xff]
    %v416 = vld [vmem:[#allocation5 + $0x558] sm:$0xff]
    %v417 = vld [vmem:[#allocation5 + $0x560] sm:$0xff]
    %v418 = vld [vmem:[#allocation5 + $0x568] sm:$0xff]
    %v419 = vld [vmem:[#allocation5 + $0x570] sm:$0xff]
    %v420 = vld [vmem:[#allocation5 + $0x578] sm:$0xff]
    %v421 = vld [vmem:[#allocation5 + $0x580] sm:$0xff]
    %v422 = vld [vmem:[#allocation5 + $0x588] sm:$0xff]
    %v423 = vld [vmem:[#allocation5 + $0x590] sm:$0xff]
    %v424 = vld [vmem:[#allocation5 + $0x598] sm:$0xff]
    %v425 = vld [vmem:[#allocation5 + $0x5a0] sm:$0xff]
    %v426 = vld [vmem:[#allocation5 + $0x5a8] sm:$0xff]
    %v427 = vld [vmem:[#allocation5 + $0x5b0] sm:$0xff]
    %v428 = vld [vmem:[#allocation5 + $0x5b8] sm:$0xff]
    %v429 = vld [vmem:[#allocation5 + $0x5c0] sm:$0xff]
    %v430 = vld [vmem:[#allocation5 + $0x5c8] sm:$0xff]
    %v431 = vld [vmem:[#allocation5 + $0x5d0] sm:$0xff]
    %v432 = vld [vmem:[#allocation5 + $0x5d8] sm:$0xff]
    %v433 = vld [vmem:[#allocation5 + $0x5e0] sm:$0xff]
    %v434 = vld [vmem:[#allocation5 + $0x5e8] sm:$0xff]
    %v435 = vld [vmem:[#allocation5 + $0x5f0] sm:$0xff]
    %v436 = vld [vmem:[#allocation5 + $0x5f8] sm:$0xff]
    %v437 = vld [vmem:[#allocation5 + $0x600] sm:$0xff]
    %v438 = vld [vmem:[#allocation5 + $0x608] sm:$0xff]
    %v439 = vld [vmem:[#allocation5 + $0x610] sm:$0xff]
    %v440 = vld [vmem:[#allocation5 + $0x618] sm:$0xff]
    %v441 = vld [vmem:[#allocation5 + $0x620] sm:$0xff]
    %v442 = vld [vmem:[#allocation5 + $0x628] sm:$0xff]
    %v443 = vld [vmem:[#allocation5 + $0x630] sm:$0xff]
    %v444 = vld [vmem:[#allocation5 + $0x638] sm:$0xff]
    %v445 = vld [vmem:[#allocation5 + $0x640] sm:$0xff]
    %v446 = vld [vmem:[#allocation5 + $0x648] sm:$0xff]
    %v447 = vld [vmem:[#allocation5 + $0x650] sm:$0xff]
    %v448 = vld [vmem:[#allocation5 + $0x658] sm:$0xff]
    %v449 = vld [vmem:[#allocation5 + $0x660] sm:$0xff]
    %v450 = vld [vmem:[#allocation5 + $0x668] sm:$0xff]
    %v451 = vld [vmem:[#allocation5 + $0x670] sm:$0xff]
    %v452 = vld [vmem:[#allocation5 + $0x678] sm:$0xff]
    %v453 = vld [vmem:[#allocation5 + $0x680] sm:$0xff]
    %v454 = vld [vmem:[#allocation5 + $0x688] sm:$0xff]
    %v455 = vld [vmem:[#allocation5 + $0x690] sm:$0xff]
    %v456 = vld [vmem:[#allocation5 + $0x698] sm:$0xff]
    %v457 = vld [vmem:[#allocation5 + $0x6a0] sm:$0xff]
    %v458 = vld [vmem:[#allocation5 + $0x6a8] sm:$0xff]
    %v459 = vld [vmem:[#allocation5 + $0x6b0] sm:$0xff]
    %v460 = vld [vmem:[#allocation5 + $0x6b8] sm:$0xff]
    %v461 = vld [vmem:[#allocation5 + $0x6c0] sm:$0xff]
    %v462 = vld [vmem:[#allocation5 + $0x6c8] sm:$0xff]
    %v463 = vld [vmem:[#allocation5 + $0x6d0] sm:$0xff]
    %v464 = vld [vmem:[#allocation5 + $0x6d8] sm:$0xff]
    %v465 = vld [vmem:[#allocation5 + $0x6e0] sm:$0xff]
    %v466 = vld [vmem:[#allocation5 + $0x6e8] sm:$0xff]
    %v467 = vld [vmem:[#allocation5 + $0x6f0] sm:$0xff]
    %v468 = vld [vmem:[#allocation5 + $0x6f8] sm:$0xff]
    %v469 = vld [vmem:[#allocation5 + $0x700] sm:$0xff]
    %v470 = vld [vmem:[#allocation5 + $0x708] sm:$0xff]
    %v471 = vld [vmem:[#allocation5 + $0x710] sm:$0xff]
    %v472 = vld [vmem:[#allocation5 + $0x718] sm:$0xff]
    %v473 = vld [vmem:[#allocation5 + $0x720] sm:$0xff]
    %v474 = vld [vmem:[#allocation5 + $0x728] sm:$0xff]
    %v475 = vld [vmem:[#allocation5 + $0x730] sm:$0xff]
    %v476 = vld [vmem:[#allocation5 + $0x738] sm:$0xff]
    %v477 = vld [vmem:[#allocation5 + $0x740] sm:$0xff]
    %v478 = vld [vmem:[#allocation5 + $0x748] sm:$0xff]
    %v479 = vld [vmem:[#allocation5 + $0x750] sm:$0xff]
    %v480 = vld [vmem:[#allocation5 + $0x758] sm:$0xff]
    %v481 = vld [vmem:[#allocation5 + $0x760] sm:$0xff]
    %v482 = vld [vmem:[#allocation5 + $0x768] sm:$0xff]
    %v483 = vld [vmem:[#allocation5 + $0x770] sm:$0xff]
    %v484 = vld [vmem:[#allocation5 + $0x778] sm:$0xff]
    %v485 = vld [vmem:[#allocation5 + $0x780] sm:$0xff]
    %v486 = vld [vmem:[#allocation5 + $0x788] sm:$0xff]
    %v487 = vld [vmem:[#allocation5 + $0x790] sm:$0xff]
    %v488 = vld [vmem:[#allocation5 + $0x798] sm:$0xff]
    %v489 = vld [vmem:[#allocation5 + $0x7a0] sm:$0xff]
    %v490 = vld [vmem:[#allocation5 + $0x7a8] sm:$0xff]
    %v491 = vld [vmem:[#allocation5 + $0x7b0] sm:$0xff]
    %v492 = vld [vmem:[#allocation5 + $0x7b8] sm:$0xff]
    %v493 = vld [vmem:[#allocation5 + $0x7c0] sm:$0xff]
    %v494 = vld [vmem:[#allocation5 + $0x7c8] sm:$0xff]
    %v495 = vld [vmem:[#allocation5 + $0x7d0] sm:$0xff]
    %v496 = vld [vmem:[#allocation5 + $0x7d8] sm:$0xff]
    %v497 = vld [vmem:[#allocation5 + $0x7e0] sm:$0xff]
    %v498 = vld [vmem:[#allocation5 + $0x7e8] sm:$0xff]
    %v499 = vld [vmem:[#allocation5 + $0x7f0] sm:$0xff]
    %v500 = vld [vmem:[#allocation5 + $0x7f8] sm:$0xff]
    %v501 = vld [vmem:[#allocation5 + $0x800] sm:$0xff]
    %v502 = vld [vmem:[#allocation5 + $0x808] sm:$0xff]
    %v503 = vld [vmem:[#allocation5 + $0x810] sm:$0xff]
    %v504 = vld [vmem:[#allocation5 + $0x818] sm:$0xff]
    %v505 = vld [vmem:[#allocation5 + $0x820] sm:$0xff]
    %v506 = vld [vmem:[#allocation5 + $0x828] sm:$0xff]
    %v507 = vld [vmem:[#allocation5 + $0x830] sm:$0xff]
    %v508 = vld [vmem:[#allocation5 + $0x838] sm:$0xff]
    %v509 = vld [vmem:[#allocation5 + $0x840] sm:$0xff]
    %v510 = vld [vmem:[#allocation5 + $0x848] sm:$0xff]
    %v511 = vld [vmem:[#allocation5 + $0x850] sm:$0xff]
    %v512 = vld [vmem:[#allocation5 + $0x858] sm:$0xff]
    %v513 = vld [vmem:[#allocation5 + $0x860] sm:$0xff]
    %v514 = vld [vmem:[#allocation5 + $0x868] sm:$0xff]
    %v515 = vld [vmem:[#allocation5 + $0x870] sm:$0xff]
    %v516 = vld [vmem:[#allocation5 + $0x878] sm:$0xff]
    %v517 = vld [vmem:[#allocation5 + $0x880] sm:$0xff]
    %v518 = vld [vmem:[#allocation5 + $0x888] sm:$0xff]
    %v519 = vld [vmem:[#allocation5 + $0x890] sm:$0xff]
    %v520 = vld [vmem:[#allocation5 + $0x898] sm:$0xff]
    %v521 = vld [vmem:[#allocation5 + $0x8a0] sm:$0xff]
    %v522 = vld [vmem:[#allocation5 + $0x8a8] sm:$0xff]
    %v523 = vld [vmem:[#allocation5 + $0x8b0] sm:$0xff]
    %v524 = vld [vmem:[#allocation5 + $0x8b8] sm:$0xff]
    %v525 = vld [vmem:[#allocation5 + $0x8c0] sm:$0xff]
    %v526 = vld [vmem:[#allocation5 + $0x8c8] sm:$0xff]
    %v527 = vld [vmem:[#allocation5 + $0x8d0] sm:$0xff]
    %v528 = vld [vmem:[#allocation5 + $0x8d8] sm:$0xff]
    %v529 = vld [vmem:[#allocation5 + $0x8e0] sm:$0xff]
    %v530 = vld [vmem:[#allocation5 + $0x8e8] sm:$0xff]
    %v531 = vld [vmem:[#allocation5 + $0x8f0] sm:$0xff]
    %v532 = vld [vmem:[#allocation5 + $0x8f8] sm:$0xff]
    %v533 = vld [vmem:[#allocation5 + $0x900] sm:$0xff]
    %v534 = vld [vmem:[#allocation5 + $0x908] sm:$0xff]
    %v535 = vld [vmem:[#allocation5 + $0x910] sm:$0xff]
    %v536 = vld [vmem:[#allocation5 + $0x918] sm:$0xff]
    %v537 = vld [vmem:[#allocation5 + $0x920] sm:$0xff]
    %v538 = vld [vmem:[#allocation5 + $0x928] sm:$0xff]
    %v539 = vld [vmem:[#allocation5 + $0x930] sm:$0xff]
    %v540 = vld [vmem:[#allocation5 + $0x938] sm:$0xff]
    %v541 = vld [vmem:[#allocation5 + $0x940] sm:$0xff]
    %v542 = vld [vmem:[#allocation5 + $0x948] sm:$0xff]
    %v543 = vld [vmem:[#allocation5 + $0x950] sm:$0xff]
    %v544 = vld [vmem:[#allocation5 + $0x958] sm:$0xff]
    %v545 = vld [vmem:[#allocation5 + $0x960] sm:$0xff]
    %v546 = vld [vmem:[#allocation5 + $0x968] sm:$0xff]
    %v547 = vld [vmem:[#allocation5 + $0x970] sm:$0xff]
    %v548 = vld [vmem:[#allocation5 + $0x978] sm:$0xff]
    %v549 = vld [vmem:[#allocation5 + $0x980] sm:$0xff]
    %v550 = vld [vmem:[#allocation5 + $0x988] sm:$0xff]
    %v551 = vld [vmem:[#allocation5 + $0x990] sm:$0xff]
    %v552 = vld [vmem:[#allocation5 + $0x998] sm:$0xff]
    %v553 = vld [vmem:[#allocation5 + $0x9a0] sm:$0xff]
    %v554 = vld [vmem:[#allocation5 + $0x9a8] sm:$0xff]
    %v555 = vld [vmem:[#allocation5 + $0x9b0] sm:$0xff]
    %v556 = vld [vmem:[#allocation5 + $0x9b8] sm:$0xff]
    %v557 = vld [vmem:[#allocation5 + $0x9c0] sm:$0xff]
    %v558 = vld [vmem:[#allocation5 + $0x9c8] sm:$0xff]
    %v559 = vld [vmem:[#allocation5 + $0x9d0] sm:$0xff]
    %v560 = vld [vmem:[#allocation5 + $0x9d8] sm:$0xff]
    %v561 = vld [vmem:[#allocation5 + $0x9e0] sm:$0xff]
    %v562 = vld [vmem:[#allocation5 + $0x9e8] sm:$0xff]
    %v563 = vld [vmem:[#allocation5 + $0x9f0] sm:$0xff]
    %v564 = vld [vmem:[#allocation5 + $0x9f8] sm:$0xff]
    %v565 = vld [vmem:[#allocation5 + $0xa00] sm:$0xff]
    %v566 = vld [vmem:[#allocation5 + $0xa08] sm:$0xff]
    %v567 = vld [vmem:[#allocation5 + $0xa10] sm:$0xff]
    %v568 = vld [vmem:[#allocation5 + $0xa18] sm:$0xff]
    %v569 = vld [vmem:[#allocation5 + $0xa20] sm:$0xff]
    %v570 = vld [vmem:[#allocation5 + $0xa28] sm:$0xff]
    %v571 = vld [vmem:[#allocation5 + $0xa30] sm:$0xff]
    %v572 = vld [vmem:[#allocation5 + $0xa38] sm:$0xff]
    %v573 = vld [vmem:[#allocation5 + $0xa40] sm:$0xff]
    %v574 = vld [vmem:[#allocation5 + $0xa48] sm:$0xff]
    %v575 = vld [vmem:[#allocation5 + $0xa50] sm:$0xff]
    %v576 = vld [vmem:[#allocation5 + $0xa58] sm:$0xff]
    %v577 = vld [vmem:[#allocation5 + $0xa60] sm:$0xff]
    %v578 = vld [vmem:[#allocation5 + $0xa68] sm:$0xff]
    %v579 = vld [vmem:[#allocation5 + $0xa70] sm:$0xff]
    %v580 = vld [vmem:[#allocation5 + $0xa78] sm:$0xff]
    %v581 = vld [vmem:[#allocation5 + $0xa80] sm:$0xff]
    %v582 = vld [vmem:[#allocation5 + $0xa88] sm:$0xff]
    %v583 = vld [vmem:[#allocation5 + $0xa90] sm:$0xff]
    %v584 = vld [vmem:[#allocation5 + $0xa98] sm:$0xff]
    %v585 = vld [vmem:[#allocation5 + $0xaa0] sm:$0xff]
    %v586 = vld [vmem:[#allocation5 + $0xaa8] sm:$0xff]
    %v587 = vld [vmem:[#allocation5 + $0xab0] sm:$0xff]
    %v588 = vld [vmem:[#allocation5 + $0xab8] sm:$0xff]
    %v589 = vld [vmem:[#allocation5 + $0xac0] sm:$0xff]
    %v590 = vld [vmem:[#allocation5 + $0xac8] sm:$0xff]
    %v591 = vld [vmem:[#allocation5 + $0xad0] sm:$0xff]
    %v592 = vld [vmem:[#allocation5 + $0xad8] sm:$0xff]
    %v593 = vld [vmem:[#allocation5 + $0xae0] sm:$0xff]
    %v594 = vld [vmem:[#allocation5 + $0xae8] sm:$0xff]
    %v595 = vld [vmem:[#allocation5 + $0xaf0] sm:$0xff]
    %v596 = vld [vmem:[#allocation5 + $0xaf8] sm:$0xff]
    %v597 = vld [vmem:[#allocation5 + $0xb00] sm:$0xff]
    %v598 = vld [vmem:[#allocation5 + $0xb08] sm:$0xff]
    %v599 = vld [vmem:[#allocation5 + $0xb10] sm:$0xff]
    %v600 = vld [vmem:[#allocation5 + $0xb18] sm:$0xff]
    %v601 = vld [vmem:[#allocation5 + $0xb20] sm:$0xff]
    %v602 = vld [vmem:[#allocation5 + $0xb28] sm:$0xff]
    %v603 = vld [vmem:[#allocation5 + $0xb30] sm:$0xff]
    %v604 = vld [vmem:[#allocation5 + $0xb38] sm:$0xff]
    %v605 = vld [vmem:[#allocation5 + $0xb40] sm:$0xff]
    %v606 = vld [vmem:[#allocation5 + $0xb48] sm:$0xff]
    %v607 = vld [vmem:[#allocation5 + $0xb50] sm:$0xff]
    %v608 = vld [vmem:[#allocation5 + $0xb58] sm:$0xff]
    %v609 = vld [vmem:[#allocation5 + $0xb60] sm:$0xff]
    %v610 = vld [vmem:[#allocation5 + $0xb68] sm:$0xff]
    %v611 = vld [vmem:[#allocation5 + $0xb70] sm:$0xff]
    %v612 = vld [vmem:[#allocation5 + $0xb78] sm:$0xff]
    %v613 = vld [vmem:[#allocation5 + $0xb80] sm:$0xff]
    %v614 = vld [vmem:[#allocation5 + $0xb88] sm:$0xff]
    %v615 = vld [vmem:[#allocation5 + $0xb90] sm:$0xff]
    %v616 = vld [vmem:[#allocation5 + $0xb98] sm:$0xff]
    %v617 = vld [vmem:[#allocation5 + $0xba0] sm:$0xff]
    %v618 = vld [vmem:[#allocation5 + $0xba8] sm:$0xff]
    %v619 = vld [vmem:[#allocation5 + $0xbb0] sm:$0xff]
    %v620 = vld [vmem:[#allocation5 + $0xbb8] sm:$0xff]
    %v621 = vld [vmem:[#allocation5 + $0xbc0] sm:$0xff]
    %v622 = vld [vmem:[#allocation5 + $0xbc8] sm:$0xff]
    %v623 = vld [vmem:[#allocation5 + $0xbd0] sm:$0xff]
    %v624 = vld [vmem:[#allocation5 + $0xbd8] sm:$0xff]
    %v625 = vld [vmem:[#allocation5 + $0xbe0] sm:$0xff]
    %v626 = vld [vmem:[#allocation5 + $0xbe8] sm:$0xff]
    %v627 = vld [vmem:[#allocation5 + $0xbf0] sm:$0xff]
    %v628 = vld [vmem:[#allocation5 + $0xbf8] sm:$0xff]
    %v629 = vld [vmem:[#allocation5 + $0xc00] sm:$0xff]
    %v630 = vld [vmem:[#allocation5 + $0xc08] sm:$0xff]
    %v631 = vld [vmem:[#allocation5 + $0xc10] sm:$0xff]
    %v632 = vld [vmem:[#allocation5 + $0xc18] sm:$0xff]
    %v633 = vld [vmem:[#allocation5 + $0xc20] sm:$0xff]
    %v634 = vld [vmem:[#allocation5 + $0xc28] sm:$0xff]
    %v635 = vld [vmem:[#allocation5 + $0xc30] sm:$0xff]
    %v636 = vld [vmem:[#allocation5 + $0xc38] sm:$0xff]
    %v637 = vld [vmem:[#allocation5 + $0xc40] sm:$0xff]
    %v638 = vld [vmem:[#allocation5 + $0xc48] sm:$0xff]
    %v639 = vld [vmem:[#allocation5 + $0xc50] sm:$0xff]
    %v640 = vld [vmem:[#allocation5 + $0xc58] sm:$0xff]
    %v641 = vld [vmem:[#allocation5 + $0xc60] sm:$0xff]
    %v642 = vld [vmem:[#allocation5 + $0xc68] sm:$0xff]
    %v643 = vld [vmem:[#allocation5 + $0xc70] sm:$0xff]
    %v644 = vld [vmem:[#allocation5 + $0xc78] sm:$0xff]
    %v645 = vld [vmem:[#allocation5 + $0xc80] sm:$0xff]
    %v646 = vld [vmem:[#allocation5 + $0xc88] sm:$0xff]
    %v647 = vld [vmem:[#allocation5 + $0xc90] sm:$0xff]
    %v648 = vld [vmem:[#allocation5 + $0xc98] sm:$0xff]
    %v649 = vld [vmem:[#allocation5 + $0xca0] sm:$0xff]
    %v650 = vld [vmem:[#allocation5 + $0xca8] sm:$0xff]
    %v651 = vld [vmem:[#allocation5 + $0xcb0] sm:$0xff]
    %v652 = vld [vmem:[#allocation5 + $0xcb8] sm:$0xff]
    %v653 = vld [vmem:[#allocation5 + $0xcc0] sm:$0xff]
    %v654 = vld [vmem:[#allocation5 + $0xcc8] sm:$0xff]
    %v655 = vld [vmem:[#allocation5 + $0xcd0] sm:$0xff]
    %v656 = vld [vmem:[#allocation5 + $0xcd8] sm:$0xff]
    %v657 = vld [vmem:[#allocation5 + $0xce0] sm:$0xff]
    %v658 = vld [vmem:[#allocation5 + $0xce8] sm:$0xff]
    %v659 = vld [vmem:[#allocation5 + $0xcf0] sm:$0xff]
    %v660 = vld [vmem:[#allocation5 + $0xcf8] sm:$0xff]
    %v661 = vld [vmem:[#allocation5 + $0xd00] sm:$0xff]
    %v662 = vld [vmem:[#allocation5 + $0xd08] sm:$0xff]
    %v663 = vld [vmem:[#allocation5 + $0xd10] sm:$0xff]
    %v664 = vld [vmem:[#allocation5 + $0xd18] sm:$0xff]
    %v665 = vld [vmem:[#allocation5 + $0xd20] sm:$0xff]
    %v666 = vld [vmem:[#allocation5 + $0xd28] sm:$0xff]
    %v667 = vld [vmem:[#allocation5 + $0xd30] sm:$0xff]
    %v668 = vld [vmem:[#allocation5 + $0xd38] sm:$0xff]
    %v669 = vld [vmem:[#allocation5 + $0xd40] sm:$0xff]
    %v670 = vld [vmem:[#allocation5 + $0xd48] sm:$0xff]
    %v671 = vld [vmem:[#allocation5 + $0xd50] sm:$0xff]
    %v672 = vld [vmem:[#allocation5 + $0xd58] sm:$0xff]
    %v673 = vld [vmem:[#allocation5 + $0xd60] sm:$0xff]
    %v674 = vld [vmem:[#allocation5 + $0xd68] sm:$0xff]
    %v675 = vld [vmem:[#allocation5 + $0xd70] sm:$0xff]
    %v676 = vld [vmem:[#allocation5 + $0xd78] sm:$0xff]
    %v677 = vld [vmem:[#allocation5 + $0xd80] sm:$0xff]
    %v678 = vld [vmem:[#allocation5 + $0xd88] sm:$0xff]
    %v679 = vld [vmem:[#allocation5 + $0xd90] sm:$0xff]
    %v680 = vld [vmem:[#allocation5 + $0xd98] sm:$0xff]
    %v681 = vld [vmem:[#allocation5 + $0xda0] sm:$0xff]
    %v682 = vld [vmem:[#allocation5 + $0xda8] sm:$0xff]
    %v683 = vld [vmem:[#allocation5 + $0xdb0] sm:$0xff]
    %v684 = vld [vmem:[#allocation5 + $0xdb8] sm:$0xff]
    %v685 = vld [vmem:[#allocation5 + $0xdc0] sm:$0xff]
    %v686 = vld [vmem:[#allocation5 + $0xdc8] sm:$0xff]
    %v687 = vld [vmem:[#allocation5 + $0xdd0] sm:$0xff]
    %v688 = vld [vmem:[#allocation5 + $0xdd8] sm:$0xff]
    %v689 = vld [vmem:[#allocation5 + $0xde0] sm:$0xff]
    %v690 = vld [vmem:[#allocation5 + $0xde8] sm:$0xff]
    %v691 = vld [vmem:[#allocation5 + $0xdf0] sm:$0xff]
    %v692 = vld [vmem:[#allocation5 + $0xdf8] sm:$0xff]
    %v693 = vld [vmem:[#allocation7] sm:$0xff]
    %v695 = vlaneseq
    %v696 = vshrl.u32 %v695, 7
    %v697 = vsub.s32 0, %v696
    %v698 = vrot.slane %v693, %v697
    %v699 = vlaneseq
    %v700 = vshrl.u32 %v699, 7
    %v701 = vsub.s32 1, %v700
    %v702 = vrot.slane %v693, %v701
    %v703 = vlaneseq
    %v704 = vshrl.u32 %v703, 7
    %v705 = vsub.s32 2, %v704
    %v706 = vrot.slane %v693, %v705
    %v707 = vlaneseq
    %v708 = vshrl.u32 %v707, 7
    %v709 = vsub.s32 3, %v708
    %v710 = vrot.slane %v693, %v709
    %v711 = vlaneseq
    %v712 = vshrl.u32 %v711, 7
    %v713 = vsub.s32 4, %v712
    %v714 = vrot.slane %v693, %v713
    %v715 = vlaneseq
    %v716 = vshrl.u32 %v715, 7
    %v717 = vsub.s32 5, %v716
    %v718 = vrot.slane %v693, %v717
    %v719 = vlaneseq
    %v720 = vshrl.u32 %v719, 7
    %v721 = vsub.s32 6, %v720
    %v722 = vrot.slane %v693, %v721
    %v723 = vlaneseq
    %v724 = vshrl.u32 %v723, 7
    %v725 = vsub.s32 7, %v724
    %v726 = vrot.slane %v693, %v725
    %v863 = vunpack.c.l.b16 %v117
    %v864 = vunpack.c.h.b16 %v117
    %v865 = vunpack.c.l.b16 %v118
    %v866 = vunpack.c.h.b16 %v118
    %v867 = vunpack.c.l.b16 %v119
    %v868 = vunpack.c.h.b16 %v119
    %v869 = vunpack.c.l.b16 %v120
    %v870 = vunpack.c.l.b16 %v121
    %v871 = vunpack.c.h.b16 %v121
    %v872 = vunpack.c.l.b16 %v122
    %v873 = vunpack.c.h.b16 %v122
    %v874 = vunpack.c.l.b16 %v123
    %v875 = vunpack.c.h.b16 %v123
    %v876 = vunpack.c.l.b16 %v124
    %v877 = vunpack.c.l.b16 %v125
    %v878 = vunpack.c.h.b16 %v125
    %v879 = vunpack.c.l.b16 %v126
    %v880 = vunpack.c.h.b16 %v126
    %v881 = vunpack.c.l.b16 %v127
    %v882 = vunpack.c.h.b16 %v127
    %v883 = vunpack.c.l.b16 %v128
    %v884 = vunpack.c.l.b16 %v129
    %v885 = vunpack.c.h.b16 %v129
    %v886 = vunpack.c.l.b16 %v130
    %v887 = vunpack.c.h.b16 %v130
    %v888 = vunpack.c.l.b16 %v131
    %v889 = vunpack.c.h.b16 %v131
    %v890 = vunpack.c.l.b16 %v132
    %v891 = vunpack.c.l.b16 %v133
    %v892 = vunpack.c.h.b16 %v133
    %v893 = vunpack.c.l.b16 %v134
    %v894 = vunpack.c.h.b16 %v134
    %v895 = vunpack.c.l.b16 %v135
    %v896 = vunpack.c.h.b16 %v135
    %v897 = vunpack.c.l.b16 %v136
    %v898 = vunpack.c.l.b16 %v137
    %v899 = vunpack.c.h.b16 %v137
    %v900 = vunpack.c.l.b16 %v138
    %v901 = vunpack.c.h.b16 %v138
    %v902 = vunpack.c.l.b16 %v139
    %v903 = vunpack.c.h.b16 %v139
    %v904 = vunpack.c.l.b16 %v140
    %v905 = vunpack.c.l.b16 %v141
    %v906 = vunpack.c.h.b16 %v141
    %v907 = vunpack.c.l.b16 %v142
    %v908 = vunpack.c.h.b16 %v142
    %v909 = vunpack.c.l.b16 %v143
    %v910 = vunpack.c.h.b16 %v143
    %v911 = vunpack.c.l.b16 %v144
    %v912 = vunpack.c.l.b16 %v145
    %v913 = vunpack.c.h.b16 %v145
    %v914 = vunpack.c.l.b16 %v146
    %v915 = vunpack.c.h.b16 %v146
    %v916 = vunpack.c.l.b16 %v147
    %v917 = vunpack.c.h.b16 %v147
    %v918 = vunpack.c.l.b16 %v148
    %v919 = vunpack.c.l.b16 %v149
    %v920 = vunpack.c.h.b16 %v149
    %v921 = vunpack.c.l.b16 %v150
    %v922 = vunpack.c.h.b16 %v150
    %v923 = vunpack.c.l.b16 %v151
    %v924 = vunpack.c.h.b16 %v151
    %v925 = vunpack.c.l.b16 %v152
    %v926 = vunpack.c.l.b16 %v153
    %v927 = vunpack.c.h.b16 %v153
    %v928 = vunpack.c.l.b16 %v154
    %v929 = vunpack.c.h.b16 %v154
    %v930 = vunpack.c.l.b16 %v155
    %v931 = vunpack.c.h.b16 %v155
    %v932 = vunpack.c.l.b16 %v156
    %v933 = vunpack.c.l.b16 %v157
    %v934 = vunpack.c.h.b16 %v157
    %v935 = vunpack.c.l.b16 %v158
    %v936 = vunpack.c.h.b16 %v158
    %v937 = vunpack.c.l.b16 %v159
    %v938 = vunpack.c.h.b16 %v159
    %v939 = vunpack.c.l.b16 %v160
    %v940 = vunpack.c.l.b16 %v161
    %v941 = vunpack.c.h.b16 %v161
    %v942 = vunpack.c.l.b16 %v162
    %v943 = vunpack.c.h.b16 %v162
    %v944 = vunpack.c.l.b16 %v163
    %v945 = vunpack.c.h.b16 %v163
    %v946 = vunpack.c.l.b16 %v164
    %v947 = vunpack.c.l.b16 %v165
    %v948 = vunpack.c.h.b16 %v165
    %v949 = vunpack.c.l.b16 %v166
    %v950 = vunpack.c.h.b16 %v166
    %v951 = vunpack.c.l.b16 %v167
    %v952 = vunpack.c.h.b16 %v167
    %v953 = vunpack.c.l.b16 %v168
    %v954 = vunpack.c.l.b16 %v169
    %v955 = vunpack.c.h.b16 %v169
    %v956 = vunpack.c.l.b16 %v170
    %v957 = vunpack.c.h.b16 %v170
    %v958 = vunpack.c.l.b16 %v171
    %v959 = vunpack.c.h.b16 %v171
    %v960 = vunpack.c.l.b16 %v172
    %v961 = vunpack.c.l.b16 %v173
    %v962 = vunpack.c.h.b16 %v173
    %v963 = vunpack.c.l.b16 %v174
    %v964 = vunpack.c.h.b16 %v174
    %v965 = vunpack.c.l.b16 %v175
    %v966 = vunpack.c.h.b16 %v175
    %v967 = vunpack.c.l.b16 %v176
    %v968 = vunpack.c.l.b16 %v177
    %v969 = vunpack.c.h.b16 %v177
    %v970 = vunpack.c.l.b16 %v178
    %v971 = vunpack.c.h.b16 %v178
    %v972 = vunpack.c.l.b16 %v179
    %v973 = vunpack.c.h.b16 %v179
    %v974 = vunpack.c.l.b16 %v180
    %v975 = vunpack.c.l.b16 %v181
    %v976 = vunpack.c.h.b16 %v181
    %v977 = vunpack.c.l.b16 %v182
    %v978 = vunpack.c.h.b16 %v182
    %v979 = vunpack.c.l.b16 %v183
    %v980 = vunpack.c.h.b16 %v183
    %v981 = vunpack.c.l.b16 %v184
    %v982 = vunpack.c.l.b16 %v185
    %v983 = vunpack.c.h.b16 %v185
    %v984 = vunpack.c.l.b16 %v186
    %v985 = vunpack.c.h.b16 %v186
    %v986 = vunpack.c.l.b16 %v187
    %v987 = vunpack.c.h.b16 %v187
    %v988 = vunpack.c.l.b16 %v188
    %v989 = vunpack.c.l.b16 %v189
    %v990 = vunpack.c.h.b16 %v189
    %v991 = vunpack.c.l.b16 %v190
    %v992 = vunpack.c.h.b16 %v190
    %v993 = vunpack.c.l.b16 %v191
    %v994 = vunpack.c.h.b16 %v191
    %v995 = vunpack.c.l.b16 %v192
    %v996 = vunpack.c.l.b16 %v193
    %v997 = vunpack.c.h.b16 %v193
    %v998 = vunpack.c.l.b16 %v194
    %v999 = vunpack.c.h.b16 %v194
    %v1000 = vunpack.c.l.b16 %v195
    %v1001 = vunpack.c.h.b16 %v195
    %v1002 = vunpack.c.l.b16 %v196
    %v1003 = vunpack.c.l.b16 %v197
    %v1004 = vunpack.c.h.b16 %v197
    %v1005 = vunpack.c.l.b16 %v198
    %v1006 = vunpack.c.h.b16 %v198
    %v1007 = vunpack.c.l.b16 %v199
    %v1008 = vunpack.c.h.b16 %v199
    %v1009 = vunpack.c.l.b16 %v200
    %v1010 = vunpack.c.l.b16 %v201
    %v1011 = vunpack.c.h.b16 %v201
    %v1012 = vunpack.c.l.b16 %v202
    %v1013 = vunpack.c.h.b16 %v202
    %v1014 = vunpack.c.l.b16 %v203
    %v1015 = vunpack.c.h.b16 %v203
    %v1016 = vunpack.c.l.b16 %v204
    %v1017 = vunpack.c.l.b16 %v205
    %v1018 = vunpack.c.h.b16 %v205
    %v1019 = vunpack.c.l.b16 %v206
    %v1020 = vunpack.c.h.b16 %v206
    %v1021 = vunpack.c.l.b16 %v207
    %v1022 = vunpack.c.h.b16 %v207
    %v1023 = vunpack.c.l.b16 %v208
    %v1024 = vunpack.c.l.b16 %v209
    %v1025 = vunpack.c.h.b16 %v209
    %v1026 = vunpack.c.l.b16 %v210
    %v1027 = vunpack.c.h.b16 %v210
    %v1028 = vunpack.c.l.b16 %v211
    %v1029 = vunpack.c.h.b16 %v211
    %v1030 = vunpack.c.l.b16 %v212
    %v1031 = vunpack.c.l.b16 %v213
    %v1032 = vunpack.c.h.b16 %v213
    %v1033 = vunpack.c.l.b16 %v214
    %v1034 = vunpack.c.h.b16 %v214
    %v1035 = vunpack.c.l.b16 %v215
    %v1036 = vunpack.c.h.b16 %v215
    %v1037 = vunpack.c.l.b16 %v216
    %v1038 = vunpack.c.l.b16 %v217
    %v1039 = vunpack.c.h.b16 %v217
    %v1040 = vunpack.c.l.b16 %v218
    %v1041 = vunpack.c.h.b16 %v218
    %v1042 = vunpack.c.l.b16 %v219
    %v1043 = vunpack.c.h.b16 %v219
    %v1044 = vunpack.c.l.b16 %v220
    %v1045 = vunpack.c.l.b16 %v221
    %v1046 = vunpack.c.h.b16 %v221
    %v1047 = vunpack.c.l.b16 %v222
    %v1048 = vunpack.c.h.b16 %v222
    %v1049 = vunpack.c.l.b16 %v223
    %v1050 = vunpack.c.h.b16 %v223
    %v1051 = vunpack.c.l.b16 %v224
    %v1052 = vunpack.c.l.b16 %v225
    %v1053 = vunpack.c.h.b16 %v225
    %v1054 = vunpack.c.l.b16 %v226
    %v1055 = vunpack.c.h.b16 %v226
    %v1056 = vunpack.c.l.b16 %v227
    %v1057 = vunpack.c.h.b16 %v227
    %v1058 = vunpack.c.l.b16 %v228
    %v1059 = vunpack.c.l.b16 %v229
    %v1060 = vunpack.c.h.b16 %v229
    %v1061 = vunpack.c.l.b16 %v230
    %v1062 = vunpack.c.h.b16 %v230
    %v1063 = vunpack.c.l.b16 %v231
    %v1064 = vunpack.c.h.b16 %v231
    %v1065 = vunpack.c.l.b16 %v232
    %v1066 = vunpack.c.l.b16 %v233
    %v1067 = vunpack.c.h.b16 %v233
    %v1068 = vunpack.c.l.b16 %v234
    %v1069 = vunpack.c.h.b16 %v234
    %v1070 = vunpack.c.l.b16 %v235
    %v1071 = vunpack.c.h.b16 %v235
    %v1072 = vunpack.c.l.b16 %v236
    %v1073 = vunpack.c.l.b16 %v237
    %v1074 = vunpack.c.h.b16 %v237
    %v1075 = vunpack.c.l.b16 %v238
    %v1076 = vunpack.c.h.b16 %v238
    %v1077 = vunpack.c.l.b16 %v239
    %v1078 = vunpack.c.h.b16 %v239
    %v1079 = vunpack.c.l.b16 %v240
    %v1080 = vunpack.c.l.b16 %v241
    %v1081 = vunpack.c.h.b16 %v241
    %v1082 = vunpack.c.l.b16 %v242
    %v1083 = vunpack.c.h.b16 %v242
    %v1084 = vunpack.c.l.b16 %v243
    %v1085 = vunpack.c.h.b16 %v243
    %v1086 = vunpack.c.l.b16 %v244
    %v1087 = vpack.c.b16 %v870, %v863
    %v1088 = vpack.c.b16 %v871, %v864
    %v1089 = vpack.c.b16 %v872, %v865
    %v1090 = vpack.c.b16 %v873, %v866
    %v1091 = vpack.c.b16 %v874, %v867
    %v1092 = vpack.c.b16 %v875, %v868
    %v1093 = vpack.c.b16 %v876, %v869
    %v1094 = vpack.c.b16 %v884, %v877
    %v1095 = vpack.c.b16 %v885, %v878
    %v1096 = vpack.c.b16 %v886, %v879
    %v1097 = vpack.c.b16 %v887, %v880
    %v1098 = vpack.c.b16 %v888, %v881
    %v1099 = vpack.c.b16 %v889, %v882
    %v1100 = vpack.c.b16 %v890, %v883
    %v1101 = vpack.c.b16 %v898, %v891
    %v1102 = vpack.c.b16 %v899, %v892
    %v1103 = vpack.c.b16 %v900, %v893
    %v1104 = vpack.c.b16 %v901, %v894
    %v1105 = vpack.c.b16 %v902, %v895
    %v1106 = vpack.c.b16 %v903, %v896
    %v1107 = vpack.c.b16 %v904, %v897
    %v1108 = vpack.c.b16 %v912, %v905
    %v1109 = vpack.c.b16 %v913, %v906
    %v1110 = vpack.c.b16 %v914, %v907
    %v1111 = vpack.c.b16 %v915, %v908
    %v1112 = vpack.c.b16 %v916, %v909
    %v1113 = vpack.c.b16 %v917, %v910
    %v1114 = vpack.c.b16 %v918, %v911
    %v1115 = vpack.c.b16 %v926, %v919
    %v1116 = vpack.c.b16 %v927, %v920
    %v1117 = vpack.c.b16 %v928, %v921
    %v1118 = vpack.c.b16 %v929, %v922
    %v1119 = vpack.c.b16 %v930, %v923
    %v1120 = vpack.c.b16 %v931, %v924
    %v1121 = vpack.c.b16 %v932, %v925
    %v1122 = vpack.c.b16 %v940, %v933
    %v1123 = vpack.c.b16 %v941, %v934
    %v1124 = vpack.c.b16 %v942, %v935
    %v1125 = vpack.c.b16 %v943, %v936
    %v1126 = vpack.c.b16 %v944, %v937
    %v1127 = vpack.c.b16 %v945, %v938
    %v1128 = vpack.c.b16 %v946, %v939
    %v1129 = vpack.c.b16 %v954, %v947
    %v1130 = vpack.c.b16 %v955, %v948
    %v1131 = vpack.c.b16 %v956, %v949
    %v1132 = vpack.c.b16 %v957, %v950
    %v1133 = vpack.c.b16 %v958, %v951
    %v1134 = vpack.c.b16 %v959, %v952
    %v1135 = vpack.c.b16 %v960, %v953
    %v1136 = vpack.c.b16 %v968, %v961
    %v1137 = vpack.c.b16 %v969, %v962
    %v1138 = vpack.c.b16 %v970, %v963
    %v1139 = vpack.c.b16 %v971, %v964
    %v1140 = vpack.c.b16 %v972, %v965
    %v1141 = vpack.c.b16 %v973, %v966
    %v1142 = vpack.c.b16 %v974, %v967
    %v1143 = vpack.c.b16 %v982, %v975
    %v1144 = vpack.c.b16 %v983, %v976
    %v1145 = vpack.c.b16 %v984, %v977
    %v1146 = vpack.c.b16 %v985, %v978
    %v1147 = vpack.c.b16 %v986, %v979
    %v1148 = vpack.c.b16 %v987, %v980
    %v1149 = vpack.c.b16 %v988, %v981
    %v1150 = vpack.c.b16 %v996, %v989
    %v1151 = vpack.c.b16 %v997, %v990
    %v1152 = vpack.c.b16 %v998, %v991
    %v1153 = vpack.c.b16 %v999, %v992
    %v1154 = vpack.c.b16 %v1000, %v993
    %v1155 = vpack.c.b16 %v1001, %v994
    %v1156 = vpack.c.b16 %v1002, %v995
    %v1157 = vpack.c.b16 %v1010, %v1003
    %v1158 = vpack.c.b16 %v1011, %v1004
    %v1159 = vpack.c.b16 %v1012, %v1005
    %v1160 = vpack.c.b16 %v1013, %v1006
    %v1161 = vpack.c.b16 %v1014, %v1007
    %v1162 = vpack.c.b16 %v1015, %v1008
    %v1163 = vpack.c.b16 %v1016, %v1009
    %v1164 = vpack.c.b16 %v1024, %v1017
    %v1165 = vpack.c.b16 %v1025, %v1018
    %v1166 = vpack.c.b16 %v1026, %v1019
    %v1167 = vpack.c.b16 %v1027, %v1020
    %v1168 = vpack.c.b16 %v1028, %v1021
    %v1169 = vpack.c.b16 %v1029, %v1022
    %v1170 = vpack.c.b16 %v1030, %v1023
    %v1171 = vpack.c.b16 %v1038, %v1031
    %v1172 = vpack.c.b16 %v1039, %v1032
    %v1173 = vpack.c.b16 %v1040, %v1033
    %v1174 = vpack.c.b16 %v1041, %v1034
    %v1175 = vpack.c.b16 %v1042, %v1035
    %v1176 = vpack.c.b16 %v1043, %v1036
    %v1177 = vpack.c.b16 %v1044, %v1037
    %v1178 = vpack.c.b16 %v1052, %v1045
    %v1179 = vpack.c.b16 %v1053, %v1046
    %v1180 = vpack.c.b16 %v1054, %v1047
    %v1181 = vpack.c.b16 %v1055, %v1048
    %v1182 = vpack.c.b16 %v1056, %v1049
    %v1183 = vpack.c.b16 %v1057, %v1050
    %v1184 = vpack.c.b16 %v1058, %v1051
    %v1185 = vpack.c.b16 %v1066, %v1059
    %v1186 = vpack.c.b16 %v1067, %v1060
    %v1187 = vpack.c.b16 %v1068, %v1061
    %v1188 = vpack.c.b16 %v1069, %v1062
    %v1189 = vpack.c.b16 %v1070, %v1063
    %v1190 = vpack.c.b16 %v1071, %v1064
    %v1191 = vpack.c.b16 %v1072, %v1065
    %v1192 = vpack.c.b16 %v1080, %v1073
    %v1193 = vpack.c.b16 %v1081, %v1074
    %v1194 = vpack.c.b16 %v1082, %v1075
    %v1195 = vpack.c.b16 %v1083, %v1076
    %v1196 = vpack.c.b16 %v1084, %v1077
    %v1197 = vpack.c.b16 %v1085, %v1078
    %v1198 = vpack.c.b16 %v1086, %v1079
    %v1759 = vunpack.c.l.b16 %v245
    %v1760 = vunpack.c.h.b16 %v245
    %v1761 = vunpack.c.l.b16 %v246
    %v1762 = vunpack.c.h.b16 %v246
    %v1763 = vunpack.c.l.b16 %v247
    %v1764 = vunpack.c.h.b16 %v247
    %v1765 = vunpack.c.l.b16 %v248
    %v1766 = vunpack.c.h.b16 %v248
    %v1767 = vunpack.c.l.b16 %v249
    %v1768 = vunpack.c.h.b16 %v249
    %v1769 = vunpack.c.l.b16 %v250
    %v1770 = vunpack.c.h.b16 %v250
    %v1771 = vunpack.c.l.b16 %v251
    %v1772 = vunpack.c.h.b16 %v251
    %v1773 = vunpack.c.l.b16 %v252
    %v1774 = vunpack.c.h.b16 %v252
    %v1775 = vunpack.c.l.b16 %v253
    %v1776 = vunpack.c.h.b16 %v253
    %v1777 = vunpack.c.l.b16 %v254
    %v1778 = vunpack.c.h.b16 %v254
    %v1779 = vunpack.c.l.b16 %v255
    %v1780 = vunpack.c.h.b16 %v255
    %v1781 = vunpack.c.l.b16 %v256
    %v1782 = vunpack.c.h.b16 %v256
    %v1783 = vunpack.c.l.b16 %v257
    %v1784 = vunpack.c.h.b16 %v257
    %v1785 = vunpack.c.l.b16 %v258
    %v1786 = vunpack.c.h.b16 %v258
    %v1787 = vunpack.c.l.b16 %v259
    %v1788 = vunpack.c.h.b16 %v259
    %v1789 = vunpack.c.l.b16 %v260
    %v1790 = vunpack.c.h.b16 %v260
    %v1791 = vunpack.c.l.b16 %v261
    %v1792 = vunpack.c.h.b16 %v261
    %v1793 = vunpack.c.l.b16 %v262
    %v1794 = vunpack.c.h.b16 %v262
    %v1795 = vunpack.c.l.b16 %v263
    %v1796 = vunpack.c.h.b16 %v263
    %v1797 = vunpack.c.l.b16 %v264
    %v1798 = vunpack.c.h.b16 %v264
    %v1799 = vunpack.c.l.b16 %v265
    %v1800 = vunpack.c.h.b16 %v265
    %v1801 = vunpack.c.l.b16 %v266
    %v1802 = vunpack.c.h.b16 %v266
    %v1803 = vunpack.c.l.b16 %v267
    %v1804 = vunpack.c.h.b16 %v267
    %v1805 = vunpack.c.l.b16 %v268
    %v1806 = vunpack.c.h.b16 %v268
    %v1807 = vunpack.c.l.b16 %v269
    %v1808 = vunpack.c.h.b16 %v269
    %v1809 = vunpack.c.l.b16 %v270
    %v1810 = vunpack.c.h.b16 %v270
    %v1811 = vunpack.c.l.b16 %v271
    %v1812 = vunpack.c.h.b16 %v271
    %v1813 = vunpack.c.l.b16 %v272
    %v1814 = vunpack.c.h.b16 %v272
    %v1815 = vunpack.c.l.b16 %v273
    %v1816 = vunpack.c.h.b16 %v273
    %v1817 = vunpack.c.l.b16 %v274
    %v1818 = vunpack.c.h.b16 %v274
    %v1819 = vunpack.c.l.b16 %v275
    %v1820 = vunpack.c.h.b16 %v275
    %v1821 = vunpack.c.l.b16 %v276
    %v1822 = vunpack.c.h.b16 %v276
    %v1823 = vunpack.c.l.b16 %v277
    %v1824 = vunpack.c.h.b16 %v277
    %v1825 = vunpack.c.l.b16 %v278
    %v1826 = vunpack.c.h.b16 %v278
    %v1827 = vunpack.c.l.b16 %v279
    %v1828 = vunpack.c.h.b16 %v279
    %v1829 = vunpack.c.l.b16 %v280
    %v1830 = vunpack.c.h.b16 %v280
    %v1831 = vunpack.c.l.b16 %v281
    %v1832 = vunpack.c.h.b16 %v281
    %v1833 = vunpack.c.l.b16 %v282
    %v1834 = vunpack.c.h.b16 %v282
    %v1835 = vunpack.c.l.b16 %v283
    %v1836 = vunpack.c.h.b16 %v283
    %v1837 = vunpack.c.l.b16 %v284
    %v1838 = vunpack.c.h.b16 %v284
    %v1839 = vunpack.c.l.b16 %v285
    %v1840 = vunpack.c.h.b16 %v285
    %v1841 = vunpack.c.l.b16 %v286
    %v1842 = vunpack.c.h.b16 %v286
    %v1843 = vunpack.c.l.b16 %v287
    %v1844 = vunpack.c.h.b16 %v287
    %v1845 = vunpack.c.l.b16 %v288
    %v1846 = vunpack.c.h.b16 %v288
    %v1847 = vunpack.c.l.b16 %v289
    %v1848 = vunpack.c.h.b16 %v289
    %v1849 = vunpack.c.l.b16 %v290
    %v1850 = vunpack.c.h.b16 %v290
    %v1851 = vunpack.c.l.b16 %v291
    %v1852 = vunpack.c.h.b16 %v291
    %v1853 = vunpack.c.l.b16 %v292
    %v1854 = vunpack.c.h.b16 %v292
    %v1855 = vunpack.c.l.b16 %v293
    %v1856 = vunpack.c.h.b16 %v293
    %v1857 = vunpack.c.l.b16 %v294
    %v1858 = vunpack.c.h.b16 %v294
    %v1859 = vunpack.c.l.b16 %v295
    %v1860 = vunpack.c.h.b16 %v295
    %v1861 = vunpack.c.l.b16 %v296
    %v1862 = vunpack.c.h.b16 %v296
    %v1863 = vunpack.c.l.b16 %v297
    %v1864 = vunpack.c.h.b16 %v297
    %v1865 = vunpack.c.l.b16 %v298
    %v1866 = vunpack.c.h.b16 %v298
    %v1867 = vunpack.c.l.b16 %v299
    %v1868 = vunpack.c.h.b16 %v299
    %v1869 = vunpack.c.l.b16 %v300
    %v1870 = vunpack.c.h.b16 %v300
    %v1871 = vunpack.c.l.b16 %v301
    %v1872 = vunpack.c.h.b16 %v301
    %v1873 = vunpack.c.l.b16 %v302
    %v1874 = vunpack.c.h.b16 %v302
    %v1875 = vunpack.c.l.b16 %v303
    %v1876 = vunpack.c.h.b16 %v303
    %v1877 = vunpack.c.l.b16 %v304
    %v1878 = vunpack.c.h.b16 %v304
    %v1879 = vunpack.c.l.b16 %v305
    %v1880 = vunpack.c.h.b16 %v305
    %v1881 = vunpack.c.l.b16 %v306
    %v1882 = vunpack.c.h.b16 %v306
    %v1883 = vunpack.c.l.b16 %v307
    %v1884 = vunpack.c.h.b16 %v307
    %v1885 = vunpack.c.l.b16 %v308
    %v1886 = vunpack.c.h.b16 %v308
    %v1887 = vunpack.c.l.b16 %v309
    %v1888 = vunpack.c.h.b16 %v309
    %v1889 = vunpack.c.l.b16 %v310
    %v1890 = vunpack.c.h.b16 %v310
    %v1891 = vunpack.c.l.b16 %v311
    %v1892 = vunpack.c.h.b16 %v311
    %v1893 = vunpack.c.l.b16 %v312
    %v1894 = vunpack.c.h.b16 %v312
    %v1895 = vunpack.c.l.b16 %v313
    %v1896 = vunpack.c.h.b16 %v313
    %v1897 = vunpack.c.l.b16 %v314
    %v1898 = vunpack.c.h.b16 %v314
    %v1899 = vunpack.c.l.b16 %v315
    %v1900 = vunpack.c.h.b16 %v315
    %v1901 = vunpack.c.l.b16 %v316
    %v1902 = vunpack.c.h.b16 %v316
    %v1903 = vunpack.c.l.b16 %v317
    %v1904 = vunpack.c.h.b16 %v317
    %v1905 = vunpack.c.l.b16 %v318
    %v1906 = vunpack.c.h.b16 %v318
    %v1907 = vunpack.c.l.b16 %v319
    %v1908 = vunpack.c.h.b16 %v319
    %v1909 = vunpack.c.l.b16 %v320
    %v1910 = vunpack.c.h.b16 %v320
    %v1911 = vunpack.c.l.b16 %v321
    %v1912 = vunpack.c.h.b16 %v321
    %v1913 = vunpack.c.l.b16 %v322
    %v1914 = vunpack.c.h.b16 %v322
    %v1915 = vunpack.c.l.b16 %v323
    %v1916 = vunpack.c.h.b16 %v323
    %v1917 = vunpack.c.l.b16 %v324
    %v1918 = vunpack.c.h.b16 %v324
    %v1919 = vunpack.c.l.b16 %v325
    %v1920 = vunpack.c.h.b16 %v325
    %v1921 = vunpack.c.l.b16 %v326
    %v1922 = vunpack.c.h.b16 %v326
    %v1923 = vunpack.c.l.b16 %v327
    %v1924 = vunpack.c.h.b16 %v327
    %v1925 = vunpack.c.l.b16 %v328
    %v1926 = vunpack.c.h.b16 %v328
    %v1927 = vunpack.c.l.b16 %v329
    %v1928 = vunpack.c.h.b16 %v329
    %v1929 = vunpack.c.l.b16 %v330
    %v1930 = vunpack.c.h.b16 %v330
    %v1931 = vunpack.c.l.b16 %v331
    %v1932 = vunpack.c.h.b16 %v331
    %v1933 = vunpack.c.l.b16 %v332
    %v1934 = vunpack.c.h.b16 %v332
    %v1935 = vunpack.c.l.b16 %v333
    %v1936 = vunpack.c.h.b16 %v333
    %v1937 = vunpack.c.l.b16 %v334
    %v1938 = vunpack.c.h.b16 %v334
    %v1939 = vunpack.c.l.b16 %v335
    %v1940 = vunpack.c.h.b16 %v335
    %v1941 = vunpack.c.l.b16 %v336
    %v1942 = vunpack.c.h.b16 %v336
    %v1943 = vunpack.c.l.b16 %v337
    %v1944 = vunpack.c.h.b16 %v337
    %v1945 = vunpack.c.l.b16 %v338
    %v1946 = vunpack.c.h.b16 %v338
    %v1947 = vunpack.c.l.b16 %v339
    %v1948 = vunpack.c.h.b16 %v339
    %v1949 = vunpack.c.l.b16 %v340
    %v1950 = vunpack.c.h.b16 %v340
    %v1951 = vunpack.c.l.b16 %v341
    %v1952 = vunpack.c.h.b16 %v341
    %v1953 = vunpack.c.l.b16 %v342
    %v1954 = vunpack.c.h.b16 %v342
    %v1955 = vunpack.c.l.b16 %v343
    %v1956 = vunpack.c.h.b16 %v343
    %v1957 = vunpack.c.l.b16 %v344
    %v1958 = vunpack.c.h.b16 %v344
    %v1959 = vunpack.c.l.b16 %v345
    %v1960 = vunpack.c.h.b16 %v345
    %v1961 = vunpack.c.l.b16 %v346
    %v1962 = vunpack.c.h.b16 %v346
    %v1963 = vunpack.c.l.b16 %v347
    %v1964 = vunpack.c.h.b16 %v347
    %v1965 = vunpack.c.l.b16 %v348
    %v1966 = vunpack.c.h.b16 %v348
    %v1967 = vunpack.c.l.b16 %v349
    %v1968 = vunpack.c.h.b16 %v349
    %v1969 = vunpack.c.l.b16 %v350
    %v1970 = vunpack.c.h.b16 %v350
    %v1971 = vunpack.c.l.b16 %v351
    %v1972 = vunpack.c.h.b16 %v351
    %v1973 = vunpack.c.l.b16 %v352
    %v1974 = vunpack.c.h.b16 %v352
    %v1975 = vunpack.c.l.b16 %v353
    %v1976 = vunpack.c.h.b16 %v353
    %v1977 = vunpack.c.l.b16 %v354
    %v1978 = vunpack.c.h.b16 %v354
    %v1979 = vunpack.c.l.b16 %v355
    %v1980 = vunpack.c.h.b16 %v355
    %v1981 = vunpack.c.l.b16 %v356
    %v1982 = vunpack.c.h.b16 %v356
    %v1983 = vunpack.c.l.b16 %v357
    %v1984 = vunpack.c.h.b16 %v357
    %v1985 = vunpack.c.l.b16 %v358
    %v1986 = vunpack.c.h.b16 %v358
    %v1987 = vunpack.c.l.b16 %v359
    %v1988 = vunpack.c.h.b16 %v359
    %v1989 = vunpack.c.l.b16 %v360
    %v1990 = vunpack.c.h.b16 %v360
    %v1991 = vunpack.c.l.b16 %v361
    %v1992 = vunpack.c.h.b16 %v361
    %v1993 = vunpack.c.l.b16 %v362
    %v1994 = vunpack.c.h.b16 %v362
    %v1995 = vunpack.c.l.b16 %v363
    %v1996 = vunpack.c.h.b16 %v363
    %v1997 = vunpack.c.l.b16 %v364
    %v1998 = vunpack.c.h.b16 %v364
    %v1999 = vunpack.c.l.b16 %v365
    %v2000 = vunpack.c.h.b16 %v365
    %v2001 = vunpack.c.l.b16 %v366
    %v2002 = vunpack.c.h.b16 %v366
    %v2003 = vunpack.c.l.b16 %v367
    %v2004 = vunpack.c.h.b16 %v367
    %v2005 = vunpack.c.l.b16 %v368
    %v2006 = vunpack.c.h.b16 %v368
    %v2007 = vunpack.c.l.b16 %v369
    %v2008 = vunpack.c.h.b16 %v369
    %v2009 = vunpack.c.l.b16 %v370
    %v2010 = vunpack.c.h.b16 %v370
    %v2011 = vunpack.c.l.b16 %v371
    %v2012 = vunpack.c.h.b16 %v371
    %v2013 = vunpack.c.l.b16 %v372
    %v2014 = vunpack.c.h.b16 %v372
    %v2015 = vunpack.c.l.b16 %v373
    %v2016 = vunpack.c.h.b16 %v373
    %v2017 = vunpack.c.l.b16 %v374
    %v2018 = vunpack.c.h.b16 %v374
    %v2019 = vunpack.c.l.b16 %v375
    %v2020 = vunpack.c.h.b16 %v375
    %v2021 = vunpack.c.l.b16 %v376
    %v2022 = vunpack.c.h.b16 %v376
    %v2023 = vunpack.c.l.b16 %v377
    %v2024 = vunpack.c.h.b16 %v377
    %v2025 = vunpack.c.l.b16 %v378
    %v2026 = vunpack.c.h.b16 %v378
    %v2027 = vunpack.c.l.b16 %v379
    %v2028 = vunpack.c.h.b16 %v379
    %v2029 = vunpack.c.l.b16 %v380
    %v2030 = vunpack.c.h.b16 %v380
    %v2031 = vunpack.c.l.b16 %v381
    %v2032 = vunpack.c.h.b16 %v381
    %v2033 = vunpack.c.l.b16 %v382
    %v2034 = vunpack.c.h.b16 %v382
    %v2035 = vunpack.c.l.b16 %v383
    %v2036 = vunpack.c.h.b16 %v383
    %v2037 = vunpack.c.l.b16 %v384
    %v2038 = vunpack.c.h.b16 %v384
    %v2039 = vunpack.c.l.b16 %v385
    %v2040 = vunpack.c.h.b16 %v385
    %v2041 = vunpack.c.l.b16 %v386
    %v2042 = vunpack.c.h.b16 %v386
    %v2043 = vunpack.c.l.b16 %v387
    %v2044 = vunpack.c.h.b16 %v387
    %v2045 = vunpack.c.l.b16 %v388
    %v2046 = vunpack.c.h.b16 %v388
    %v2047 = vunpack.c.l.b16 %v389
    %v2048 = vunpack.c.h.b16 %v389
    %v2049 = vunpack.c.l.b16 %v390
    %v2050 = vunpack.c.h.b16 %v390
    %v2051 = vunpack.c.l.b16 %v391
    %v2052 = vunpack.c.h.b16 %v391
    %v2053 = vunpack.c.l.b16 %v392
    %v2054 = vunpack.c.h.b16 %v392
    %v2055 = vunpack.c.l.b16 %v393
    %v2056 = vunpack.c.h.b16 %v393
    %v2057 = vunpack.c.l.b16 %v394
    %v2058 = vunpack.c.h.b16 %v394
    %v2059 = vunpack.c.l.b16 %v395
    %v2060 = vunpack.c.h.b16 %v395
    %v2061 = vunpack.c.l.b16 %v396
    %v2062 = vunpack.c.h.b16 %v396
    %v2063 = vunpack.c.l.b16 %v397
    %v2064 = vunpack.c.h.b16 %v397
    %v2065 = vunpack.c.l.b16 %v398
    %v2066 = vunpack.c.h.b16 %v398
    %v2067 = vunpack.c.l.b16 %v399
    %v2068 = vunpack.c.h.b16 %v399
    %v2069 = vunpack.c.l.b16 %v400
    %v2070 = vunpack.c.h.b16 %v400
    %v2071 = vunpack.c.l.b16 %v401
    %v2072 = vunpack.c.h.b16 %v401
    %v2073 = vunpack.c.l.b16 %v402
    %v2074 = vunpack.c.h.b16 %v402
    %v2075 = vunpack.c.l.b16 %v403
    %v2076 = vunpack.c.h.b16 %v403
    %v2077 = vunpack.c.l.b16 %v404
    %v2078 = vunpack.c.h.b16 %v404
    %v2079 = vunpack.c.l.b16 %v405
    %v2080 = vunpack.c.h.b16 %v405
    %v2081 = vunpack.c.l.b16 %v406
    %v2082 = vunpack.c.h.b16 %v406
    %v2083 = vunpack.c.l.b16 %v407
    %v2084 = vunpack.c.h.b16 %v407
    %v2085 = vunpack.c.l.b16 %v408
    %v2086 = vunpack.c.h.b16 %v408
    %v2087 = vunpack.c.l.b16 %v409
    %v2088 = vunpack.c.h.b16 %v409
    %v2089 = vunpack.c.l.b16 %v410
    %v2090 = vunpack.c.h.b16 %v410
    %v2091 = vunpack.c.l.b16 %v411
    %v2092 = vunpack.c.h.b16 %v411
    %v2093 = vunpack.c.l.b16 %v412
    %v2094 = vunpack.c.h.b16 %v412
    %v2095 = vunpack.c.l.b16 %v413
    %v2096 = vunpack.c.h.b16 %v413
    %v2097 = vunpack.c.l.b16 %v414
    %v2098 = vunpack.c.h.b16 %v414
    %v2099 = vunpack.c.l.b16 %v415
    %v2100 = vunpack.c.h.b16 %v415
    %v2101 = vunpack.c.l.b16 %v416
    %v2102 = vunpack.c.h.b16 %v416
    %v2103 = vunpack.c.l.b16 %v417
    %v2104 = vunpack.c.h.b16 %v417
    %v2105 = vunpack.c.l.b16 %v418
    %v2106 = vunpack.c.h.b16 %v418
    %v2107 = vunpack.c.l.b16 %v419
    %v2108 = vunpack.c.h.b16 %v419
    %v2109 = vunpack.c.l.b16 %v420
    %v2110 = vunpack.c.h.b16 %v420
    %v2111 = vunpack.c.l.b16 %v421
    %v2112 = vunpack.c.h.b16 %v421
    %v2113 = vunpack.c.l.b16 %v422
    %v2114 = vunpack.c.h.b16 %v422
    %v2115 = vunpack.c.l.b16 %v423
    %v2116 = vunpack.c.h.b16 %v423
    %v2117 = vunpack.c.l.b16 %v424
    %v2118 = vunpack.c.h.b16 %v424
    %v2119 = vunpack.c.l.b16 %v425
    %v2120 = vunpack.c.h.b16 %v425
    %v2121 = vunpack.c.l.b16 %v426
    %v2122 = vunpack.c.h.b16 %v426
    %v2123 = vunpack.c.l.b16 %v427
    %v2124 = vunpack.c.h.b16 %v427
    %v2125 = vunpack.c.l.b16 %v428
    %v2126 = vunpack.c.h.b16 %v428
    %v2127 = vunpack.c.l.b16 %v429
    %v2128 = vunpack.c.h.b16 %v429
    %v2129 = vunpack.c.l.b16 %v430
    %v2130 = vunpack.c.h.b16 %v430
    %v2131 = vunpack.c.l.b16 %v431
    %v2132 = vunpack.c.h.b16 %v431
    %v2133 = vunpack.c.l.b16 %v432
    %v2134 = vunpack.c.h.b16 %v432
    %v2135 = vunpack.c.l.b16 %v433
    %v2136 = vunpack.c.h.b16 %v433
    %v2137 = vunpack.c.l.b16 %v434
    %v2138 = vunpack.c.h.b16 %v434
    %v2139 = vunpack.c.l.b16 %v435
    %v2140 = vunpack.c.h.b16 %v435
    %v2141 = vunpack.c.l.b16 %v436
    %v2142 = vunpack.c.h.b16 %v436
    %v2143 = vunpack.c.l.b16 %v437
    %v2144 = vunpack.c.h.b16 %v437
    %v2145 = vunpack.c.l.b16 %v438
    %v2146 = vunpack.c.h.b16 %v438
    %v2147 = vunpack.c.l.b16 %v439
    %v2148 = vunpack.c.h.b16 %v439
    %v2149 = vunpack.c.l.b16 %v440
    %v2150 = vunpack.c.h.b16 %v440
    %v2151 = vunpack.c.l.b16 %v441
    %v2152 = vunpack.c.h.b16 %v441
    %v2153 = vunpack.c.l.b16 %v442
    %v2154 = vunpack.c.h.b16 %v442
    %v2155 = vunpack.c.l.b16 %v443
    %v2156 = vunpack.c.h.b16 %v443
    %v2157 = vunpack.c.l.b16 %v444
    %v2158 = vunpack.c.h.b16 %v444
    %v2159 = vunpack.c.l.b16 %v445
    %v2160 = vunpack.c.h.b16 %v445
    %v2161 = vunpack.c.l.b16 %v446
    %v2162 = vunpack.c.h.b16 %v446
    %v2163 = vunpack.c.l.b16 %v447
    %v2164 = vunpack.c.h.b16 %v447
    %v2165 = vunpack.c.l.b16 %v448
    %v2166 = vunpack.c.h.b16 %v448
    %v2167 = vunpack.c.l.b16 %v449
    %v2168 = vunpack.c.h.b16 %v449
    %v2169 = vunpack.c.l.b16 %v450
    %v2170 = vunpack.c.h.b16 %v450
    %v2171 = vunpack.c.l.b16 %v451
    %v2172 = vunpack.c.h.b16 %v451
    %v2173 = vunpack.c.l.b16 %v452
    %v2174 = vunpack.c.h.b16 %v452
    %v2175 = vunpack.c.l.b16 %v453
    %v2176 = vunpack.c.h.b16 %v453
    %v2177 = vunpack.c.l.b16 %v454
    %v2178 = vunpack.c.h.b16 %v454
    %v2179 = vunpack.c.l.b16 %v455
    %v2180 = vunpack.c.h.b16 %v455
    %v2181 = vunpack.c.l.b16 %v456
    %v2182 = vunpack.c.h.b16 %v456
    %v2183 = vunpack.c.l.b16 %v457
    %v2184 = vunpack.c.h.b16 %v457
    %v2185 = vunpack.c.l.b16 %v458
    %v2186 = vunpack.c.h.b16 %v458
    %v2187 = vunpack.c.l.b16 %v459
    %v2188 = vunpack.c.h.b16 %v459
    %v2189 = vunpack.c.l.b16 %v460
    %v2190 = vunpack.c.h.b16 %v460
    %v2191 = vunpack.c.l.b16 %v461
    %v2192 = vunpack.c.h.b16 %v461
    %v2193 = vunpack.c.l.b16 %v462
    %v2194 = vunpack.c.h.b16 %v462
    %v2195 = vunpack.c.l.b16 %v463
    %v2196 = vunpack.c.h.b16 %v463
    %v2197 = vunpack.c.l.b16 %v464
    %v2198 = vunpack.c.h.b16 %v464
    %v2199 = vunpack.c.l.b16 %v465
    %v2200 = vunpack.c.h.b16 %v465
    %v2201 = vunpack.c.l.b16 %v466
    %v2202 = vunpack.c.h.b16 %v466
    %v2203 = vunpack.c.l.b16 %v467
    %v2204 = vunpack.c.h.b16 %v467
    %v2205 = vunpack.c.l.b16 %v468
    %v2206 = vunpack.c.h.b16 %v468
    %v2207 = vunpack.c.l.b16 %v469
    %v2208 = vunpack.c.h.b16 %v469
    %v2209 = vunpack.c.l.b16 %v470
    %v2210 = vunpack.c.h.b16 %v470
    %v2211 = vunpack.c.l.b16 %v471
    %v2212 = vunpack.c.h.b16 %v471
    %v2213 = vunpack.c.l.b16 %v472
    %v2214 = vunpack.c.h.b16 %v472
    %v2215 = vunpack.c.l.b16 %v473
    %v2216 = vunpack.c.h.b16 %v473
    %v2217 = vunpack.c.l.b16 %v474
    %v2218 = vunpack.c.h.b16 %v474
    %v2219 = vunpack.c.l.b16 %v475
    %v2220 = vunpack.c.h.b16 %v475
    %v2221 = vunpack.c.l.b16 %v476
    %v2222 = vunpack.c.h.b16 %v476
    %v2223 = vunpack.c.l.b16 %v477
    %v2224 = vunpack.c.h.b16 %v477
    %v2225 = vunpack.c.l.b16 %v478
    %v2226 = vunpack.c.h.b16 %v478
    %v2227 = vunpack.c.l.b16 %v479
    %v2228 = vunpack.c.h.b16 %v479
    %v2229 = vunpack.c.l.b16 %v480
    %v2230 = vunpack.c.h.b16 %v480
    %v2231 = vunpack.c.l.b16 %v481
    %v2232 = vunpack.c.h.b16 %v481
    %v2233 = vunpack.c.l.b16 %v482
    %v2234 = vunpack.c.h.b16 %v482
    %v2235 = vunpack.c.l.b16 %v483
    %v2236 = vunpack.c.h.b16 %v483
    %v2237 = vunpack.c.l.b16 %v484
    %v2238 = vunpack.c.h.b16 %v484
    %v2239 = vunpack.c.l.b16 %v485
    %v2240 = vunpack.c.h.b16 %v485
    %v2241 = vunpack.c.l.b16 %v486
    %v2242 = vunpack.c.h.b16 %v486
    %v2243 = vunpack.c.l.b16 %v487
    %v2244 = vunpack.c.h.b16 %v487
    %v2245 = vunpack.c.l.b16 %v488
    %v2246 = vunpack.c.h.b16 %v488
    %v2247 = vunpack.c.l.b16 %v489
    %v2248 = vunpack.c.h.b16 %v489
    %v2249 = vunpack.c.l.b16 %v490
    %v2250 = vunpack.c.h.b16 %v490
    %v2251 = vunpack.c.l.b16 %v491
    %v2252 = vunpack.c.h.b16 %v491
    %v2253 = vunpack.c.l.b16 %v492
    %v2254 = vunpack.c.h.b16 %v492
    %v2255 = vunpack.c.l.b16 %v493
    %v2256 = vunpack.c.h.b16 %v493
    %v2257 = vunpack.c.l.b16 %v494
    %v2258 = vunpack.c.h.b16 %v494
    %v2259 = vunpack.c.l.b16 %v495
    %v2260 = vunpack.c.h.b16 %v495
    %v2261 = vunpack.c.l.b16 %v496
    %v2262 = vunpack.c.h.b16 %v496
    %v2263 = vunpack.c.l.b16 %v497
    %v2264 = vunpack.c.h.b16 %v497
    %v2265 = vunpack.c.l.b16 %v498
    %v2266 = vunpack.c.h.b16 %v498
    %v2267 = vunpack.c.l.b16 %v499
    %v2268 = vunpack.c.h.b16 %v499
    %v2269 = vunpack.c.l.b16 %v500
    %v2270 = vunpack.c.h.b16 %v500
    %v2271 = vunpack.c.l.b16 %v501
    %v2272 = vunpack.c.h.b16 %v501
    %v2273 = vunpack.c.l.b16 %v502
    %v2274 = vunpack.c.h.b16 %v502
    %v2275 = vunpack.c.l.b16 %v503
    %v2276 = vunpack.c.h.b16 %v503
    %v2277 = vunpack.c.l.b16 %v504
    %v2278 = vunpack.c.h.b16 %v504
    %v2279 = vunpack.c.l.b16 %v505
    %v2280 = vunpack.c.h.b16 %v505
    %v2281 = vunpack.c.l.b16 %v506
    %v2282 = vunpack.c.h.b16 %v506
    %v2283 = vunpack.c.l.b16 %v507
    %v2284 = vunpack.c.h.b16 %v507
    %v2285 = vunpack.c.l.b16 %v508
    %v2286 = vunpack.c.h.b16 %v508
    %v2287 = vunpack.c.l.b16 %v509
    %v2288 = vunpack.c.h.b16 %v509
    %v2289 = vunpack.c.l.b16 %v510
    %v2290 = vunpack.c.h.b16 %v510
    %v2291 = vunpack.c.l.b16 %v511
    %v2292 = vunpack.c.h.b16 %v511
    %v2293 = vunpack.c.l.b16 %v512
    %v2294 = vunpack.c.h.b16 %v512
    %v2295 = vunpack.c.l.b16 %v513
    %v2296 = vunpack.c.h.b16 %v513
    %v2297 = vunpack.c.l.b16 %v514
    %v2298 = vunpack.c.h.b16 %v514
    %v2299 = vunpack.c.l.b16 %v515
    %v2300 = vunpack.c.h.b16 %v515
    %v2301 = vunpack.c.l.b16 %v516
    %v2302 = vunpack.c.h.b16 %v516
    %v2303 = vunpack.c.l.b16 %v517
    %v2304 = vunpack.c.h.b16 %v517
    %v2305 = vunpack.c.l.b16 %v518
    %v2306 = vunpack.c.h.b16 %v518
    %v2307 = vunpack.c.l.b16 %v519
    %v2308 = vunpack.c.h.b16 %v519
    %v2309 = vunpack.c.l.b16 %v520
    %v2310 = vunpack.c.h.b16 %v520
    %v2311 = vunpack.c.l.b16 %v521
    %v2312 = vunpack.c.h.b16 %v521
    %v2313 = vunpack.c.l.b16 %v522
    %v2314 = vunpack.c.h.b16 %v522
    %v2315 = vunpack.c.l.b16 %v523
    %v2316 = vunpack.c.h.b16 %v523
    %v2317 = vunpack.c.l.b16 %v524
    %v2318 = vunpack.c.h.b16 %v524
    %v2319 = vunpack.c.l.b16 %v525
    %v2320 = vunpack.c.h.b16 %v525
    %v2321 = vunpack.c.l.b16 %v526
    %v2322 = vunpack.c.h.b16 %v526
    %v2323 = vunpack.c.l.b16 %v527
    %v2324 = vunpack.c.h.b16 %v527
    %v2325 = vunpack.c.l.b16 %v528
    %v2326 = vunpack.c.h.b16 %v528
    %v2327 = vunpack.c.l.b16 %v529
    %v2328 = vunpack.c.h.b16 %v529
    %v2329 = vunpack.c.l.b16 %v530
    %v2330 = vunpack.c.h.b16 %v530
    %v2331 = vunpack.c.l.b16 %v531
    %v2332 = vunpack.c.h.b16 %v531
    %v2333 = vunpack.c.l.b16 %v532
    %v2334 = vunpack.c.h.b16 %v532
    %v2335 = vunpack.c.l.b16 %v533
    %v2336 = vunpack.c.h.b16 %v533
    %v2337 = vunpack.c.l.b16 %v534
    %v2338 = vunpack.c.h.b16 %v534
    %v2339 = vunpack.c.l.b16 %v535
    %v2340 = vunpack.c.h.b16 %v535
    %v2341 = vunpack.c.l.b16 %v536
    %v2342 = vunpack.c.h.b16 %v536
    %v2343 = vunpack.c.l.b16 %v537
    %v2344 = vunpack.c.h.b16 %v537
    %v2345 = vunpack.c.l.b16 %v538
    %v2346 = vunpack.c.h.b16 %v538
    %v2347 = vunpack.c.l.b16 %v539
    %v2348 = vunpack.c.h.b16 %v539
    %v2349 = vunpack.c.l.b16 %v540
    %v2350 = vunpack.c.h.b16 %v540
    %v2351 = vunpack.c.l.b16 %v541
    %v2352 = vunpack.c.h.b16 %v541
    %v2353 = vunpack.c.l.b16 %v542
    %v2354 = vunpack.c.h.b16 %v542
    %v2355 = vunpack.c.l.b16 %v543
    %v2356 = vunpack.c.h.b16 %v543
    %v2357 = vunpack.c.l.b16 %v544
    %v2358 = vunpack.c.h.b16 %v544
    %v2359 = vunpack.c.l.b16 %v545
    %v2360 = vunpack.c.h.b16 %v545
    %v2361 = vunpack.c.l.b16 %v546
    %v2362 = vunpack.c.h.b16 %v546
    %v2363 = vunpack.c.l.b16 %v547
    %v2364 = vunpack.c.h.b16 %v547
    %v2365 = vunpack.c.l.b16 %v548
    %v2366 = vunpack.c.h.b16 %v548
    %v2367 = vunpack.c.l.b16 %v549
    %v2368 = vunpack.c.h.b16 %v549
    %v2369 = vunpack.c.l.b16 %v550
    %v2370 = vunpack.c.h.b16 %v550
    %v2371 = vunpack.c.l.b16 %v551
    %v2372 = vunpack.c.h.b16 %v551
    %v2373 = vunpack.c.l.b16 %v552
    %v2374 = vunpack.c.h.b16 %v552
    %v2375 = vunpack.c.l.b16 %v553
    %v2376 = vunpack.c.h.b16 %v553
    %v2377 = vunpack.c.l.b16 %v554
    %v2378 = vunpack.c.h.b16 %v554
    %v2379 = vunpack.c.l.b16 %v555
    %v2380 = vunpack.c.h.b16 %v555
    %v2381 = vunpack.c.l.b16 %v556
    %v2382 = vunpack.c.h.b16 %v556
    %v2383 = vunpack.c.l.b16 %v557
    %v2384 = vunpack.c.h.b16 %v557
    %v2385 = vunpack.c.l.b16 %v558
    %v2386 = vunpack.c.h.b16 %v558
    %v2387 = vunpack.c.l.b16 %v559
    %v2388 = vunpack.c.h.b16 %v559
    %v2389 = vunpack.c.l.b16 %v560
    %v2390 = vunpack.c.h.b16 %v560
    %v2391 = vunpack.c.l.b16 %v561
    %v2392 = vunpack.c.h.b16 %v561
    %v2393 = vunpack.c.l.b16 %v562
    %v2394 = vunpack.c.h.b16 %v562
    %v2395 = vunpack.c.l.b16 %v563
    %v2396 = vunpack.c.h.b16 %v563
    %v2397 = vunpack.c.l.b16 %v564
    %v2398 = vunpack.c.h.b16 %v564
    %v2399 = vunpack.c.l.b16 %v565
    %v2400 = vunpack.c.h.b16 %v565
    %v2401 = vunpack.c.l.b16 %v566
    %v2402 = vunpack.c.h.b16 %v566
    %v2403 = vunpack.c.l.b16 %v567
    %v2404 = vunpack.c.h.b16 %v567
    %v2405 = vunpack.c.l.b16 %v568
    %v2406 = vunpack.c.h.b16 %v568
    %v2407 = vunpack.c.l.b16 %v569
    %v2408 = vunpack.c.h.b16 %v569
    %v2409 = vunpack.c.l.b16 %v570
    %v2410 = vunpack.c.h.b16 %v570
    %v2411 = vunpack.c.l.b16 %v571
    %v2412 = vunpack.c.h.b16 %v571
    %v2413 = vunpack.c.l.b16 %v572
    %v2414 = vunpack.c.h.b16 %v572
    %v2415 = vunpack.c.l.b16 %v573
    %v2416 = vunpack.c.h.b16 %v573
    %v2417 = vunpack.c.l.b16 %v574
    %v2418 = vunpack.c.h.b16 %v574
    %v2419 = vunpack.c.l.b16 %v575
    %v2420 = vunpack.c.h.b16 %v575
    %v2421 = vunpack.c.l.b16 %v576
    %v2422 = vunpack.c.h.b16 %v576
    %v2423 = vunpack.c.l.b16 %v577
    %v2424 = vunpack.c.h.b16 %v577
    %v2425 = vunpack.c.l.b16 %v578
    %v2426 = vunpack.c.h.b16 %v578
    %v2427 = vunpack.c.l.b16 %v579
    %v2428 = vunpack.c.h.b16 %v579
    %v2429 = vunpack.c.l.b16 %v580
    %v2430 = vunpack.c.h.b16 %v580
    %v2431 = vunpack.c.l.b16 %v581
    %v2432 = vunpack.c.h.b16 %v581
    %v2433 = vunpack.c.l.b16 %v582
    %v2434 = vunpack.c.h.b16 %v582
    %v2435 = vunpack.c.l.b16 %v583
    %v2436 = vunpack.c.h.b16 %v583
    %v2437 = vunpack.c.l.b16 %v584
    %v2438 = vunpack.c.h.b16 %v584
    %v2439 = vunpack.c.l.b16 %v585
    %v2440 = vunpack.c.h.b16 %v585
    %v2441 = vunpack.c.l.b16 %v586
    %v2442 = vunpack.c.h.b16 %v586
    %v2443 = vunpack.c.l.b16 %v587
    %v2444 = vunpack.c.h.b16 %v587
    %v2445 = vunpack.c.l.b16 %v588
    %v2446 = vunpack.c.h.b16 %v588
    %v2447 = vunpack.c.l.b16 %v589
    %v2448 = vunpack.c.h.b16 %v589
    %v2449 = vunpack.c.l.b16 %v590
    %v2450 = vunpack.c.h.b16 %v590
    %v2451 = vunpack.c.l.b16 %v591
    %v2452 = vunpack.c.h.b16 %v591
    %v2453 = vunpack.c.l.b16 %v592
    %v2454 = vunpack.c.h.b16 %v592
    %v2455 = vunpack.c.l.b16 %v593
    %v2456 = vunpack.c.h.b16 %v593
    %v2457 = vunpack.c.l.b16 %v594
    %v2458 = vunpack.c.h.b16 %v594
    %v2459 = vunpack.c.l.b16 %v595
    %v2460 = vunpack.c.h.b16 %v595
    %v2461 = vunpack.c.l.b16 %v596
    %v2462 = vunpack.c.h.b16 %v596
    %v2463 = vunpack.c.l.b16 %v597
    %v2464 = vunpack.c.h.b16 %v597
    %v2465 = vunpack.c.l.b16 %v598
    %v2466 = vunpack.c.h.b16 %v598
    %v2467 = vunpack.c.l.b16 %v599
    %v2468 = vunpack.c.h.b16 %v599
    %v2469 = vunpack.c.l.b16 %v600
    %v2470 = vunpack.c.h.b16 %v600
    %v2471 = vunpack.c.l.b16 %v601
    %v2472 = vunpack.c.h.b16 %v601
    %v2473 = vunpack.c.l.b16 %v602
    %v2474 = vunpack.c.h.b16 %v602
    %v2475 = vunpack.c.l.b16 %v603
    %v2476 = vunpack.c.h.b16 %v603
    %v2477 = vunpack.c.l.b16 %v604
    %v2478 = vunpack.c.h.b16 %v604
    %v2479 = vunpack.c.l.b16 %v605
    %v2480 = vunpack.c.h.b16 %v605
    %v2481 = vunpack.c.l.b16 %v606
    %v2482 = vunpack.c.h.b16 %v606
    %v2483 = vunpack.c.l.b16 %v607
    %v2484 = vunpack.c.h.b16 %v607
    %v2485 = vunpack.c.l.b16 %v608
    %v2486 = vunpack.c.h.b16 %v608
    %v2487 = vunpack.c.l.b16 %v609
    %v2488 = vunpack.c.h.b16 %v609
    %v2489 = vunpack.c.l.b16 %v610
    %v2490 = vunpack.c.h.b16 %v610
    %v2491 = vunpack.c.l.b16 %v611
    %v2492 = vunpack.c.h.b16 %v611
    %v2493 = vunpack.c.l.b16 %v612
    %v2494 = vunpack.c.h.b16 %v612
    %v2495 = vunpack.c.l.b16 %v613
    %v2496 = vunpack.c.h.b16 %v613
    %v2497 = vunpack.c.l.b16 %v614
    %v2498 = vunpack.c.h.b16 %v614
    %v2499 = vunpack.c.l.b16 %v615
    %v2500 = vunpack.c.h.b16 %v615
    %v2501 = vunpack.c.l.b16 %v616
    %v2502 = vunpack.c.h.b16 %v616
    %v2503 = vunpack.c.l.b16 %v617
    %v2504 = vunpack.c.h.b16 %v617
    %v2505 = vunpack.c.l.b16 %v618
    %v2506 = vunpack.c.h.b16 %v618
    %v2507 = vunpack.c.l.b16 %v619
    %v2508 = vunpack.c.h.b16 %v619
    %v2509 = vunpack.c.l.b16 %v620
    %v2510 = vunpack.c.h.b16 %v620
    %v2511 = vunpack.c.l.b16 %v621
    %v2512 = vunpack.c.h.b16 %v621
    %v2513 = vunpack.c.l.b16 %v622
    %v2514 = vunpack.c.h.b16 %v622
    %v2515 = vunpack.c.l.b16 %v623
    %v2516 = vunpack.c.h.b16 %v623
    %v2517 = vunpack.c.l.b16 %v624
    %v2518 = vunpack.c.h.b16 %v624
    %v2519 = vunpack.c.l.b16 %v625
    %v2520 = vunpack.c.h.b16 %v625
    %v2521 = vunpack.c.l.b16 %v626
    %v2522 = vunpack.c.h.b16 %v626
    %v2523 = vunpack.c.l.b16 %v627
    %v2524 = vunpack.c.h.b16 %v627
    %v2525 = vunpack.c.l.b16 %v628
    %v2526 = vunpack.c.h.b16 %v628
    %v2527 = vunpack.c.l.b16 %v629
    %v2528 = vunpack.c.h.b16 %v629
    %v2529 = vunpack.c.l.b16 %v630
    %v2530 = vunpack.c.h.b16 %v630
    %v2531 = vunpack.c.l.b16 %v631
    %v2532 = vunpack.c.h.b16 %v631
    %v2533 = vunpack.c.l.b16 %v632
    %v2534 = vunpack.c.h.b16 %v632
    %v2535 = vunpack.c.l.b16 %v633
    %v2536 = vunpack.c.h.b16 %v633
    %v2537 = vunpack.c.l.b16 %v634
    %v2538 = vunpack.c.h.b16 %v634
    %v2539 = vunpack.c.l.b16 %v635
    %v2540 = vunpack.c.h.b16 %v635
    %v2541 = vunpack.c.l.b16 %v636
    %v2542 = vunpack.c.h.b16 %v636
    %v2543 = vunpack.c.l.b16 %v637
    %v2544 = vunpack.c.h.b16 %v637
    %v2545 = vunpack.c.l.b16 %v638
    %v2546 = vunpack.c.h.b16 %v638
    %v2547 = vunpack.c.l.b16 %v639
    %v2548 = vunpack.c.h.b16 %v639
    %v2549 = vunpack.c.l.b16 %v640
    %v2550 = vunpack.c.h.b16 %v640
    %v2551 = vunpack.c.l.b16 %v641
    %v2552 = vunpack.c.h.b16 %v641
    %v2553 = vunpack.c.l.b16 %v642
    %v2554 = vunpack.c.h.b16 %v642
    %v2555 = vunpack.c.l.b16 %v643
    %v2556 = vunpack.c.h.b16 %v643
    %v2557 = vunpack.c.l.b16 %v644
    %v2558 = vunpack.c.h.b16 %v644
    %v2559 = vunpack.c.l.b16 %v645
    %v2560 = vunpack.c.h.b16 %v645
    %v2561 = vunpack.c.l.b16 %v646
    %v2562 = vunpack.c.h.b16 %v646
    %v2563 = vunpack.c.l.b16 %v647
    %v2564 = vunpack.c.h.b16 %v647
    %v2565 = vunpack.c.l.b16 %v648
    %v2566 = vunpack.c.h.b16 %v648
    %v2567 = vunpack.c.l.b16 %v649
    %v2568 = vunpack.c.h.b16 %v649
    %v2569 = vunpack.c.l.b16 %v650
    %v2570 = vunpack.c.h.b16 %v650
    %v2571 = vunpack.c.l.b16 %v651
    %v2572 = vunpack.c.h.b16 %v651
    %v2573 = vunpack.c.l.b16 %v652
    %v2574 = vunpack.c.h.b16 %v652
    %v2575 = vunpack.c.l.b16 %v653
    %v2576 = vunpack.c.h.b16 %v653
    %v2577 = vunpack.c.l.b16 %v654
    %v2578 = vunpack.c.h.b16 %v654
    %v2579 = vunpack.c.l.b16 %v655
    %v2580 = vunpack.c.h.b16 %v655
    %v2581 = vunpack.c.l.b16 %v656
    %v2582 = vunpack.c.h.b16 %v656
    %v2583 = vunpack.c.l.b16 %v657
    %v2584 = vunpack.c.h.b16 %v657
    %v2585 = vunpack.c.l.b16 %v658
    %v2586 = vunpack.c.h.b16 %v658
    %v2587 = vunpack.c.l.b16 %v659
    %v2588 = vunpack.c.h.b16 %v659
    %v2589 = vunpack.c.l.b16 %v660
    %v2590 = vunpack.c.h.b16 %v660
    %v2591 = vunpack.c.l.b16 %v661
    %v2592 = vunpack.c.h.b16 %v661
    %v2593 = vunpack.c.l.b16 %v662
    %v2594 = vunpack.c.h.b16 %v662
    %v2595 = vunpack.c.l.b16 %v663
    %v2596 = vunpack.c.h.b16 %v663
    %v2597 = vunpack.c.l.b16 %v664
    %v2598 = vunpack.c.h.b16 %v664
    %v2599 = vunpack.c.l.b16 %v665
    %v2600 = vunpack.c.h.b16 %v665
    %v2601 = vunpack.c.l.b16 %v666
    %v2602 = vunpack.c.h.b16 %v666
    %v2603 = vunpack.c.l.b16 %v667
    %v2604 = vunpack.c.h.b16 %v667
    %v2605 = vunpack.c.l.b16 %v668
    %v2606 = vunpack.c.h.b16 %v668
    %v2607 = vunpack.c.l.b16 %v669
    %v2608 = vunpack.c.h.b16 %v669
    %v2609 = vunpack.c.l.b16 %v670
    %v2610 = vunpack.c.h.b16 %v670
    %v2611 = vunpack.c.l.b16 %v671
    %v2612 = vunpack.c.h.b16 %v671
    %v2613 = vunpack.c.l.b16 %v672
    %v2614 = vunpack.c.h.b16 %v672
    %v2615 = vunpack.c.l.b16 %v673
    %v2616 = vunpack.c.h.b16 %v673
    %v2617 = vunpack.c.l.b16 %v674
    %v2618 = vunpack.c.h.b16 %v674
    %v2619 = vunpack.c.l.b16 %v675
    %v2620 = vunpack.c.h.b16 %v675
    %v2621 = vunpack.c.l.b16 %v676
    %v2622 = vunpack.c.h.b16 %v676
    %v2623 = vunpack.c.l.b16 %v677
    %v2624 = vunpack.c.h.b16 %v677
    %v2625 = vunpack.c.l.b16 %v678
    %v2626 = vunpack.c.h.b16 %v678
    %v2627 = vunpack.c.l.b16 %v679
    %v2628 = vunpack.c.h.b16 %v679
    %v2629 = vunpack.c.l.b16 %v680
    %v2630 = vunpack.c.h.b16 %v680
    %v2631 = vunpack.c.l.b16 %v681
    %v2632 = vunpack.c.h.b16 %v681
    %v2633 = vunpack.c.l.b16 %v682
    %v2634 = vunpack.c.h.b16 %v682
    %v2635 = vunpack.c.l.b16 %v683
    %v2636 = vunpack.c.h.b16 %v683
    %v2637 = vunpack.c.l.b16 %v684
    %v2638 = vunpack.c.h.b16 %v684
    %v2639 = vunpack.c.l.b16 %v685
    %v2640 = vunpack.c.h.b16 %v685
    %v2641 = vunpack.c.l.b16 %v686
    %v2642 = vunpack.c.h.b16 %v686
    %v2643 = vunpack.c.l.b16 %v687
    %v2644 = vunpack.c.h.b16 %v687
    %v2645 = vunpack.c.l.b16 %v688
    %v2646 = vunpack.c.h.b16 %v688
    %v2647 = vunpack.c.l.b16 %v689
    %v2648 = vunpack.c.h.b16 %v689
    %v2649 = vunpack.c.l.b16 %v690
    %v2650 = vunpack.c.h.b16 %v690
    %v2651 = vunpack.c.l.b16 %v691
    %v2652 = vunpack.c.h.b16 %v691
    %v2653 = vunpack.c.l.b16 %v692
    %v2654 = vunpack.c.h.b16 %v692
    %v2655 = vpack.c.b16 %v1767, %v1759
    %v2656 = vpack.c.b16 %v1768, %v1760
    %v2657 = vpack.c.b16 %v1769, %v1761
    %v2658 = vpack.c.b16 %v1770, %v1762
    %v2659 = vpack.c.b16 %v1771, %v1763
    %v2660 = vpack.c.b16 %v1772, %v1764
    %v2661 = vpack.c.b16 %v1773, %v1765
    %v2662 = vpack.c.b16 %v1774, %v1766
    %v2663 = vpack.c.b16 %v1783, %v1775
    %v2664 = vpack.c.b16 %v1784, %v1776
    %v2665 = vpack.c.b16 %v1785, %v1777
    %v2666 = vpack.c.b16 %v1786, %v1778
    %v2667 = vpack.c.b16 %v1787, %v1779
    %v2668 = vpack.c.b16 %v1788, %v1780
    %v2669 = vpack.c.b16 %v1789, %v1781
    %v2670 = vpack.c.b16 %v1790, %v1782
    %v2671 = vpack.c.b16 %v1799, %v1791
    %v2672 = vpack.c.b16 %v1800, %v1792
    %v2673 = vpack.c.b16 %v1801, %v1793
    %v2674 = vpack.c.b16 %v1802, %v1794
    %v2675 = vpack.c.b16 %v1803, %v1795
    %v2676 = vpack.c.b16 %v1804, %v1796
    %v2677 = vpack.c.b16 %v1805, %v1797
    %v2678 = vpack.c.b16 %v1806, %v1798
    %v2679 = vpack.c.b16 %v1815, %v1807
    %v2680 = vpack.c.b16 %v1816, %v1808
    %v2681 = vpack.c.b16 %v1817, %v1809
    %v2682 = vpack.c.b16 %v1818, %v1810
    %v2683 = vpack.c.b16 %v1819, %v1811
    %v2684 = vpack.c.b16 %v1820, %v1812
    %v2685 = vpack.c.b16 %v1821, %v1813
    %v2686 = vpack.c.b16 %v1822, %v1814
    %v2687 = vpack.c.b16 %v1831, %v1823
    %v2688 = vpack.c.b16 %v1832, %v1824
    %v2689 = vpack.c.b16 %v1833, %v1825
    %v2690 = vpack.c.b16 %v1834, %v1826
    %v2691 = vpack.c.b16 %v1835, %v1827
    %v2692 = vpack.c.b16 %v1836, %v1828
    %v2693 = vpack.c.b16 %v1837, %v1829
    %v2694 = vpack.c.b16 %v1838, %v1830
    %v2695 = vpack.c.b16 %v1847, %v1839
    %v2696 = vpack.c.b16 %v1848, %v1840
    %v2697 = vpack.c.b16 %v1849, %v1841
    %v2698 = vpack.c.b16 %v1850, %v1842
    %v2699 = vpack.c.b16 %v1851, %v1843
    %v2700 = vpack.c.b16 %v1852, %v1844
    %v2701 = vpack.c.b16 %v1853, %v1845
    %v2702 = vpack.c.b16 %v1854, %v1846
    %v2703 = vpack.c.b16 %v1863, %v1855
    %v2704 = vpack.c.b16 %v1864, %v1856
    %v2705 = vpack.c.b16 %v1865, %v1857
    %v2706 = vpack.c.b16 %v1866, %v1858
    %v2707 = vpack.c.b16 %v1867, %v1859
    %v2708 = vpack.c.b16 %v1868, %v1860
    %v2709 = vpack.c.b16 %v1869, %v1861
    %v2710 = vpack.c.b16 %v1870, %v1862
    %v2711 = vpack.c.b16 %v1879, %v1871
    %v2712 = vpack.c.b16 %v1880, %v1872
    %v2713 = vpack.c.b16 %v1881, %v1873
    %v2714 = vpack.c.b16 %v1882, %v1874
    %v2715 = vpack.c.b16 %v1883, %v1875
    %v2716 = vpack.c.b16 %v1884, %v1876
    %v2717 = vpack.c.b16 %v1885, %v1877
    %v2718 = vpack.c.b16 %v1886, %v1878
    %v2719 = vpack.c.b16 %v1895, %v1887
    %v2720 = vpack.c.b16 %v1896, %v1888
    %v2721 = vpack.c.b16 %v1897, %v1889
    %v2722 = vpack.c.b16 %v1898, %v1890
    %v2723 = vpack.c.b16 %v1899, %v1891
    %v2724 = vpack.c.b16 %v1900, %v1892
    %v2725 = vpack.c.b16 %v1901, %v1893
    %v2726 = vpack.c.b16 %v1902, %v1894
    %v2727 = vpack.c.b16 %v1911, %v1903
    %v2728 = vpack.c.b16 %v1912, %v1904
    %v2729 = vpack.c.b16 %v1913, %v1905
    %v2730 = vpack.c.b16 %v1914, %v1906
    %v2731 = vpack.c.b16 %v1915, %v1907
    %v2732 = vpack.c.b16 %v1916, %v1908
    %v2733 = vpack.c.b16 %v1917, %v1909
    %v2734 = vpack.c.b16 %v1918, %v1910
    %v2735 = vpack.c.b16 %v1927, %v1919
    %v2736 = vpack.c.b16 %v1928, %v1920
    %v2737 = vpack.c.b16 %v1929, %v1921
    %v2738 = vpack.c.b16 %v1930, %v1922
    %v2739 = vpack.c.b16 %v1931, %v1923
    %v2740 = vpack.c.b16 %v1932, %v1924
    %v2741 = vpack.c.b16 %v1933, %v1925
    %v2742 = vpack.c.b16 %v1934, %v1926
    %v2743 = vpack.c.b16 %v1943, %v1935
    %v2744 = vpack.c.b16 %v1944, %v1936
    %v2745 = vpack.c.b16 %v1945, %v1937
    %v2746 = vpack.c.b16 %v1946, %v1938
    %v2747 = vpack.c.b16 %v1947, %v1939
    %v2748 = vpack.c.b16 %v1948, %v1940
    %v2749 = vpack.c.b16 %v1949, %v1941
    %v2750 = vpack.c.b16 %v1950, %v1942
    %v2751 = vpack.c.b16 %v1959, %v1951
    %v2752 = vpack.c.b16 %v1960, %v1952
    %v2753 = vpack.c.b16 %v1961, %v1953
    %v2754 = vpack.c.b16 %v1962, %v1954
    %v2755 = vpack.c.b16 %v1963, %v1955
    %v2756 = vpack.c.b16 %v1964, %v1956
    %v2757 = vpack.c.b16 %v1965, %v1957
    %v2758 = vpack.c.b16 %v1966, %v1958
    %v2759 = vpack.c.b16 %v1975, %v1967
    %v2760 = vpack.c.b16 %v1976, %v1968
    %v2761 = vpack.c.b16 %v1977, %v1969
    %v2762 = vpack.c.b16 %v1978, %v1970
    %v2763 = vpack.c.b16 %v1979, %v1971
    %v2764 = vpack.c.b16 %v1980, %v1972
    %v2765 = vpack.c.b16 %v1981, %v1973
    %v2766 = vpack.c.b16 %v1982, %v1974
    %v2767 = vpack.c.b16 %v1991, %v1983
    %v2768 = vpack.c.b16 %v1992, %v1984
    %v2769 = vpack.c.b16 %v1993, %v1985
    %v2770 = vpack.c.b16 %v1994, %v1986
    %v2771 = vpack.c.b16 %v1995, %v1987
    %v2772 = vpack.c.b16 %v1996, %v1988
    %v2773 = vpack.c.b16 %v1997, %v1989
    %v2774 = vpack.c.b16 %v1998, %v1990
    %v2775 = vpack.c.b16 %v2007, %v1999
    %v2776 = vpack.c.b16 %v2008, %v2000
    %v2777 = vpack.c.b16 %v2009, %v2001
    %v2778 = vpack.c.b16 %v2010, %v2002
    %v2779 = vpack.c.b16 %v2011, %v2003
    %v2780 = vpack.c.b16 %v2012, %v2004
    %v2781 = vpack.c.b16 %v2013, %v2005
    %v2782 = vpack.c.b16 %v2014, %v2006
    %v2783 = vpack.c.b16 %v2023, %v2015
    %v2784 = vpack.c.b16 %v2024, %v2016
    %v2785 = vpack.c.b16 %v2025, %v2017
    %v2786 = vpack.c.b16 %v2026, %v2018
    %v2787 = vpack.c.b16 %v2027, %v2019
    %v2788 = vpack.c.b16 %v2028, %v2020
    %v2789 = vpack.c.b16 %v2029, %v2021
    %v2790 = vpack.c.b16 %v2030, %v2022
    %v2791 = vpack.c.b16 %v2039, %v2031
    %v2792 = vpack.c.b16 %v2040, %v2032
    %v2793 = vpack.c.b16 %v2041, %v2033
    %v2794 = vpack.c.b16 %v2042, %v2034
    %v2795 = vpack.c.b16 %v2043, %v2035
    %v2796 = vpack.c.b16 %v2044, %v2036
    %v2797 = vpack.c.b16 %v2045, %v2037
    %v2798 = vpack.c.b16 %v2046, %v2038
    %v2799 = vpack.c.b16 %v2055, %v2047
    %v2800 = vpack.c.b16 %v2056, %v2048
    %v2801 = vpack.c.b16 %v2057, %v2049
    %v2802 = vpack.c.b16 %v2058, %v2050
    %v2803 = vpack.c.b16 %v2059, %v2051
    %v2804 = vpack.c.b16 %v2060, %v2052
    %v2805 = vpack.c.b16 %v2061, %v2053
    %v2806 = vpack.c.b16 %v2062, %v2054
    %v2807 = vpack.c.b16 %v2071, %v2063
    %v2808 = vpack.c.b16 %v2072, %v2064
    %v2809 = vpack.c.b16 %v2073, %v2065
    %v2810 = vpack.c.b16 %v2074, %v2066
    %v2811 = vpack.c.b16 %v2075, %v2067
    %v2812 = vpack.c.b16 %v2076, %v2068
    %v2813 = vpack.c.b16 %v2077, %v2069
    %v2814 = vpack.c.b16 %v2078, %v2070
    %v2815 = vpack.c.b16 %v2087, %v2079
    %v2816 = vpack.c.b16 %v2088, %v2080
    %v2817 = vpack.c.b16 %v2089, %v2081
    %v2818 = vpack.c.b16 %v2090, %v2082
    %v2819 = vpack.c.b16 %v2091, %v2083
    %v2820 = vpack.c.b16 %v2092, %v2084
    %v2821 = vpack.c.b16 %v2093, %v2085
    %v2822 = vpack.c.b16 %v2094, %v2086
    %v2823 = vpack.c.b16 %v2103, %v2095
    %v2824 = vpack.c.b16 %v2104, %v2096
    %v2825 = vpack.c.b16 %v2105, %v2097
    %v2826 = vpack.c.b16 %v2106, %v2098
    %v2827 = vpack.c.b16 %v2107, %v2099
    %v2828 = vpack.c.b16 %v2108, %v2100
    %v2829 = vpack.c.b16 %v2109, %v2101
    %v2830 = vpack.c.b16 %v2110, %v2102
    %v2831 = vpack.c.b16 %v2119, %v2111
    %v2832 = vpack.c.b16 %v2120, %v2112
    %v2833 = vpack.c.b16 %v2121, %v2113
    %v2834 = vpack.c.b16 %v2122, %v2114
    %v2835 = vpack.c.b16 %v2123, %v2115
    %v2836 = vpack.c.b16 %v2124, %v2116
    %v2837 = vpack.c.b16 %v2125, %v2117
    %v2838 = vpack.c.b16 %v2126, %v2118
    %v2839 = vpack.c.b16 %v2135, %v2127
    %v2840 = vpack.c.b16 %v2136, %v2128
    %v2841 = vpack.c.b16 %v2137, %v2129
    %v2842 = vpack.c.b16 %v2138, %v2130
    %v2843 = vpack.c.b16 %v2139, %v2131
    %v2844 = vpack.c.b16 %v2140, %v2132
    %v2845 = vpack.c.b16 %v2141, %v2133
    %v2846 = vpack.c.b16 %v2142, %v2134
    %v2847 = vpack.c.b16 %v2151, %v2143
    %v2848 = vpack.c.b16 %v2152, %v2144
    %v2849 = vpack.c.b16 %v2153, %v2145
    %v2850 = vpack.c.b16 %v2154, %v2146
    %v2851 = vpack.c.b16 %v2155, %v2147
    %v2852 = vpack.c.b16 %v2156, %v2148
    %v2853 = vpack.c.b16 %v2157, %v2149
    %v2854 = vpack.c.b16 %v2158, %v2150
    %v2855 = vpack.c.b16 %v2167, %v2159
    %v2856 = vpack.c.b16 %v2168, %v2160
    %v2857 = vpack.c.b16 %v2169, %v2161
    %v2858 = vpack.c.b16 %v2170, %v2162
    %v2859 = vpack.c.b16 %v2171, %v2163
    %v2860 = vpack.c.b16 %v2172, %v2164
    %v2861 = vpack.c.b16 %v2173, %v2165
    %v2862 = vpack.c.b16 %v2174, %v2166
    %v2863 = vpack.c.b16 %v2183, %v2175
    %v2864 = vpack.c.b16 %v2184, %v2176
    %v2865 = vpack.c.b16 %v2185, %v2177
    %v2866 = vpack.c.b16 %v2186, %v2178
    %v2867 = vpack.c.b16 %v2187, %v2179
    %v2868 = vpack.c.b16 %v2188, %v2180
    %v2869 = vpack.c.b16 %v2189, %v2181
    %v2870 = vpack.c.b16 %v2190, %v2182
    %v2871 = vpack.c.b16 %v2199, %v2191
    %v2872 = vpack.c.b16 %v2200, %v2192
    %v2873 = vpack.c.b16 %v2201, %v2193
    %v2874 = vpack.c.b16 %v2202, %v2194
    %v2875 = vpack.c.b16 %v2203, %v2195
    %v2876 = vpack.c.b16 %v2204, %v2196
    %v2877 = vpack.c.b16 %v2205, %v2197
    %v2878 = vpack.c.b16 %v2206, %v2198
    %v2879 = vpack.c.b16 %v2215, %v2207
    %v2880 = vpack.c.b16 %v2216, %v2208
    %v2881 = vpack.c.b16 %v2217, %v2209
    %v2882 = vpack.c.b16 %v2218, %v2210
    %v2883 = vpack.c.b16 %v2219, %v2211
    %v2884 = vpack.c.b16 %v2220, %v2212
    %v2885 = vpack.c.b16 %v2221, %v2213
    %v2886 = vpack.c.b16 %v2222, %v2214
    %v2887 = vpack.c.b16 %v2231, %v2223
    %v2888 = vpack.c.b16 %v2232, %v2224
    %v2889 = vpack.c.b16 %v2233, %v2225
    %v2890 = vpack.c.b16 %v2234, %v2226
    %v2891 = vpack.c.b16 %v2235, %v2227
    %v2892 = vpack.c.b16 %v2236, %v2228
    %v2893 = vpack.c.b16 %v2237, %v2229
    %v2894 = vpack.c.b16 %v2238, %v2230
    %v2895 = vpack.c.b16 %v2247, %v2239
    %v2896 = vpack.c.b16 %v2248, %v2240
    %v2897 = vpack.c.b16 %v2249, %v2241
    %v2898 = vpack.c.b16 %v2250, %v2242
    %v2899 = vpack.c.b16 %v2251, %v2243
    %v2900 = vpack.c.b16 %v2252, %v2244
    %v2901 = vpack.c.b16 %v2253, %v2245
    %v2902 = vpack.c.b16 %v2254, %v2246
    %v2903 = vpack.c.b16 %v2263, %v2255
    %v2904 = vpack.c.b16 %v2264, %v2256
    %v2905 = vpack.c.b16 %v2265, %v2257
    %v2906 = vpack.c.b16 %v2266, %v2258
    %v2907 = vpack.c.b16 %v2267, %v2259
    %v2908 = vpack.c.b16 %v2268, %v2260
    %v2909 = vpack.c.b16 %v2269, %v2261
    %v2910 = vpack.c.b16 %v2270, %v2262
    %v2911 = vpack.c.b16 %v2279, %v2271
    %v2912 = vpack.c.b16 %v2280, %v2272
    %v2913 = vpack.c.b16 %v2281, %v2273
    %v2914 = vpack.c.b16 %v2282, %v2274
    %v2915 = vpack.c.b16 %v2283, %v2275
    %v2916 = vpack.c.b16 %v2284, %v2276
    %v2917 = vpack.c.b16 %v2285, %v2277
    %v2918 = vpack.c.b16 %v2286, %v2278
    %v2919 = vpack.c.b16 %v2295, %v2287
    %v2920 = vpack.c.b16 %v2296, %v2288
    %v2921 = vpack.c.b16 %v2297, %v2289
    %v2922 = vpack.c.b16 %v2298, %v2290
    %v2923 = vpack.c.b16 %v2299, %v2291
    %v2924 = vpack.c.b16 %v2300, %v2292
    %v2925 = vpack.c.b16 %v2301, %v2293
    %v2926 = vpack.c.b16 %v2302, %v2294
    %v2927 = vpack.c.b16 %v2311, %v2303
    %v2928 = vpack.c.b16 %v2312, %v2304
    %v2929 = vpack.c.b16 %v2313, %v2305
    %v2930 = vpack.c.b16 %v2314, %v2306
    %v2931 = vpack.c.b16 %v2315, %v2307
    %v2932 = vpack.c.b16 %v2316, %v2308
    %v2933 = vpack.c.b16 %v2317, %v2309
    %v2934 = vpack.c.b16 %v2318, %v2310
    %v2935 = vpack.c.b16 %v2327, %v2319
    %v2936 = vpack.c.b16 %v2328, %v2320
    %v2937 = vpack.c.b16 %v2329, %v2321
    %v2938 = vpack.c.b16 %v2330, %v2322
    %v2939 = vpack.c.b16 %v2331, %v2323
    %v2940 = vpack.c.b16 %v2332, %v2324
    %v2941 = vpack.c.b16 %v2333, %v2325
    %v2942 = vpack.c.b16 %v2334, %v2326
    %v2943 = vpack.c.b16 %v2343, %v2335
    %v2944 = vpack.c.b16 %v2344, %v2336
    %v2945 = vpack.c.b16 %v2345, %v2337
    %v2946 = vpack.c.b16 %v2346, %v2338
    %v2947 = vpack.c.b16 %v2347, %v2339
    %v2948 = vpack.c.b16 %v2348, %v2340
    %v2949 = vpack.c.b16 %v2349, %v2341
    %v2950 = vpack.c.b16 %v2350, %v2342
    %v2951 = vpack.c.b16 %v2359, %v2351
    %v2952 = vpack.c.b16 %v2360, %v2352
    %v2953 = vpack.c.b16 %v2361, %v2353
    %v2954 = vpack.c.b16 %v2362, %v2354
    %v2955 = vpack.c.b16 %v2363, %v2355
    %v2956 = vpack.c.b16 %v2364, %v2356
    %v2957 = vpack.c.b16 %v2365, %v2357
    %v2958 = vpack.c.b16 %v2366, %v2358
    %v2959 = vpack.c.b16 %v2375, %v2367
    %v2960 = vpack.c.b16 %v2376, %v2368
    %v2961 = vpack.c.b16 %v2377, %v2369
    %v2962 = vpack.c.b16 %v2378, %v2370
    %v2963 = vpack.c.b16 %v2379, %v2371
    %v2964 = vpack.c.b16 %v2380, %v2372
    %v2965 = vpack.c.b16 %v2381, %v2373
    %v2966 = vpack.c.b16 %v2382, %v2374
    %v2967 = vpack.c.b16 %v2391, %v2383
    %v2968 = vpack.c.b16 %v2392, %v2384
    %v2969 = vpack.c.b16 %v2393, %v2385
    %v2970 = vpack.c.b16 %v2394, %v2386
    %v2971 = vpack.c.b16 %v2395, %v2387
    %v2972 = vpack.c.b16 %v2396, %v2388
    %v2973 = vpack.c.b16 %v2397, %v2389
    %v2974 = vpack.c.b16 %v2398, %v2390
    %v2975 = vpack.c.b16 %v2407, %v2399
    %v2976 = vpack.c.b16 %v2408, %v2400
    %v2977 = vpack.c.b16 %v2409, %v2401
    %v2978 = vpack.c.b16 %v2410, %v2402
    %v2979 = vpack.c.b16 %v2411, %v2403
    %v2980 = vpack.c.b16 %v2412, %v2404
    %v2981 = vpack.c.b16 %v2413, %v2405
    %v2982 = vpack.c.b16 %v2414, %v2406
    %v2983 = vpack.c.b16 %v2423, %v2415
    %v2984 = vpack.c.b16 %v2424, %v2416
    %v2985 = vpack.c.b16 %v2425, %v2417
    %v2986 = vpack.c.b16 %v2426, %v2418
    %v2987 = vpack.c.b16 %v2427, %v2419
    %v2988 = vpack.c.b16 %v2428, %v2420
    %v2989 = vpack.c.b16 %v2429, %v2421
    %v2990 = vpack.c.b16 %v2430, %v2422
    %v2991 = vpack.c.b16 %v2439, %v2431
    %v2992 = vpack.c.b16 %v2440, %v2432
    %v2993 = vpack.c.b16 %v2441, %v2433
    %v2994 = vpack.c.b16 %v2442, %v2434
    %v2995 = vpack.c.b16 %v2443, %v2435
    %v2996 = vpack.c.b16 %v2444, %v2436
    %v2997 = vpack.c.b16 %v2445, %v2437
    %v2998 = vpack.c.b16 %v2446, %v2438
    %v2999 = vpack.c.b16 %v2455, %v2447
    %v3000 = vpack.c.b16 %v2456, %v2448
    %v3001 = vpack.c.b16 %v2457, %v2449
    %v3002 = vpack.c.b16 %v2458, %v2450
    %v3003 = vpack.c.b16 %v2459, %v2451
    %v3004 = vpack.c.b16 %v2460, %v2452
    %v3005 = vpack.c.b16 %v2461, %v2453
    %v3006 = vpack.c.b16 %v2462, %v2454
    %v3007 = vpack.c.b16 %v2471, %v2463
    %v3008 = vpack.c.b16 %v2472, %v2464
    %v3009 = vpack.c.b16 %v2473, %v2465
    %v3010 = vpack.c.b16 %v2474, %v2466
    %v3011 = vpack.c.b16 %v2475, %v2467
    %v3012 = vpack.c.b16 %v2476, %v2468
    %v3013 = vpack.c.b16 %v2477, %v2469
    %v3014 = vpack.c.b16 %v2478, %v2470
    %v3015 = vpack.c.b16 %v2487, %v2479
    %v3016 = vpack.c.b16 %v2488, %v2480
    %v3017 = vpack.c.b16 %v2489, %v2481
    %v3018 = vpack.c.b16 %v2490, %v2482
    %v3019 = vpack.c.b16 %v2491, %v2483
    %v3020 = vpack.c.b16 %v2492, %v2484
    %v3021 = vpack.c.b16 %v2493, %v2485
    %v3022 = vpack.c.b16 %v2494, %v2486
    %v3023 = vpack.c.b16 %v2503, %v2495
    %v3024 = vpack.c.b16 %v2504, %v2496
    %v3025 = vpack.c.b16 %v2505, %v2497
    %v3026 = vpack.c.b16 %v2506, %v2498
    %v3027 = vpack.c.b16 %v2507, %v2499
    %v3028 = vpack.c.b16 %v2508, %v2500
    %v3029 = vpack.c.b16 %v2509, %v2501
    %v3030 = vpack.c.b16 %v2510, %v2502
    %v3031 = vpack.c.b16 %v2519, %v2511
    %v3032 = vpack.c.b16 %v2520, %v2512
    %v3033 = vpack.c.b16 %v2521, %v2513
    %v3034 = vpack.c.b16 %v2522, %v2514
    %v3035 = vpack.c.b16 %v2523, %v2515
    %v3036 = vpack.c.b16 %v2524, %v2516
    %v3037 = vpack.c.b16 %v2525, %v2517
    %v3038 = vpack.c.b16 %v2526, %v2518
    %v3039 = vpack.c.b16 %v2535, %v2527
    %v3040 = vpack.c.b16 %v2536, %v2528
    %v3041 = vpack.c.b16 %v2537, %v2529
    %v3042 = vpack.c.b16 %v2538, %v2530
    %v3043 = vpack.c.b16 %v2539, %v2531
    %v3044 = vpack.c.b16 %v2540, %v2532
    %v3045 = vpack.c.b16 %v2541, %v2533
    %v3046 = vpack.c.b16 %v2542, %v2534
    %v3047 = vpack.c.b16 %v2551, %v2543
    %v3048 = vpack.c.b16 %v2552, %v2544
    %v3049 = vpack.c.b16 %v2553, %v2545
    %v3050 = vpack.c.b16 %v2554, %v2546
    %v3051 = vpack.c.b16 %v2555, %v2547
    %v3052 = vpack.c.b16 %v2556, %v2548
    %v3053 = vpack.c.b16 %v2557, %v2549
    %v3054 = vpack.c.b16 %v2558, %v2550
    %v3055 = vpack.c.b16 %v2567, %v2559
    %v3056 = vpack.c.b16 %v2568, %v2560
    %v3057 = vpack.c.b16 %v2569, %v2561
    %v3058 = vpack.c.b16 %v2570, %v2562
    %v3059 = vpack.c.b16 %v2571, %v2563
    %v3060 = vpack.c.b16 %v2572, %v2564
    %v3061 = vpack.c.b16 %v2573, %v2565
    %v3062 = vpack.c.b16 %v2574, %v2566
    %v3063 = vpack.c.b16 %v2583, %v2575
    %v3064 = vpack.c.b16 %v2584, %v2576
    %v3065 = vpack.c.b16 %v2585, %v2577
    %v3066 = vpack.c.b16 %v2586, %v2578
    %v3067 = vpack.c.b16 %v2587, %v2579
    %v3068 = vpack.c.b16 %v2588, %v2580
    %v3069 = vpack.c.b16 %v2589, %v2581
    %v3070 = vpack.c.b16 %v2590, %v2582
    %v3071 = vpack.c.b16 %v2599, %v2591
    %v3072 = vpack.c.b16 %v2600, %v2592
    %v3073 = vpack.c.b16 %v2601, %v2593
    %v3074 = vpack.c.b16 %v2602, %v2594
    %v3075 = vpack.c.b16 %v2603, %v2595
    %v3076 = vpack.c.b16 %v2604, %v2596
    %v3077 = vpack.c.b16 %v2605, %v2597
    %v3078 = vpack.c.b16 %v2606, %v2598
    %v3079 = vpack.c.b16 %v2615, %v2607
    %v3080 = vpack.c.b16 %v2616, %v2608
    %v3081 = vpack.c.b16 %v2617, %v2609
    %v3082 = vpack.c.b16 %v2618, %v2610
    %v3083 = vpack.c.b16 %v2619, %v2611
    %v3084 = vpack.c.b16 %v2620, %v2612
    %v3085 = vpack.c.b16 %v2621, %v2613
    %v3086 = vpack.c.b16 %v2622, %v2614
    %v3087 = vpack.c.b16 %v2631, %v2623
    %v3088 = vpack.c.b16 %v2632, %v2624
    %v3089 = vpack.c.b16 %v2633, %v2625
    %v3090 = vpack.c.b16 %v2634, %v2626
    %v3091 = vpack.c.b16 %v2635, %v2627
    %v3092 = vpack.c.b16 %v2636, %v2628
    %v3093 = vpack.c.b16 %v2637, %v2629
    %v3094 = vpack.c.b16 %v2638, %v2630
    %v3095 = vpack.c.b16 %v2647, %v2639
    %v3096 = vpack.c.b16 %v2648, %v2640
    %v3097 = vpack.c.b16 %v2649, %v2641
    %v3098 = vpack.c.b16 %v2650, %v2642
    %v3099 = vpack.c.b16 %v2651, %v2643
    %v3100 = vpack.c.b16 %v2652, %v2644
    %v3101 = vpack.c.b16 %v2653, %v2645
    %v3102 = vpack.c.b16 %v2654, %v2646
    %3551 = vmatprep.subr.bf16.mxu0 %v2712
    %3552 = vmatpush1.bf16.msra.mxu0 %v2711
    %3553 = vmatprep.subr.bf16.mxu0 %v2704
    %3554 = vmatpush1.bf16.msra.mxu0 %v2703
    %3555 = vmatprep.subr.bf16.mxu0 %v2696
    %3556 = vmatpush1.bf16.msra.mxu0 %v2695
    %3557 = vmatprep.subr.bf16.mxu0 %v2688
    %3558 = vmatpush1.bf16.msra.mxu0 %v2687
    %3559 = vmatprep.subr.bf16.mxu0 %v2680
    %3560 = vmatpush1.bf16.msra.mxu0 %v2679
    %3561 = vmatprep.subr.bf16.mxu0 %v2672
    %3562 = vmatpush1.bf16.msra.mxu0 %v2671
    %3563 = vmatprep.subr.bf16.mxu0 %v2664
    %3564 = vmatpush1.bf16.msra.mxu0 %v2663
    %3565 = vmatprep.subr.bf16.mxu0 %v2656
    %3566 = vmatpush1.bf16.msra.mxu0 %v2655
    %3567 = vmatprep.subr.bf16.mxu0 %v2776
    %3568 = vmatpush2.bf16.msra.mxu0 %v2775
    %3569 = vmatprep.subr.bf16.mxu0 %v2768
    %3570 = vmatpush2.bf16.msra.mxu0 %v2767
    %3571 = vmatprep.subr.bf16.mxu0 %v2760
    %3572 = vmatpush2.bf16.msra.mxu0 %v2759
    %3573 = vmatprep.subr.bf16.mxu0 %v2752
    %3574 = vmatpush2.bf16.msra.mxu0 %v2751
    %3575 = vmatprep.subr.bf16.mxu0 %v2744
    %3576 = vmatpush2.bf16.msra.mxu0 %v2743
    %3577 = vmatprep.subr.bf16.mxu0 %v2736
    %3578 = vmatpush2.bf16.msra.mxu0 %v2735
    %3579 = vmatprep.subr.bf16.mxu0 %v2728
    %3580 = vmatpush2.bf16.msra.mxu0 %v2727
    %3581 = vmatprep.subr.bf16.mxu0 %v2720
    %3582 = vmatpush2.bf16.msra.mxu0 %v2719
    %3583 = vmatprep.mubr.bf16.mxu0 %v1088
    %3584 = vmatmul.mubr.bf16.gmra.mxu0 %v1087
    %v3585 = vpop.f32.mrf.mxu0
    %v3586 = vadd.f32 %v698, %v3585
    %v3587 = vpop.f32.mrf.mxu0
    %v3588 = vadd.f32 %v702, %v3587
    %v3589 = vpop.f32.mrf.mxu0
    %v3590 = vadd.f32 %v698, %v3589
    %v3591 = vpop.f32.mrf.mxu0
    %v3592 = vadd.f32 %v702, %v3591
    %3593 = vmatprep.mubr.bf16.mxu0 %v1095
    %3594 = vmatmul.mubr.bf16.gmra.mxu0 %v1094
    %v3595 = vpop.f32.mrf.mxu0
    %v3596 = vadd.f32 %v698, %v3595
    %v3597 = vpop.f32.mrf.mxu0
    %v3598 = vadd.f32 %v702, %v3597
    %v3599 = vpop.f32.mrf.mxu0
    %v3600 = vadd.f32 %v698, %v3599
    %v3601 = vpop.f32.mrf.mxu0
    %v3602 = vadd.f32 %v702, %v3601
    %3603 = vmatprep.mubr.bf16.mxu0 %v1102
    %3604 = vmatmul.mubr.bf16.gmra.mxu0 %v1101
    %v3605 = vpop.f32.mrf.mxu0
    %v3606 = vadd.f32 %v698, %v3605
    %v3607 = vpop.f32.mrf.mxu0
    %v3608 = vadd.f32 %v702, %v3607
    %v3609 = vpop.f32.mrf.mxu0
    %v3610 = vadd.f32 %v698, %v3609
    %v3611 = vpop.f32.mrf.mxu0
    %v3612 = vadd.f32 %v702, %v3611
    %3613 = vmatprep.mubr.bf16.mxu0 %v1109
    %3614 = vmatmul.mubr.bf16.gmra.mxu0 %v1108
    %v3615 = vpop.f32.mrf.mxu0
    %v3616 = vadd.f32 %v698, %v3615
    %v3617 = vpop.f32.mrf.mxu0
    %v3618 = vadd.f32 %v702, %v3617
    %v3619 = vpop.f32.mrf.mxu0
    %v3620 = vadd.f32 %v698, %v3619
    %v3621 = vpop.f32.mrf.mxu0
    %v3622 = vadd.f32 %v702, %v3621
    %3623 = vmatprep.mubr.bf16.mxu0 %v1116
    %3624 = vmatmul.mubr.bf16.gmra.mxu0 %v1115
    %v3625 = vpop.f32.mrf.mxu0
    %v3626 = vadd.f32 %v698, %v3625
    %v3627 = vpop.f32.mrf.mxu0
    %v3628 = vadd.f32 %v702, %v3627
    %v3629 = vpop.f32.mrf.mxu0
    %v3630 = vadd.f32 %v698, %v3629
    %v3631 = vpop.f32.mrf.mxu0
    %v3632 = vadd.f32 %v702, %v3631
    %3633 = vmatprep.mubr.bf16.mxu0 %v1123
    %3634 = vmatmul.mubr.bf16.gmra.mxu0 %v1122
    %v3635 = vpop.f32.mrf.mxu0
    %v3636 = vadd.f32 %v698, %v3635
    %v3637 = vpop.f32.mrf.mxu0
    %v3638 = vadd.f32 %v702, %v3637
    %v3639 = vpop.f32.mrf.mxu0
    %v3640 = vadd.f32 %v698, %v3639
    %v3641 = vpop.f32.mrf.mxu0
    %v3642 = vadd.f32 %v702, %v3641
    %3643 = vmatprep.mubr.bf16.mxu0 %v1130
    %3644 = vmatmul.mubr.bf16.gmra.mxu0 %v1129
    %v3645 = vpop.f32.mrf.mxu0
    %v3646 = vadd.f32 %v698, %v3645
    %v3647 = vpop.f32.mrf.mxu0
    %v3648 = vadd.f32 %v702, %v3647
    %v3649 = vpop.f32.mrf.mxu0
    %v3650 = vadd.f32 %v698, %v3649
    %v3651 = vpop.f32.mrf.mxu0
    %v3652 = vadd.f32 %v702, %v3651
    %3653 = vmatprep.mubr.bf16.mxu0 %v1137
    %3654 = vmatmul.mubr.bf16.gmra.mxu0 %v1136
    %v3655 = vpop.f32.mrf.mxu0
    %v3656 = vadd.f32 %v698, %v3655
    %v3657 = vpop.f32.mrf.mxu0
    %v3658 = vadd.f32 %v702, %v3657
    %v3659 = vpop.f32.mrf.mxu0
    %v3660 = vadd.f32 %v698, %v3659
    %v3661 = vpop.f32.mrf.mxu0
    %v3662 = vadd.f32 %v702, %v3661
    %3663 = vmatprep.mubr.bf16.mxu0 %v1144
    %3664 = vmatmul.mubr.bf16.gmra.mxu0 %v1143
    %v3665 = vpop.f32.mrf.mxu0
    %v3666 = vadd.f32 %v698, %v3665
    %v3667 = vpop.f32.mrf.mxu0
    %v3668 = vadd.f32 %v702, %v3667
    %v3669 = vpop.f32.mrf.mxu0
    %v3670 = vadd.f32 %v698, %v3669
    %v3671 = vpop.f32.mrf.mxu0
    %v3672 = vadd.f32 %v702, %v3671
    %3673 = vmatprep.mubr.bf16.mxu0 %v1151
    %3674 = vmatmul.mubr.bf16.gmra.mxu0 %v1150
    %v3675 = vpop.f32.mrf.mxu0
    %v3676 = vadd.f32 %v698, %v3675
    %v3677 = vpop.f32.mrf.mxu0
    %v3678 = vadd.f32 %v702, %v3677
    %v3679 = vpop.f32.mrf.mxu0
    %v3680 = vadd.f32 %v698, %v3679
    %v3681 = vpop.f32.mrf.mxu0
    %v3682 = vadd.f32 %v702, %v3681
    %3683 = vmatprep.mubr.bf16.mxu0 %v1158
    %3684 = vmatmul.mubr.bf16.gmra.mxu0 %v1157
    %v3685 = vpop.f32.mrf.mxu0
    %v3686 = vadd.f32 %v698, %v3685
    %v3687 = vpop.f32.mrf.mxu0
    %v3688 = vadd.f32 %v702, %v3687
    %v3689 = vpop.f32.mrf.mxu0
    %v3690 = vadd.f32 %v698, %v3689
    %v3691 = vpop.f32.mrf.mxu0
    %v3692 = vadd.f32 %v702, %v3691
    %3693 = vmatprep.mubr.bf16.mxu0 %v1165
    %3694 = vmatmul.mubr.bf16.gmra.mxu0 %v1164
    %v3695 = vpop.f32.mrf.mxu0
    %v3696 = vadd.f32 %v698, %v3695
    %v3697 = vpop.f32.mrf.mxu0
    %v3698 = vadd.f32 %v702, %v3697
    %v3699 = vpop.f32.mrf.mxu0
    %v3700 = vadd.f32 %v698, %v3699
    %v3701 = vpop.f32.mrf.mxu0
    %v3702 = vadd.f32 %v702, %v3701
    %3703 = vmatprep.mubr.bf16.mxu0 %v1172
    %3704 = vmatmul.mubr.bf16.gmra.mxu0 %v1171
    %v3705 = vpop.f32.mrf.mxu0
    %v3706 = vadd.f32 %v698, %v3705
    %v3707 = vpop.f32.mrf.mxu0
    %v3708 = vadd.f32 %v702, %v3707
    %v3709 = vpop.f32.mrf.mxu0
    %v3710 = vadd.f32 %v698, %v3709
    %v3711 = vpop.f32.mrf.mxu0
    %v3712 = vadd.f32 %v702, %v3711
    %3713 = vmatprep.mubr.bf16.mxu0 %v1179
    %3714 = vmatmul.mubr.bf16.gmra.mxu0 %v1178
    %v3715 = vpop.f32.mrf.mxu0
    %v3716 = vadd.f32 %v698, %v3715
    %v3717 = vpop.f32.mrf.mxu0
    %v3718 = vadd.f32 %v702, %v3717
    %v3719 = vpop.f32.mrf.mxu0
    %v3720 = vadd.f32 %v698, %v3719
    %v3721 = vpop.f32.mrf.mxu0
    %v3722 = vadd.f32 %v702, %v3721
    %3723 = vmatprep.mubr.bf16.mxu0 %v1186
    %3724 = vmatmul.mubr.bf16.gmra.mxu0 %v1185
    %v3725 = vpop.f32.mrf.mxu0
    %v3726 = vadd.f32 %v698, %v3725
    %v3727 = vpop.f32.mrf.mxu0
    %v3728 = vadd.f32 %v702, %v3727
    %v3729 = vpop.f32.mrf.mxu0
    %v3730 = vadd.f32 %v698, %v3729
    %v3731 = vpop.f32.mrf.mxu0
    %v3732 = vadd.f32 %v702, %v3731
    %3733 = vmatprep.mubr.bf16.mxu0 %v1193
    %3734 = vmatmul.mubr.bf16.gmra.mxu0 %v1192
    %v3735 = vpop.f32.mrf.mxu0
    %v3736 = vadd.f32 %v698, %v3735
    %v3737 = vpop.f32.mrf.mxu0
    %v3738 = vadd.f32 %v702, %v3737
    %v3739 = vpop.f32.mrf.mxu0
    %v3740 = vadd.f32 %v698, %v3739
    %v3741 = vpop.f32.mrf.mxu0
    %v3742 = vadd.f32 %v702, %v3741
    %3743 = vdwg.mxu0
    %3744 = vmatprep.subr.bf16.mxu0 %v2840
    %3745 = vmatpush1.bf16.msra.mxu0 %v2839
    %3746 = vmatprep.subr.bf16.mxu0 %v2832
    %3747 = vmatpush1.bf16.msra.mxu0 %v2831
    %3748 = vmatprep.subr.bf16.mxu0 %v2824
    %3749 = vmatpush1.bf16.msra.mxu0 %v2823
    %3750 = vmatprep.subr.bf16.mxu0 %v2816
    %3751 = vmatpush1.bf16.msra.mxu0 %v2815
    %3752 = vmatprep.subr.bf16.mxu0 %v2808
    %3753 = vmatpush1.bf16.msra.mxu0 %v2807
    %3754 = vmatprep.subr.bf16.mxu0 %v2800
    %3755 = vmatpush1.bf16.msra.mxu0 %v2799
    %3756 = vmatprep.subr.bf16.mxu0 %v2792
    %3757 = vmatpush1.bf16.msra.mxu0 %v2791
    %3758 = vmatprep.subr.bf16.mxu0 %v2784
    %3759 = vmatpush1.bf16.msra.mxu0 %v2783
    %3760 = vmatprep.subr.bf16.mxu0 %v2904
    %3761 = vmatpush2.bf16.msra.mxu0 %v2903
    %3762 = vmatprep.subr.bf16.mxu0 %v2896
    %3763 = vmatpush2.bf16.msra.mxu0 %v2895
    %3764 = vmatprep.subr.bf16.mxu0 %v2888
    %3765 = vmatpush2.bf16.msra.mxu0 %v2887
    %3766 = vmatprep.subr.bf16.mxu0 %v2880
    %3767 = vmatpush2.bf16.msra.mxu0 %v2879
    %3768 = vmatprep.subr.bf16.mxu0 %v2872
    %3769 = vmatpush2.bf16.msra.mxu0 %v2871
    %3770 = vmatprep.subr.bf16.mxu0 %v2864
    %3771 = vmatpush2.bf16.msra.mxu0 %v2863
    %3772 = vmatprep.subr.bf16.mxu0 %v2856
    %3773 = vmatpush2.bf16.msra.mxu0 %v2855
    %3774 = vmatprep.subr.bf16.mxu0 %v2848
    %3775 = vmatpush2.bf16.msra.mxu0 %v2847
    %3776 = vmatprep.mubr.bf16.mxu0 %v1090
    %3777 = vmatmul.mubr.bf16.gmra.mxu0 %v1089
    %v3778 = vpop.f32.mrf.mxu0
    %v3779 = vadd.f32 %v3586, %v3778
    %v3780 = vpop.f32.mrf.mxu0
    %v3781 = vadd.f32 %v3588, %v3780
    %v3782 = vpop.f32.mrf.mxu0
    %v3783 = vadd.f32 %v3590, %v3782
    %v3784 = vpop.f32.mrf.mxu0
    %v3785 = vadd.f32 %v3592, %v3784
    %3786 = vmatprep.mubr.bf16.mxu0 %v1097
    %3787 = vmatmul.mubr.bf16.gmra.mxu0 %v1096
    %v3788 = vpop.f32.mrf.mxu0
    %v3789 = vadd.f32 %v3596, %v3788
    %v3790 = vpop.f32.mrf.mxu0
    %v3791 = vadd.f32 %v3598, %v3790
    %v3792 = vpop.f32.mrf.mxu0
    %v3793 = vadd.f32 %v3600, %v3792
    %v3794 = vpop.f32.mrf.mxu0
    %v3795 = vadd.f32 %v3602, %v3794
    %3796 = vmatprep.mubr.bf16.mxu0 %v1104
    %3797 = vmatmul.mubr.bf16.gmra.mxu0 %v1103
    %v3798 = vpop.f32.mrf.mxu0
    %v3799 = vadd.f32 %v3606, %v3798
    %v3800 = vpop.f32.mrf.mxu0
    %v3801 = vadd.f32 %v3608, %v3800
    %v3802 = vpop.f32.mrf.mxu0
    %v3803 = vadd.f32 %v3610, %v3802
    %v3804 = vpop.f32.mrf.mxu0
    %v3805 = vadd.f32 %v3612, %v3804
    %3806 = vmatprep.mubr.bf16.mxu0 %v1111
    %3807 = vmatmul.mubr.bf16.gmra.mxu0 %v1110
    %v3808 = vpop.f32.mrf.mxu0
    %v3809 = vadd.f32 %v3616, %v3808
    %v3810 = vpop.f32.mrf.mxu0
    %v3811 = vadd.f32 %v3618, %v3810
    %v3812 = vpop.f32.mrf.mxu0
    %v3813 = vadd.f32 %v3620, %v3812
    %v3814 = vpop.f32.mrf.mxu0
    %v3815 = vadd.f32 %v3622, %v3814
    %3816 = vmatprep.mubr.bf16.mxu0 %v1118
    %3817 = vmatmul.mubr.bf16.gmra.mxu0 %v1117
    %v3818 = vpop.f32.mrf.mxu0
    %v3819 = vadd.f32 %v3626, %v3818
    %v3820 = vpop.f32.mrf.mxu0
    %v3821 = vadd.f32 %v3628, %v3820
    %v3822 = vpop.f32.mrf.mxu0
    %v3823 = vadd.f32 %v3630, %v3822
    %v3824 = vpop.f32.mrf.mxu0
    %v3825 = vadd.f32 %v3632, %v3824
    %3826 = vmatprep.mubr.bf16.mxu0 %v1125
    %3827 = vmatmul.mubr.bf16.gmra.mxu0 %v1124
    %v3828 = vpop.f32.mrf.mxu0
    %v3829 = vadd.f32 %v3636, %v3828
    %v3830 = vpop.f32.mrf.mxu0
    %v3831 = vadd.f32 %v3638, %v3830
    %v3832 = vpop.f32.mrf.mxu0
    %v3833 = vadd.f32 %v3640, %v3832
    %v3834 = vpop.f32.mrf.mxu0
    %v3835 = vadd.f32 %v3642, %v3834
    %3836 = vmatprep.mubr.bf16.mxu0 %v1132
    %3837 = vmatmul.mubr.bf16.gmra.mxu0 %v1131
    %v3838 = vpop.f32.mrf.mxu0
    %v3839 = vadd.f32 %v3646, %v3838
    %v3840 = vpop.f32.mrf.mxu0
    %v3841 = vadd.f32 %v3648, %v3840
    %v3842 = vpop.f32.mrf.mxu0
    %v3843 = vadd.f32 %v3650, %v3842
    %v3844 = vpop.f32.mrf.mxu0
    %v3845 = vadd.f32 %v3652, %v3844
    %3846 = vmatprep.mubr.bf16.mxu0 %v1139
    %3847 = vmatmul.mubr.bf16.gmra.mxu0 %v1138
    %v3848 = vpop.f32.mrf.mxu0
    %v3849 = vadd.f32 %v3656, %v3848
    %v3850 = vpop.f32.mrf.mxu0
    %v3851 = vadd.f32 %v3658, %v3850
    %v3852 = vpop.f32.mrf.mxu0
    %v3853 = vadd.f32 %v3660, %v3852
    %v3854 = vpop.f32.mrf.mxu0
    %v3855 = vadd.f32 %v3662, %v3854
    %3856 = vmatprep.mubr.bf16.mxu0 %v1146
    %3857 = vmatmul.mubr.bf16.gmra.mxu0 %v1145
    %v3858 = vpop.f32.mrf.mxu0
    %v3859 = vadd.f32 %v3666, %v3858
    %v3860 = vpop.f32.mrf.mxu0
    %v3861 = vadd.f32 %v3668, %v3860
    %v3862 = vpop.f32.mrf.mxu0
    %v3863 = vadd.f32 %v3670, %v3862
    %v3864 = vpop.f32.mrf.mxu0
    %v3865 = vadd.f32 %v3672, %v3864
    %3866 = vmatprep.mubr.bf16.mxu0 %v1153
    %3867 = vmatmul.mubr.bf16.gmra.mxu0 %v1152
    %v3868 = vpop.f32.mrf.mxu0
    %v3869 = vadd.f32 %v3676, %v3868
    %v3870 = vpop.f32.mrf.mxu0
    %v3871 = vadd.f32 %v3678, %v3870
    %v3872 = vpop.f32.mrf.mxu0
    %v3873 = vadd.f32 %v3680, %v3872
    %v3874 = vpop.f32.mrf.mxu0
    %v3875 = vadd.f32 %v3682, %v3874
    %3876 = vmatprep.mubr.bf16.mxu0 %v1160
    %3877 = vmatmul.mubr.bf16.gmra.mxu0 %v1159
    %v3878 = vpop.f32.mrf.mxu0
    %v3879 = vadd.f32 %v3686, %v3878
    %v3880 = vpop.f32.mrf.mxu0
    %v3881 = vadd.f32 %v3688, %v3880
    %v3882 = vpop.f32.mrf.mxu0
    %v3883 = vadd.f32 %v3690, %v3882
    %v3884 = vpop.f32.mrf.mxu0
    %v3885 = vadd.f32 %v3692, %v3884
    %3886 = vmatprep.mubr.bf16.mxu0 %v1167
    %3887 = vmatmul.mubr.bf16.gmra.mxu0 %v1166
    %v3888 = vpop.f32.mrf.mxu0
    %v3889 = vadd.f32 %v3696, %v3888
    %v3890 = vpop.f32.mrf.mxu0
    %v3891 = vadd.f32 %v3698, %v3890
    %v3892 = vpop.f32.mrf.mxu0
    %v3893 = vadd.f32 %v3700, %v3892
    %v3894 = vpop.f32.mrf.mxu0
    %v3895 = vadd.f32 %v3702, %v3894
    %3896 = vmatprep.mubr.bf16.mxu0 %v1174
    %3897 = vmatmul.mubr.bf16.gmra.mxu0 %v1173
    %v3898 = vpop.f32.mrf.mxu0
    %v3899 = vadd.f32 %v3706, %v3898
    %v3900 = vpop.f32.mrf.mxu0
    %v3901 = vadd.f32 %v3708, %v3900
    %v3902 = vpop.f32.mrf.mxu0
    %v3903 = vadd.f32 %v3710, %v3902
    %v3904 = vpop.f32.mrf.mxu0
    %v3905 = vadd.f32 %v3712, %v3904
    %3906 = vmatprep.mubr.bf16.mxu0 %v1181
    %3907 = vmatmul.mubr.bf16.gmra.mxu0 %v1180
    %v3908 = vpop.f32.mrf.mxu0
    %v3909 = vadd.f32 %v3716, %v3908
    %v3910 = vpop.f32.mrf.mxu0
    %v3911 = vadd.f32 %v3718, %v3910
    %v3912 = vpop.f32.mrf.mxu0
    %v3913 = vadd.f32 %v3720, %v3912
    %v3914 = vpop.f32.mrf.mxu0
    %v3915 = vadd.f32 %v3722, %v3914
    %3916 = vmatprep.mubr.bf16.mxu0 %v1188
    %3917 = vmatmul.mubr.bf16.gmra.mxu0 %v1187
    %v3918 = vpop.f32.mrf.mxu0
    %v3919 = vadd.f32 %v3726, %v3918
    %v3920 = vpop.f32.mrf.mxu0
    %v3921 = vadd.f32 %v3728, %v3920
    %v3922 = vpop.f32.mrf.mxu0
    %v3923 = vadd.f32 %v3730, %v3922
    %v3924 = vpop.f32.mrf.mxu0
    %v3925 = vadd.f32 %v3732, %v3924
    %3926 = vmatprep.mubr.bf16.mxu0 %v1195
    %3927 = vmatmul.mubr.bf16.gmra.mxu0 %v1194
    %v3928 = vpop.f32.mrf.mxu0
    %v3929 = vadd.f32 %v3736, %v3928
    %v3930 = vpop.f32.mrf.mxu0
    %v3931 = vadd.f32 %v3738, %v3930
    %v3932 = vpop.f32.mrf.mxu0
    %v3933 = vadd.f32 %v3740, %v3932
    %v3934 = vpop.f32.mrf.mxu0
    %v3935 = vadd.f32 %v3742, %v3934
    %3936 = vdwg.mxu0
    %3937 = vmatprep.subr.bf16.mxu0 %v2968
    %3938 = vmatpush1.bf16.msra.mxu0 %v2967
    %3939 = vmatprep.subr.bf16.mxu0 %v2960
    %3940 = vmatpush1.bf16.msra.mxu0 %v2959
    %3941 = vmatprep.subr.bf16.mxu0 %v2952
    %3942 = vmatpush1.bf16.msra.mxu0 %v2951
    %3943 = vmatprep.subr.bf16.mxu0 %v2944
    %3944 = vmatpush1.bf16.msra.mxu0 %v2943
    %3945 = vmatprep.subr.bf16.mxu0 %v2936
    %3946 = vmatpush1.bf16.msra.mxu0 %v2935
    %3947 = vmatprep.subr.bf16.mxu0 %v2928
    %3948 = vmatpush1.bf16.msra.mxu0 %v2927
    %3949 = vmatprep.subr.bf16.mxu0 %v2920
    %3950 = vmatpush1.bf16.msra.mxu0 %v2919
    %3951 = vmatprep.subr.bf16.mxu0 %v2912
    %3952 = vmatpush1.bf16.msra.mxu0 %v2911
    %3953 = vmatprep.subr.bf16.mxu0 %v3032
    %3954 = vmatpush2.bf16.msra.mxu0 %v3031
    %3955 = vmatprep.subr.bf16.mxu0 %v3024
    %3956 = vmatpush2.bf16.msra.mxu0 %v3023
    %3957 = vmatprep.subr.bf16.mxu0 %v3016
    %3958 = vmatpush2.bf16.msra.mxu0 %v3015
    %3959 = vmatprep.subr.bf16.mxu0 %v3008
    %3960 = vmatpush2.bf16.msra.mxu0 %v3007
    %3961 = vmatprep.subr.bf16.mxu0 %v3000
    %3962 = vmatpush2.bf16.msra.mxu0 %v2999
    %3963 = vmatprep.subr.bf16.mxu0 %v2992
    %3964 = vmatpush2.bf16.msra.mxu0 %v2991
    %3965 = vmatprep.subr.bf16.mxu0 %v2984
    %3966 = vmatpush2.bf16.msra.mxu0 %v2983
    %3967 = vmatprep.subr.bf16.mxu0 %v2976
    %3968 = vmatpush2.bf16.msra.mxu0 %v2975
    %3969 = vmatprep.mubr.bf16.mxu0 %v1092
    %3970 = vmatmul.mubr.bf16.gmra.mxu0 %v1091
    %v3971 = vpop.f32.mrf.mxu0
    %v3972 = vadd.f32 %v3779, %v3971
    %v3973 = vpop.f32.mrf.mxu0
    %v3974 = vadd.f32 %v3781, %v3973
    %v3975 = vpop.f32.mrf.mxu0
    %v3976 = vadd.f32 %v3783, %v3975
    %v3977 = vpop.f32.mrf.mxu0
    %v3978 = vadd.f32 %v3785, %v3977
    %3979 = vmatprep.mubr.bf16.mxu0 %v1099
    %3980 = vmatmul.mubr.bf16.gmra.mxu0 %v1098
    %v3981 = vpop.f32.mrf.mxu0
    %v3982 = vadd.f32 %v3789, %v3981
    %v3983 = vpop.f32.mrf.mxu0
    %v3984 = vadd.f32 %v3791, %v3983
    %v3985 = vpop.f32.mrf.mxu0
    %v3986 = vadd.f32 %v3793, %v3985
    %v3987 = vpop.f32.mrf.mxu0
    %v3988 = vadd.f32 %v3795, %v3987
    %3989 = vmatprep.mubr.bf16.mxu0 %v1106
    %3990 = vmatmul.mubr.bf16.gmra.mxu0 %v1105
    %v3991 = vpop.f32.mrf.mxu0
    %v3992 = vadd.f32 %v3799, %v3991
    %v3993 = vpop.f32.mrf.mxu0
    %v3994 = vadd.f32 %v3801, %v3993
    %v3995 = vpop.f32.mrf.mxu0
    %v3996 = vadd.f32 %v3803, %v3995
    %v3997 = vpop.f32.mrf.mxu0
    %v3998 = vadd.f32 %v3805, %v3997
    %3999 = vmatprep.mubr.bf16.mxu0 %v1113
    %4000 = vmatmul.mubr.bf16.gmra.mxu0 %v1112
    %v4001 = vpop.f32.mrf.mxu0
    %v4002 = vadd.f32 %v3809, %v4001
    %v4003 = vpop.f32.mrf.mxu0
    %v4004 = vadd.f32 %v3811, %v4003
    %v4005 = vpop.f32.mrf.mxu0
    %v4006 = vadd.f32 %v3813, %v4005
    %v4007 = vpop.f32.mrf.mxu0
    %v4008 = vadd.f32 %v3815, %v4007
    %4009 = vmatprep.mubr.bf16.mxu0 %v1120
    %4010 = vmatmul.mubr.bf16.gmra.mxu0 %v1119
    %v4011 = vpop.f32.mrf.mxu0
    %v4012 = vadd.f32 %v3819, %v4011
    %v4013 = vpop.f32.mrf.mxu0
    %v4014 = vadd.f32 %v3821, %v4013
    %v4015 = vpop.f32.mrf.mxu0
    %v4016 = vadd.f32 %v3823, %v4015
    %v4017 = vpop.f32.mrf.mxu0
    %v4018 = vadd.f32 %v3825, %v4017
    %4019 = vmatprep.mubr.bf16.mxu0 %v1127
    %4020 = vmatmul.mubr.bf16.gmra.mxu0 %v1126
    %v4021 = vpop.f32.mrf.mxu0
    %v4022 = vadd.f32 %v3829, %v4021
    %v4023 = vpop.f32.mrf.mxu0
    %v4024 = vadd.f32 %v3831, %v4023
    %v4025 = vpop.f32.mrf.mxu0
    %v4026 = vadd.f32 %v3833, %v4025
    %v4027 = vpop.f32.mrf.mxu0
    %v4028 = vadd.f32 %v3835, %v4027
    %4029 = vmatprep.mubr.bf16.mxu0 %v1134
    %4030 = vmatmul.mubr.bf16.gmra.mxu0 %v1133
    %v4031 = vpop.f32.mrf.mxu0
    %v4032 = vadd.f32 %v3839, %v4031
    %v4033 = vpop.f32.mrf.mxu0
    %v4034 = vadd.f32 %v3841, %v4033
    %v4035 = vpop.f32.mrf.mxu0
    %v4036 = vadd.f32 %v3843, %v4035
    %v4037 = vpop.f32.mrf.mxu0
    %v4038 = vadd.f32 %v3845, %v4037
    %4039 = vmatprep.mubr.bf16.mxu0 %v1141
    %4040 = vmatmul.mubr.bf16.gmra.mxu0 %v1140
    %v4041 = vpop.f32.mrf.mxu0
    %v4042 = vadd.f32 %v3849, %v4041
    %v4043 = vpop.f32.mrf.mxu0
    %v4044 = vadd.f32 %v3851, %v4043
    %v4045 = vpop.f32.mrf.mxu0
    %v4046 = vadd.f32 %v3853, %v4045
    %v4047 = vpop.f32.mrf.mxu0
    %v4048 = vadd.f32 %v3855, %v4047
    %4049 = vmatprep.mubr.bf16.mxu0 %v1148
    %4050 = vmatmul.mubr.bf16.gmra.mxu0 %v1147
    %v4051 = vpop.f32.mrf.mxu0
    %v4052 = vadd.f32 %v3859, %v4051
    %v4053 = vpop.f32.mrf.mxu0
    %v4054 = vadd.f32 %v3861, %v4053
    %v4055 = vpop.f32.mrf.mxu0
    %v4056 = vadd.f32 %v3863, %v4055
    %v4057 = vpop.f32.mrf.mxu0
    %v4058 = vadd.f32 %v3865, %v4057
    %4059 = vmatprep.mubr.bf16.mxu0 %v1155
    %4060 = vmatmul.mubr.bf16.gmra.mxu0 %v1154
    %v4061 = vpop.f32.mrf.mxu0
    %v4062 = vadd.f32 %v3869, %v4061
    %v4063 = vpop.f32.mrf.mxu0
    %v4064 = vadd.f32 %v3871, %v4063
    %v4065 = vpop.f32.mrf.mxu0
    %v4066 = vadd.f32 %v3873, %v4065
    %v4067 = vpop.f32.mrf.mxu0
    %v4068 = vadd.f32 %v3875, %v4067
    %4069 = vmatprep.mubr.bf16.mxu0 %v1162
    %4070 = vmatmul.mubr.bf16.gmra.mxu0 %v1161
    %v4071 = vpop.f32.mrf.mxu0
    %v4072 = vadd.f32 %v3879, %v4071
    %v4073 = vpop.f32.mrf.mxu0
    %v4074 = vadd.f32 %v3881, %v4073
    %v4075 = vpop.f32.mrf.mxu0
    %v4076 = vadd.f32 %v3883, %v4075
    %v4077 = vpop.f32.mrf.mxu0
    %v4078 = vadd.f32 %v3885, %v4077
    %4079 = vmatprep.mubr.bf16.mxu0 %v1169
    %4080 = vmatmul.mubr.bf16.gmra.mxu0 %v1168
    %v4081 = vpop.f32.mrf.mxu0
    %v4082 = vadd.f32 %v3889, %v4081
    %v4083 = vpop.f32.mrf.mxu0
    %v4084 = vadd.f32 %v3891, %v4083
    %v4085 = vpop.f32.mrf.mxu0
    %v4086 = vadd.f32 %v3893, %v4085
    %v4087 = vpop.f32.mrf.mxu0
    %v4088 = vadd.f32 %v3895, %v4087
    %4089 = vmatprep.mubr.bf16.mxu0 %v1176
    %4090 = vmatmul.mubr.bf16.gmra.mxu0 %v1175
    %v4091 = vpop.f32.mrf.mxu0
    %v4092 = vadd.f32 %v3899, %v4091
    %v4093 = vpop.f32.mrf.mxu0
    %v4094 = vadd.f32 %v3901, %v4093
    %v4095 = vpop.f32.mrf.mxu0
    %v4096 = vadd.f32 %v3903, %v4095
    %v4097 = vpop.f32.mrf.mxu0
    %v4098 = vadd.f32 %v3905, %v4097
    %4099 = vmatprep.mubr.bf16.mxu0 %v1183
    %4100 = vmatmul.mubr.bf16.gmra.mxu0 %v1182
    %v4101 = vpop.f32.mrf.mxu0
    %v4102 = vadd.f32 %v3909, %v4101
    %v4103 = vpop.f32.mrf.mxu0
    %v4104 = vadd.f32 %v3911, %v4103
    %v4105 = vpop.f32.mrf.mxu0
    %v4106 = vadd.f32 %v3913, %v4105
    %v4107 = vpop.f32.mrf.mxu0
    %v4108 = vadd.f32 %v3915, %v4107
    %4109 = vmatprep.mubr.bf16.mxu0 %v1190
    %4110 = vmatmul.mubr.bf16.gmra.mxu0 %v1189
    %v4111 = vpop.f32.mrf.mxu0
    %v4112 = vadd.f32 %v3919, %v4111
    %v4113 = vpop.f32.mrf.mxu0
    %v4114 = vadd.f32 %v3921, %v4113
    %v4115 = vpop.f32.mrf.mxu0
    %v4116 = vadd.f32 %v3923, %v4115
    %v4117 = vpop.f32.mrf.mxu0
    %v4118 = vadd.f32 %v3925, %v4117
    %4119 = vmatprep.mubr.bf16.mxu0 %v1197
    %4120 = vmatmul.mubr.bf16.gmra.mxu0 %v1196
    %v4121 = vpop.f32.mrf.mxu0
    %v4122 = vadd.f32 %v3929, %v4121
    %v4123 = vpop.f32.mrf.mxu0
    %v4124 = vadd.f32 %v3931, %v4123
    %v4125 = vpop.f32.mrf.mxu0
    %v4126 = vadd.f32 %v3933, %v4125
    %v4127 = vpop.f32.mrf.mxu0
    %v4128 = vadd.f32 %v3935, %v4127
    %4129 = vdwg.mxu0
    %4130 = vmatprep.subr.bf16.mxu0 %v3096
    %4131 = vmatpush1.bf16.msra.mxu0 %v3095
    %4132 = vmatprep.subr.bf16.mxu0 %v3088
    %4133 = vmatpush1.bf16.msra.mxu0 %v3087
    %4134 = vmatprep.subr.bf16.mxu0 %v3080
    %4135 = vmatpush1.bf16.msra.mxu0 %v3079
    %4136 = vmatprep.subr.bf16.mxu0 %v3072
    %4137 = vmatpush1.bf16.msra.mxu0 %v3071
    %4138 = vmatprep.subr.bf16.mxu0 %v3064
    %4139 = vmatpush1.bf16.msra.mxu0 %v3063
    %4140 = vmatprep.subr.bf16.mxu0 %v3056
    %4141 = vmatpush1.bf16.msra.mxu0 %v3055
    %4142 = vmatprep.subr.bf16.mxu0 %v3048
    %4143 = vmatpush1.bf16.msra.mxu0 %v3047
    %4144 = vmatprep.subr.bf16.mxu0 %v3040
    %4145 = vmatpush1.bf16.msra.mxu0 %v3039
    %4146 = vmatprep.subr.bf16.mxu0 0
    %4147 = vmatpush2.bf16.msra.mxu0 0
    %4148 = vmatprep.subr.bf16.mxu0 0
    %4149 = vmatpush2.bf16.msra.mxu0 0
    %4150 = vmatprep.subr.bf16.mxu0 0
    %4151 = vmatpush2.bf16.msra.mxu0 0
    %4152 = vmatprep.subr.bf16.mxu0 0
    %4153 = vmatpush2.bf16.msra.mxu0 0
    %4154 = vmatprep.subr.bf16.mxu0 0
    %4155 = vmatpush2.bf16.msra.mxu0 0
    %4156 = vmatprep.subr.bf16.mxu0 0
    %4157 = vmatpush2.bf16.msra.mxu0 0
    %4158 = vmatprep.subr.bf16.mxu0 0
    %4159 = vmatpush2.bf16.msra.mxu0 0
    %4160 = vmatprep.subr.bf16.mxu0 0
    %4161 = vmatpush2.bf16.msra.mxu0 0
    %4162 = vmatprep.mubr.bf16.mxu0 0
    %4163 = vmatmul.mubr.bf16.gmra.mxu0 %v1093
    %v4164 = vpop.f32.mrf.mxu0
    %v4165 = vadd.f32 %v3972, %v4164
    %v4166 = vpop.f32.mrf.mxu0
    %v4167 = vadd.f32 %v3974, %v4166
    %v4168 = vpop.f32.mrf.mxu0
    %v4169 = vadd.f32 %v3976, %v4168
    %v4170 = vpop.f32.mrf.mxu0
    %v4171 = vadd.f32 %v3978, %v4170
    %4172 = vmatprep.mubr.bf16.mxu0 0
    %4173 = vmatmul.mubr.bf16.gmra.mxu0 %v1100
    %v4174 = vpop.f32.mrf.mxu0
    %v4175 = vadd.f32 %v3982, %v4174
    %v4176 = vpop.f32.mrf.mxu0
    %v4177 = vadd.f32 %v3984, %v4176
    %v4178 = vpop.f32.mrf.mxu0
    %v4179 = vadd.f32 %v3986, %v4178
    %v4180 = vpop.f32.mrf.mxu0
    %v4181 = vadd.f32 %v3988, %v4180
    %4182 = vmatprep.mubr.bf16.mxu0 0
    %4183 = vmatmul.mubr.bf16.gmra.mxu0 %v1107
    %v4184 = vpop.f32.mrf.mxu0
    %v4185 = vadd.f32 %v3992, %v4184
    %v4186 = vpop.f32.mrf.mxu0
    %v4187 = vadd.f32 %v3994, %v4186
    %v4188 = vpop.f32.mrf.mxu0
    %v4189 = vadd.f32 %v3996, %v4188
    %v4190 = vpop.f32.mrf.mxu0
    %v4191 = vadd.f32 %v3998, %v4190
    %4192 = vmatprep.mubr.bf16.mxu0 0
    %4193 = vmatmul.mubr.bf16.gmra.mxu0 %v1114
    %v4194 = vpop.f32.mrf.mxu0
    %v4195 = vadd.f32 %v4002, %v4194
    %v4196 = vpop.f32.mrf.mxu0
    %v4197 = vadd.f32 %v4004, %v4196
    %v4198 = vpop.f32.mrf.mxu0
    %v4199 = vadd.f32 %v4006, %v4198
    %v4200 = vpop.f32.mrf.mxu0
    %v4201 = vadd.f32 %v4008, %v4200
    %4202 = vmatprep.mubr.bf16.mxu0 0
    %4203 = vmatmul.mubr.bf16.gmra.mxu0 %v1121
    %v4204 = vpop.f32.mrf.mxu0
    %v4205 = vadd.f32 %v4012, %v4204
    %v4206 = vpop.f32.mrf.mxu0
    %v4207 = vadd.f32 %v4014, %v4206
    %v4208 = vpop.f32.mrf.mxu0
    %v4209 = vadd.f32 %v4016, %v4208
    %v4210 = vpop.f32.mrf.mxu0
    %v4211 = vadd.f32 %v4018, %v4210
    %4212 = vmatprep.mubr.bf16.mxu0 0
    %4213 = vmatmul.mubr.bf16.gmra.mxu0 %v1128
    %v4214 = vpop.f32.mrf.mxu0
    %v4215 = vadd.f32 %v4022, %v4214
    %v4216 = vpop.f32.mrf.mxu0
    %v4217 = vadd.f32 %v4024, %v4216
    %v4218 = vpop.f32.mrf.mxu0
    %v4219 = vadd.f32 %v4026, %v4218
    %v4220 = vpop.f32.mrf.mxu0
    %v4221 = vadd.f32 %v4028, %v4220
    %4222 = vmatprep.mubr.bf16.mxu0 0
    %4223 = vmatmul.mubr.bf16.gmra.mxu0 %v1135
    %v4224 = vpop.f32.mrf.mxu0
    %v4225 = vadd.f32 %v4032, %v4224
    %v4226 = vpop.f32.mrf.mxu0
    %v4227 = vadd.f32 %v4034, %v4226
    %v4228 = vpop.f32.mrf.mxu0
    %v4229 = vadd.f32 %v4036, %v4228
    %v4230 = vpop.f32.mrf.mxu0
    %v4231 = vadd.f32 %v4038, %v4230
    %4232 = vmatprep.mubr.bf16.mxu0 0
    %4233 = vmatmul.mubr.bf16.gmra.mxu0 %v1142
    %v4234 = vpop.f32.mrf.mxu0
    %v4235 = vadd.f32 %v4042, %v4234
    %v4236 = vpop.f32.mrf.mxu0
    %v4237 = vadd.f32 %v4044, %v4236
    %v4238 = vpop.f32.mrf.mxu0
    %v4239 = vadd.f32 %v4046, %v4238
    %v4240 = vpop.f32.mrf.mxu0
    %v4241 = vadd.f32 %v4048, %v4240
    %4242 = vmatprep.mubr.bf16.mxu0 0
    %4243 = vmatmul.mubr.bf16.gmra.mxu0 %v1149
    %v4244 = vpop.f32.mrf.mxu0
    %v4245 = vadd.f32 %v4052, %v4244
    %v4246 = vpop.f32.mrf.mxu0
    %v4247 = vadd.f32 %v4054, %v4246
    %v4248 = vpop.f32.mrf.mxu0
    %v4249 = vadd.f32 %v4056, %v4248
    %v4250 = vpop.f32.mrf.mxu0
    %v4251 = vadd.f32 %v4058, %v4250
    %4252 = vmatprep.mubr.bf16.mxu0 0
    %4253 = vmatmul.mubr.bf16.gmra.mxu0 %v1156
    %v4254 = vpop.f32.mrf.mxu0
    %v4255 = vadd.f32 %v4062, %v4254
    %v4256 = vpop.f32.mrf.mxu0
    %v4257 = vadd.f32 %v4064, %v4256
    %v4258 = vpop.f32.mrf.mxu0
    %v4259 = vadd.f32 %v4066, %v4258
    %v4260 = vpop.f32.mrf.mxu0
    %v4261 = vadd.f32 %v4068, %v4260
    %4262 = vmatprep.mubr.bf16.mxu0 0
    %4263 = vmatmul.mubr.bf16.gmra.mxu0 %v1163
    %v4264 = vpop.f32.mrf.mxu0
    %v4265 = vadd.f32 %v4072, %v4264
    %v4266 = vpop.f32.mrf.mxu0
    %v4267 = vadd.f32 %v4074, %v4266
    %v4268 = vpop.f32.mrf.mxu0
    %v4269 = vadd.f32 %v4076, %v4268
    %v4270 = vpop.f32.mrf.mxu0
    %v4271 = vadd.f32 %v4078, %v4270
    %4272 = vmatprep.mubr.bf16.mxu0 0
    %4273 = vmatmul.mubr.bf16.gmra.mxu0 %v1170
    %v4274 = vpop.f32.mrf.mxu0
    %v4275 = vadd.f32 %v4082, %v4274
    %v4276 = vpop.f32.mrf.mxu0
    %v4277 = vadd.f32 %v4084, %v4276
    %v4278 = vpop.f32.mrf.mxu0
    %v4279 = vadd.f32 %v4086, %v4278
    %v4280 = vpop.f32.mrf.mxu0
    %v4281 = vadd.f32 %v4088, %v4280
    %4282 = vmatprep.mubr.bf16.mxu0 0
    %4283 = vmatmul.mubr.bf16.gmra.mxu0 %v1177
    %v4284 = vpop.f32.mrf.mxu0
    %v4285 = vadd.f32 %v4092, %v4284
    %v4286 = vpop.f32.mrf.mxu0
    %v4287 = vadd.f32 %v4094, %v4286
    %v4288 = vpop.f32.mrf.mxu0
    %v4289 = vadd.f32 %v4096, %v4288
    %v4290 = vpop.f32.mrf.mxu0
    %v4291 = vadd.f32 %v4098, %v4290
    %4292 = vmatprep.mubr.bf16.mxu0 0
    %4293 = vmatmul.mubr.bf16.gmra.mxu0 %v1184
    %v4294 = vpop.f32.mrf.mxu0
    %v4295 = vadd.f32 %v4102, %v4294
    %v4296 = vpop.f32.mrf.mxu0
    %v4297 = vadd.f32 %v4104, %v4296
    %v4298 = vpop.f32.mrf.mxu0
    %v4299 = vadd.f32 %v4106, %v4298
    %v4300 = vpop.f32.mrf.mxu0
    %v4301 = vadd.f32 %v4108, %v4300
    %4302 = vmatprep.mubr.bf16.mxu0 0
    %4303 = vmatmul.mubr.bf16.gmra.mxu0 %v1191
    %v4304 = vpop.f32.mrf.mxu0
    %v4305 = vadd.f32 %v4112, %v4304
    %v4306 = vpop.f32.mrf.mxu0
    %v4307 = vadd.f32 %v4114, %v4306
    %v4308 = vpop.f32.mrf.mxu0
    %v4309 = vadd.f32 %v4116, %v4308
    %v4310 = vpop.f32.mrf.mxu0
    %v4311 = vadd.f32 %v4118, %v4310
    %4312 = vmatprep.mubr.bf16.mxu0 0
    %4313 = vmatmul.mubr.bf16.gmra.mxu0 %v1198
    %v4314 = vpop.f32.mrf.mxu0
    %v4315 = vadd.f32 %v4122, %v4314
    %v4316 = vpop.f32.mrf.mxu0
    %v4317 = vadd.f32 %v4124, %v4316
    %v4318 = vpop.f32.mrf.mxu0
    %v4319 = vadd.f32 %v4126, %v4318
    %v4320 = vpop.f32.mrf.mxu0
    %v4321 = vadd.f32 %v4128, %v4320
    %4322 = vdwg.mxu0
    %4323 = vmatprep.subr.bf16.mxu0 %v2714
    %4324 = vmatpush1.bf16.msra.mxu0 %v2713
    %4325 = vmatprep.subr.bf16.mxu0 %v2706
    %4326 = vmatpush1.bf16.msra.mxu0 %v2705
    %4327 = vmatprep.subr.bf16.mxu0 %v2698
    %4328 = vmatpush1.bf16.msra.mxu0 %v2697
    %4329 = vmatprep.subr.bf16.mxu0 %v2690
    %4330 = vmatpush1.bf16.msra.mxu0 %v2689
    %4331 = vmatprep.subr.bf16.mxu0 %v2682
    %4332 = vmatpush1.bf16.msra.mxu0 %v2681
    %4333 = vmatprep.subr.bf16.mxu0 %v2674
    %4334 = vmatpush1.bf16.msra.mxu0 %v2673
    %4335 = vmatprep.subr.bf16.mxu0 %v2666
    %4336 = vmatpush1.bf16.msra.mxu0 %v2665
    %4337 = vmatprep.subr.bf16.mxu0 %v2658
    %4338 = vmatpush1.bf16.msra.mxu0 %v2657
    %4339 = vmatprep.subr.bf16.mxu0 %v2778
    %4340 = vmatpush2.bf16.msra.mxu0 %v2777
    %4341 = vmatprep.subr.bf16.mxu0 %v2770
    %4342 = vmatpush2.bf16.msra.mxu0 %v2769
    %4343 = vmatprep.subr.bf16.mxu0 %v2762
    %4344 = vmatpush2.bf16.msra.mxu0 %v2761
    %4345 = vmatprep.subr.bf16.mxu0 %v2754
    %4346 = vmatpush2.bf16.msra.mxu0 %v2753
    %4347 = vmatprep.subr.bf16.mxu0 %v2746
    %4348 = vmatpush2.bf16.msra.mxu0 %v2745
    %4349 = vmatprep.subr.bf16.mxu0 %v2738
    %4350 = vmatpush2.bf16.msra.mxu0 %v2737
    %4351 = vmatprep.subr.bf16.mxu0 %v2730
    %4352 = vmatpush2.bf16.msra.mxu0 %v2729
    %4353 = vmatprep.subr.bf16.mxu0 %v2722
    %4354 = vmatpush2.bf16.msra.mxu0 %v2721
    %4355 = vmatprep.mubr.bf16.mxu0 %v1088
    %4356 = vmatmul.mubr.bf16.gmra.mxu0 %v1087
    %v4357 = vpop.f32.mrf.mxu0
    %v4358 = vadd.f32 %v706, %v4357
    %v4359 = vpop.f32.mrf.mxu0
    %v4360 = vadd.f32 %v710, %v4359
    %v4361 = vpop.f32.mrf.mxu0
    %v4362 = vadd.f32 %v706, %v4361
    %v4363 = vpop.f32.mrf.mxu0
    %v4364 = vadd.f32 %v710, %v4363
    %4365 = vmatprep.mubr.bf16.mxu0 %v1095
    %4366 = vmatmul.mubr.bf16.gmra.mxu0 %v1094
    %v4367 = vpop.f32.mrf.mxu0
    %v4368 = vadd.f32 %v706, %v4367
    %v4369 = vpop.f32.mrf.mxu0
    %v4370 = vadd.f32 %v710, %v4369
    %v4371 = vpop.f32.mrf.mxu0
    %v4372 = vadd.f32 %v706, %v4371
    %v4373 = vpop.f32.mrf.mxu0
    %v4374 = vadd.f32 %v710, %v4373
    %4375 = vmatprep.mubr.bf16.mxu0 %v1102
    %4376 = vmatmul.mubr.bf16.gmra.mxu0 %v1101
    %v4377 = vpop.f32.mrf.mxu0
    %v4378 = vadd.f32 %v706, %v4377
    %v4379 = vpop.f32.mrf.mxu0
    %v4380 = vadd.f32 %v710, %v4379
    %v4381 = vpop.f32.mrf.mxu0
    %v4382 = vadd.f32 %v706, %v4381
    %v4383 = vpop.f32.mrf.mxu0
    %v4384 = vadd.f32 %v710, %v4383
    %4385 = vmatprep.mubr.bf16.mxu0 %v1109
    %4386 = vmatmul.mubr.bf16.gmra.mxu0 %v1108
    %v4387 = vpop.f32.mrf.mxu0
    %v4388 = vadd.f32 %v706, %v4387
    %v4389 = vpop.f32.mrf.mxu0
    %v4390 = vadd.f32 %v710, %v4389
    %v4391 = vpop.f32.mrf.mxu0
    %v4392 = vadd.f32 %v706, %v4391
    %v4393 = vpop.f32.mrf.mxu0
    %v4394 = vadd.f32 %v710, %v4393
    %4395 = vmatprep.mubr.bf16.mxu0 %v1116
    %4396 = vmatmul.mubr.bf16.gmra.mxu0 %v1115
    %v4397 = vpop.f32.mrf.mxu0
    %v4398 = vadd.f32 %v706, %v4397
    %v4399 = vpop.f32.mrf.mxu0
    %v4400 = vadd.f32 %v710, %v4399
    %v4401 = vpop.f32.mrf.mxu0
    %v4402 = vadd.f32 %v706, %v4401
    %v4403 = vpop.f32.mrf.mxu0
    %v4404 = vadd.f32 %v710, %v4403
    %4405 = vmatprep.mubr.bf16.mxu0 %v1123
    %4406 = vmatmul.mubr.bf16.gmra.mxu0 %v1122
    %v4407 = vpop.f32.mrf.mxu0
    %v4408 = vadd.f32 %v706, %v4407
    %v4409 = vpop.f32.mrf.mxu0
    %v4410 = vadd.f32 %v710, %v4409
    %v4411 = vpop.f32.mrf.mxu0
    %v4412 = vadd.f32 %v706, %v4411
    %v4413 = vpop.f32.mrf.mxu0
    %v4414 = vadd.f32 %v710, %v4413
    %4415 = vmatprep.mubr.bf16.mxu0 %v1130
    %4416 = vmatmul.mubr.bf16.gmra.mxu0 %v1129
    %v4417 = vpop.f32.mrf.mxu0
    %v4418 = vadd.f32 %v706, %v4417
    %v4419 = vpop.f32.mrf.mxu0
    %v4420 = vadd.f32 %v710, %v4419
    %v4421 = vpop.f32.mrf.mxu0
    %v4422 = vadd.f32 %v706, %v4421
    %v4423 = vpop.f32.mrf.mxu0
    %v4424 = vadd.f32 %v710, %v4423
    %4425 = vmatprep.mubr.bf16.mxu0 %v1137
    %4426 = vmatmul.mubr.bf16.gmra.mxu0 %v1136
    %v4427 = vpop.f32.mrf.mxu0
    %v4428 = vadd.f32 %v706, %v4427
    %v4429 = vpop.f32.mrf.mxu0
    %v4430 = vadd.f32 %v710, %v4429
    %v4431 = vpop.f32.mrf.mxu0
    %v4432 = vadd.f32 %v706, %v4431
    %v4433 = vpop.f32.mrf.mxu0
    %v4434 = vadd.f32 %v710, %v4433
    %4435 = vmatprep.mubr.bf16.mxu0 %v1144
    %4436 = vmatmul.mubr.bf16.gmra.mxu0 %v1143
    %v4437 = vpop.f32.mrf.mxu0
    %v4438 = vadd.f32 %v706, %v4437
    %v4439 = vpop.f32.mrf.mxu0
    %v4440 = vadd.f32 %v710, %v4439
    %v4441 = vpop.f32.mrf.mxu0
    %v4442 = vadd.f32 %v706, %v4441
    %v4443 = vpop.f32.mrf.mxu0
    %v4444 = vadd.f32 %v710, %v4443
    %4445 = vmatprep.mubr.bf16.mxu0 %v1151
    %4446 = vmatmul.mubr.bf16.gmra.mxu0 %v1150
    %v4447 = vpop.f32.mrf.mxu0
    %v4448 = vadd.f32 %v706, %v4447
    %v4449 = vpop.f32.mrf.mxu0
    %v4450 = vadd.f32 %v710, %v4449
    %v4451 = vpop.f32.mrf.mxu0
    %v4452 = vadd.f32 %v706, %v4451
    %v4453 = vpop.f32.mrf.mxu0
    %v4454 = vadd.f32 %v710, %v4453
    %4455 = vmatprep.mubr.bf16.mxu0 %v1158
    %4456 = vmatmul.mubr.bf16.gmra.mxu0 %v1157
    %v4457 = vpop.f32.mrf.mxu0
    %v4458 = vadd.f32 %v706, %v4457
    %v4459 = vpop.f32.mrf.mxu0
    %v4460 = vadd.f32 %v710, %v4459
    %v4461 = vpop.f32.mrf.mxu0
    %v4462 = vadd.f32 %v706, %v4461
    %v4463 = vpop.f32.mrf.mxu0
    %v4464 = vadd.f32 %v710, %v4463
    %4465 = vmatprep.mubr.bf16.mxu0 %v1165
    %4466 = vmatmul.mubr.bf16.gmra.mxu0 %v1164
    %v4467 = vpop.f32.mrf.mxu0
    %v4468 = vadd.f32 %v706, %v4467
    %v4469 = vpop.f32.mrf.mxu0
    %v4470 = vadd.f32 %v710, %v4469
    %v4471 = vpop.f32.mrf.mxu0
    %v4472 = vadd.f32 %v706, %v4471
    %v4473 = vpop.f32.mrf.mxu0
    %v4474 = vadd.f32 %v710, %v4473
    %4475 = vmatprep.mubr.bf16.mxu0 %v1172
    %4476 = vmatmul.mubr.bf16.gmra.mxu0 %v1171
    %v4477 = vpop.f32.mrf.mxu0
    %v4478 = vadd.f32 %v706, %v4477
    %v4479 = vpop.f32.mrf.mxu0
    %v4480 = vadd.f32 %v710, %v4479
    %v4481 = vpop.f32.mrf.mxu0
    %v4482 = vadd.f32 %v706, %v4481
    %v4483 = vpop.f32.mrf.mxu0
    %v4484 = vadd.f32 %v710, %v4483
    %4485 = vmatprep.mubr.bf16.mxu0 %v1179
    %4486 = vmatmul.mubr.bf16.gmra.mxu0 %v1178
    %v4487 = vpop.f32.mrf.mxu0
    %v4488 = vadd.f32 %v706, %v4487
    %v4489 = vpop.f32.mrf.mxu0
    %v4490 = vadd.f32 %v710, %v4489
    %v4491 = vpop.f32.mrf.mxu0
    %v4492 = vadd.f32 %v706, %v4491
    %v4493 = vpop.f32.mrf.mxu0
    %v4494 = vadd.f32 %v710, %v4493
    %4495 = vmatprep.mubr.bf16.mxu0 %v1186
    %4496 = vmatmul.mubr.bf16.gmra.mxu0 %v1185
    %v4497 = vpop.f32.mrf.mxu0
    %v4498 = vadd.f32 %v706, %v4497
    %v4499 = vpop.f32.mrf.mxu0
    %v4500 = vadd.f32 %v710, %v4499
    %v4501 = vpop.f32.mrf.mxu0
    %v4502 = vadd.f32 %v706, %v4501
    %v4503 = vpop.f32.mrf.mxu0
    %v4504 = vadd.f32 %v710, %v4503
    %4505 = vmatprep.mubr.bf16.mxu0 %v1193
    %4506 = vmatmul.mubr.bf16.gmra.mxu0 %v1192
    %v4507 = vpop.f32.mrf.mxu0
    %v4508 = vadd.f32 %v706, %v4507
    %v4509 = vpop.f32.mrf.mxu0
    %v4510 = vadd.f32 %v710, %v4509
    %v4511 = vpop.f32.mrf.mxu0
    %v4512 = vadd.f32 %v706, %v4511
    %v4513 = vpop.f32.mrf.mxu0
    %v4514 = vadd.f32 %v710, %v4513
    %4515 = vdwg.mxu0
    %4516 = vmatprep.subr.bf16.mxu0 %v2842
    %4517 = vmatpush1.bf16.msra.mxu0 %v2841
    %4518 = vmatprep.subr.bf16.mxu0 %v2834
    %4519 = vmatpush1.bf16.msra.mxu0 %v2833
    %4520 = vmatprep.subr.bf16.mxu0 %v2826
    %4521 = vmatpush1.bf16.msra.mxu0 %v2825
    %4522 = vmatprep.subr.bf16.mxu0 %v2818
    %4523 = vmatpush1.bf16.msra.mxu0 %v2817
    %4524 = vmatprep.subr.bf16.mxu0 %v2810
    %4525 = vmatpush1.bf16.msra.mxu0 %v2809
    %4526 = vmatprep.subr.bf16.mxu0 %v2802
    %4527 = vmatpush1.bf16.msra.mxu0 %v2801
    %4528 = vmatprep.subr.bf16.mxu0 %v2794
    %4529 = vmatpush1.bf16.msra.mxu0 %v2793
    %4530 = vmatprep.subr.bf16.mxu0 %v2786
    %4531 = vmatpush1.bf16.msra.mxu0 %v2785
    %4532 = vmatprep.subr.bf16.mxu0 %v2906
    %4533 = vmatpush2.bf16.msra.mxu0 %v2905
    %4534 = vmatprep.subr.bf16.mxu0 %v2898
    %4535 = vmatpush2.bf16.msra.mxu0 %v2897
    %4536 = vmatprep.subr.bf16.mxu0 %v2890
    %4537 = vmatpush2.bf16.msra.mxu0 %v2889
    %4538 = vmatprep.subr.bf16.mxu0 %v2882
    %4539 = vmatpush2.bf16.msra.mxu0 %v2881
    %4540 = vmatprep.subr.bf16.mxu0 %v2874
    %4541 = vmatpush2.bf16.msra.mxu0 %v2873
    %4542 = vmatprep.subr.bf16.mxu0 %v2866
    %4543 = vmatpush2.bf16.msra.mxu0 %v2865
    %4544 = vmatprep.subr.bf16.mxu0 %v2858
    %4545 = vmatpush2.bf16.msra.mxu0 %v2857
    %4546 = vmatprep.subr.bf16.mxu0 %v2850
    %4547 = vmatpush2.bf16.msra.mxu0 %v2849
    %4548 = vmatprep.mubr.bf16.mxu0 %v1090
    %4549 = vmatmul.mubr.bf16.gmra.mxu0 %v1089
    %v4550 = vpop.f32.mrf.mxu0
    %v4551 = vadd.f32 %v4358, %v4550
    %v4552 = vpop.f32.mrf.mxu0
    %v4553 = vadd.f32 %v4360, %v4552
    %v4554 = vpop.f32.mrf.mxu0
    %v4555 = vadd.f32 %v4362, %v4554
    %v4556 = vpop.f32.mrf.mxu0
    %v4557 = vadd.f32 %v4364, %v4556
    %4558 = vmatprep.mubr.bf16.mxu0 %v1097
    %4559 = vmatmul.mubr.bf16.gmra.mxu0 %v1096
    %v4560 = vpop.f32.mrf.mxu0
    %v4561 = vadd.f32 %v4368, %v4560
    %v4562 = vpop.f32.mrf.mxu0
    %v4563 = vadd.f32 %v4370, %v4562
    %v4564 = vpop.f32.mrf.mxu0
    %v4565 = vadd.f32 %v4372, %v4564
    %v4566 = vpop.f32.mrf.mxu0
    %v4567 = vadd.f32 %v4374, %v4566
    %4568 = vmatprep.mubr.bf16.mxu0 %v1104
    %4569 = vmatmul.mubr.bf16.gmra.mxu0 %v1103
    %v4570 = vpop.f32.mrf.mxu0
    %v4571 = vadd.f32 %v4378, %v4570
    %v4572 = vpop.f32.mrf.mxu0
    %v4573 = vadd.f32 %v4380, %v4572
    %v4574 = vpop.f32.mrf.mxu0
    %v4575 = vadd.f32 %v4382, %v4574
    %v4576 = vpop.f32.mrf.mxu0
    %v4577 = vadd.f32 %v4384, %v4576
    %4578 = vmatprep.mubr.bf16.mxu0 %v1111
    %4579 = vmatmul.mubr.bf16.gmra.mxu0 %v1110
    %v4580 = vpop.f32.mrf.mxu0
    %v4581 = vadd.f32 %v4388, %v4580
    %v4582 = vpop.f32.mrf.mxu0
    %v4583 = vadd.f32 %v4390, %v4582
    %v4584 = vpop.f32.mrf.mxu0
    %v4585 = vadd.f32 %v4392, %v4584
    %v4586 = vpop.f32.mrf.mxu0
    %v4587 = vadd.f32 %v4394, %v4586
    %4588 = vmatprep.mubr.bf16.mxu0 %v1118
    %4589 = vmatmul.mubr.bf16.gmra.mxu0 %v1117
    %v4590 = vpop.f32.mrf.mxu0
    %v4591 = vadd.f32 %v4398, %v4590
    %v4592 = vpop.f32.mrf.mxu0
    %v4593 = vadd.f32 %v4400, %v4592
    %v4594 = vpop.f32.mrf.mxu0
    %v4595 = vadd.f32 %v4402, %v4594
    %v4596 = vpop.f32.mrf.mxu0
    %v4597 = vadd.f32 %v4404, %v4596
    %4598 = vmatprep.mubr.bf16.mxu0 %v1125
    %4599 = vmatmul.mubr.bf16.gmra.mxu0 %v1124
    %v4600 = vpop.f32.mrf.mxu0
    %v4601 = vadd.f32 %v4408, %v4600
    %v4602 = vpop.f32.mrf.mxu0
    %v4603 = vadd.f32 %v4410, %v4602
    %v4604 = vpop.f32.mrf.mxu0
    %v4605 = vadd.f32 %v4412, %v4604
    %v4606 = vpop.f32.mrf.mxu0
    %v4607 = vadd.f32 %v4414, %v4606
    %4608 = vmatprep.mubr.bf16.mxu0 %v1132
    %4609 = vmatmul.mubr.bf16.gmra.mxu0 %v1131
    %v4610 = vpop.f32.mrf.mxu0
    %v4611 = vadd.f32 %v4418, %v4610
    %v4612 = vpop.f32.mrf.mxu0
    %v4613 = vadd.f32 %v4420, %v4612
    %v4614 = vpop.f32.mrf.mxu0
    %v4615 = vadd.f32 %v4422, %v4614
    %v4616 = vpop.f32.mrf.mxu0
    %v4617 = vadd.f32 %v4424, %v4616
    %4618 = vmatprep.mubr.bf16.mxu0 %v1139
    %4619 = vmatmul.mubr.bf16.gmra.mxu0 %v1138
    %v4620 = vpop.f32.mrf.mxu0
    %v4621 = vadd.f32 %v4428, %v4620
    %v4622 = vpop.f32.mrf.mxu0
    %v4623 = vadd.f32 %v4430, %v4622
    %v4624 = vpop.f32.mrf.mxu0
    %v4625 = vadd.f32 %v4432, %v4624
    %v4626 = vpop.f32.mrf.mxu0
    %v4627 = vadd.f32 %v4434, %v4626
    %4628 = vmatprep.mubr.bf16.mxu0 %v1146
    %4629 = vmatmul.mubr.bf16.gmra.mxu0 %v1145
    %v4630 = vpop.f32.mrf.mxu0
    %v4631 = vadd.f32 %v4438, %v4630
    %v4632 = vpop.f32.mrf.mxu0
    %v4633 = vadd.f32 %v4440, %v4632
    %v4634 = vpop.f32.mrf.mxu0
    %v4635 = vadd.f32 %v4442, %v4634
    %v4636 = vpop.f32.mrf.mxu0
    %v4637 = vadd.f32 %v4444, %v4636
    %4638 = vmatprep.mubr.bf16.mxu0 %v1153
    %4639 = vmatmul.mubr.bf16.gmra.mxu0 %v1152
    %v4640 = vpop.f32.mrf.mxu0
    %v4641 = vadd.f32 %v4448, %v4640
    %v4642 = vpop.f32.mrf.mxu0
    %v4643 = vadd.f32 %v4450, %v4642
    %v4644 = vpop.f32.mrf.mxu0
    %v4645 = vadd.f32 %v4452, %v4644
    %v4646 = vpop.f32.mrf.mxu0
    %v4647 = vadd.f32 %v4454, %v4646
    %4648 = vmatprep.mubr.bf16.mxu0 %v1160
    %4649 = vmatmul.mubr.bf16.gmra.mxu0 %v1159
    %v4650 = vpop.f32.mrf.mxu0
    %v4651 = vadd.f32 %v4458, %v4650
    %v4652 = vpop.f32.mrf.mxu0
    %v4653 = vadd.f32 %v4460, %v4652
    %v4654 = vpop.f32.mrf.mxu0
    %v4655 = vadd.f32 %v4462, %v4654
    %v4656 = vpop.f32.mrf.mxu0
    %v4657 = vadd.f32 %v4464, %v4656
    %4658 = vmatprep.mubr.bf16.mxu0 %v1167
    %4659 = vmatmul.mubr.bf16.gmra.mxu0 %v1166
    %v4660 = vpop.f32.mrf.mxu0
    %v4661 = vadd.f32 %v4468, %v4660
    %v4662 = vpop.f32.mrf.mxu0
    %v4663 = vadd.f32 %v4470, %v4662
    %v4664 = vpop.f32.mrf.mxu0
    %v4665 = vadd.f32 %v4472, %v4664
    %v4666 = vpop.f32.mrf.mxu0
    %v4667 = vadd.f32 %v4474, %v4666
    %4668 = vmatprep.mubr.bf16.mxu0 %v1174
    %4669 = vmatmul.mubr.bf16.gmra.mxu0 %v1173
    %v4670 = vpop.f32.mrf.mxu0
    %v4671 = vadd.f32 %v4478, %v4670
    %v4672 = vpop.f32.mrf.mxu0
    %v4673 = vadd.f32 %v4480, %v4672
    %v4674 = vpop.f32.mrf.mxu0
    %v4675 = vadd.f32 %v4482, %v4674
    %v4676 = vpop.f32.mrf.mxu0
    %v4677 = vadd.f32 %v4484, %v4676
    %4678 = vmatprep.mubr.bf16.mxu0 %v1181
    %4679 = vmatmul.mubr.bf16.gmra.mxu0 %v1180
    %v4680 = vpop.f32.mrf.mxu0
    %v4681 = vadd.f32 %v4488, %v4680
    %v4682 = vpop.f32.mrf.mxu0
    %v4683 = vadd.f32 %v4490, %v4682
    %v4684 = vpop.f32.mrf.mxu0
    %v4685 = vadd.f32 %v4492, %v4684
    %v4686 = vpop.f32.mrf.mxu0
    %v4687 = vadd.f32 %v4494, %v4686
    %4688 = vmatprep.mubr.bf16.mxu0 %v1188
    %4689 = vmatmul.mubr.bf16.gmra.mxu0 %v1187
    %v4690 = vpop.f32.mrf.mxu0
    %v4691 = vadd.f32 %v4498, %v4690
    %v4692 = vpop.f32.mrf.mxu0
    %v4693 = vadd.f32 %v4500, %v4692
    %v4694 = vpop.f32.mrf.mxu0
    %v4695 = vadd.f32 %v4502, %v4694
    %v4696 = vpop.f32.mrf.mxu0
    %v4697 = vadd.f32 %v4504, %v4696
    %4698 = vmatprep.mubr.bf16.mxu0 %v1195
    %4699 = vmatmul.mubr.bf16.gmra.mxu0 %v1194
    %v4700 = vpop.f32.mrf.mxu0
    %v4701 = vadd.f32 %v4508, %v4700
    %v4702 = vpop.f32.mrf.mxu0
    %v4703 = vadd.f32 %v4510, %v4702
    %v4704 = vpop.f32.mrf.mxu0
    %v4705 = vadd.f32 %v4512, %v4704
    %v4706 = vpop.f32.mrf.mxu0
    %v4707 = vadd.f32 %v4514, %v4706
    %4708 = vdwg.mxu0
    %4709 = vmatprep.subr.bf16.mxu0 %v2970
    %4710 = vmatpush1.bf16.msra.mxu0 %v2969
    %4711 = vmatprep.subr.bf16.mxu0 %v2962
    %4712 = vmatpush1.bf16.msra.mxu0 %v2961
    %4713 = vmatprep.subr.bf16.mxu0 %v2954
    %4714 = vmatpush1.bf16.msra.mxu0 %v2953
    %4715 = vmatprep.subr.bf16.mxu0 %v2946
    %4716 = vmatpush1.bf16.msra.mxu0 %v2945
    %4717 = vmatprep.subr.bf16.mxu0 %v2938
    %4718 = vmatpush1.bf16.msra.mxu0 %v2937
    %4719 = vmatprep.subr.bf16.mxu0 %v2930
    %4720 = vmatpush1.bf16.msra.mxu0 %v2929
    %4721 = vmatprep.subr.bf16.mxu0 %v2922
    %4722 = vmatpush1.bf16.msra.mxu0 %v2921
    %4723 = vmatprep.subr.bf16.mxu0 %v2914
    %4724 = vmatpush1.bf16.msra.mxu0 %v2913
    %4725 = vmatprep.subr.bf16.mxu0 %v3034
    %4726 = vmatpush2.bf16.msra.mxu0 %v3033
    %4727 = vmatprep.subr.bf16.mxu0 %v3026
    %4728 = vmatpush2.bf16.msra.mxu0 %v3025
    %4729 = vmatprep.subr.bf16.mxu0 %v3018
    %4730 = vmatpush2.bf16.msra.mxu0 %v3017
    %4731 = vmatprep.subr.bf16.mxu0 %v3010
    %4732 = vmatpush2.bf16.msra.mxu0 %v3009
    %4733 = vmatprep.subr.bf16.mxu0 %v3002
    %4734 = vmatpush2.bf16.msra.mxu0 %v3001
    %4735 = vmatprep.subr.bf16.mxu0 %v2994
    %4736 = vmatpush2.bf16.msra.mxu0 %v2993
    %4737 = vmatprep.subr.bf16.mxu0 %v2986
    %4738 = vmatpush2.bf16.msra.mxu0 %v2985
    %4739 = vmatprep.subr.bf16.mxu0 %v2978
    %4740 = vmatpush2.bf16.msra.mxu0 %v2977
    %4741 = vmatprep.mubr.bf16.mxu0 %v1092
    %4742 = vmatmul.mubr.bf16.gmra.mxu0 %v1091
    %v4743 = vpop.f32.mrf.mxu0
    %v4744 = vadd.f32 %v4551, %v4743
    %v4745 = vpop.f32.mrf.mxu0
    %v4746 = vadd.f32 %v4553, %v4745
    %v4747 = vpop.f32.mrf.mxu0
    %v4748 = vadd.f32 %v4555, %v4747
    %v4749 = vpop.f32.mrf.mxu0
    %v4750 = vadd.f32 %v4557, %v4749
    %4751 = vmatprep.mubr.bf16.mxu0 %v1099
    %4752 = vmatmul.mubr.bf16.gmra.mxu0 %v1098
    %v4753 = vpop.f32.mrf.mxu0
    %v4754 = vadd.f32 %v4561, %v4753
    %v4755 = vpop.f32.mrf.mxu0
    %v4756 = vadd.f32 %v4563, %v4755
    %v4757 = vpop.f32.mrf.mxu0
    %v4758 = vadd.f32 %v4565, %v4757
    %v4759 = vpop.f32.mrf.mxu0
    %v4760 = vadd.f32 %v4567, %v4759
    %4761 = vmatprep.mubr.bf16.mxu0 %v1106
    %4762 = vmatmul.mubr.bf16.gmra.mxu0 %v1105
    %v4763 = vpop.f32.mrf.mxu0
    %v4764 = vadd.f32 %v4571, %v4763
    %v4765 = vpop.f32.mrf.mxu0
    %v4766 = vadd.f32 %v4573, %v4765
    %v4767 = vpop.f32.mrf.mxu0
    %v4768 = vadd.f32 %v4575, %v4767
    %v4769 = vpop.f32.mrf.mxu0
    %v4770 = vadd.f32 %v4577, %v4769
    %4771 = vmatprep.mubr.bf16.mxu0 %v1113
    %4772 = vmatmul.mubr.bf16.gmra.mxu0 %v1112
    %v4773 = vpop.f32.mrf.mxu0
    %v4774 = vadd.f32 %v4581, %v4773
    %v4775 = vpop.f32.mrf.mxu0
    %v4776 = vadd.f32 %v4583, %v4775
    %v4777 = vpop.f32.mrf.mxu0
    %v4778 = vadd.f32 %v4585, %v4777
    %v4779 = vpop.f32.mrf.mxu0
    %v4780 = vadd.f32 %v4587, %v4779
    %4781 = vmatprep.mubr.bf16.mxu0 %v1120
    %4782 = vmatmul.mubr.bf16.gmra.mxu0 %v1119
    %v4783 = vpop.f32.mrf.mxu0
    %v4784 = vadd.f32 %v4591, %v4783
    %v4785 = vpop.f32.mrf.mxu0
    %v4786 = vadd.f32 %v4593, %v4785
    %v4787 = vpop.f32.mrf.mxu0
    %v4788 = vadd.f32 %v4595, %v4787
    %v4789 = vpop.f32.mrf.mxu0
    %v4790 = vadd.f32 %v4597, %v4789
    %4791 = vmatprep.mubr.bf16.mxu0 %v1127
    %4792 = vmatmul.mubr.bf16.gmra.mxu0 %v1126
    %v4793 = vpop.f32.mrf.mxu0
    %v4794 = vadd.f32 %v4601, %v4793
    %v4795 = vpop.f32.mrf.mxu0
    %v4796 = vadd.f32 %v4603, %v4795
    %v4797 = vpop.f32.mrf.mxu0
    %v4798 = vadd.f32 %v4605, %v4797
    %v4799 = vpop.f32.mrf.mxu0
    %v4800 = vadd.f32 %v4607, %v4799
    %4801 = vmatprep.mubr.bf16.mxu0 %v1134
    %4802 = vmatmul.mubr.bf16.gmra.mxu0 %v1133
    %v4803 = vpop.f32.mrf.mxu0
    %v4804 = vadd.f32 %v4611, %v4803
    %v4805 = vpop.f32.mrf.mxu0
    %v4806 = vadd.f32 %v4613, %v4805
    %v4807 = vpop.f32.mrf.mxu0
    %v4808 = vadd.f32 %v4615, %v4807
    %v4809 = vpop.f32.mrf.mxu0
    %v4810 = vadd.f32 %v4617, %v4809
    %4811 = vmatprep.mubr.bf16.mxu0 %v1141
    %4812 = vmatmul.mubr.bf16.gmra.mxu0 %v1140
    %v4813 = vpop.f32.mrf.mxu0
    %v4814 = vadd.f32 %v4621, %v4813
    %v4815 = vpop.f32.mrf.mxu0
    %v4816 = vadd.f32 %v4623, %v4815
    %v4817 = vpop.f32.mrf.mxu0
    %v4818 = vadd.f32 %v4625, %v4817
    %v4819 = vpop.f32.mrf.mxu0
    %v4820 = vadd.f32 %v4627, %v4819
    %4821 = vmatprep.mubr.bf16.mxu0 %v1148
    %4822 = vmatmul.mubr.bf16.gmra.mxu0 %v1147
    %v4823 = vpop.f32.mrf.mxu0
    %v4824 = vadd.f32 %v4631, %v4823
    %v4825 = vpop.f32.mrf.mxu0
    %v4826 = vadd.f32 %v4633, %v4825
    %v4827 = vpop.f32.mrf.mxu0
    %v4828 = vadd.f32 %v4635, %v4827
    %v4829 = vpop.f32.mrf.mxu0
    %v4830 = vadd.f32 %v4637, %v4829
    %4831 = vmatprep.mubr.bf16.mxu0 %v1155
    %4832 = vmatmul.mubr.bf16.gmra.mxu0 %v1154
    %v4833 = vpop.f32.mrf.mxu0
    %v4834 = vadd.f32 %v4641, %v4833
    %v4835 = vpop.f32.mrf.mxu0
    %v4836 = vadd.f32 %v4643, %v4835
    %v4837 = vpop.f32.mrf.mxu0
    %v4838 = vadd.f32 %v4645, %v4837
    %v4839 = vpop.f32.mrf.mxu0
    %v4840 = vadd.f32 %v4647, %v4839
    %4841 = vmatprep.mubr.bf16.mxu0 %v1162
    %4842 = vmatmul.mubr.bf16.gmra.mxu0 %v1161
    %v4843 = vpop.f32.mrf.mxu0
    %v4844 = vadd.f32 %v4651, %v4843
    %v4845 = vpop.f32.mrf.mxu0
    %v4846 = vadd.f32 %v4653, %v4845
    %v4847 = vpop.f32.mrf.mxu0
    %v4848 = vadd.f32 %v4655, %v4847
    %v4849 = vpop.f32.mrf.mxu0
    %v4850 = vadd.f32 %v4657, %v4849
    %4851 = vmatprep.mubr.bf16.mxu0 %v1169
    %4852 = vmatmul.mubr.bf16.gmra.mxu0 %v1168
    %v4853 = vpop.f32.mrf.mxu0
    %v4854 = vadd.f32 %v4661, %v4853
    %v4855 = vpop.f32.mrf.mxu0
    %v4856 = vadd.f32 %v4663, %v4855
    %v4857 = vpop.f32.mrf.mxu0
    %v4858 = vadd.f32 %v4665, %v4857
    %v4859 = vpop.f32.mrf.mxu0
    %v4860 = vadd.f32 %v4667, %v4859
    %4861 = vmatprep.mubr.bf16.mxu0 %v1176
    %4862 = vmatmul.mubr.bf16.gmra.mxu0 %v1175
    %v4863 = vpop.f32.mrf.mxu0
    %v4864 = vadd.f32 %v4671, %v4863
    %v4865 = vpop.f32.mrf.mxu0
    %v4866 = vadd.f32 %v4673, %v4865
    %v4867 = vpop.f32.mrf.mxu0
    %v4868 = vadd.f32 %v4675, %v4867
    %v4869 = vpop.f32.mrf.mxu0
    %v4870 = vadd.f32 %v4677, %v4869
    %4871 = vmatprep.mubr.bf16.mxu0 %v1183
    %4872 = vmatmul.mubr.bf16.gmra.mxu0 %v1182
    %v4873 = vpop.f32.mrf.mxu0
    %v4874 = vadd.f32 %v4681, %v4873
    %v4875 = vpop.f32.mrf.mxu0
    %v4876 = vadd.f32 %v4683, %v4875
    %v4877 = vpop.f32.mrf.mxu0
    %v4878 = vadd.f32 %v4685, %v4877
    %v4879 = vpop.f32.mrf.mxu0
    %v4880 = vadd.f32 %v4687, %v4879
    %4881 = vmatprep.mubr.bf16.mxu0 %v1190
    %4882 = vmatmul.mubr.bf16.gmra.mxu0 %v1189
    %v4883 = vpop.f32.mrf.mxu0
    %v4884 = vadd.f32 %v4691, %v4883
    %v4885 = vpop.f32.mrf.mxu0
    %v4886 = vadd.f32 %v4693, %v4885
    %v4887 = vpop.f32.mrf.mxu0
    %v4888 = vadd.f32 %v4695, %v4887
    %v4889 = vpop.f32.mrf.mxu0
    %v4890 = vadd.f32 %v4697, %v4889
    %4891 = vmatprep.mubr.bf16.mxu0 %v1197
    %4892 = vmatmul.mubr.bf16.gmra.mxu0 %v1196
    %v4893 = vpop.f32.mrf.mxu0
    %v4894 = vadd.f32 %v4701, %v4893
    %v4895 = vpop.f32.mrf.mxu0
    %v4896 = vadd.f32 %v4703, %v4895
    %v4897 = vpop.f32.mrf.mxu0
    %v4898 = vadd.f32 %v4705, %v4897
    %v4899 = vpop.f32.mrf.mxu0
    %v4900 = vadd.f32 %v4707, %v4899
    %4901 = vdwg.mxu0
    %4902 = vmatprep.subr.bf16.mxu0 %v3098
    %4903 = vmatpush1.bf16.msra.mxu0 %v3097
    %4904 = vmatprep.subr.bf16.mxu0 %v3090
    %4905 = vmatpush1.bf16.msra.mxu0 %v3089
    %4906 = vmatprep.subr.bf16.mxu0 %v3082
    %4907 = vmatpush1.bf16.msra.mxu0 %v3081
    %4908 = vmatprep.subr.bf16.mxu0 %v3074
    %4909 = vmatpush1.bf16.msra.mxu0 %v3073
    %4910 = vmatprep.subr.bf16.mxu0 %v3066
    %4911 = vmatpush1.bf16.msra.mxu0 %v3065
    %4912 = vmatprep.subr.bf16.mxu0 %v3058
    %4913 = vmatpush1.bf16.msra.mxu0 %v3057
    %4914 = vmatprep.subr.bf16.mxu0 %v3050
    %4915 = vmatpush1.bf16.msra.mxu0 %v3049
    %4916 = vmatprep.subr.bf16.mxu0 %v3042
    %4917 = vmatpush1.bf16.msra.mxu0 %v3041
    %4918 = vmatprep.subr.bf16.mxu0 0
    %4919 = vmatpush2.bf16.msra.mxu0 0
    %4920 = vmatprep.subr.bf16.mxu0 0
    %4921 = vmatpush2.bf16.msra.mxu0 0
    %4922 = vmatprep.subr.bf16.mxu0 0
    %4923 = vmatpush2.bf16.msra.mxu0 0
    %4924 = vmatprep.subr.bf16.mxu0 0
    %4925 = vmatpush2.bf16.msra.mxu0 0
    %4926 = vmatprep.subr.bf16.mxu0 0
    %4927 = vmatpush2.bf16.msra.mxu0 0
    %4928 = vmatprep.subr.bf16.mxu0 0
    %4929 = vmatpush2.bf16.msra.mxu0 0
    %4930 = vmatprep.subr.bf16.mxu0 0
    %4931 = vmatpush2.bf16.msra.mxu0 0
    %4932 = vmatprep.subr.bf16.mxu0 0
    %4933 = vmatpush2.bf16.msra.mxu0 0
    %4934 = vmatprep.mubr.bf16.mxu0 0
    %4935 = vmatmul.mubr.bf16.gmra.mxu0 %v1093
    %v4936 = vpop.f32.mrf.mxu0
    %v4937 = vadd.f32 %v4744, %v4936
    %v4938 = vpop.f32.mrf.mxu0
    %v4939 = vadd.f32 %v4746, %v4938
    %v4940 = vpop.f32.mrf.mxu0
    %v4941 = vadd.f32 %v4748, %v4940
    %v4942 = vpop.f32.mrf.mxu0
    %v4943 = vadd.f32 %v4750, %v4942
    %4944 = vmatprep.mubr.bf16.mxu0 0
    %4945 = vmatmul.mubr.bf16.gmra.mxu0 %v1100
    %v4946 = vpop.f32.mrf.mxu0
    %v4947 = vadd.f32 %v4754, %v4946
    %v4948 = vpop.f32.mrf.mxu0
    %v4949 = vadd.f32 %v4756, %v4948
    %v4950 = vpop.f32.mrf.mxu0
    %v4951 = vadd.f32 %v4758, %v4950
    %v4952 = vpop.f32.mrf.mxu0
    %v4953 = vadd.f32 %v4760, %v4952
    %4954 = vmatprep.mubr.bf16.mxu0 0
    %4955 = vmatmul.mubr.bf16.gmra.mxu0 %v1107
    %v4956 = vpop.f32.mrf.mxu0
    %v4957 = vadd.f32 %v4764, %v4956
    %v4958 = vpop.f32.mrf.mxu0
    %v4959 = vadd.f32 %v4766, %v4958
    %v4960 = vpop.f32.mrf.mxu0
    %v4961 = vadd.f32 %v4768, %v4960
    %v4962 = vpop.f32.mrf.mxu0
    %v4963 = vadd.f32 %v4770, %v4962
    %4964 = vmatprep.mubr.bf16.mxu0 0
    %4965 = vmatmul.mubr.bf16.gmra.mxu0 %v1114
    %v4966 = vpop.f32.mrf.mxu0
    %v4967 = vadd.f32 %v4774, %v4966
    %v4968 = vpop.f32.mrf.mxu0
    %v4969 = vadd.f32 %v4776, %v4968
    %v4970 = vpop.f32.mrf.mxu0
    %v4971 = vadd.f32 %v4778, %v4970
    %v4972 = vpop.f32.mrf.mxu0
    %v4973 = vadd.f32 %v4780, %v4972
    %4974 = vmatprep.mubr.bf16.mxu0 0
    %4975 = vmatmul.mubr.bf16.gmra.mxu0 %v1121
    %v4976 = vpop.f32.mrf.mxu0
    %v4977 = vadd.f32 %v4784, %v4976
    %v4978 = vpop.f32.mrf.mxu0
    %v4979 = vadd.f32 %v4786, %v4978
    %v4980 = vpop.f32.mrf.mxu0
    %v4981 = vadd.f32 %v4788, %v4980
    %v4982 = vpop.f32.mrf.mxu0
    %v4983 = vadd.f32 %v4790, %v4982
    %4984 = vmatprep.mubr.bf16.mxu0 0
    %4985 = vmatmul.mubr.bf16.gmra.mxu0 %v1128
    %v4986 = vpop.f32.mrf.mxu0
    %v4987 = vadd.f32 %v4794, %v4986
    %v4988 = vpop.f32.mrf.mxu0
    %v4989 = vadd.f32 %v4796, %v4988
    %v4990 = vpop.f32.mrf.mxu0
    %v4991 = vadd.f32 %v4798, %v4990
    %v4992 = vpop.f32.mrf.mxu0
    %v4993 = vadd.f32 %v4800, %v4992
    %4994 = vmatprep.mubr.bf16.mxu0 0
    %4995 = vmatmul.mubr.bf16.gmra.mxu0 %v1135
    %v4996 = vpop.f32.mrf.mxu0
    %v4997 = vadd.f32 %v4804, %v4996
    %v4998 = vpop.f32.mrf.mxu0
    %v4999 = vadd.f32 %v4806, %v4998
    %v5000 = vpop.f32.mrf.mxu0
    %v5001 = vadd.f32 %v4808, %v5000
    %v5002 = vpop.f32.mrf.mxu0
    %v5003 = vadd.f32 %v4810, %v5002
    %5004 = vmatprep.mubr.bf16.mxu0 0
    %5005 = vmatmul.mubr.bf16.gmra.mxu0 %v1142
    %v5006 = vpop.f32.mrf.mxu0
    %v5007 = vadd.f32 %v4814, %v5006
    %v5008 = vpop.f32.mrf.mxu0
    %v5009 = vadd.f32 %v4816, %v5008
    %v5010 = vpop.f32.mrf.mxu0
    %v5011 = vadd.f32 %v4818, %v5010
    %v5012 = vpop.f32.mrf.mxu0
    %v5013 = vadd.f32 %v4820, %v5012
    %5014 = vmatprep.mubr.bf16.mxu0 0
    %5015 = vmatmul.mubr.bf16.gmra.mxu0 %v1149
    %v5016 = vpop.f32.mrf.mxu0
    %v5017 = vadd.f32 %v4824, %v5016
    %v5018 = vpop.f32.mrf.mxu0
    %v5019 = vadd.f32 %v4826, %v5018
    %v5020 = vpop.f32.mrf.mxu0
    %v5021 = vadd.f32 %v4828, %v5020
    %v5022 = vpop.f32.mrf.mxu0
    %v5023 = vadd.f32 %v4830, %v5022
    %5024 = vmatprep.mubr.bf16.mxu0 0
    %5025 = vmatmul.mubr.bf16.gmra.mxu0 %v1156
    %v5026 = vpop.f32.mrf.mxu0
    %v5027 = vadd.f32 %v4834, %v5026
    %v5028 = vpop.f32.mrf.mxu0
    %v5029 = vadd.f32 %v4836, %v5028
    %v5030 = vpop.f32.mrf.mxu0
    %v5031 = vadd.f32 %v4838, %v5030
    %v5032 = vpop.f32.mrf.mxu0
    %v5033 = vadd.f32 %v4840, %v5032
    %5034 = vmatprep.mubr.bf16.mxu0 0
    %5035 = vmatmul.mubr.bf16.gmra.mxu0 %v1163
    %v5036 = vpop.f32.mrf.mxu0
    %v5037 = vadd.f32 %v4844, %v5036
    %v5038 = vpop.f32.mrf.mxu0
    %v5039 = vadd.f32 %v4846, %v5038
    %v5040 = vpop.f32.mrf.mxu0
    %v5041 = vadd.f32 %v4848, %v5040
    %v5042 = vpop.f32.mrf.mxu0
    %v5043 = vadd.f32 %v4850, %v5042
    %5044 = vmatprep.mubr.bf16.mxu0 0
    %5045 = vmatmul.mubr.bf16.gmra.mxu0 %v1170
    %v5046 = vpop.f32.mrf.mxu0
    %v5047 = vadd.f32 %v4854, %v5046
    %v5048 = vpop.f32.mrf.mxu0
    %v5049 = vadd.f32 %v4856, %v5048
    %v5050 = vpop.f32.mrf.mxu0
    %v5051 = vadd.f32 %v4858, %v5050
    %v5052 = vpop.f32.mrf.mxu0
    %v5053 = vadd.f32 %v4860, %v5052
    %5054 = vmatprep.mubr.bf16.mxu0 0
    %5055 = vmatmul.mubr.bf16.gmra.mxu0 %v1177
    %v5056 = vpop.f32.mrf.mxu0
    %v5057 = vadd.f32 %v4864, %v5056
    %v5058 = vpop.f32.mrf.mxu0
    %v5059 = vadd.f32 %v4866, %v5058
    %v5060 = vpop.f32.mrf.mxu0
    %v5061 = vadd.f32 %v4868, %v5060
    %v5062 = vpop.f32.mrf.mxu0
    %v5063 = vadd.f32 %v4870, %v5062
    %5064 = vmatprep.mubr.bf16.mxu0 0
    %5065 = vmatmul.mubr.bf16.gmra.mxu0 %v1184
    %v5066 = vpop.f32.mrf.mxu0
    %v5067 = vadd.f32 %v4874, %v5066
    %v5068 = vpop.f32.mrf.mxu0
    %v5069 = vadd.f32 %v4876, %v5068
    %v5070 = vpop.f32.mrf.mxu0
    %v5071 = vadd.f32 %v4878, %v5070
    %v5072 = vpop.f32.mrf.mxu0
    %v5073 = vadd.f32 %v4880, %v5072
    %5074 = vmatprep.mubr.bf16.mxu0 0
    %5075 = vmatmul.mubr.bf16.gmra.mxu0 %v1191
    %v5076 = vpop.f32.mrf.mxu0
    %v5077 = vadd.f32 %v4884, %v5076
    %v5078 = vpop.f32.mrf.mxu0
    %v5079 = vadd.f32 %v4886, %v5078
    %v5080 = vpop.f32.mrf.mxu0
    %v5081 = vadd.f32 %v4888, %v5080
    %v5082 = vpop.f32.mrf.mxu0
    %v5083 = vadd.f32 %v4890, %v5082
    %5084 = vmatprep.mubr.bf16.mxu0 0
    %5085 = vmatmul.mubr.bf16.gmra.mxu0 %v1198
    %v5086 = vpop.f32.mrf.mxu0
    %v5087 = vadd.f32 %v4894, %v5086
    %v5088 = vpop.f32.mrf.mxu0
    %v5089 = vadd.f32 %v4896, %v5088
    %v5090 = vpop.f32.mrf.mxu0
    %v5091 = vadd.f32 %v4898, %v5090
    %v5092 = vpop.f32.mrf.mxu0
    %v5093 = vadd.f32 %v4900, %v5092
    %5094 = vdwg.mxu0
    %5095 = vmatprep.subr.bf16.mxu0 %v2716
    %5096 = vmatpush1.bf16.msra.mxu0 %v2715
    %5097 = vmatprep.subr.bf16.mxu0 %v2708
    %5098 = vmatpush1.bf16.msra.mxu0 %v2707
    %5099 = vmatprep.subr.bf16.mxu0 %v2700
    %5100 = vmatpush1.bf16.msra.mxu0 %v2699
    %5101 = vmatprep.subr.bf16.mxu0 %v2692
    %5102 = vmatpush1.bf16.msra.mxu0 %v2691
    %5103 = vmatprep.subr.bf16.mxu0 %v2684
    %5104 = vmatpush1.bf16.msra.mxu0 %v2683
    %5105 = vmatprep.subr.bf16.mxu0 %v2676
    %5106 = vmatpush1.bf16.msra.mxu0 %v2675
    %5107 = vmatprep.subr.bf16.mxu0 %v2668
    %5108 = vmatpush1.bf16.msra.mxu0 %v2667
    %5109 = vmatprep.subr.bf16.mxu0 %v2660
    %5110 = vmatpush1.bf16.msra.mxu0 %v2659
    %5111 = vmatprep.subr.bf16.mxu0 %v2780
    %5112 = vmatpush2.bf16.msra.mxu0 %v2779
    %5113 = vmatprep.subr.bf16.mxu0 %v2772
    %5114 = vmatpush2.bf16.msra.mxu0 %v2771
    %5115 = vmatprep.subr.bf16.mxu0 %v2764
    %5116 = vmatpush2.bf16.msra.mxu0 %v2763
    %5117 = vmatprep.subr.bf16.mxu0 %v2756
    %5118 = vmatpush2.bf16.msra.mxu0 %v2755
    %5119 = vmatprep.subr.bf16.mxu0 %v2748
    %5120 = vmatpush2.bf16.msra.mxu0 %v2747
    %5121 = vmatprep.subr.bf16.mxu0 %v2740
    %5122 = vmatpush2.bf16.msra.mxu0 %v2739
    %5123 = vmatprep.subr.bf16.mxu0 %v2732
    %5124 = vmatpush2.bf16.msra.mxu0 %v2731
    %5125 = vmatprep.subr.bf16.mxu0 %v2724
    %5126 = vmatpush2.bf16.msra.mxu0 %v2723
    %5127 = vmatprep.mubr.bf16.mxu0 %v1088
    %5128 = vmatmul.mubr.bf16.gmra.mxu0 %v1087
    %v5129 = vpop.f32.mrf.mxu0
    %v5130 = vadd.f32 %v714, %v5129
    %v5131 = vpop.f32.mrf.mxu0
    %v5132 = vadd.f32 %v718, %v5131
    %v5133 = vpop.f32.mrf.mxu0
    %v5134 = vadd.f32 %v714, %v5133
    %v5135 = vpop.f32.mrf.mxu0
    %v5136 = vadd.f32 %v718, %v5135
    %5137 = vmatprep.mubr.bf16.mxu0 %v1095
    %5138 = vmatmul.mubr.bf16.gmra.mxu0 %v1094
    %v5139 = vpop.f32.mrf.mxu0
    %v5140 = vadd.f32 %v714, %v5139
    %v5141 = vpop.f32.mrf.mxu0
    %v5142 = vadd.f32 %v718, %v5141
    %v5143 = vpop.f32.mrf.mxu0
    %v5144 = vadd.f32 %v714, %v5143
    %v5145 = vpop.f32.mrf.mxu0
    %v5146 = vadd.f32 %v718, %v5145
    %5147 = vmatprep.mubr.bf16.mxu0 %v1102
    %5148 = vmatmul.mubr.bf16.gmra.mxu0 %v1101
    %v5149 = vpop.f32.mrf.mxu0
    %v5150 = vadd.f32 %v714, %v5149
    %v5151 = vpop.f32.mrf.mxu0
    %v5152 = vadd.f32 %v718, %v5151
    %v5153 = vpop.f32.mrf.mxu0
    %v5154 = vadd.f32 %v714, %v5153
    %v5155 = vpop.f32.mrf.mxu0
    %v5156 = vadd.f32 %v718, %v5155
    %5157 = vmatprep.mubr.bf16.mxu0 %v1109
    %5158 = vmatmul.mubr.bf16.gmra.mxu0 %v1108
    %v5159 = vpop.f32.mrf.mxu0
    %v5160 = vadd.f32 %v714, %v5159
    %v5161 = vpop.f32.mrf.mxu0
    %v5162 = vadd.f32 %v718, %v5161
    %v5163 = vpop.f32.mrf.mxu0
    %v5164 = vadd.f32 %v714, %v5163
    %v5165 = vpop.f32.mrf.mxu0
    %v5166 = vadd.f32 %v718, %v5165
    %5167 = vmatprep.mubr.bf16.mxu0 %v1116
    %5168 = vmatmul.mubr.bf16.gmra.mxu0 %v1115
    %v5169 = vpop.f32.mrf.mxu0
    %v5170 = vadd.f32 %v714, %v5169
    %v5171 = vpop.f32.mrf.mxu0
    %v5172 = vadd.f32 %v718, %v5171
    %v5173 = vpop.f32.mrf.mxu0
    %v5174 = vadd.f32 %v714, %v5173
    %v5175 = vpop.f32.mrf.mxu0
    %v5176 = vadd.f32 %v718, %v5175
    %5177 = vmatprep.mubr.bf16.mxu0 %v1123
    %5178 = vmatmul.mubr.bf16.gmra.mxu0 %v1122
    %v5179 = vpop.f32.mrf.mxu0
    %v5180 = vadd.f32 %v714, %v5179
    %v5181 = vpop.f32.mrf.mxu0
    %v5182 = vadd.f32 %v718, %v5181
    %v5183 = vpop.f32.mrf.mxu0
    %v5184 = vadd.f32 %v714, %v5183
    %v5185 = vpop.f32.mrf.mxu0
    %v5186 = vadd.f32 %v718, %v5185
    %5187 = vmatprep.mubr.bf16.mxu0 %v1130
    %5188 = vmatmul.mubr.bf16.gmra.mxu0 %v1129
    %v5189 = vpop.f32.mrf.mxu0
    %v5190 = vadd.f32 %v714, %v5189
    %v5191 = vpop.f32.mrf.mxu0
    %v5192 = vadd.f32 %v718, %v5191
    %v5193 = vpop.f32.mrf.mxu0
    %v5194 = vadd.f32 %v714, %v5193
    %v5195 = vpop.f32.mrf.mxu0
    %v5196 = vadd.f32 %v718, %v5195
    %5197 = vmatprep.mubr.bf16.mxu0 %v1137
    %5198 = vmatmul.mubr.bf16.gmra.mxu0 %v1136
    %v5199 = vpop.f32.mrf.mxu0
    %v5200 = vadd.f32 %v714, %v5199
    %v5201 = vpop.f32.mrf.mxu0
    %v5202 = vadd.f32 %v718, %v5201
    %v5203 = vpop.f32.mrf.mxu0
    %v5204 = vadd.f32 %v714, %v5203
    %v5205 = vpop.f32.mrf.mxu0
    %v5206 = vadd.f32 %v718, %v5205
    %5207 = vmatprep.mubr.bf16.mxu0 %v1144
    %5208 = vmatmul.mubr.bf16.gmra.mxu0 %v1143
    %v5209 = vpop.f32.mrf.mxu0
    %v5210 = vadd.f32 %v714, %v5209
    %v5211 = vpop.f32.mrf.mxu0
    %v5212 = vadd.f32 %v718, %v5211
    %v5213 = vpop.f32.mrf.mxu0
    %v5214 = vadd.f32 %v714, %v5213
    %v5215 = vpop.f32.mrf.mxu0
    %v5216 = vadd.f32 %v718, %v5215
    %5217 = vmatprep.mubr.bf16.mxu0 %v1151
    %5218 = vmatmul.mubr.bf16.gmra.mxu0 %v1150
    %v5219 = vpop.f32.mrf.mxu0
    %v5220 = vadd.f32 %v714, %v5219
    %v5221 = vpop.f32.mrf.mxu0
    %v5222 = vadd.f32 %v718, %v5221
    %v5223 = vpop.f32.mrf.mxu0
    %v5224 = vadd.f32 %v714, %v5223
    %v5225 = vpop.f32.mrf.mxu0
    %v5226 = vadd.f32 %v718, %v5225
    %5227 = vmatprep.mubr.bf16.mxu0 %v1158
    %5228 = vmatmul.mubr.bf16.gmra.mxu0 %v1157
    %v5229 = vpop.f32.mrf.mxu0
    %v5230 = vadd.f32 %v714, %v5229
    %v5231 = vpop.f32.mrf.mxu0
    %v5232 = vadd.f32 %v718, %v5231
    %v5233 = vpop.f32.mrf.mxu0
    %v5234 = vadd.f32 %v714, %v5233
    %v5235 = vpop.f32.mrf.mxu0
    %v5236 = vadd.f32 %v718, %v5235
    %5237 = vmatprep.mubr.bf16.mxu0 %v1165
    %5238 = vmatmul.mubr.bf16.gmra.mxu0 %v1164
    %v5239 = vpop.f32.mrf.mxu0
    %v5240 = vadd.f32 %v714, %v5239
    %v5241 = vpop.f32.mrf.mxu0
    %v5242 = vadd.f32 %v718, %v5241
    %v5243 = vpop.f32.mrf.mxu0
    %v5244 = vadd.f32 %v714, %v5243
    %v5245 = vpop.f32.mrf.mxu0
    %v5246 = vadd.f32 %v718, %v5245
    %5247 = vmatprep.mubr.bf16.mxu0 %v1172
    %5248 = vmatmul.mubr.bf16.gmra.mxu0 %v1171
    %v5249 = vpop.f32.mrf.mxu0
    %v5250 = vadd.f32 %v714, %v5249
    %v5251 = vpop.f32.mrf.mxu0
    %v5252 = vadd.f32 %v718, %v5251
    %v5253 = vpop.f32.mrf.mxu0
    %v5254 = vadd.f32 %v714, %v5253
    %v5255 = vpop.f32.mrf.mxu0
    %v5256 = vadd.f32 %v718, %v5255
    %5257 = vmatprep.mubr.bf16.mxu0 %v1179
    %5258 = vmatmul.mubr.bf16.gmra.mxu0 %v1178
    %v5259 = vpop.f32.mrf.mxu0
    %v5260 = vadd.f32 %v714, %v5259
    %v5261 = vpop.f32.mrf.mxu0
    %v5262 = vadd.f32 %v718, %v5261
    %v5263 = vpop.f32.mrf.mxu0
    %v5264 = vadd.f32 %v714, %v5263
    %v5265 = vpop.f32.mrf.mxu0
    %v5266 = vadd.f32 %v718, %v5265
    %5267 = vmatprep.mubr.bf16.mxu0 %v1186
    %5268 = vmatmul.mubr.bf16.gmra.mxu0 %v1185
    %v5269 = vpop.f32.mrf.mxu0
    %v5270 = vadd.f32 %v714, %v5269
    %v5271 = vpop.f32.mrf.mxu0
    %v5272 = vadd.f32 %v718, %v5271
    %v5273 = vpop.f32.mrf.mxu0
    %v5274 = vadd.f32 %v714, %v5273
    %v5275 = vpop.f32.mrf.mxu0
    %v5276 = vadd.f32 %v718, %v5275
    %5277 = vmatprep.mubr.bf16.mxu0 %v1193
    %5278 = vmatmul.mubr.bf16.gmra.mxu0 %v1192
    %v5279 = vpop.f32.mrf.mxu0
    %v5280 = vadd.f32 %v714, %v5279
    %v5281 = vpop.f32.mrf.mxu0
    %v5282 = vadd.f32 %v718, %v5281
    %v5283 = vpop.f32.mrf.mxu0
    %v5284 = vadd.f32 %v714, %v5283
    %v5285 = vpop.f32.mrf.mxu0
    %v5286 = vadd.f32 %v718, %v5285
    %5287 = vdwg.mxu0
    %5288 = vmatprep.subr.bf16.mxu0 %v2844
    %5289 = vmatpush1.bf16.msra.mxu0 %v2843
    %5290 = vmatprep.subr.bf16.mxu0 %v2836
    %5291 = vmatpush1.bf16.msra.mxu0 %v2835
    %5292 = vmatprep.subr.bf16.mxu0 %v2828
    %5293 = vmatpush1.bf16.msra.mxu0 %v2827
    %5294 = vmatprep.subr.bf16.mxu0 %v2820
    %5295 = vmatpush1.bf16.msra.mxu0 %v2819
    %5296 = vmatprep.subr.bf16.mxu0 %v2812
    %5297 = vmatpush1.bf16.msra.mxu0 %v2811
    %5298 = vmatprep.subr.bf16.mxu0 %v2804
    %5299 = vmatpush1.bf16.msra.mxu0 %v2803
    %5300 = vmatprep.subr.bf16.mxu0 %v2796
    %5301 = vmatpush1.bf16.msra.mxu0 %v2795
    %5302 = vmatprep.subr.bf16.mxu0 %v2788
    %5303 = vmatpush1.bf16.msra.mxu0 %v2787
    %5304 = vmatprep.subr.bf16.mxu0 %v2908
    %5305 = vmatpush2.bf16.msra.mxu0 %v2907
    %5306 = vmatprep.subr.bf16.mxu0 %v2900
    %5307 = vmatpush2.bf16.msra.mxu0 %v2899
    %5308 = vmatprep.subr.bf16.mxu0 %v2892
    %5309 = vmatpush2.bf16.msra.mxu0 %v2891
    %5310 = vmatprep.subr.bf16.mxu0 %v2884
    %5311 = vmatpush2.bf16.msra.mxu0 %v2883
    %5312 = vmatprep.subr.bf16.mxu0 %v2876
    %5313 = vmatpush2.bf16.msra.mxu0 %v2875
    %5314 = vmatprep.subr.bf16.mxu0 %v2868
    %5315 = vmatpush2.bf16.msra.mxu0 %v2867
    %5316 = vmatprep.subr.bf16.mxu0 %v2860
    %5317 = vmatpush2.bf16.msra.mxu0 %v2859
    %5318 = vmatprep.subr.bf16.mxu0 %v2852
    %5319 = vmatpush2.bf16.msra.mxu0 %v2851
    %5320 = vmatprep.mubr.bf16.mxu0 %v1090
    %5321 = vmatmul.mubr.bf16.gmra.mxu0 %v1089
    %v5322 = vpop.f32.mrf.mxu0
    %v5323 = vadd.f32 %v5130, %v5322
    %v5324 = vpop.f32.mrf.mxu0
    %v5325 = vadd.f32 %v5132, %v5324
    %v5326 = vpop.f32.mrf.mxu0
    %v5327 = vadd.f32 %v5134, %v5326
    %v5328 = vpop.f32.mrf.mxu0
    %v5329 = vadd.f32 %v5136, %v5328
    %5330 = vmatprep.mubr.bf16.mxu0 %v1097
    %5331 = vmatmul.mubr.bf16.gmra.mxu0 %v1096
    %v5332 = vpop.f32.mrf.mxu0
    %v5333 = vadd.f32 %v5140, %v5332
    %v5334 = vpop.f32.mrf.mxu0
    %v5335 = vadd.f32 %v5142, %v5334
    %v5336 = vpop.f32.mrf.mxu0
    %v5337 = vadd.f32 %v5144, %v5336
    %v5338 = vpop.f32.mrf.mxu0
    %v5339 = vadd.f32 %v5146, %v5338
    %5340 = vmatprep.mubr.bf16.mxu0 %v1104
    %5341 = vmatmul.mubr.bf16.gmra.mxu0 %v1103
    %v5342 = vpop.f32.mrf.mxu0
    %v5343 = vadd.f32 %v5150, %v5342
    %v5344 = vpop.f32.mrf.mxu0
    %v5345 = vadd.f32 %v5152, %v5344
    %v5346 = vpop.f32.mrf.mxu0
    %v5347 = vadd.f32 %v5154, %v5346
    %v5348 = vpop.f32.mrf.mxu0
    %v5349 = vadd.f32 %v5156, %v5348
    %5350 = vmatprep.mubr.bf16.mxu0 %v1111
    %5351 = vmatmul.mubr.bf16.gmra.mxu0 %v1110
    %v5352 = vpop.f32.mrf.mxu0
    %v5353 = vadd.f32 %v5160, %v5352
    %v5354 = vpop.f32.mrf.mxu0
    %v5355 = vadd.f32 %v5162, %v5354
    %v5356 = vpop.f32.mrf.mxu0
    %v5357 = vadd.f32 %v5164, %v5356
    %v5358 = vpop.f32.mrf.mxu0
    %v5359 = vadd.f32 %v5166, %v5358
    %5360 = vmatprep.mubr.bf16.mxu0 %v1118
    %5361 = vmatmul.mubr.bf16.gmra.mxu0 %v1117
    %v5362 = vpop.f32.mrf.mxu0
    %v5363 = vadd.f32 %v5170, %v5362
    %v5364 = vpop.f32.mrf.mxu0
    %v5365 = vadd.f32 %v5172, %v5364
    %v5366 = vpop.f32.mrf.mxu0
    %v5367 = vadd.f32 %v5174, %v5366
    %v5368 = vpop.f32.mrf.mxu0
    %v5369 = vadd.f32 %v5176, %v5368
    %5370 = vmatprep.mubr.bf16.mxu0 %v1125
    %5371 = vmatmul.mubr.bf16.gmra.mxu0 %v1124
    %v5372 = vpop.f32.mrf.mxu0
    %v5373 = vadd.f32 %v5180, %v5372
    %v5374 = vpop.f32.mrf.mxu0
    %v5375 = vadd.f32 %v5182, %v5374
    %v5376 = vpop.f32.mrf.mxu0
    %v5377 = vadd.f32 %v5184, %v5376
    %v5378 = vpop.f32.mrf.mxu0
    %v5379 = vadd.f32 %v5186, %v5378
    %5380 = vmatprep.mubr.bf16.mxu0 %v1132
    %5381 = vmatmul.mubr.bf16.gmra.mxu0 %v1131
    %v5382 = vpop.f32.mrf.mxu0
    %v5383 = vadd.f32 %v5190, %v5382
    %v5384 = vpop.f32.mrf.mxu0
    %v5385 = vadd.f32 %v5192, %v5384
    %v5386 = vpop.f32.mrf.mxu0
    %v5387 = vadd.f32 %v5194, %v5386
    %v5388 = vpop.f32.mrf.mxu0
    %v5389 = vadd.f32 %v5196, %v5388
    %5390 = vmatprep.mubr.bf16.mxu0 %v1139
    %5391 = vmatmul.mubr.bf16.gmra.mxu0 %v1138
    %v5392 = vpop.f32.mrf.mxu0
    %v5393 = vadd.f32 %v5200, %v5392
    %v5394 = vpop.f32.mrf.mxu0
    %v5395 = vadd.f32 %v5202, %v5394
    %v5396 = vpop.f32.mrf.mxu0
    %v5397 = vadd.f32 %v5204, %v5396
    %v5398 = vpop.f32.mrf.mxu0
    %v5399 = vadd.f32 %v5206, %v5398
    %5400 = vmatprep.mubr.bf16.mxu0 %v1146
    %5401 = vmatmul.mubr.bf16.gmra.mxu0 %v1145
    %v5402 = vpop.f32.mrf.mxu0
    %v5403 = vadd.f32 %v5210, %v5402
    %v5404 = vpop.f32.mrf.mxu0
    %v5405 = vadd.f32 %v5212, %v5404
    %v5406 = vpop.f32.mrf.mxu0
    %v5407 = vadd.f32 %v5214, %v5406
    %v5408 = vpop.f32.mrf.mxu0
    %v5409 = vadd.f32 %v5216, %v5408
    %5410 = vmatprep.mubr.bf16.mxu0 %v1153
    %5411 = vmatmul.mubr.bf16.gmra.mxu0 %v1152
    %v5412 = vpop.f32.mrf.mxu0
    %v5413 = vadd.f32 %v5220, %v5412
    %v5414 = vpop.f32.mrf.mxu0
    %v5415 = vadd.f32 %v5222, %v5414
    %v5416 = vpop.f32.mrf.mxu0
    %v5417 = vadd.f32 %v5224, %v5416
    %v5418 = vpop.f32.mrf.mxu0
    %v5419 = vadd.f32 %v5226, %v5418
    %5420 = vmatprep.mubr.bf16.mxu0 %v1160
    %5421 = vmatmul.mubr.bf16.gmra.mxu0 %v1159
    %v5422 = vpop.f32.mrf.mxu0
    %v5423 = vadd.f32 %v5230, %v5422
    %v5424 = vpop.f32.mrf.mxu0
    %v5425 = vadd.f32 %v5232, %v5424
    %v5426 = vpop.f32.mrf.mxu0
    %v5427 = vadd.f32 %v5234, %v5426
    %v5428 = vpop.f32.mrf.mxu0
    %v5429 = vadd.f32 %v5236, %v5428
    %5430 = vmatprep.mubr.bf16.mxu0 %v1167
    %5431 = vmatmul.mubr.bf16.gmra.mxu0 %v1166
    %v5432 = vpop.f32.mrf.mxu0
    %v5433 = vadd.f32 %v5240, %v5432
    %v5434 = vpop.f32.mrf.mxu0
    %v5435 = vadd.f32 %v5242, %v5434
    %v5436 = vpop.f32.mrf.mxu0
    %v5437 = vadd.f32 %v5244, %v5436
    %v5438 = vpop.f32.mrf.mxu0
    %v5439 = vadd.f32 %v5246, %v5438
    %5440 = vmatprep.mubr.bf16.mxu0 %v1174
    %5441 = vmatmul.mubr.bf16.gmra.mxu0 %v1173
    %v5442 = vpop.f32.mrf.mxu0
    %v5443 = vadd.f32 %v5250, %v5442
    %v5444 = vpop.f32.mrf.mxu0
    %v5445 = vadd.f32 %v5252, %v5444
    %v5446 = vpop.f32.mrf.mxu0
    %v5447 = vadd.f32 %v5254, %v5446
    %v5448 = vpop.f32.mrf.mxu0
    %v5449 = vadd.f32 %v5256, %v5448
    %5450 = vmatprep.mubr.bf16.mxu0 %v1181
    %5451 = vmatmul.mubr.bf16.gmra.mxu0 %v1180
    %v5452 = vpop.f32.mrf.mxu0
    %v5453 = vadd.f32 %v5260, %v5452
    %v5454 = vpop.f32.mrf.mxu0
    %v5455 = vadd.f32 %v5262, %v5454
    %v5456 = vpop.f32.mrf.mxu0
    %v5457 = vadd.f32 %v5264, %v5456
    %v5458 = vpop.f32.mrf.mxu0
    %v5459 = vadd.f32 %v5266, %v5458
    %5460 = vmatprep.mubr.bf16.mxu0 %v1188
    %5461 = vmatmul.mubr.bf16.gmra.mxu0 %v1187
    %v5462 = vpop.f32.mrf.mxu0
    %v5463 = vadd.f32 %v5270, %v5462
    %v5464 = vpop.f32.mrf.mxu0
    %v5465 = vadd.f32 %v5272, %v5464
    %v5466 = vpop.f32.mrf.mxu0
    %v5467 = vadd.f32 %v5274, %v5466
    %v5468 = vpop.f32.mrf.mxu0
    %v5469 = vadd.f32 %v5276, %v5468
    %5470 = vmatprep.mubr.bf16.mxu0 %v1195
    %5471 = vmatmul.mubr.bf16.gmra.mxu0 %v1194
    %v5472 = vpop.f32.mrf.mxu0
    %v5473 = vadd.f32 %v5280, %v5472
    %v5474 = vpop.f32.mrf.mxu0
    %v5475 = vadd.f32 %v5282, %v5474
    %v5476 = vpop.f32.mrf.mxu0
    %v5477 = vadd.f32 %v5284, %v5476
    %v5478 = vpop.f32.mrf.mxu0
    %v5479 = vadd.f32 %v5286, %v5478
    %5480 = vdwg.mxu0
    %5481 = vmatprep.subr.bf16.mxu0 %v2972
    %5482 = vmatpush1.bf16.msra.mxu0 %v2971
    %5483 = vmatprep.subr.bf16.mxu0 %v2964
    %5484 = vmatpush1.bf16.msra.mxu0 %v2963
    %5485 = vmatprep.subr.bf16.mxu0 %v2956
    %5486 = vmatpush1.bf16.msra.mxu0 %v2955
    %5487 = vmatprep.subr.bf16.mxu0 %v2948
    %5488 = vmatpush1.bf16.msra.mxu0 %v2947
    %5489 = vmatprep.subr.bf16.mxu0 %v2940
    %5490 = vmatpush1.bf16.msra.mxu0 %v2939
    %5491 = vmatprep.subr.bf16.mxu0 %v2932
    %5492 = vmatpush1.bf16.msra.mxu0 %v2931
    %5493 = vmatprep.subr.bf16.mxu0 %v2924
    %5494 = vmatpush1.bf16.msra.mxu0 %v2923
    %5495 = vmatprep.subr.bf16.mxu0 %v2916
    %5496 = vmatpush1.bf16.msra.mxu0 %v2915
    %5497 = vmatprep.subr.bf16.mxu0 %v3036
    %5498 = vmatpush2.bf16.msra.mxu0 %v3035
    %5499 = vmatprep.subr.bf16.mxu0 %v3028
    %5500 = vmatpush2.bf16.msra.mxu0 %v3027
    %5501 = vmatprep.subr.bf16.mxu0 %v3020
    %5502 = vmatpush2.bf16.msra.mxu0 %v3019
    %5503 = vmatprep.subr.bf16.mxu0 %v3012
    %5504 = vmatpush2.bf16.msra.mxu0 %v3011
    %5505 = vmatprep.subr.bf16.mxu0 %v3004
    %5506 = vmatpush2.bf16.msra.mxu0 %v3003
    %5507 = vmatprep.subr.bf16.mxu0 %v2996
    %5508 = vmatpush2.bf16.msra.mxu0 %v2995
    %5509 = vmatprep.subr.bf16.mxu0 %v2988
    %5510 = vmatpush2.bf16.msra.mxu0 %v2987
    %5511 = vmatprep.subr.bf16.mxu0 %v2980
    %5512 = vmatpush2.bf16.msra.mxu0 %v2979
    %5513 = vmatprep.mubr.bf16.mxu0 %v1092
    %5514 = vmatmul.mubr.bf16.gmra.mxu0 %v1091
    %v5515 = vpop.f32.mrf.mxu0
    %v5516 = vadd.f32 %v5323, %v5515
    %v5517 = vpop.f32.mrf.mxu0
    %v5518 = vadd.f32 %v5325, %v5517
    %v5519 = vpop.f32.mrf.mxu0
    %v5520 = vadd.f32 %v5327, %v5519
    %v5521 = vpop.f32.mrf.mxu0
    %v5522 = vadd.f32 %v5329, %v5521
    %5523 = vmatprep.mubr.bf16.mxu0 %v1099
    %5524 = vmatmul.mubr.bf16.gmra.mxu0 %v1098
    %v5525 = vpop.f32.mrf.mxu0
    %v5526 = vadd.f32 %v5333, %v5525
    %v5527 = vpop.f32.mrf.mxu0
    %v5528 = vadd.f32 %v5335, %v5527
    %v5529 = vpop.f32.mrf.mxu0
    %v5530 = vadd.f32 %v5337, %v5529
    %v5531 = vpop.f32.mrf.mxu0
    %v5532 = vadd.f32 %v5339, %v5531
    %5533 = vmatprep.mubr.bf16.mxu0 %v1106
    %5534 = vmatmul.mubr.bf16.gmra.mxu0 %v1105
    %v5535 = vpop.f32.mrf.mxu0
    %v5536 = vadd.f32 %v5343, %v5535
    %v5537 = vpop.f32.mrf.mxu0
    %v5538 = vadd.f32 %v5345, %v5537
    %v5539 = vpop.f32.mrf.mxu0
    %v5540 = vadd.f32 %v5347, %v5539
    %v5541 = vpop.f32.mrf.mxu0
    %v5542 = vadd.f32 %v5349, %v5541
    %5543 = vmatprep.mubr.bf16.mxu0 %v1113
    %5544 = vmatmul.mubr.bf16.gmra.mxu0 %v1112
    %v5545 = vpop.f32.mrf.mxu0
    %v5546 = vadd.f32 %v5353, %v5545
    %v5547 = vpop.f32.mrf.mxu0
    %v5548 = vadd.f32 %v5355, %v5547
    %v5549 = vpop.f32.mrf.mxu0
    %v5550 = vadd.f32 %v5357, %v5549
    %v5551 = vpop.f32.mrf.mxu0
    %v5552 = vadd.f32 %v5359, %v5551
    %5553 = vmatprep.mubr.bf16.mxu0 %v1120
    %5554 = vmatmul.mubr.bf16.gmra.mxu0 %v1119
    %v5555 = vpop.f32.mrf.mxu0
    %v5556 = vadd.f32 %v5363, %v5555
    %v5557 = vpop.f32.mrf.mxu0
    %v5558 = vadd.f32 %v5365, %v5557
    %v5559 = vpop.f32.mrf.mxu0
    %v5560 = vadd.f32 %v5367, %v5559
    %v5561 = vpop.f32.mrf.mxu0
    %v5562 = vadd.f32 %v5369, %v5561
    %5563 = vmatprep.mubr.bf16.mxu0 %v1127
    %5564 = vmatmul.mubr.bf16.gmra.mxu0 %v1126
    %v5565 = vpop.f32.mrf.mxu0
    %v5566 = vadd.f32 %v5373, %v5565
    %v5567 = vpop.f32.mrf.mxu0
    %v5568 = vadd.f32 %v5375, %v5567
    %v5569 = vpop.f32.mrf.mxu0
    %v5570 = vadd.f32 %v5377, %v5569
    %v5571 = vpop.f32.mrf.mxu0
    %v5572 = vadd.f32 %v5379, %v5571
    %5573 = vmatprep.mubr.bf16.mxu0 %v1134
    %5574 = vmatmul.mubr.bf16.gmra.mxu0 %v1133
    %v5575 = vpop.f32.mrf.mxu0
    %v5576 = vadd.f32 %v5383, %v5575
    %v5577 = vpop.f32.mrf.mxu0
    %v5578 = vadd.f32 %v5385, %v5577
    %v5579 = vpop.f32.mrf.mxu0
    %v5580 = vadd.f32 %v5387, %v5579
    %v5581 = vpop.f32.mrf.mxu0
    %v5582 = vadd.f32 %v5389, %v5581
    %5583 = vmatprep.mubr.bf16.mxu0 %v1141
    %5584 = vmatmul.mubr.bf16.gmra.mxu0 %v1140
    %v5585 = vpop.f32.mrf.mxu0
    %v5586 = vadd.f32 %v5393, %v5585
    %v5587 = vpop.f32.mrf.mxu0
    %v5588 = vadd.f32 %v5395, %v5587
    %v5589 = vpop.f32.mrf.mxu0
    %v5590 = vadd.f32 %v5397, %v5589
    %v5591 = vpop.f32.mrf.mxu0
    %v5592 = vadd.f32 %v5399, %v5591
    %5593 = vmatprep.mubr.bf16.mxu0 %v1148
    %5594 = vmatmul.mubr.bf16.gmra.mxu0 %v1147
    %v5595 = vpop.f32.mrf.mxu0
    %v5596 = vadd.f32 %v5403, %v5595
    %v5597 = vpop.f32.mrf.mxu0
    %v5598 = vadd.f32 %v5405, %v5597
    %v5599 = vpop.f32.mrf.mxu0
    %v5600 = vadd.f32 %v5407, %v5599
    %v5601 = vpop.f32.mrf.mxu0
    %v5602 = vadd.f32 %v5409, %v5601
    %5603 = vmatprep.mubr.bf16.mxu0 %v1155
    %5604 = vmatmul.mubr.bf16.gmra.mxu0 %v1154
    %v5605 = vpop.f32.mrf.mxu0
    %v5606 = vadd.f32 %v5413, %v5605
    %v5607 = vpop.f32.mrf.mxu0
    %v5608 = vadd.f32 %v5415, %v5607
    %v5609 = vpop.f32.mrf.mxu0
    %v5610 = vadd.f32 %v5417, %v5609
    %v5611 = vpop.f32.mrf.mxu0
    %v5612 = vadd.f32 %v5419, %v5611
    %5613 = vmatprep.mubr.bf16.mxu0 %v1162
    %5614 = vmatmul.mubr.bf16.gmra.mxu0 %v1161
    %v5615 = vpop.f32.mrf.mxu0
    %v5616 = vadd.f32 %v5423, %v5615
    %v5617 = vpop.f32.mrf.mxu0
    %v5618 = vadd.f32 %v5425, %v5617
    %v5619 = vpop.f32.mrf.mxu0
    %v5620 = vadd.f32 %v5427, %v5619
    %v5621 = vpop.f32.mrf.mxu0
    %v5622 = vadd.f32 %v5429, %v5621
    %5623 = vmatprep.mubr.bf16.mxu0 %v1169
    %5624 = vmatmul.mubr.bf16.gmra.mxu0 %v1168
    %v5625 = vpop.f32.mrf.mxu0
    %v5626 = vadd.f32 %v5433, %v5625
    %v5627 = vpop.f32.mrf.mxu0
    %v5628 = vadd.f32 %v5435, %v5627
    %v5629 = vpop.f32.mrf.mxu0
    %v5630 = vadd.f32 %v5437, %v5629
    %v5631 = vpop.f32.mrf.mxu0
    %v5632 = vadd.f32 %v5439, %v5631
    %5633 = vmatprep.mubr.bf16.mxu0 %v1176
    %5634 = vmatmul.mubr.bf16.gmra.mxu0 %v1175
    %v5635 = vpop.f32.mrf.mxu0
    %v5636 = vadd.f32 %v5443, %v5635
    %v5637 = vpop.f32.mrf.mxu0
    %v5638 = vadd.f32 %v5445, %v5637
    %v5639 = vpop.f32.mrf.mxu0
    %v5640 = vadd.f32 %v5447, %v5639
    %v5641 = vpop.f32.mrf.mxu0
    %v5642 = vadd.f32 %v5449, %v5641
    %5643 = vmatprep.mubr.bf16.mxu0 %v1183
    %5644 = vmatmul.mubr.bf16.gmra.mxu0 %v1182
    %v5645 = vpop.f32.mrf.mxu0
    %v5646 = vadd.f32 %v5453, %v5645
    %v5647 = vpop.f32.mrf.mxu0
    %v5648 = vadd.f32 %v5455, %v5647
    %v5649 = vpop.f32.mrf.mxu0
    %v5650 = vadd.f32 %v5457, %v5649
    %v5651 = vpop.f32.mrf.mxu0
    %v5652 = vadd.f32 %v5459, %v5651
    %5653 = vmatprep.mubr.bf16.mxu0 %v1190
    %5654 = vmatmul.mubr.bf16.gmra.mxu0 %v1189
    %v5655 = vpop.f32.mrf.mxu0
    %v5656 = vadd.f32 %v5463, %v5655
    %v5657 = vpop.f32.mrf.mxu0
    %v5658 = vadd.f32 %v5465, %v5657
    %v5659 = vpop.f32.mrf.mxu0
    %v5660 = vadd.f32 %v5467, %v5659
    %v5661 = vpop.f32.mrf.mxu0
    %v5662 = vadd.f32 %v5469, %v5661
    %5663 = vmatprep.mubr.bf16.mxu0 %v1197
    %5664 = vmatmul.mubr.bf16.gmra.mxu0 %v1196
    %v5665 = vpop.f32.mrf.mxu0
    %v5666 = vadd.f32 %v5473, %v5665
    %v5667 = vpop.f32.mrf.mxu0
    %v5668 = vadd.f32 %v5475, %v5667
    %v5669 = vpop.f32.mrf.mxu0
    %v5670 = vadd.f32 %v5477, %v5669
    %v5671 = vpop.f32.mrf.mxu0
    %v5672 = vadd.f32 %v5479, %v5671
    %5673 = vdwg.mxu0
    %5674 = vmatprep.subr.bf16.mxu0 %v3100
    %5675 = vmatpush1.bf16.msra.mxu0 %v3099
    %5676 = vmatprep.subr.bf16.mxu0 %v3092
    %5677 = vmatpush1.bf16.msra.mxu0 %v3091
    %5678 = vmatprep.subr.bf16.mxu0 %v3084
    %5679 = vmatpush1.bf16.msra.mxu0 %v3083
    %5680 = vmatprep.subr.bf16.mxu0 %v3076
    %5681 = vmatpush1.bf16.msra.mxu0 %v3075
    %5682 = vmatprep.subr.bf16.mxu0 %v3068
    %5683 = vmatpush1.bf16.msra.mxu0 %v3067
    %5684 = vmatprep.subr.bf16.mxu0 %v3060
    %5685 = vmatpush1.bf16.msra.mxu0 %v3059
    %5686 = vmatprep.subr.bf16.mxu0 %v3052
    %5687 = vmatpush1.bf16.msra.mxu0 %v3051
    %5688 = vmatprep.subr.bf16.mxu0 %v3044
    %5689 = vmatpush1.bf16.msra.mxu0 %v3043
    %5690 = vmatprep.subr.bf16.mxu0 0
    %5691 = vmatpush2.bf16.msra.mxu0 0
    %5692 = vmatprep.subr.bf16.mxu0 0
    %5693 = vmatpush2.bf16.msra.mxu0 0
    %5694 = vmatprep.subr.bf16.mxu0 0
    %5695 = vmatpush2.bf16.msra.mxu0 0
    %5696 = vmatprep.subr.bf16.mxu0 0
    %5697 = vmatpush2.bf16.msra.mxu0 0
    %5698 = vmatprep.subr.bf16.mxu0 0
    %5699 = vmatpush2.bf16.msra.mxu0 0
    %5700 = vmatprep.subr.bf16.mxu0 0
    %5701 = vmatpush2.bf16.msra.mxu0 0
    %5702 = vmatprep.subr.bf16.mxu0 0
    %5703 = vmatpush2.bf16.msra.mxu0 0
    %5704 = vmatprep.subr.bf16.mxu0 0
    %5705 = vmatpush2.bf16.msra.mxu0 0
    %5706 = vmatprep.mubr.bf16.mxu0 0
    %5707 = vmatmul.mubr.bf16.gmra.mxu0 %v1093
    %v5708 = vpop.f32.mrf.mxu0
    %v5709 = vadd.f32 %v5516, %v5708
    %v5710 = vpop.f32.mrf.mxu0
    %v5711 = vadd.f32 %v5518, %v5710
    %v5712 = vpop.f32.mrf.mxu0
    %v5713 = vadd.f32 %v5520, %v5712
    %v5714 = vpop.f32.mrf.mxu0
    %v5715 = vadd.f32 %v5522, %v5714
    %5716 = vmatprep.mubr.bf16.mxu0 0
    %5717 = vmatmul.mubr.bf16.gmra.mxu0 %v1100
    %v5718 = vpop.f32.mrf.mxu0
    %v5719 = vadd.f32 %v5526, %v5718
    %v5720 = vpop.f32.mrf.mxu0
    %v5721 = vadd.f32 %v5528, %v5720
    %v5722 = vpop.f32.mrf.mxu0
    %v5723 = vadd.f32 %v5530, %v5722
    %v5724 = vpop.f32.mrf.mxu0
    %v5725 = vadd.f32 %v5532, %v5724
    %5726 = vmatprep.mubr.bf16.mxu0 0
    %5727 = vmatmul.mubr.bf16.gmra.mxu0 %v1107
    %v5728 = vpop.f32.mrf.mxu0
    %v5729 = vadd.f32 %v5536, %v5728
    %v5730 = vpop.f32.mrf.mxu0
    %v5731 = vadd.f32 %v5538, %v5730
    %v5732 = vpop.f32.mrf.mxu0
    %v5733 = vadd.f32 %v5540, %v5732
    %v5734 = vpop.f32.mrf.mxu0
    %v5735 = vadd.f32 %v5542, %v5734
    %5736 = vmatprep.mubr.bf16.mxu0 0
    %5737 = vmatmul.mubr.bf16.gmra.mxu0 %v1114
    %v5738 = vpop.f32.mrf.mxu0
    %v5739 = vadd.f32 %v5546, %v5738
    %v5740 = vpop.f32.mrf.mxu0
    %v5741 = vadd.f32 %v5548, %v5740
    %v5742 = vpop.f32.mrf.mxu0
    %v5743 = vadd.f32 %v5550, %v5742
    %v5744 = vpop.f32.mrf.mxu0
    %v5745 = vadd.f32 %v5552, %v5744
    %5746 = vmatprep.mubr.bf16.mxu0 0
    %5747 = vmatmul.mubr.bf16.gmra.mxu0 %v1121
    %v5748 = vpop.f32.mrf.mxu0
    %v5749 = vadd.f32 %v5556, %v5748
    %v5750 = vpop.f32.mrf.mxu0
    %v5751 = vadd.f32 %v5558, %v5750
    %v5752 = vpop.f32.mrf.mxu0
    %v5753 = vadd.f32 %v5560, %v5752
    %v5754 = vpop.f32.mrf.mxu0
    %v5755 = vadd.f32 %v5562, %v5754
    %5756 = vmatprep.mubr.bf16.mxu0 0
    %5757 = vmatmul.mubr.bf16.gmra.mxu0 %v1128
    %v5758 = vpop.f32.mrf.mxu0
    %v5759 = vadd.f32 %v5566, %v5758
    %v5760 = vpop.f32.mrf.mxu0
    %v5761 = vadd.f32 %v5568, %v5760
    %v5762 = vpop.f32.mrf.mxu0
    %v5763 = vadd.f32 %v5570, %v5762
    %v5764 = vpop.f32.mrf.mxu0
    %v5765 = vadd.f32 %v5572, %v5764
    %5766 = vmatprep.mubr.bf16.mxu0 0
    %5767 = vmatmul.mubr.bf16.gmra.mxu0 %v1135
    %v5768 = vpop.f32.mrf.mxu0
    %v5769 = vadd.f32 %v5576, %v5768
    %v5770 = vpop.f32.mrf.mxu0
    %v5771 = vadd.f32 %v5578, %v5770
    %v5772 = vpop.f32.mrf.mxu0
    %v5773 = vadd.f32 %v5580, %v5772
    %v5774 = vpop.f32.mrf.mxu0
    %v5775 = vadd.f32 %v5582, %v5774
    %5776 = vmatprep.mubr.bf16.mxu0 0
    %5777 = vmatmul.mubr.bf16.gmra.mxu0 %v1142
    %v5778 = vpop.f32.mrf.mxu0
    %v5779 = vadd.f32 %v5586, %v5778
    %v5780 = vpop.f32.mrf.mxu0
    %v5781 = vadd.f32 %v5588, %v5780
    %v5782 = vpop.f32.mrf.mxu0
    %v5783 = vadd.f32 %v5590, %v5782
    %v5784 = vpop.f32.mrf.mxu0
    %v5785 = vadd.f32 %v5592, %v5784
    %5786 = vmatprep.mubr.bf16.mxu0 0
    %5787 = vmatmul.mubr.bf16.gmra.mxu0 %v1149
    %v5788 = vpop.f32.mrf.mxu0
    %v5789 = vadd.f32 %v5596, %v5788
    %v5790 = vpop.f32.mrf.mxu0
    %v5791 = vadd.f32 %v5598, %v5790
    %v5792 = vpop.f32.mrf.mxu0
    %v5793 = vadd.f32 %v5600, %v5792
    %v5794 = vpop.f32.mrf.mxu0
    %v5795 = vadd.f32 %v5602, %v5794
    %5796 = vmatprep.mubr.bf16.mxu0 0
    %5797 = vmatmul.mubr.bf16.gmra.mxu0 %v1156
    %v5798 = vpop.f32.mrf.mxu0
    %v5799 = vadd.f32 %v5606, %v5798
    %v5800 = vpop.f32.mrf.mxu0
    %v5801 = vadd.f32 %v5608, %v5800
    %v5802 = vpop.f32.mrf.mxu0
    %v5803 = vadd.f32 %v5610, %v5802
    %v5804 = vpop.f32.mrf.mxu0
    %v5805 = vadd.f32 %v5612, %v5804
    %5806 = vmatprep.mubr.bf16.mxu0 0
    %5807 = vmatmul.mubr.bf16.gmra.mxu0 %v1163
    %v5808 = vpop.f32.mrf.mxu0
    %v5809 = vadd.f32 %v5616, %v5808
    %v5810 = vpop.f32.mrf.mxu0
    %v5811 = vadd.f32 %v5618, %v5810
    %v5812 = vpop.f32.mrf.mxu0
    %v5813 = vadd.f32 %v5620, %v5812
    %v5814 = vpop.f32.mrf.mxu0
    %v5815 = vadd.f32 %v5622, %v5814
    %5816 = vmatprep.mubr.bf16.mxu0 0
    %5817 = vmatmul.mubr.bf16.gmra.mxu0 %v1170
    %v5818 = vpop.f32.mrf.mxu0
    %v5819 = vadd.f32 %v5626, %v5818
    %v5820 = vpop.f32.mrf.mxu0
    %v5821 = vadd.f32 %v5628, %v5820
    %v5822 = vpop.f32.mrf.mxu0
    %v5823 = vadd.f32 %v5630, %v5822
    %v5824 = vpop.f32.mrf.mxu0
    %v5825 = vadd.f32 %v5632, %v5824
    %5826 = vmatprep.mubr.bf16.mxu0 0
    %5827 = vmatmul.mubr.bf16.gmra.mxu0 %v1177
    %v5828 = vpop.f32.mrf.mxu0
    %v5829 = vadd.f32 %v5636, %v5828
    %v5830 = vpop.f32.mrf.mxu0
    %v5831 = vadd.f32 %v5638, %v5830
    %v5832 = vpop.f32.mrf.mxu0
    %v5833 = vadd.f32 %v5640, %v5832
    %v5834 = vpop.f32.mrf.mxu0
    %v5835 = vadd.f32 %v5642, %v5834
    %5836 = vmatprep.mubr.bf16.mxu0 0
    %5837 = vmatmul.mubr.bf16.gmra.mxu0 %v1184
    %v5838 = vpop.f32.mrf.mxu0
    %v5839 = vadd.f32 %v5646, %v5838
    %v5840 = vpop.f32.mrf.mxu0
    %v5841 = vadd.f32 %v5648, %v5840
    %v5842 = vpop.f32.mrf.mxu0
    %v5843 = vadd.f32 %v5650, %v5842
    %v5844 = vpop.f32.mrf.mxu0
    %v5845 = vadd.f32 %v5652, %v5844
    %5846 = vmatprep.mubr.bf16.mxu0 0
    %5847 = vmatmul.mubr.bf16.gmra.mxu0 %v1191
    %v5848 = vpop.f32.mrf.mxu0
    %v5849 = vadd.f32 %v5656, %v5848
    %v5850 = vpop.f32.mrf.mxu0
    %v5851 = vadd.f32 %v5658, %v5850
    %v5852 = vpop.f32.mrf.mxu0
    %v5853 = vadd.f32 %v5660, %v5852
    %v5854 = vpop.f32.mrf.mxu0
    %v5855 = vadd.f32 %v5662, %v5854
    %5856 = vmatprep.mubr.bf16.mxu0 0
    %5857 = vmatmul.mubr.bf16.gmra.mxu0 %v1198
    %v5858 = vpop.f32.mrf.mxu0
    %v5859 = vadd.f32 %v5666, %v5858
    %v5860 = vpop.f32.mrf.mxu0
    %v5861 = vadd.f32 %v5668, %v5860
    %v5862 = vpop.f32.mrf.mxu0
    %v5863 = vadd.f32 %v5670, %v5862
    %v5864 = vpop.f32.mrf.mxu0
    %v5865 = vadd.f32 %v5672, %v5864
    %5866 = vdwg.mxu0
    %5867 = vmatprep.subr.bf16.mxu0 %v2718
    %5868 = vmatpush1.bf16.msra.mxu0 %v2717
    %5869 = vmatprep.subr.bf16.mxu0 %v2710
    %5870 = vmatpush1.bf16.msra.mxu0 %v2709
    %5871 = vmatprep.subr.bf16.mxu0 %v2702
    %5872 = vmatpush1.bf16.msra.mxu0 %v2701
    %5873 = vmatprep.subr.bf16.mxu0 %v2694
    %5874 = vmatpush1.bf16.msra.mxu0 %v2693
    %5875 = vmatprep.subr.bf16.mxu0 %v2686
    %5876 = vmatpush1.bf16.msra.mxu0 %v2685
    %5877 = vmatprep.subr.bf16.mxu0 %v2678
    %5878 = vmatpush1.bf16.msra.mxu0 %v2677
    %5879 = vmatprep.subr.bf16.mxu0 %v2670
    %5880 = vmatpush1.bf16.msra.mxu0 %v2669
    %5881 = vmatprep.subr.bf16.mxu0 %v2662
    %5882 = vmatpush1.bf16.msra.mxu0 %v2661
    %5883 = vmatprep.subr.bf16.mxu0 %v2782
    %5884 = vmatpush2.bf16.msra.mxu0 %v2781
    %5885 = vmatprep.subr.bf16.mxu0 %v2774
    %5886 = vmatpush2.bf16.msra.mxu0 %v2773
    %5887 = vmatprep.subr.bf16.mxu0 %v2766
    %5888 = vmatpush2.bf16.msra.mxu0 %v2765
    %5889 = vmatprep.subr.bf16.mxu0 %v2758
    %5890 = vmatpush2.bf16.msra.mxu0 %v2757
    %5891 = vmatprep.subr.bf16.mxu0 %v2750
    %5892 = vmatpush2.bf16.msra.mxu0 %v2749
    %5893 = vmatprep.subr.bf16.mxu0 %v2742
    %5894 = vmatpush2.bf16.msra.mxu0 %v2741
    %5895 = vmatprep.subr.bf16.mxu0 %v2734
    %5896 = vmatpush2.bf16.msra.mxu0 %v2733
    %5897 = vmatprep.subr.bf16.mxu0 %v2726
    %5898 = vmatpush2.bf16.msra.mxu0 %v2725
    %5899 = vmatprep.mubr.bf16.mxu0 %v1088
    %5900 = vmatmul.mubr.bf16.gmra.mxu0 %v1087
    %v5901 = vpop.f32.mrf.mxu0
    %v5902 = vadd.f32 %v722, %v5901
    %v5903 = vpop.f32.mrf.mxu0
    %v5904 = vadd.f32 %v726, %v5903
    %v5905 = vpop.f32.mrf.mxu0
    %v5906 = vadd.f32 %v722, %v5905
    %v5907 = vpop.f32.mrf.mxu0
    %v5908 = vadd.f32 %v726, %v5907
    %5909 = vmatprep.mubr.bf16.mxu0 %v1095
    %5910 = vmatmul.mubr.bf16.gmra.mxu0 %v1094
    %v5911 = vpop.f32.mrf.mxu0
    %v5912 = vadd.f32 %v722, %v5911
    %v5913 = vpop.f32.mrf.mxu0
    %v5914 = vadd.f32 %v726, %v5913
    %v5915 = vpop.f32.mrf.mxu0
    %v5916 = vadd.f32 %v722, %v5915
    %v5917 = vpop.f32.mrf.mxu0
    %v5918 = vadd.f32 %v726, %v5917
    %5919 = vmatprep.mubr.bf16.mxu0 %v1102
    %5920 = vmatmul.mubr.bf16.gmra.mxu0 %v1101
    %v5921 = vpop.f32.mrf.mxu0
    %v5922 = vadd.f32 %v722, %v5921
    %v5923 = vpop.f32.mrf.mxu0
    %v5924 = vadd.f32 %v726, %v5923
    %v5925 = vpop.f32.mrf.mxu0
    %v5926 = vadd.f32 %v722, %v5925
    %v5927 = vpop.f32.mrf.mxu0
    %v5928 = vadd.f32 %v726, %v5927
    %5929 = vmatprep.mubr.bf16.mxu0 %v1109
    %5930 = vmatmul.mubr.bf16.gmra.mxu0 %v1108
    %v5931 = vpop.f32.mrf.mxu0
    %v5932 = vadd.f32 %v722, %v5931
    %v5933 = vpop.f32.mrf.mxu0
    %v5934 = vadd.f32 %v726, %v5933
    %v5935 = vpop.f32.mrf.mxu0
    %v5936 = vadd.f32 %v722, %v5935
    %v5937 = vpop.f32.mrf.mxu0
    %v5938 = vadd.f32 %v726, %v5937
    %5939 = vmatprep.mubr.bf16.mxu0 %v1116
    %5940 = vmatmul.mubr.bf16.gmra.mxu0 %v1115
    %v5941 = vpop.f32.mrf.mxu0
    %v5942 = vadd.f32 %v722, %v5941
    %v5943 = vpop.f32.mrf.mxu0
    %v5944 = vadd.f32 %v726, %v5943
    %v5945 = vpop.f32.mrf.mxu0
    %v5946 = vadd.f32 %v722, %v5945
    %v5947 = vpop.f32.mrf.mxu0
    %v5948 = vadd.f32 %v726, %v5947
    %5949 = vmatprep.mubr.bf16.mxu0 %v1123
    %5950 = vmatmul.mubr.bf16.gmra.mxu0 %v1122
    %v5951 = vpop.f32.mrf.mxu0
    %v5952 = vadd.f32 %v722, %v5951
    %v5953 = vpop.f32.mrf.mxu0
    %v5954 = vadd.f32 %v726, %v5953
    %v5955 = vpop.f32.mrf.mxu0
    %v5956 = vadd.f32 %v722, %v5955
    %v5957 = vpop.f32.mrf.mxu0
    %v5958 = vadd.f32 %v726, %v5957
    %5959 = vmatprep.mubr.bf16.mxu0 %v1130
    %5960 = vmatmul.mubr.bf16.gmra.mxu0 %v1129
    %v5961 = vpop.f32.mrf.mxu0
    %v5962 = vadd.f32 %v722, %v5961
    %v5963 = vpop.f32.mrf.mxu0
    %v5964 = vadd.f32 %v726, %v5963
    %v5965 = vpop.f32.mrf.mxu0
    %v5966 = vadd.f32 %v722, %v5965
    %v5967 = vpop.f32.mrf.mxu0
    %v5968 = vadd.f32 %v726, %v5967
    %5969 = vmatprep.mubr.bf16.mxu0 %v1137
    %5970 = vmatmul.mubr.bf16.gmra.mxu0 %v1136
    %v5971 = vpop.f32.mrf.mxu0
    %v5972 = vadd.f32 %v722, %v5971
    %v5973 = vpop.f32.mrf.mxu0
    %v5974 = vadd.f32 %v726, %v5973
    %v5975 = vpop.f32.mrf.mxu0
    %v5976 = vadd.f32 %v722, %v5975
    %v5977 = vpop.f32.mrf.mxu0
    %v5978 = vadd.f32 %v726, %v5977
    %5979 = vmatprep.mubr.bf16.mxu0 %v1144
    %5980 = vmatmul.mubr.bf16.gmra.mxu0 %v1143
    %v5981 = vpop.f32.mrf.mxu0
    %v5982 = vadd.f32 %v722, %v5981
    %v5983 = vpop.f32.mrf.mxu0
    %v5984 = vadd.f32 %v726, %v5983
    %v5985 = vpop.f32.mrf.mxu0
    %v5986 = vadd.f32 %v722, %v5985
    %v5987 = vpop.f32.mrf.mxu0
    %v5988 = vadd.f32 %v726, %v5987
    %5989 = vmatprep.mubr.bf16.mxu0 %v1151
    %5990 = vmatmul.mubr.bf16.gmra.mxu0 %v1150
    %v5991 = vpop.f32.mrf.mxu0
    %v5992 = vadd.f32 %v722, %v5991
    %v5993 = vpop.f32.mrf.mxu0
    %v5994 = vadd.f32 %v726, %v5993
    %v5995 = vpop.f32.mrf.mxu0
    %v5996 = vadd.f32 %v722, %v5995
    %v5997 = vpop.f32.mrf.mxu0
    %v5998 = vadd.f32 %v726, %v5997
    %5999 = vmatprep.mubr.bf16.mxu0 %v1158
    %6000 = vmatmul.mubr.bf16.gmra.mxu0 %v1157
    %v6001 = vpop.f32.mrf.mxu0
    %v6002 = vadd.f32 %v722, %v6001
    %v6003 = vpop.f32.mrf.mxu0
    %v6004 = vadd.f32 %v726, %v6003
    %v6005 = vpop.f32.mrf.mxu0
    %v6006 = vadd.f32 %v722, %v6005
    %v6007 = vpop.f32.mrf.mxu0
    %v6008 = vadd.f32 %v726, %v6007
    %6009 = vmatprep.mubr.bf16.mxu0 %v1165
    %6010 = vmatmul.mubr.bf16.gmra.mxu0 %v1164
    %v6011 = vpop.f32.mrf.mxu0
    %v6012 = vadd.f32 %v722, %v6011
    %v6013 = vpop.f32.mrf.mxu0
    %v6014 = vadd.f32 %v726, %v6013
    %v6015 = vpop.f32.mrf.mxu0
    %v6016 = vadd.f32 %v722, %v6015
    %v6017 = vpop.f32.mrf.mxu0
    %v6018 = vadd.f32 %v726, %v6017
    %6019 = vmatprep.mubr.bf16.mxu0 %v1172
    %6020 = vmatmul.mubr.bf16.gmra.mxu0 %v1171
    %v6021 = vpop.f32.mrf.mxu0
    %v6022 = vadd.f32 %v722, %v6021
    %v6023 = vpop.f32.mrf.mxu0
    %v6024 = vadd.f32 %v726, %v6023
    %v6025 = vpop.f32.mrf.mxu0
    %v6026 = vadd.f32 %v722, %v6025
    %v6027 = vpop.f32.mrf.mxu0
    %v6028 = vadd.f32 %v726, %v6027
    %6029 = vmatprep.mubr.bf16.mxu0 %v1179
    %6030 = vmatmul.mubr.bf16.gmra.mxu0 %v1178
    %v6031 = vpop.f32.mrf.mxu0
    %v6032 = vadd.f32 %v722, %v6031
    %v6033 = vpop.f32.mrf.mxu0
    %v6034 = vadd.f32 %v726, %v6033
    %v6035 = vpop.f32.mrf.mxu0
    %v6036 = vadd.f32 %v722, %v6035
    %v6037 = vpop.f32.mrf.mxu0
    %v6038 = vadd.f32 %v726, %v6037
    %6039 = vmatprep.mubr.bf16.mxu0 %v1186
    %6040 = vmatmul.mubr.bf16.gmra.mxu0 %v1185
    %v6041 = vpop.f32.mrf.mxu0
    %v6042 = vadd.f32 %v722, %v6041
    %v6043 = vpop.f32.mrf.mxu0
    %v6044 = vadd.f32 %v726, %v6043
    %v6045 = vpop.f32.mrf.mxu0
    %v6046 = vadd.f32 %v722, %v6045
    %v6047 = vpop.f32.mrf.mxu0
    %v6048 = vadd.f32 %v726, %v6047
    %6049 = vmatprep.mubr.bf16.mxu0 %v1193
    %6050 = vmatmul.mubr.bf16.gmra.mxu0 %v1192
    %v6051 = vpop.f32.mrf.mxu0
    %v6052 = vadd.f32 %v722, %v6051
    %v6053 = vpop.f32.mrf.mxu0
    %v6054 = vadd.f32 %v726, %v6053
    %v6055 = vpop.f32.mrf.mxu0
    %v6056 = vadd.f32 %v722, %v6055
    %v6057 = vpop.f32.mrf.mxu0
    %v6058 = vadd.f32 %v726, %v6057
    %6059 = vdwg.mxu0
    %6060 = vmatprep.subr.bf16.mxu0 %v2846
    %6061 = vmatpush1.bf16.msra.mxu0 %v2845
    %6062 = vmatprep.subr.bf16.mxu0 %v2838
    %6063 = vmatpush1.bf16.msra.mxu0 %v2837
    %6064 = vmatprep.subr.bf16.mxu0 %v2830
    %6065 = vmatpush1.bf16.msra.mxu0 %v2829
    %6066 = vmatprep.subr.bf16.mxu0 %v2822
    %6067 = vmatpush1.bf16.msra.mxu0 %v2821
    %6068 = vmatprep.subr.bf16.mxu0 %v2814
    %6069 = vmatpush1.bf16.msra.mxu0 %v2813
    %6070 = vmatprep.subr.bf16.mxu0 %v2806
    %6071 = vmatpush1.bf16.msra.mxu0 %v2805
    %6072 = vmatprep.subr.bf16.mxu0 %v2798
    %6073 = vmatpush1.bf16.msra.mxu0 %v2797
    %6074 = vmatprep.subr.bf16.mxu0 %v2790
    %6075 = vmatpush1.bf16.msra.mxu0 %v2789
    %6076 = vmatprep.subr.bf16.mxu0 %v2910
    %6077 = vmatpush2.bf16.msra.mxu0 %v2909
    %6078 = vmatprep.subr.bf16.mxu0 %v2902
    %6079 = vmatpush2.bf16.msra.mxu0 %v2901
    %6080 = vmatprep.subr.bf16.mxu0 %v2894
    %6081 = vmatpush2.bf16.msra.mxu0 %v2893
    %6082 = vmatprep.subr.bf16.mxu0 %v2886
    %6083 = vmatpush2.bf16.msra.mxu0 %v2885
    %6084 = vmatprep.subr.bf16.mxu0 %v2878
    %6085 = vmatpush2.bf16.msra.mxu0 %v2877
    %6086 = vmatprep.subr.bf16.mxu0 %v2870
    %6087 = vmatpush2.bf16.msra.mxu0 %v2869
    %6088 = vmatprep.subr.bf16.mxu0 %v2862
    %6089 = vmatpush2.bf16.msra.mxu0 %v2861
    %6090 = vmatprep.subr.bf16.mxu0 %v2854
    %6091 = vmatpush2.bf16.msra.mxu0 %v2853
    %6092 = vmatprep.mubr.bf16.mxu0 %v1090
    %6093 = vmatmul.mubr.bf16.gmra.mxu0 %v1089
    %v6094 = vpop.f32.mrf.mxu0
    %v6095 = vadd.f32 %v5902, %v6094
    %v6096 = vpop.f32.mrf.mxu0
    %v6097 = vadd.f32 %v5904, %v6096
    %v6098 = vpop.f32.mrf.mxu0
    %v6099 = vadd.f32 %v5906, %v6098
    %v6100 = vpop.f32.mrf.mxu0
    %v6101 = vadd.f32 %v5908, %v6100
    %6102 = vmatprep.mubr.bf16.mxu0 %v1097
    %6103 = vmatmul.mubr.bf16.gmra.mxu0 %v1096
    %v6104 = vpop.f32.mrf.mxu0
    %v6105 = vadd.f32 %v5912, %v6104
    %v6106 = vpop.f32.mrf.mxu0
    %v6107 = vadd.f32 %v5914, %v6106
    %v6108 = vpop.f32.mrf.mxu0
    %v6109 = vadd.f32 %v5916, %v6108
    %v6110 = vpop.f32.mrf.mxu0
    %v6111 = vadd.f32 %v5918, %v6110
    %6112 = vmatprep.mubr.bf16.mxu0 %v1104
    %6113 = vmatmul.mubr.bf16.gmra.mxu0 %v1103
    %v6114 = vpop.f32.mrf.mxu0
    %v6115 = vadd.f32 %v5922, %v6114
    %v6116 = vpop.f32.mrf.mxu0
    %v6117 = vadd.f32 %v5924, %v6116
    %v6118 = vpop.f32.mrf.mxu0
    %v6119 = vadd.f32 %v5926, %v6118
    %v6120 = vpop.f32.mrf.mxu0
    %v6121 = vadd.f32 %v5928, %v6120
    %6122 = vmatprep.mubr.bf16.mxu0 %v1111
    %6123 = vmatmul.mubr.bf16.gmra.mxu0 %v1110
    %v6124 = vpop.f32.mrf.mxu0
    %v6125 = vadd.f32 %v5932, %v6124
    %v6126 = vpop.f32.mrf.mxu0
    %v6127 = vadd.f32 %v5934, %v6126
    %v6128 = vpop.f32.mrf.mxu0
    %v6129 = vadd.f32 %v5936, %v6128
    %v6130 = vpop.f32.mrf.mxu0
    %v6131 = vadd.f32 %v5938, %v6130
    %6132 = vmatprep.mubr.bf16.mxu0 %v1118
    %6133 = vmatmul.mubr.bf16.gmra.mxu0 %v1117
    %v6134 = vpop.f32.mrf.mxu0
    %v6135 = vadd.f32 %v5942, %v6134
    %v6136 = vpop.f32.mrf.mxu0
    %v6137 = vadd.f32 %v5944, %v6136
    %v6138 = vpop.f32.mrf.mxu0
    %v6139 = vadd.f32 %v5946, %v6138
    %v6140 = vpop.f32.mrf.mxu0
    %v6141 = vadd.f32 %v5948, %v6140
    %6142 = vmatprep.mubr.bf16.mxu0 %v1125
    %6143 = vmatmul.mubr.bf16.gmra.mxu0 %v1124
    %v6144 = vpop.f32.mrf.mxu0
    %v6145 = vadd.f32 %v5952, %v6144
    %v6146 = vpop.f32.mrf.mxu0
    %v6147 = vadd.f32 %v5954, %v6146
    %v6148 = vpop.f32.mrf.mxu0
    %v6149 = vadd.f32 %v5956, %v6148
    %v6150 = vpop.f32.mrf.mxu0
    %v6151 = vadd.f32 %v5958, %v6150
    %6152 = vmatprep.mubr.bf16.mxu0 %v1132
    %6153 = vmatmul.mubr.bf16.gmra.mxu0 %v1131
    %v6154 = vpop.f32.mrf.mxu0
    %v6155 = vadd.f32 %v5962, %v6154
    %v6156 = vpop.f32.mrf.mxu0
    %v6157 = vadd.f32 %v5964, %v6156
    %v6158 = vpop.f32.mrf.mxu0
    %v6159 = vadd.f32 %v5966, %v6158
    %v6160 = vpop.f32.mrf.mxu0
    %v6161 = vadd.f32 %v5968, %v6160
    %6162 = vmatprep.mubr.bf16.mxu0 %v1139
    %6163 = vmatmul.mubr.bf16.gmra.mxu0 %v1138
    %v6164 = vpop.f32.mrf.mxu0
    %v6165 = vadd.f32 %v5972, %v6164
    %v6166 = vpop.f32.mrf.mxu0
    %v6167 = vadd.f32 %v5974, %v6166
    %v6168 = vpop.f32.mrf.mxu0
    %v6169 = vadd.f32 %v5976, %v6168
    %v6170 = vpop.f32.mrf.mxu0
    %v6171 = vadd.f32 %v5978, %v6170
    %6172 = vmatprep.mubr.bf16.mxu0 %v1146
    %6173 = vmatmul.mubr.bf16.gmra.mxu0 %v1145
    %v6174 = vpop.f32.mrf.mxu0
    %v6175 = vadd.f32 %v5982, %v6174
    %v6176 = vpop.f32.mrf.mxu0
    %v6177 = vadd.f32 %v5984, %v6176
    %v6178 = vpop.f32.mrf.mxu0
    %v6179 = vadd.f32 %v5986, %v6178
    %v6180 = vpop.f32.mrf.mxu0
    %v6181 = vadd.f32 %v5988, %v6180
    %6182 = vmatprep.mubr.bf16.mxu0 %v1153
    %6183 = vmatmul.mubr.bf16.gmra.mxu0 %v1152
    %v6184 = vpop.f32.mrf.mxu0
    %v6185 = vadd.f32 %v5992, %v6184
    %v6186 = vpop.f32.mrf.mxu0
    %v6187 = vadd.f32 %v5994, %v6186
    %v6188 = vpop.f32.mrf.mxu0
    %v6189 = vadd.f32 %v5996, %v6188
    %v6190 = vpop.f32.mrf.mxu0
    %v6191 = vadd.f32 %v5998, %v6190
    %6192 = vmatprep.mubr.bf16.mxu0 %v1160
    %6193 = vmatmul.mubr.bf16.gmra.mxu0 %v1159
    %v6194 = vpop.f32.mrf.mxu0
    %v6195 = vadd.f32 %v6002, %v6194
    %v6196 = vpop.f32.mrf.mxu0
    %v6197 = vadd.f32 %v6004, %v6196
    %v6198 = vpop.f32.mrf.mxu0
    %v6199 = vadd.f32 %v6006, %v6198
    %v6200 = vpop.f32.mrf.mxu0
    %v6201 = vadd.f32 %v6008, %v6200
    %6202 = vmatprep.mubr.bf16.mxu0 %v1167
    %6203 = vmatmul.mubr.bf16.gmra.mxu0 %v1166
    %v6204 = vpop.f32.mrf.mxu0
    %v6205 = vadd.f32 %v6012, %v6204
    %v6206 = vpop.f32.mrf.mxu0
    %v6207 = vadd.f32 %v6014, %v6206
    %v6208 = vpop.f32.mrf.mxu0
    %v6209 = vadd.f32 %v6016, %v6208
    %v6210 = vpop.f32.mrf.mxu0
    %v6211 = vadd.f32 %v6018, %v6210
    %6212 = vmatprep.mubr.bf16.mxu0 %v1174
    %6213 = vmatmul.mubr.bf16.gmra.mxu0 %v1173
    %v6214 = vpop.f32.mrf.mxu0
    %v6215 = vadd.f32 %v6022, %v6214
    %v6216 = vpop.f32.mrf.mxu0
    %v6217 = vadd.f32 %v6024, %v6216
    %v6218 = vpop.f32.mrf.mxu0
    %v6219 = vadd.f32 %v6026, %v6218
    %v6220 = vpop.f32.mrf.mxu0
    %v6221 = vadd.f32 %v6028, %v6220
    %6222 = vmatprep.mubr.bf16.mxu0 %v1181
    %6223 = vmatmul.mubr.bf16.gmra.mxu0 %v1180
    %v6224 = vpop.f32.mrf.mxu0
    %v6225 = vadd.f32 %v6032, %v6224
    %v6226 = vpop.f32.mrf.mxu0
    %v6227 = vadd.f32 %v6034, %v6226
    %v6228 = vpop.f32.mrf.mxu0
    %v6229 = vadd.f32 %v6036, %v6228
    %v6230 = vpop.f32.mrf.mxu0
    %v6231 = vadd.f32 %v6038, %v6230
    %6232 = vmatprep.mubr.bf16.mxu0 %v1188
    %6233 = vmatmul.mubr.bf16.gmra.mxu0 %v1187
    %v6234 = vpop.f32.mrf.mxu0
    %v6235 = vadd.f32 %v6042, %v6234
    %v6236 = vpop.f32.mrf.mxu0
    %v6237 = vadd.f32 %v6044, %v6236
    %v6238 = vpop.f32.mrf.mxu0
    %v6239 = vadd.f32 %v6046, %v6238
    %v6240 = vpop.f32.mrf.mxu0
    %v6241 = vadd.f32 %v6048, %v6240
    %6242 = vmatprep.mubr.bf16.mxu0 %v1195
    %6243 = vmatmul.mubr.bf16.gmra.mxu0 %v1194
    %v6244 = vpop.f32.mrf.mxu0
    %v6245 = vadd.f32 %v6052, %v6244
    %v6246 = vpop.f32.mrf.mxu0
    %v6247 = vadd.f32 %v6054, %v6246
    %v6248 = vpop.f32.mrf.mxu0
    %v6249 = vadd.f32 %v6056, %v6248
    %v6250 = vpop.f32.mrf.mxu0
    %v6251 = vadd.f32 %v6058, %v6250
    %6252 = vdwg.mxu0
    %6253 = vmatprep.subr.bf16.mxu0 %v2974
    %6254 = vmatpush1.bf16.msra.mxu0 %v2973
    %6255 = vmatprep.subr.bf16.mxu0 %v2966
    %6256 = vmatpush1.bf16.msra.mxu0 %v2965
    %6257 = vmatprep.subr.bf16.mxu0 %v2958
    %6258 = vmatpush1.bf16.msra.mxu0 %v2957
    %6259 = vmatprep.subr.bf16.mxu0 %v2950
    %6260 = vmatpush1.bf16.msra.mxu0 %v2949
    %6261 = vmatprep.subr.bf16.mxu0 %v2942
    %6262 = vmatpush1.bf16.msra.mxu0 %v2941
    %6263 = vmatprep.subr.bf16.mxu0 %v2934
    %6264 = vmatpush1.bf16.msra.mxu0 %v2933
    %6265 = vmatprep.subr.bf16.mxu0 %v2926
    %6266 = vmatpush1.bf16.msra.mxu0 %v2925
    %6267 = vmatprep.subr.bf16.mxu0 %v2918
    %6268 = vmatpush1.bf16.msra.mxu0 %v2917
    %6269 = vmatprep.subr.bf16.mxu0 %v3038
    %6270 = vmatpush2.bf16.msra.mxu0 %v3037
    %6271 = vmatprep.subr.bf16.mxu0 %v3030
    %6272 = vmatpush2.bf16.msra.mxu0 %v3029
    %6273 = vmatprep.subr.bf16.mxu0 %v3022
    %6274 = vmatpush2.bf16.msra.mxu0 %v3021
    %6275 = vmatprep.subr.bf16.mxu0 %v3014
    %6276 = vmatpush2.bf16.msra.mxu0 %v3013
    %6277 = vmatprep.subr.bf16.mxu0 %v3006
    %6278 = vmatpush2.bf16.msra.mxu0 %v3005
    %6279 = vmatprep.subr.bf16.mxu0 %v2998
    %6280 = vmatpush2.bf16.msra.mxu0 %v2997
    %6281 = vmatprep.subr.bf16.mxu0 %v2990
    %6282 = vmatpush2.bf16.msra.mxu0 %v2989
    %6283 = vmatprep.subr.bf16.mxu0 %v2982
    %6284 = vmatpush2.bf16.msra.mxu0 %v2981
    %6285 = vmatprep.mubr.bf16.mxu0 %v1092
    %6286 = vmatmul.mubr.bf16.gmra.mxu0 %v1091
    %v6287 = vpop.f32.mrf.mxu0
    %v6288 = vadd.f32 %v6095, %v6287
    %v6289 = vpop.f32.mrf.mxu0
    %v6290 = vadd.f32 %v6097, %v6289
    %v6291 = vpop.f32.mrf.mxu0
    %v6292 = vadd.f32 %v6099, %v6291
    %v6293 = vpop.f32.mrf.mxu0
    %v6294 = vadd.f32 %v6101, %v6293
    %6295 = vmatprep.mubr.bf16.mxu0 %v1099
    %6296 = vmatmul.mubr.bf16.gmra.mxu0 %v1098
    %v6297 = vpop.f32.mrf.mxu0
    %v6298 = vadd.f32 %v6105, %v6297
    %v6299 = vpop.f32.mrf.mxu0
    %v6300 = vadd.f32 %v6107, %v6299
    %v6301 = vpop.f32.mrf.mxu0
    %v6302 = vadd.f32 %v6109, %v6301
    %v6303 = vpop.f32.mrf.mxu0
    %v6304 = vadd.f32 %v6111, %v6303
    %6305 = vmatprep.mubr.bf16.mxu0 %v1106
    %6306 = vmatmul.mubr.bf16.gmra.mxu0 %v1105
    %v6307 = vpop.f32.mrf.mxu0
    %v6308 = vadd.f32 %v6115, %v6307
    %v6309 = vpop.f32.mrf.mxu0
    %v6310 = vadd.f32 %v6117, %v6309
    %v6311 = vpop.f32.mrf.mxu0
    %v6312 = vadd.f32 %v6119, %v6311
    %v6313 = vpop.f32.mrf.mxu0
    %v6314 = vadd.f32 %v6121, %v6313
    %6315 = vmatprep.mubr.bf16.mxu0 %v1113
    %6316 = vmatmul.mubr.bf16.gmra.mxu0 %v1112
    %v6317 = vpop.f32.mrf.mxu0
    %v6318 = vadd.f32 %v6125, %v6317
    %v6319 = vpop.f32.mrf.mxu0
    %v6320 = vadd.f32 %v6127, %v6319
    %v6321 = vpop.f32.mrf.mxu0
    %v6322 = vadd.f32 %v6129, %v6321
    %v6323 = vpop.f32.mrf.mxu0
    %v6324 = vadd.f32 %v6131, %v6323
    %6325 = vmatprep.mubr.bf16.mxu0 %v1120
    %6326 = vmatmul.mubr.bf16.gmra.mxu0 %v1119
    %v6327 = vpop.f32.mrf.mxu0
    %v6328 = vadd.f32 %v6135, %v6327
    %v6329 = vpop.f32.mrf.mxu0
    %v6330 = vadd.f32 %v6137, %v6329
    %v6331 = vpop.f32.mrf.mxu0
    %v6332 = vadd.f32 %v6139, %v6331
    %v6333 = vpop.f32.mrf.mxu0
    %v6334 = vadd.f32 %v6141, %v6333
    %6335 = vmatprep.mubr.bf16.mxu0 %v1127
    %6336 = vmatmul.mubr.bf16.gmra.mxu0 %v1126
    %v6337 = vpop.f32.mrf.mxu0
    %v6338 = vadd.f32 %v6145, %v6337
    %v6339 = vpop.f32.mrf.mxu0
    %v6340 = vadd.f32 %v6147, %v6339
    %v6341 = vpop.f32.mrf.mxu0
    %v6342 = vadd.f32 %v6149, %v6341
    %v6343 = vpop.f32.mrf.mxu0
    %v6344 = vadd.f32 %v6151, %v6343
    %6345 = vmatprep.mubr.bf16.mxu0 %v1134
    %6346 = vmatmul.mubr.bf16.gmra.mxu0 %v1133
    %v6347 = vpop.f32.mrf.mxu0
    %v6348 = vadd.f32 %v6155, %v6347
    %v6349 = vpop.f32.mrf.mxu0
    %v6350 = vadd.f32 %v6157, %v6349
    %v6351 = vpop.f32.mrf.mxu0
    %v6352 = vadd.f32 %v6159, %v6351
    %v6353 = vpop.f32.mrf.mxu0
    %v6354 = vadd.f32 %v6161, %v6353
    %6355 = vmatprep.mubr.bf16.mxu0 %v1141
    %6356 = vmatmul.mubr.bf16.gmra.mxu0 %v1140
    %v6357 = vpop.f32.mrf.mxu0
    %v6358 = vadd.f32 %v6165, %v6357
    %v6359 = vpop.f32.mrf.mxu0
    %v6360 = vadd.f32 %v6167, %v6359
    %v6361 = vpop.f32.mrf.mxu0
    %v6362 = vadd.f32 %v6169, %v6361
    %v6363 = vpop.f32.mrf.mxu0
    %v6364 = vadd.f32 %v6171, %v6363
    %6365 = vmatprep.mubr.bf16.mxu0 %v1148
    %6366 = vmatmul.mubr.bf16.gmra.mxu0 %v1147
    %v6367 = vpop.f32.mrf.mxu0
    %v6368 = vadd.f32 %v6175, %v6367
    %v6369 = vpop.f32.mrf.mxu0
    %v6370 = vadd.f32 %v6177, %v6369
    %v6371 = vpop.f32.mrf.mxu0
    %v6372 = vadd.f32 %v6179, %v6371
    %v6373 = vpop.f32.mrf.mxu0
    %v6374 = vadd.f32 %v6181, %v6373
    %6375 = vmatprep.mubr.bf16.mxu0 %v1155
    %6376 = vmatmul.mubr.bf16.gmra.mxu0 %v1154
    %v6377 = vpop.f32.mrf.mxu0
    %v6378 = vadd.f32 %v6185, %v6377
    %v6379 = vpop.f32.mrf.mxu0
    %v6380 = vadd.f32 %v6187, %v6379
    %v6381 = vpop.f32.mrf.mxu0
    %v6382 = vadd.f32 %v6189, %v6381
    %v6383 = vpop.f32.mrf.mxu0
    %v6384 = vadd.f32 %v6191, %v6383
    %6385 = vmatprep.mubr.bf16.mxu0 %v1162
    %6386 = vmatmul.mubr.bf16.gmra.mxu0 %v1161
    %v6387 = vpop.f32.mrf.mxu0
    %v6388 = vadd.f32 %v6195, %v6387
    %v6389 = vpop.f32.mrf.mxu0
    %v6390 = vadd.f32 %v6197, %v6389
    %v6391 = vpop.f32.mrf.mxu0
    %v6392 = vadd.f32 %v6199, %v6391
    %v6393 = vpop.f32.mrf.mxu0
    %v6394 = vadd.f32 %v6201, %v6393
    %6395 = vmatprep.mubr.bf16.mxu0 %v1169
    %6396 = vmatmul.mubr.bf16.gmra.mxu0 %v1168
    %v6397 = vpop.f32.mrf.mxu0
    %v6398 = vadd.f32 %v6205, %v6397
    %v6399 = vpop.f32.mrf.mxu0
    %v6400 = vadd.f32 %v6207, %v6399
    %v6401 = vpop.f32.mrf.mxu0
    %v6402 = vadd.f32 %v6209, %v6401
    %v6403 = vpop.f32.mrf.mxu0
    %v6404 = vadd.f32 %v6211, %v6403
    %6405 = vmatprep.mubr.bf16.mxu0 %v1176
    %6406 = vmatmul.mubr.bf16.gmra.mxu0 %v1175
    %v6407 = vpop.f32.mrf.mxu0
    %v6408 = vadd.f32 %v6215, %v6407
    %v6409 = vpop.f32.mrf.mxu0
    %v6410 = vadd.f32 %v6217, %v6409
    %v6411 = vpop.f32.mrf.mxu0
    %v6412 = vadd.f32 %v6219, %v6411
    %v6413 = vpop.f32.mrf.mxu0
    %v6414 = vadd.f32 %v6221, %v6413
    %6415 = vmatprep.mubr.bf16.mxu0 %v1183
    %6416 = vmatmul.mubr.bf16.gmra.mxu0 %v1182
    %v6417 = vpop.f32.mrf.mxu0
    %v6418 = vadd.f32 %v6225, %v6417
    %v6419 = vpop.f32.mrf.mxu0
    %v6420 = vadd.f32 %v6227, %v6419
    %v6421 = vpop.f32.mrf.mxu0
    %v6422 = vadd.f32 %v6229, %v6421
    %v6423 = vpop.f32.mrf.mxu0
    %v6424 = vadd.f32 %v6231, %v6423
    %6425 = vmatprep.mubr.bf16.mxu0 %v1190
    %6426 = vmatmul.mubr.bf16.gmra.mxu0 %v1189
    %v6427 = vpop.f32.mrf.mxu0
    %v6428 = vadd.f32 %v6235, %v6427
    %v6429 = vpop.f32.mrf.mxu0
    %v6430 = vadd.f32 %v6237, %v6429
    %v6431 = vpop.f32.mrf.mxu0
    %v6432 = vadd.f32 %v6239, %v6431
    %v6433 = vpop.f32.mrf.mxu0
    %v6434 = vadd.f32 %v6241, %v6433
    %6435 = vmatprep.mubr.bf16.mxu0 %v1197
    %6436 = vmatmul.mubr.bf16.gmra.mxu0 %v1196
    %v6437 = vpop.f32.mrf.mxu0
    %v6438 = vadd.f32 %v6245, %v6437
    %v6439 = vpop.f32.mrf.mxu0
    %v6440 = vadd.f32 %v6247, %v6439
    %v6441 = vpop.f32.mrf.mxu0
    %v6442 = vadd.f32 %v6249, %v6441
    %v6443 = vpop.f32.mrf.mxu0
    %v6444 = vadd.f32 %v6251, %v6443
    %6445 = vdwg.mxu0
    %6446 = vmatprep.subr.bf16.mxu0 %v3102
    %6447 = vmatpush1.bf16.msra.mxu0 %v3101
    %6448 = vmatprep.subr.bf16.mxu0 %v3094
    %6449 = vmatpush1.bf16.msra.mxu0 %v3093
    %6450 = vmatprep.subr.bf16.mxu0 %v3086
    %6451 = vmatpush1.bf16.msra.mxu0 %v3085
    %6452 = vmatprep.subr.bf16.mxu0 %v3078
    %6453 = vmatpush1.bf16.msra.mxu0 %v3077
    %6454 = vmatprep.subr.bf16.mxu0 %v3070
    %6455 = vmatpush1.bf16.msra.mxu0 %v3069
    %6456 = vmatprep.subr.bf16.mxu0 %v3062
    %6457 = vmatpush1.bf16.msra.mxu0 %v3061
    %6458 = vmatprep.subr.bf16.mxu0 %v3054
    %6459 = vmatpush1.bf16.msra.mxu0 %v3053
    %6460 = vmatprep.subr.bf16.mxu0 %v3046
    %6461 = vmatpush1.bf16.msra.mxu0 %v3045
    %6462 = vmatprep.subr.bf16.mxu0 0
    %6463 = vmatpush2.bf16.msra.mxu0 0
    %6464 = vmatprep.subr.bf16.mxu0 0
    %6465 = vmatpush2.bf16.msra.mxu0 0
    %6466 = vmatprep.subr.bf16.mxu0 0
    %6467 = vmatpush2.bf16.msra.mxu0 0
    %6468 = vmatprep.subr.bf16.mxu0 0
    %6469 = vmatpush2.bf16.msra.mxu0 0
    %6470 = vmatprep.subr.bf16.mxu0 0
    %6471 = vmatpush2.bf16.msra.mxu0 0
    %6472 = vmatprep.subr.bf16.mxu0 0
    %6473 = vmatpush2.bf16.msra.mxu0 0
    %6474 = vmatprep.subr.bf16.mxu0 0
    %6475 = vmatpush2.bf16.msra.mxu0 0
    %6476 = vmatprep.subr.bf16.mxu0 0
    %6477 = vmatpush2.bf16.msra.mxu0 0
    %6478 = vmatprep.mubr.bf16.mxu0 0
    %6479 = vmatmul.mubr.bf16.gmra.mxu0 %v1093
    %v6480 = vpop.f32.mrf.mxu0
    %v6481 = vadd.f32 %v6288, %v6480
    %v6482 = vpop.f32.mrf.mxu0
    %v6483 = vadd.f32 %v6290, %v6482
    %v6484 = vpop.f32.mrf.mxu0
    %v6485 = vadd.f32 %v6292, %v6484
    %v6486 = vpop.f32.mrf.mxu0
    %v6487 = vadd.f32 %v6294, %v6486
    %6488 = vmatprep.mubr.bf16.mxu0 0
    %6489 = vmatmul.mubr.bf16.gmra.mxu0 %v1100
    %v6490 = vpop.f32.mrf.mxu0
    %v6491 = vadd.f32 %v6298, %v6490
    %v6492 = vpop.f32.mrf.mxu0
    %v6493 = vadd.f32 %v6300, %v6492
    %v6494 = vpop.f32.mrf.mxu0
    %v6495 = vadd.f32 %v6302, %v6494
    %v6496 = vpop.f32.mrf.mxu0
    %v6497 = vadd.f32 %v6304, %v6496
    %6498 = vmatprep.mubr.bf16.mxu0 0
    %6499 = vmatmul.mubr.bf16.gmra.mxu0 %v1107
    %v6500 = vpop.f32.mrf.mxu0
    %v6501 = vadd.f32 %v6308, %v6500
    %v6502 = vpop.f32.mrf.mxu0
    %v6503 = vadd.f32 %v6310, %v6502
    %v6504 = vpop.f32.mrf.mxu0
    %v6505 = vadd.f32 %v6312, %v6504
    %v6506 = vpop.f32.mrf.mxu0
    %v6507 = vadd.f32 %v6314, %v6506
    %6508 = vmatprep.mubr.bf16.mxu0 0
    %6509 = vmatmul.mubr.bf16.gmra.mxu0 %v1114
    %v6510 = vpop.f32.mrf.mxu0
    %v6511 = vadd.f32 %v6318, %v6510
    %v6512 = vpop.f32.mrf.mxu0
    %v6513 = vadd.f32 %v6320, %v6512
    %v6514 = vpop.f32.mrf.mxu0
    %v6515 = vadd.f32 %v6322, %v6514
    %v6516 = vpop.f32.mrf.mxu0
    %v6517 = vadd.f32 %v6324, %v6516
    %6518 = vmatprep.mubr.bf16.mxu0 0
    %6519 = vmatmul.mubr.bf16.gmra.mxu0 %v1121
    %v6520 = vpop.f32.mrf.mxu0
    %v6521 = vadd.f32 %v6328, %v6520
    %v6522 = vpop.f32.mrf.mxu0
    %v6523 = vadd.f32 %v6330, %v6522
    %v6524 = vpop.f32.mrf.mxu0
    %v6525 = vadd.f32 %v6332, %v6524
    %v6526 = vpop.f32.mrf.mxu0
    %v6527 = vadd.f32 %v6334, %v6526
    %6528 = vmatprep.mubr.bf16.mxu0 0
    %6529 = vmatmul.mubr.bf16.gmra.mxu0 %v1128
    %v6530 = vpop.f32.mrf.mxu0
    %v6531 = vadd.f32 %v6338, %v6530
    %v6532 = vpop.f32.mrf.mxu0
    %v6533 = vadd.f32 %v6340, %v6532
    %v6534 = vpop.f32.mrf.mxu0
    %v6535 = vadd.f32 %v6342, %v6534
    %v6536 = vpop.f32.mrf.mxu0
    %v6537 = vadd.f32 %v6344, %v6536
    %6538 = vmatprep.mubr.bf16.mxu0 0
    %6539 = vmatmul.mubr.bf16.gmra.mxu0 %v1135
    %v6540 = vpop.f32.mrf.mxu0
    %v6541 = vadd.f32 %v6348, %v6540
    %v6542 = vpop.f32.mrf.mxu0
    %v6543 = vadd.f32 %v6350, %v6542
    %v6544 = vpop.f32.mrf.mxu0
    %v6545 = vadd.f32 %v6352, %v6544
    %v6546 = vpop.f32.mrf.mxu0
    %v6547 = vadd.f32 %v6354, %v6546
    %6548 = vmatprep.mubr.bf16.mxu0 0
    %6549 = vmatmul.mubr.bf16.gmra.mxu0 %v1142
    %v6550 = vpop.f32.mrf.mxu0
    %v6551 = vadd.f32 %v6358, %v6550
    %v6552 = vpop.f32.mrf.mxu0
    %v6553 = vadd.f32 %v6360, %v6552
    %v6554 = vpop.f32.mrf.mxu0
    %v6555 = vadd.f32 %v6362, %v6554
    %v6556 = vpop.f32.mrf.mxu0
    %v6557 = vadd.f32 %v6364, %v6556
    %6558 = vmatprep.mubr.bf16.mxu0 0
    %6559 = vmatmul.mubr.bf16.gmra.mxu0 %v1149
    %v6560 = vpop.f32.mrf.mxu0
    %v6561 = vadd.f32 %v6368, %v6560
    %v6562 = vpop.f32.mrf.mxu0
    %v6563 = vadd.f32 %v6370, %v6562
    %v6564 = vpop.f32.mrf.mxu0
    %v6565 = vadd.f32 %v6372, %v6564
    %v6566 = vpop.f32.mrf.mxu0
    %v6567 = vadd.f32 %v6374, %v6566
    %6568 = vmatprep.mubr.bf16.mxu0 0
    %6569 = vmatmul.mubr.bf16.gmra.mxu0 %v1156
    %v6570 = vpop.f32.mrf.mxu0
    %v6571 = vadd.f32 %v6378, %v6570
    %v6572 = vpop.f32.mrf.mxu0
    %v6573 = vadd.f32 %v6380, %v6572
    %v6574 = vpop.f32.mrf.mxu0
    %v6575 = vadd.f32 %v6382, %v6574
    %v6576 = vpop.f32.mrf.mxu0
    %v6577 = vadd.f32 %v6384, %v6576
    %6578 = vmatprep.mubr.bf16.mxu0 0
    %6579 = vmatmul.mubr.bf16.gmra.mxu0 %v1163
    %v6580 = vpop.f32.mrf.mxu0
    %v6581 = vadd.f32 %v6388, %v6580
    %v6582 = vpop.f32.mrf.mxu0
    %v6583 = vadd.f32 %v6390, %v6582
    %v6584 = vpop.f32.mrf.mxu0
    %v6585 = vadd.f32 %v6392, %v6584
    %v6586 = vpop.f32.mrf.mxu0
    %v6587 = vadd.f32 %v6394, %v6586
    %6588 = vmatprep.mubr.bf16.mxu0 0
    %6589 = vmatmul.mubr.bf16.gmra.mxu0 %v1170
    %v6590 = vpop.f32.mrf.mxu0
    %v6591 = vadd.f32 %v6398, %v6590
    %v6592 = vpop.f32.mrf.mxu0
    %v6593 = vadd.f32 %v6400, %v6592
    %v6594 = vpop.f32.mrf.mxu0
    %v6595 = vadd.f32 %v6402, %v6594
    %v6596 = vpop.f32.mrf.mxu0
    %v6597 = vadd.f32 %v6404, %v6596
    %6598 = vmatprep.mubr.bf16.mxu0 0
    %6599 = vmatmul.mubr.bf16.gmra.mxu0 %v1177
    %v6600 = vpop.f32.mrf.mxu0
    %v6601 = vadd.f32 %v6408, %v6600
    %v6602 = vpop.f32.mrf.mxu0
    %v6603 = vadd.f32 %v6410, %v6602
    %v6604 = vpop.f32.mrf.mxu0
    %v6605 = vadd.f32 %v6412, %v6604
    %v6606 = vpop.f32.mrf.mxu0
    %v6607 = vadd.f32 %v6414, %v6606
    %6608 = vmatprep.mubr.bf16.mxu0 0
    %6609 = vmatmul.mubr.bf16.gmra.mxu0 %v1184
    %v6610 = vpop.f32.mrf.mxu0
    %v6611 = vadd.f32 %v6418, %v6610
    %v6612 = vpop.f32.mrf.mxu0
    %v6613 = vadd.f32 %v6420, %v6612
    %v6614 = vpop.f32.mrf.mxu0
    %v6615 = vadd.f32 %v6422, %v6614
    %v6616 = vpop.f32.mrf.mxu0
    %v6617 = vadd.f32 %v6424, %v6616
    %6618 = vmatprep.mubr.bf16.mxu0 0
    %6619 = vmatmul.mubr.bf16.gmra.mxu0 %v1191
    %v6620 = vpop.f32.mrf.mxu0
    %v6621 = vadd.f32 %v6428, %v6620
    %v6622 = vpop.f32.mrf.mxu0
    %v6623 = vadd.f32 %v6430, %v6622
    %v6624 = vpop.f32.mrf.mxu0
    %v6625 = vadd.f32 %v6432, %v6624
    %v6626 = vpop.f32.mrf.mxu0
    %v6627 = vadd.f32 %v6434, %v6626
    %6628 = vmatprep.mubr.bf16.mxu0 0
    %6629 = vmatmul.mubr.bf16.gmra.mxu0 %v1198
    %v6630 = vpop.f32.mrf.mxu0
    %v6631 = vadd.f32 %v6438, %v6630
    %v6632 = vpop.f32.mrf.mxu0
    %v6633 = vadd.f32 %v6440, %v6632
    %v6634 = vpop.f32.mrf.mxu0
    %v6635 = vadd.f32 %v6442, %v6634
    %v6636 = vpop.f32.mrf.mxu0
    %v6637 = vadd.f32 %v6444, %v6636
    %6638 = vdwg.mxu0
    %v6639 = vmax.f32 %v4165, 0.0
    %v6640 = vmax.f32 %v4167, 0.0
    %v6641 = vmax.f32 %v4937, 0.0
    %v6642 = vmax.f32 %v4939, 0.0
    %v6643 = vmax.f32 %v5709, 0.0
    %v6644 = vmax.f32 %v5711, 0.0
    %v6645 = vmax.f32 %v6481, 0.0
    %v6646 = vmax.f32 %v6483, 0.0
    %v6647 = vmax.f32 %v4169, 0.0
    %v6648 = vmax.f32 %v4171, 0.0
    %v6649 = vmax.f32 %v4941, 0.0
    %v6650 = vmax.f32 %v4943, 0.0
    %v6651 = vmax.f32 %v5713, 0.0
    %v6652 = vmax.f32 %v5715, 0.0
    %v6653 = vmax.f32 %v6485, 0.0
    %v6654 = vmax.f32 %v6487, 0.0
    %v6655 = vmax.f32 %v4175, 0.0
    %v6656 = vmax.f32 %v4177, 0.0
    %v6657 = vmax.f32 %v4947, 0.0
    %v6658 = vmax.f32 %v4949, 0.0
    %v6659 = vmax.f32 %v5719, 0.0
    %v6660 = vmax.f32 %v5721, 0.0
    %v6661 = vmax.f32 %v6491, 0.0
    %v6662 = vmax.f32 %v6493, 0.0
    %v6663 = vmax.f32 %v4179, 0.0
    %v6664 = vmax.f32 %v4181, 0.0
    %v6665 = vmax.f32 %v4951, 0.0
    %v6666 = vmax.f32 %v4953, 0.0
    %v6667 = vmax.f32 %v5723, 0.0
    %v6668 = vmax.f32 %v5725, 0.0
    %v6669 = vmax.f32 %v6495, 0.0
    %v6670 = vmax.f32 %v6497, 0.0
    %v6671 = vmax.f32 %v4185, 0.0
    %v6672 = vmax.f32 %v4187, 0.0
    %v6673 = vmax.f32 %v4957, 0.0
    %v6674 = vmax.f32 %v4959, 0.0
    %v6675 = vmax.f32 %v5729, 0.0
    %v6676 = vmax.f32 %v5731, 0.0
    %v6677 = vmax.f32 %v6501, 0.0
    %v6678 = vmax.f32 %v6503, 0.0
    %v6679 = vmax.f32 %v4189, 0.0
    %v6680 = vmax.f32 %v4191, 0.0
    %v6681 = vmax.f32 %v4961, 0.0
    %v6682 = vmax.f32 %v4963, 0.0
    %v6683 = vmax.f32 %v5733, 0.0
    %v6684 = vmax.f32 %v5735, 0.0
    %v6685 = vmax.f32 %v6505, 0.0
    %v6686 = vmax.f32 %v6507, 0.0
    %v6687 = vmax.f32 %v4195, 0.0
    %v6688 = vmax.f32 %v4197, 0.0
    %v6689 = vmax.f32 %v4967, 0.0
    %v6690 = vmax.f32 %v4969, 0.0
    %v6691 = vmax.f32 %v5739, 0.0
    %v6692 = vmax.f32 %v5741, 0.0
    %v6693 = vmax.f32 %v6511, 0.0
    %v6694 = vmax.f32 %v6513, 0.0
    %v6695 = vmax.f32 %v4199, 0.0
    %v6696 = vmax.f32 %v4201, 0.0
    %v6697 = vmax.f32 %v4971, 0.0
    %v6698 = vmax.f32 %v4973, 0.0
    %v6699 = vmax.f32 %v5743, 0.0
    %v6700 = vmax.f32 %v5745, 0.0
    %v6701 = vmax.f32 %v6515, 0.0
    %v6702 = vmax.f32 %v6517, 0.0
    %v6703 = vmax.f32 %v4205, 0.0
    %v6704 = vmax.f32 %v4207, 0.0
    %v6705 = vmax.f32 %v4977, 0.0
    %v6706 = vmax.f32 %v4979, 0.0
    %v6707 = vmax.f32 %v5749, 0.0
    %v6708 = vmax.f32 %v5751, 0.0
    %v6709 = vmax.f32 %v6521, 0.0
    %v6710 = vmax.f32 %v6523, 0.0
    %v6711 = vmax.f32 %v4209, 0.0
    %v6712 = vmax.f32 %v4211, 0.0
    %v6713 = vmax.f32 %v4981, 0.0
    %v6714 = vmax.f32 %v4983, 0.0
    %v6715 = vmax.f32 %v5753, 0.0
    %v6716 = vmax.f32 %v5755, 0.0
    %v6717 = vmax.f32 %v6525, 0.0
    %v6718 = vmax.f32 %v6527, 0.0
    %v6719 = vmax.f32 %v4215, 0.0
    %v6720 = vmax.f32 %v4217, 0.0
    %v6721 = vmax.f32 %v4987, 0.0
    %v6722 = vmax.f32 %v4989, 0.0
    %v6723 = vmax.f32 %v5759, 0.0
    %v6724 = vmax.f32 %v5761, 0.0
    %v6725 = vmax.f32 %v6531, 0.0
    %v6726 = vmax.f32 %v6533, 0.0
    %v6727 = vmax.f32 %v4219, 0.0
    %v6728 = vmax.f32 %v4221, 0.0
    %v6729 = vmax.f32 %v4991, 0.0
    %v6730 = vmax.f32 %v4993, 0.0
    %v6731 = vmax.f32 %v5763, 0.0
    %v6732 = vmax.f32 %v5765, 0.0
    %v6733 = vmax.f32 %v6535, 0.0
    %v6734 = vmax.f32 %v6537, 0.0
    %v6735 = vmax.f32 %v4225, 0.0
    %v6736 = vmax.f32 %v4227, 0.0
    %v6737 = vmax.f32 %v4997, 0.0
    %v6738 = vmax.f32 %v4999, 0.0
    %v6739 = vmax.f32 %v5769, 0.0
    %v6740 = vmax.f32 %v5771, 0.0
    %v6741 = vmax.f32 %v6541, 0.0
    %v6742 = vmax.f32 %v6543, 0.0
    %v6743 = vmax.f32 %v4229, 0.0
    %v6744 = vmax.f32 %v4231, 0.0
    %v6745 = vmax.f32 %v5001, 0.0
    %v6746 = vmax.f32 %v5003, 0.0
    %v6747 = vmax.f32 %v5773, 0.0
    %v6748 = vmax.f32 %v5775, 0.0
    %v6749 = vmax.f32 %v6545, 0.0
    %v6750 = vmax.f32 %v6547, 0.0
    %v6751 = vmax.f32 %v4235, 0.0
    %v6752 = vmax.f32 %v4237, 0.0
    %v6753 = vmax.f32 %v5007, 0.0
    %v6754 = vmax.f32 %v5009, 0.0
    %v6755 = vmax.f32 %v5779, 0.0
    %v6756 = vmax.f32 %v5781, 0.0
    %v6757 = vmax.f32 %v6551, 0.0
    %v6758 = vmax.f32 %v6553, 0.0
    %v6759 = vmax.f32 %v4239, 0.0
    %v6760 = vmax.f32 %v4241, 0.0
    %v6761 = vmax.f32 %v5011, 0.0
    %v6762 = vmax.f32 %v5013, 0.0
    %v6763 = vmax.f32 %v5783, 0.0
    %v6764 = vmax.f32 %v5785, 0.0
    %v6765 = vmax.f32 %v6555, 0.0
    %v6766 = vmax.f32 %v6557, 0.0
    %v6767 = vmax.f32 %v4245, 0.0
    %v6768 = vmax.f32 %v4247, 0.0
    %v6769 = vmax.f32 %v5017, 0.0
    %v6770 = vmax.f32 %v5019, 0.0
    %v6771 = vmax.f32 %v5789, 0.0
    %v6772 = vmax.f32 %v5791, 0.0
    %v6773 = vmax.f32 %v6561, 0.0
    %v6774 = vmax.f32 %v6563, 0.0
    %v6775 = vmax.f32 %v4249, 0.0
    %v6776 = vmax.f32 %v4251, 0.0
    %v6777 = vmax.f32 %v5021, 0.0
    %v6778 = vmax.f32 %v5023, 0.0
    %v6779 = vmax.f32 %v5793, 0.0
    %v6780 = vmax.f32 %v5795, 0.0
    %v6781 = vmax.f32 %v6565, 0.0
    %v6782 = vmax.f32 %v6567, 0.0
    %v6783 = vmax.f32 %v4255, 0.0
    %v6784 = vmax.f32 %v4257, 0.0
    %v6785 = vmax.f32 %v5027, 0.0
    %v6786 = vmax.f32 %v5029, 0.0
    %v6787 = vmax.f32 %v5799, 0.0
    %v6788 = vmax.f32 %v5801, 0.0
    %v6789 = vmax.f32 %v6571, 0.0
    %v6790 = vmax.f32 %v6573, 0.0
    %v6791 = vmax.f32 %v4259, 0.0
    %v6792 = vmax.f32 %v4261, 0.0
    %v6793 = vmax.f32 %v5031, 0.0
    %v6794 = vmax.f32 %v5033, 0.0
    %v6795 = vmax.f32 %v5803, 0.0
    %v6796 = vmax.f32 %v5805, 0.0
    %v6797 = vmax.f32 %v6575, 0.0
    %v6798 = vmax.f32 %v6577, 0.0
    %v6799 = vmax.f32 %v4265, 0.0
    %v6800 = vmax.f32 %v4267, 0.0
    %v6801 = vmax.f32 %v5037, 0.0
    %v6802 = vmax.f32 %v5039, 0.0
    %v6803 = vmax.f32 %v5809, 0.0
    %v6804 = vmax.f32 %v5811, 0.0
    %v6805 = vmax.f32 %v6581, 0.0
    %v6806 = vmax.f32 %v6583, 0.0
    %v6807 = vmax.f32 %v4269, 0.0
    %v6808 = vmax.f32 %v4271, 0.0
    %v6809 = vmax.f32 %v5041, 0.0
    %v6810 = vmax.f32 %v5043, 0.0
    %v6811 = vmax.f32 %v5813, 0.0
    %v6812 = vmax.f32 %v5815, 0.0
    %v6813 = vmax.f32 %v6585, 0.0
    %v6814 = vmax.f32 %v6587, 0.0
    %v6815 = vmax.f32 %v4275, 0.0
    %v6816 = vmax.f32 %v4277, 0.0
    %v6817 = vmax.f32 %v5047, 0.0
    %v6818 = vmax.f32 %v5049, 0.0
    %v6819 = vmax.f32 %v5819, 0.0
    %v6820 = vmax.f32 %v5821, 0.0
    %v6821 = vmax.f32 %v6591, 0.0
    %v6822 = vmax.f32 %v6593, 0.0
    %v6823 = vmax.f32 %v4279, 0.0
    %v6824 = vmax.f32 %v4281, 0.0
    %v6825 = vmax.f32 %v5051, 0.0
    %v6826 = vmax.f32 %v5053, 0.0
    %v6827 = vmax.f32 %v5823, 0.0
    %v6828 = vmax.f32 %v5825, 0.0
    %v6829 = vmax.f32 %v6595, 0.0
    %v6830 = vmax.f32 %v6597, 0.0
    %v6831 = vmax.f32 %v4285, 0.0
    %v6832 = vmax.f32 %v4287, 0.0
    %v6833 = vmax.f32 %v5057, 0.0
    %v6834 = vmax.f32 %v5059, 0.0
    %v6835 = vmax.f32 %v5829, 0.0
    %v6836 = vmax.f32 %v5831, 0.0
    %v6837 = vmax.f32 %v6601, 0.0
    %v6838 = vmax.f32 %v6603, 0.0
    %v6839 = vmax.f32 %v4289, 0.0
    %v6840 = vmax.f32 %v4291, 0.0
    %v6841 = vmax.f32 %v5061, 0.0
    %v6842 = vmax.f32 %v5063, 0.0
    %v6843 = vmax.f32 %v5833, 0.0
    %v6844 = vmax.f32 %v5835, 0.0
    %v6845 = vmax.f32 %v6605, 0.0
    %v6846 = vmax.f32 %v6607, 0.0
    %v6847 = vmax.f32 %v4295, 0.0
    %v6848 = vmax.f32 %v4297, 0.0
    %v6849 = vmax.f32 %v5067, 0.0
    %v6850 = vmax.f32 %v5069, 0.0
    %v6851 = vmax.f32 %v5839, 0.0
    %v6852 = vmax.f32 %v5841, 0.0
    %v6853 = vmax.f32 %v6611, 0.0
    %v6854 = vmax.f32 %v6613, 0.0
    %v6855 = vmax.f32 %v4299, 0.0
    %v6856 = vmax.f32 %v4301, 0.0
    %v6857 = vmax.f32 %v5071, 0.0
    %v6858 = vmax.f32 %v5073, 0.0
    %v6859 = vmax.f32 %v5843, 0.0
    %v6860 = vmax.f32 %v5845, 0.0
    %v6861 = vmax.f32 %v6615, 0.0
    %v6862 = vmax.f32 %v6617, 0.0
    %v6863 = vmax.f32 %v4305, 0.0
    %v6864 = vmax.f32 %v4307, 0.0
    %v6865 = vmax.f32 %v5077, 0.0
    %v6866 = vmax.f32 %v5079, 0.0
    %v6867 = vmax.f32 %v5849, 0.0
    %v6868 = vmax.f32 %v5851, 0.0
    %v6869 = vmax.f32 %v6621, 0.0
    %v6870 = vmax.f32 %v6623, 0.0
    %v6871 = vmax.f32 %v4309, 0.0
    %v6872 = vmax.f32 %v4311, 0.0
    %v6873 = vmax.f32 %v5081, 0.0
    %v6874 = vmax.f32 %v5083, 0.0
    %v6875 = vmax.f32 %v5853, 0.0
    %v6876 = vmax.f32 %v5855, 0.0
    %v6877 = vmax.f32 %v6625, 0.0
    %v6878 = vmax.f32 %v6627, 0.0
    %v6879 = vmax.f32 %v4315, 0.0
    %v6880 = vmax.f32 %v4317, 0.0
    %v6881 = vmax.f32 %v5087, 0.0
    %v6882 = vmax.f32 %v5089, 0.0
    %v6883 = vmax.f32 %v5859, 0.0
    %v6884 = vmax.f32 %v5861, 0.0
    %v6885 = vmax.f32 %v6631, 0.0
    %v6886 = vmax.f32 %v6633, 0.0
    %v6887 = vmax.f32 %v4319, 0.0
    %v6888 = vmax.f32 %v4321, 0.0
    %v6889 = vmax.f32 %v5091, 0.0
    %v6890 = vmax.f32 %v5093, 0.0
    %v6891 = vmax.f32 %v5863, 0.0
    %v6892 = vmax.f32 %v5865, 0.0
    %v6893 = vmax.f32 %v6635, 0.0
    %v6894 = vmax.f32 %v6637, 0.0
    %v6895 = vpack.c.bf16 %v6647, %v6639
    %v6896 = vpack.c.bf16 %v6648, %v6640
    %v6897 = vpack.c.bf16 %v6649, %v6641
    %v6898 = vpack.c.bf16 %v6650, %v6642
    %v6899 = vpack.c.bf16 %v6651, %v6643
    %v6900 = vpack.c.bf16 %v6652, %v6644
    %v6901 = vpack.c.bf16 %v6653, %v6645
    %v6902 = vpack.c.bf16 %v6654, %v6646
    %v6903 = vpack.c.bf16 %v6663, %v6655
    %v6904 = vpack.c.bf16 %v6664, %v6656
    %v6905 = vpack.c.bf16 %v6665, %v6657
    %v6906 = vpack.c.bf16 %v6666, %v6658
    %v6907 = vpack.c.bf16 %v6667, %v6659
    %v6908 = vpack.c.bf16 %v6668, %v6660
    %v6909 = vpack.c.bf16 %v6669, %v6661
    %v6910 = vpack.c.bf16 %v6670, %v6662
    %v6911 = vpack.c.bf16 %v6679, %v6671
    %v6912 = vpack.c.bf16 %v6680, %v6672
    %v6913 = vpack.c.bf16 %v6681, %v6673
    %v6914 = vpack.c.bf16 %v6682, %v6674
    %v6915 = vpack.c.bf16 %v6683, %v6675
    %v6916 = vpack.c.bf16 %v6684, %v6676
    %v6917 = vpack.c.bf16 %v6685, %v6677
    %v6918 = vpack.c.bf16 %v6686, %v6678
    %v6919 = vpack.c.bf16 %v6695, %v6687
    %v6920 = vpack.c.bf16 %v6696, %v6688
    %v6921 = vpack.c.bf16 %v6697, %v6689
    %v6922 = vpack.c.bf16 %v6698, %v6690
    %v6923 = vpack.c.bf16 %v6699, %v6691
    %v6924 = vpack.c.bf16 %v6700, %v6692
    %v6925 = vpack.c.bf16 %v6701, %v6693
    %v6926 = vpack.c.bf16 %v6702, %v6694
    %v6927 = vpack.c.bf16 %v6711, %v6703
    %v6928 = vpack.c.bf16 %v6712, %v6704
    %v6929 = vpack.c.bf16 %v6713, %v6705
    %v6930 = vpack.c.bf16 %v6714, %v6706
    %v6931 = vpack.c.bf16 %v6715, %v6707
    %v6932 = vpack.c.bf16 %v6716, %v6708
    %v6933 = vpack.c.bf16 %v6717, %v6709
    %v6934 = vpack.c.bf16 %v6718, %v6710
    %v6935 = vpack.c.bf16 %v6727, %v6719
    %v6936 = vpack.c.bf16 %v6728, %v6720
    %v6937 = vpack.c.bf16 %v6729, %v6721
    %v6938 = vpack.c.bf16 %v6730, %v6722
    %v6939 = vpack.c.bf16 %v6731, %v6723
    %v6940 = vpack.c.bf16 %v6732, %v6724
    %v6941 = vpack.c.bf16 %v6733, %v6725
    %v6942 = vpack.c.bf16 %v6734, %v6726
    %v6943 = vpack.c.bf16 %v6743, %v6735
    %v6944 = vpack.c.bf16 %v6744, %v6736
    %v6945 = vpack.c.bf16 %v6745, %v6737
    %v6946 = vpack.c.bf16 %v6746, %v6738
    %v6947 = vpack.c.bf16 %v6747, %v6739
    %v6948 = vpack.c.bf16 %v6748, %v6740
    %v6949 = vpack.c.bf16 %v6749, %v6741
    %v6950 = vpack.c.bf16 %v6750, %v6742
    %v6951 = vpack.c.bf16 %v6759, %v6751
    %v6952 = vpack.c.bf16 %v6760, %v6752
    %v6953 = vpack.c.bf16 %v6761, %v6753
    %v6954 = vpack.c.bf16 %v6762, %v6754
    %v6955 = vpack.c.bf16 %v6763, %v6755
    %v6956 = vpack.c.bf16 %v6764, %v6756
    %v6957 = vpack.c.bf16 %v6765, %v6757
    %v6958 = vpack.c.bf16 %v6766, %v6758
    %v6959 = vpack.c.bf16 %v6775, %v6767
    %v6960 = vpack.c.bf16 %v6776, %v6768
    %v6961 = vpack.c.bf16 %v6777, %v6769
    %v6962 = vpack.c.bf16 %v6778, %v6770
    %v6963 = vpack.c.bf16 %v6779, %v6771
    %v6964 = vpack.c.bf16 %v6780, %v6772
    %v6965 = vpack.c.bf16 %v6781, %v6773
    %v6966 = vpack.c.bf16 %v6782, %v6774
    %v6967 = vpack.c.bf16 %v6791, %v6783
    %v6968 = vpack.c.bf16 %v6792, %v6784
    %v6969 = vpack.c.bf16 %v6793, %v6785
    %v6970 = vpack.c.bf16 %v6794, %v6786
    %v6971 = vpack.c.bf16 %v6795, %v6787
    %v6972 = vpack.c.bf16 %v6796, %v6788
    %v6973 = vpack.c.bf16 %v6797, %v6789
    %v6974 = vpack.c.bf16 %v6798, %v6790
    %v6975 = vpack.c.bf16 %v6807, %v6799
    %v6976 = vpack.c.bf16 %v6808, %v6800
    %v6977 = vpack.c.bf16 %v6809, %v6801
    %v6978 = vpack.c.bf16 %v6810, %v6802
    %v6979 = vpack.c.bf16 %v6811, %v6803
    %v6980 = vpack.c.bf16 %v6812, %v6804
    %v6981 = vpack.c.bf16 %v6813, %v6805
    %v6982 = vpack.c.bf16 %v6814, %v6806
    %v6983 = vpack.c.bf16 %v6823, %v6815
    %v6984 = vpack.c.bf16 %v6824, %v6816
    %v6985 = vpack.c.bf16 %v6825, %v6817
    %v6986 = vpack.c.bf16 %v6826, %v6818
    %v6987 = vpack.c.bf16 %v6827, %v6819
    %v6988 = vpack.c.bf16 %v6828, %v6820
    %v6989 = vpack.c.bf16 %v6829, %v6821
    %v6990 = vpack.c.bf16 %v6830, %v6822
    %v6991 = vpack.c.bf16 %v6839, %v6831
    %v6992 = vpack.c.bf16 %v6840, %v6832
    %v6993 = vpack.c.bf16 %v6841, %v6833
    %v6994 = vpack.c.bf16 %v6842, %v6834
    %v6995 = vpack.c.bf16 %v6843, %v6835
    %v6996 = vpack.c.bf16 %v6844, %v6836
    %v6997 = vpack.c.bf16 %v6845, %v6837
    %v6998 = vpack.c.bf16 %v6846, %v6838
    %v6999 = vpack.c.bf16 %v6855, %v6847
    %v7000 = vpack.c.bf16 %v6856, %v6848
    %v7001 = vpack.c.bf16 %v6857, %v6849
    %v7002 = vpack.c.bf16 %v6858, %v6850
    %v7003 = vpack.c.bf16 %v6859, %v6851
    %v7004 = vpack.c.bf16 %v6860, %v6852
    %v7005 = vpack.c.bf16 %v6861, %v6853
    %v7006 = vpack.c.bf16 %v6862, %v6854
    %v7007 = vpack.c.bf16 %v6871, %v6863
    %v7008 = vpack.c.bf16 %v6872, %v6864
    %v7009 = vpack.c.bf16 %v6873, %v6865
    %v7010 = vpack.c.bf16 %v6874, %v6866
    %v7011 = vpack.c.bf16 %v6875, %v6867
    %v7012 = vpack.c.bf16 %v6876, %v6868
    %v7013 = vpack.c.bf16 %v6877, %v6869
    %v7014 = vpack.c.bf16 %v6878, %v6870
    %v7015 = vpack.c.bf16 %v6887, %v6879
    %v7016 = vpack.c.bf16 %v6888, %v6880
    %v7017 = vpack.c.bf16 %v6889, %v6881
    %v7018 = vpack.c.bf16 %v6890, %v6882
    %v7019 = vpack.c.bf16 %v6891, %v6883
    %v7020 = vpack.c.bf16 %v6892, %v6884
    %v7021 = vpack.c.bf16 %v6893, %v6885
    %v7022 = vpack.c.bf16 %v6894, %v6886
    %v7023 = vld [vmem:[#allocation8] sm:$0xff]
    %v7024 = vld [vmem:[#allocation8 + $0x8] sm:$0xff]
    %v7025 = vld [vmem:[#allocation8 + $0x10] sm:$0xff]
    %v7026 = vld [vmem:[#allocation8 + $0x18] sm:$0xff]
    %v7027 = vld [vmem:[#allocation8 + $0x20] sm:$0xff]
    %v7028 = vld [vmem:[#allocation8 + $0x28] sm:$0xff]
    %v7029 = vld [vmem:[#allocation8 + $0x30] sm:$0xff]
    %v7030 = vld [vmem:[#allocation8 + $0x38] sm:$0xff]
    %v7031 = vld [vmem:[#allocation8 + $0x40] sm:$0xff]
    %v7032 = vld [vmem:[#allocation8 + $0x48] sm:$0xff]
    %v7033 = vld [vmem:[#allocation8 + $0x50] sm:$0xff]
    %v7034 = vld [vmem:[#allocation8 + $0x58] sm:$0xff]
    %v7035 = vld [vmem:[#allocation8 + $0x60] sm:$0xff]
    %v7036 = vld [vmem:[#allocation8 + $0x68] sm:$0xff]
    %v7037 = vld [vmem:[#allocation8 + $0x70] sm:$0xff]
    %v7038 = vld [vmem:[#allocation8 + $0x78] sm:$0xff]
    %v7039 = vld [vmem:[#allocation8 + $0x80] sm:$0xff]
    %v7040 = vld [vmem:[#allocation8 + $0x88] sm:$0xff]
    %v7041 = vld [vmem:[#allocation8 + $0x90] sm:$0xff]
    %v7042 = vld [vmem:[#allocation8 + $0x98] sm:$0xff]
    %v7043 = vld [vmem:[#allocation8 + $0xa0] sm:$0xff]
    %v7044 = vld [vmem:[#allocation8 + $0xa8] sm:$0xff]
    %v7045 = vld [vmem:[#allocation8 + $0xb0] sm:$0xff]
    %v7046 = vld [vmem:[#allocation8 + $0xb8] sm:$0xff]
    %v7047 = vld [vmem:[#allocation8 + $0xc0] sm:$0xff]
    %v7048 = vld [vmem:[#allocation8 + $0xc8] sm:$0xff]
    %v7049 = vld [vmem:[#allocation8 + $0xd0] sm:$0xff]
    %v7050 = vld [vmem:[#allocation8 + $0xd8] sm:$0xff]
    %v7051 = vld [vmem:[#allocation8 + $0xe0] sm:$0xff]
    %v7052 = vld [vmem:[#allocation8 + $0xe8] sm:$0xff]
    %v7053 = vld [vmem:[#allocation8 + $0xf0] sm:$0xff]
    %v7054 = vld [vmem:[#allocation8 + $0xf8] sm:$0xff]
    %v7055 = vld [vmem:[#allocation8 + $0x100] sm:$0xff]
    %v7056 = vld [vmem:[#allocation8 + $0x108] sm:$0xff]
    %v7057 = vld [vmem:[#allocation8 + $0x110] sm:$0xff]
    %v7058 = vld [vmem:[#allocation8 + $0x118] sm:$0xff]
    %v7059 = vld [vmem:[#allocation8 + $0x120] sm:$0xff]
    %v7060 = vld [vmem:[#allocation8 + $0x128] sm:$0xff]
    %v7061 = vld [vmem:[#allocation8 + $0x130] sm:$0xff]
    %v7062 = vld [vmem:[#allocation8 + $0x138] sm:$0xff]
    %v7063 = vld [vmem:[#allocation8 + $0x140] sm:$0xff]
    %v7064 = vld [vmem:[#allocation8 + $0x148] sm:$0xff]
    %v7065 = vld [vmem:[#allocation8 + $0x150] sm:$0xff]
    %v7066 = vld [vmem:[#allocation8 + $0x158] sm:$0xff]
    %v7067 = vld [vmem:[#allocation8 + $0x160] sm:$0xff]
    %v7068 = vld [vmem:[#allocation8 + $0x168] sm:$0xff]
    %v7069 = vld [vmem:[#allocation8 + $0x170] sm:$0xff]
    %v7070 = vld [vmem:[#allocation8 + $0x178] sm:$0xff]
    %v7071 = vld [vmem:[#allocation8 + $0x180] sm:$0xff]
    %v7072 = vld [vmem:[#allocation8 + $0x188] sm:$0xff]
    %v7073 = vld [vmem:[#allocation8 + $0x190] sm:$0xff]
    %v7074 = vld [vmem:[#allocation8 + $0x198] sm:$0xff]
    %v7075 = vld [vmem:[#allocation8 + $0x1a0] sm:$0xff]
    %v7076 = vld [vmem:[#allocation8 + $0x1a8] sm:$0xff]
    %v7077 = vld [vmem:[#allocation8 + $0x1b0] sm:$0xff]
    %v7078 = vld [vmem:[#allocation8 + $0x1b8] sm:$0xff]
    %v7079 = vld [vmem:[#allocation8 + $0x1c0] sm:$0xff]
    %v7080 = vld [vmem:[#allocation8 + $0x1c8] sm:$0xff]
    %v7081 = vld [vmem:[#allocation8 + $0x1d0] sm:$0xff]
    %v7082 = vld [vmem:[#allocation8 + $0x1d8] sm:$0xff]
    %v7083 = vld [vmem:[#allocation8 + $0x1e0] sm:$0xff]
    %v7084 = vld [vmem:[#allocation8 + $0x1e8] sm:$0xff]
    %v7085 = vld [vmem:[#allocation8 + $0x1f0] sm:$0xff]
    %v7086 = vld [vmem:[#allocation8 + $0x1f8] sm:$0xff]
    %v7087 = vld [vmem:[#allocation8 + $0x200] sm:$0xff]
    %v7088 = vld [vmem:[#allocation8 + $0x208] sm:$0xff]
    %v7089 = vld [vmem:[#allocation8 + $0x210] sm:$0xff]
    %v7090 = vld [vmem:[#allocation8 + $0x218] sm:$0xff]
    %v7091 = vld [vmem:[#allocation8 + $0x220] sm:$0xff]
    %v7092 = vld [vmem:[#allocation8 + $0x228] sm:$0xff]
    %v7093 = vld [vmem:[#allocation8 + $0x230] sm:$0xff]
    %v7094 = vld [vmem:[#allocation8 + $0x238] sm:$0xff]
    %v7095 = vld [vmem:[#allocation8 + $0x240] sm:$0xff]
    %v7096 = vld [vmem:[#allocation8 + $0x248] sm:$0xff]
    %v7097 = vld [vmem:[#allocation8 + $0x250] sm:$0xff]
    %v7098 = vld [vmem:[#allocation8 + $0x258] sm:$0xff]
    %v7099 = vld [vmem:[#allocation8 + $0x260] sm:$0xff]
    %v7100 = vld [vmem:[#allocation8 + $0x268] sm:$0xff]
    %v7101 = vld [vmem:[#allocation8 + $0x270] sm:$0xff]
    %v7102 = vld [vmem:[#allocation8 + $0x278] sm:$0xff]
    %v7103 = vld [vmem:[#allocation8 + $0x280] sm:$0xff]
    %v7104 = vld [vmem:[#allocation8 + $0x288] sm:$0xff]
    %v7105 = vld [vmem:[#allocation8 + $0x290] sm:$0xff]
    %v7106 = vld [vmem:[#allocation8 + $0x298] sm:$0xff]
    %v7107 = vld [vmem:[#allocation8 + $0x2a0] sm:$0xff]
    %v7108 = vld [vmem:[#allocation8 + $0x2a8] sm:$0xff]
    %v7109 = vld [vmem:[#allocation8 + $0x2b0] sm:$0xff]
    %v7110 = vld [vmem:[#allocation8 + $0x2b8] sm:$0xff]
    %v7111 = vld [vmem:[#allocation8 + $0x2c0] sm:$0xff]
    %v7112 = vld [vmem:[#allocation8 + $0x2c8] sm:$0xff]
    %v7113 = vld [vmem:[#allocation8 + $0x2d0] sm:$0xff]
    %v7114 = vld [vmem:[#allocation8 + $0x2d8] sm:$0xff]
    %v7115 = vld [vmem:[#allocation8 + $0x2e0] sm:$0xff]
    %v7116 = vld [vmem:[#allocation8 + $0x2e8] sm:$0xff]
    %v7117 = vld [vmem:[#allocation8 + $0x2f0] sm:$0xff]
    %v7118 = vld [vmem:[#allocation8 + $0x2f8] sm:$0xff]
    %v7119 = vld [vmem:[#allocation8 + $0x300] sm:$0xff]
    %v7120 = vld [vmem:[#allocation8 + $0x308] sm:$0xff]
    %v7121 = vld [vmem:[#allocation8 + $0x310] sm:$0xff]
    %v7122 = vld [vmem:[#allocation8 + $0x318] sm:$0xff]
    %v7123 = vld [vmem:[#allocation8 + $0x320] sm:$0xff]
    %v7124 = vld [vmem:[#allocation8 + $0x328] sm:$0xff]
    %v7125 = vld [vmem:[#allocation8 + $0x330] sm:$0xff]
    %v7126 = vld [vmem:[#allocation8 + $0x338] sm:$0xff]
    %v7127 = vld [vmem:[#allocation8 + $0x340] sm:$0xff]
    %v7128 = vld [vmem:[#allocation8 + $0x348] sm:$0xff]
    %v7129 = vld [vmem:[#allocation8 + $0x350] sm:$0xff]
    %v7130 = vld [vmem:[#allocation8 + $0x358] sm:$0xff]
    %v7131 = vld [vmem:[#allocation8 + $0x360] sm:$0xff]
    %v7132 = vld [vmem:[#allocation8 + $0x368] sm:$0xff]
    %v7133 = vld [vmem:[#allocation8 + $0x370] sm:$0xff]
    %v7134 = vld [vmem:[#allocation8 + $0x378] sm:$0xff]
    %v7135 = vld [vmem:[#allocation8 + $0x380] sm:$0xff]
    %v7136 = vld [vmem:[#allocation8 + $0x388] sm:$0xff]
    %v7137 = vld [vmem:[#allocation8 + $0x390] sm:$0xff]
    %v7138 = vld [vmem:[#allocation8 + $0x398] sm:$0xff]
    %v7139 = vld [vmem:[#allocation8 + $0x3a0] sm:$0xff]
    %v7140 = vld [vmem:[#allocation8 + $0x3a8] sm:$0xff]
    %v7141 = vld [vmem:[#allocation8 + $0x3b0] sm:$0xff]
    %v7142 = vld [vmem:[#allocation8 + $0x3b8] sm:$0xff]
    %v7143 = vld [vmem:[#allocation8 + $0x3c0] sm:$0xff]
    %v7144 = vld [vmem:[#allocation8 + $0x3c8] sm:$0xff]
    %v7145 = vld [vmem:[#allocation8 + $0x3d0] sm:$0xff]
    %v7146 = vld [vmem:[#allocation8 + $0x3d8] sm:$0xff]
    %v7147 = vld [vmem:[#allocation8 + $0x3e0] sm:$0xff]
    %v7148 = vld [vmem:[#allocation8 + $0x3e8] sm:$0xff]
    %v7149 = vld [vmem:[#allocation8 + $0x3f0] sm:$0xff]
    %v7150 = vld [vmem:[#allocation8 + $0x3f8] sm:$0xff]
    %v7151 = vld [vmem:[#allocation8 + $0x400] sm:$0xff]
    %v7152 = vld [vmem:[#allocation8 + $0x408] sm:$0xff]
    %v7153 = vld [vmem:[#allocation8 + $0x410] sm:$0xff]
    %v7154 = vld [vmem:[#allocation8 + $0x418] sm:$0xff]
    %v7155 = vld [vmem:[#allocation8 + $0x420] sm:$0xff]
    %v7156 = vld [vmem:[#allocation8 + $0x428] sm:$0xff]
    %v7157 = vld [vmem:[#allocation8 + $0x430] sm:$0xff]
    %v7158 = vld [vmem:[#allocation8 + $0x438] sm:$0xff]
    %v7159 = vld [vmem:[#allocation8 + $0x440] sm:$0xff]
    %v7160 = vld [vmem:[#allocation8 + $0x448] sm:$0xff]
    %v7161 = vld [vmem:[#allocation8 + $0x450] sm:$0xff]
    %v7162 = vld [vmem:[#allocation8 + $0x458] sm:$0xff]
    %v7163 = vld [vmem:[#allocation8 + $0x460] sm:$0xff]
    %v7164 = vld [vmem:[#allocation8 + $0x468] sm:$0xff]
    %v7165 = vld [vmem:[#allocation8 + $0x470] sm:$0xff]
    %v7166 = vld [vmem:[#allocation8 + $0x478] sm:$0xff]
    %v7167 = vld [vmem:[#allocation8 + $0x480] sm:$0xff]
    %v7168 = vld [vmem:[#allocation8 + $0x488] sm:$0xff]
    %v7169 = vld [vmem:[#allocation8 + $0x490] sm:$0xff]
    %v7170 = vld [vmem:[#allocation8 + $0x498] sm:$0xff]
    %v7171 = vld [vmem:[#allocation8 + $0x4a0] sm:$0xff]
    %v7172 = vld [vmem:[#allocation8 + $0x4a8] sm:$0xff]
    %v7173 = vld [vmem:[#allocation8 + $0x4b0] sm:$0xff]
    %v7174 = vld [vmem:[#allocation8 + $0x4b8] sm:$0xff]
    %v7175 = vld [vmem:[#allocation8 + $0x4c0] sm:$0xff]
    %v7176 = vld [vmem:[#allocation8 + $0x4c8] sm:$0xff]
    %v7177 = vld [vmem:[#allocation8 + $0x4d0] sm:$0xff]
    %v7178 = vld [vmem:[#allocation8 + $0x4d8] sm:$0xff]
    %v7179 = vld [vmem:[#allocation8 + $0x4e0] sm:$0xff]
    %v7180 = vld [vmem:[#allocation8 + $0x4e8] sm:$0xff]
    %v7181 = vld [vmem:[#allocation8 + $0x4f0] sm:$0xff]
    %v7182 = vld [vmem:[#allocation8 + $0x4f8] sm:$0xff]
    %v7183 = vld [vmem:[#allocation8 + $0x500] sm:$0xff]
    %v7184 = vld [vmem:[#allocation8 + $0x508] sm:$0xff]
    %v7185 = vld [vmem:[#allocation8 + $0x510] sm:$0xff]
    %v7186 = vld [vmem:[#allocation8 + $0x518] sm:$0xff]
    %v7187 = vld [vmem:[#allocation8 + $0x520] sm:$0xff]
    %v7188 = vld [vmem:[#allocation8 + $0x528] sm:$0xff]
    %v7189 = vld [vmem:[#allocation8 + $0x530] sm:$0xff]
    %v7190 = vld [vmem:[#allocation8 + $0x538] sm:$0xff]
    %v7191 = vld [vmem:[#allocation8 + $0x540] sm:$0xff]
    %v7192 = vld [vmem:[#allocation8 + $0x548] sm:$0xff]
    %v7193 = vld [vmem:[#allocation8 + $0x550] sm:$0xff]
    %v7194 = vld [vmem:[#allocation8 + $0x558] sm:$0xff]
    %v7195 = vld [vmem:[#allocation8 + $0x560] sm:$0xff]
    %v7196 = vld [vmem:[#allocation8 + $0x568] sm:$0xff]
    %v7197 = vld [vmem:[#allocation8 + $0x570] sm:$0xff]
    %v7198 = vld [vmem:[#allocation8 + $0x578] sm:$0xff]
    %v7199 = vld [vmem:[#allocation8 + $0x580] sm:$0xff]
    %v7200 = vld [vmem:[#allocation8 + $0x588] sm:$0xff]
    %v7201 = vld [vmem:[#allocation8 + $0x590] sm:$0xff]
    %v7202 = vld [vmem:[#allocation8 + $0x598] sm:$0xff]
    %v7203 = vld [vmem:[#allocation8 + $0x5a0] sm:$0xff]
    %v7204 = vld [vmem:[#allocation8 + $0x5a8] sm:$0xff]
    %v7205 = vld [vmem:[#allocation8 + $0x5b0] sm:$0xff]
    %v7206 = vld [vmem:[#allocation8 + $0x5b8] sm:$0xff]
    %v7207 = vld [vmem:[#allocation8 + $0x5c0] sm:$0xff]
    %v7208 = vld [vmem:[#allocation8 + $0x5c8] sm:$0xff]
    %v7209 = vld [vmem:[#allocation8 + $0x5d0] sm:$0xff]
    %v7210 = vld [vmem:[#allocation8 + $0x5d8] sm:$0xff]
    %v7211 = vld [vmem:[#allocation8 + $0x5e0] sm:$0xff]
    %v7212 = vld [vmem:[#allocation8 + $0x5e8] sm:$0xff]
    %v7213 = vld [vmem:[#allocation8 + $0x5f0] sm:$0xff]
    %v7214 = vld [vmem:[#allocation8 + $0x5f8] sm:$0xff]
    %v7215 = vld [vmem:[#allocation8 + $0x600] sm:$0xff]
    %v7216 = vld [vmem:[#allocation8 + $0x608] sm:$0xff]
    %v7217 = vld [vmem:[#allocation8 + $0x610] sm:$0xff]
    %v7218 = vld [vmem:[#allocation8 + $0x618] sm:$0xff]
    %v7219 = vld [vmem:[#allocation8 + $0x620] sm:$0xff]
    %v7220 = vld [vmem:[#allocation8 + $0x628] sm:$0xff]
    %v7221 = vld [vmem:[#allocation8 + $0x630] sm:$0xff]
    %v7222 = vld [vmem:[#allocation8 + $0x638] sm:$0xff]
    %v7223 = vld [vmem:[#allocation8 + $0x640] sm:$0xff]
    %v7224 = vld [vmem:[#allocation8 + $0x648] sm:$0xff]
    %v7225 = vld [vmem:[#allocation8 + $0x650] sm:$0xff]
    %v7226 = vld [vmem:[#allocation8 + $0x658] sm:$0xff]
    %v7227 = vld [vmem:[#allocation8 + $0x660] sm:$0xff]
    %v7228 = vld [vmem:[#allocation8 + $0x668] sm:$0xff]
    %v7229 = vld [vmem:[#allocation8 + $0x670] sm:$0xff]
    %v7230 = vld [vmem:[#allocation8 + $0x678] sm:$0xff]
    %v7231 = vld [vmem:[#allocation8 + $0x680] sm:$0xff]
    %v7232 = vld [vmem:[#allocation8 + $0x688] sm:$0xff]
    %v7233 = vld [vmem:[#allocation8 + $0x690] sm:$0xff]
    %v7234 = vld [vmem:[#allocation8 + $0x698] sm:$0xff]
    %v7235 = vld [vmem:[#allocation8 + $0x6a0] sm:$0xff]
    %v7236 = vld [vmem:[#allocation8 + $0x6a8] sm:$0xff]
    %v7237 = vld [vmem:[#allocation8 + $0x6b0] sm:$0xff]
    %v7238 = vld [vmem:[#allocation8 + $0x6b8] sm:$0xff]
    %v7239 = vld [vmem:[#allocation8 + $0x6c0] sm:$0xff]
    %v7240 = vld [vmem:[#allocation8 + $0x6c8] sm:$0xff]
    %v7241 = vld [vmem:[#allocation8 + $0x6d0] sm:$0xff]
    %v7242 = vld [vmem:[#allocation8 + $0x6d8] sm:$0xff]
    %v7243 = vld [vmem:[#allocation8 + $0x6e0] sm:$0xff]
    %v7244 = vld [vmem:[#allocation8 + $0x6e8] sm:$0xff]
    %v7245 = vld [vmem:[#allocation8 + $0x6f0] sm:$0xff]
    %v7246 = vld [vmem:[#allocation8 + $0x6f8] sm:$0xff]
    %v7247 = vld [vmem:[#allocation8 + $0x700] sm:$0xff]
    %v7248 = vld [vmem:[#allocation8 + $0x708] sm:$0xff]
    %v7249 = vld [vmem:[#allocation8 + $0x710] sm:$0xff]
    %v7250 = vld [vmem:[#allocation8 + $0x718] sm:$0xff]
    %v7251 = vld [vmem:[#allocation8 + $0x720] sm:$0xff]
    %v7252 = vld [vmem:[#allocation8 + $0x728] sm:$0xff]
    %v7253 = vld [vmem:[#allocation8 + $0x730] sm:$0xff]
    %v7254 = vld [vmem:[#allocation8 + $0x738] sm:$0xff]
    %v7255 = vld [vmem:[#allocation8 + $0x740] sm:$0xff]
    %v7256 = vld [vmem:[#allocation8 + $0x748] sm:$0xff]
    %v7257 = vld [vmem:[#allocation8 + $0x750] sm:$0xff]
    %v7258 = vld [vmem:[#allocation8 + $0x758] sm:$0xff]
    %v7259 = vld [vmem:[#allocation8 + $0x760] sm:$0xff]
    %v7260 = vld [vmem:[#allocation8 + $0x768] sm:$0xff]
    %v7261 = vld [vmem:[#allocation8 + $0x770] sm:$0xff]
    %v7262 = vld [vmem:[#allocation8 + $0x778] sm:$0xff]
    %v7263 = vld [vmem:[#allocation8 + $0x780] sm:$0xff]
    %v7264 = vld [vmem:[#allocation8 + $0x788] sm:$0xff]
    %v7265 = vld [vmem:[#allocation8 + $0x790] sm:$0xff]
    %v7266 = vld [vmem:[#allocation8 + $0x798] sm:$0xff]
    %v7267 = vld [vmem:[#allocation8 + $0x7a0] sm:$0xff]
    %v7268 = vld [vmem:[#allocation8 + $0x7a8] sm:$0xff]
    %v7269 = vld [vmem:[#allocation8 + $0x7b0] sm:$0xff]
    %v7270 = vld [vmem:[#allocation8 + $0x7b8] sm:$0xff]
    %v7271 = vld [vmem:[#allocation8 + $0x7c0] sm:$0xff]
    %v7272 = vld [vmem:[#allocation8 + $0x7c8] sm:$0xff]
    %v7273 = vld [vmem:[#allocation8 + $0x7d0] sm:$0xff]
    %v7274 = vld [vmem:[#allocation8 + $0x7d8] sm:$0xff]
    %v7275 = vld [vmem:[#allocation8 + $0x7e0] sm:$0xff]
    %v7276 = vld [vmem:[#allocation8 + $0x7e8] sm:$0xff]
    %v7277 = vld [vmem:[#allocation8 + $0x7f0] sm:$0xff]
    %v7278 = vld [vmem:[#allocation8 + $0x7f8] sm:$0xff]
    %v7279 = vld [vmem:[#allocation10] sm:$0xf]
    %v7281 = vlaneseq
    %v7282 = vshrl.u32 %v7281, 7
    %v7283 = vsub.s32 0, %v7282
    %v7284 = vrot.slane %v7279, %v7283
    %v7285 = vlaneseq
    %v7286 = vshrl.u32 %v7285, 7
    %v7287 = vsub.s32 1, %v7286
    %v7288 = vrot.slane %v7279, %v7287
    %v7289 = vlaneseq
    %v7290 = vshrl.u32 %v7289, 7
    %v7291 = vsub.s32 2, %v7290
    %v7292 = vrot.slane %v7279, %v7291
    %v7293 = vlaneseq
    %v7294 = vshrl.u32 %v7293, 7
    %v7295 = vsub.s32 3, %v7294
    %v7296 = vrot.slane %v7279, %v7295
    %v7557 = vunpack.c.l.b16 %v7023
    %v7558 = vunpack.c.h.b16 %v7023
    %v7559 = vunpack.c.l.b16 %v7024
    %v7560 = vunpack.c.h.b16 %v7024
    %v7561 = vunpack.c.l.b16 %v7025
    %v7562 = vunpack.c.h.b16 %v7025
    %v7563 = vunpack.c.l.b16 %v7026
    %v7564 = vunpack.c.h.b16 %v7026
    %v7565 = vunpack.c.l.b16 %v7027
    %v7566 = vunpack.c.h.b16 %v7027
    %v7567 = vunpack.c.l.b16 %v7028
    %v7568 = vunpack.c.h.b16 %v7028
    %v7569 = vunpack.c.l.b16 %v7029
    %v7570 = vunpack.c.h.b16 %v7029
    %v7571 = vunpack.c.l.b16 %v7030
    %v7572 = vunpack.c.h.b16 %v7030
    %v7573 = vunpack.c.l.b16 %v7031
    %v7574 = vunpack.c.h.b16 %v7031
    %v7575 = vunpack.c.l.b16 %v7032
    %v7576 = vunpack.c.h.b16 %v7032
    %v7577 = vunpack.c.l.b16 %v7033
    %v7578 = vunpack.c.h.b16 %v7033
    %v7579 = vunpack.c.l.b16 %v7034
    %v7580 = vunpack.c.h.b16 %v7034
    %v7581 = vunpack.c.l.b16 %v7035
    %v7582 = vunpack.c.h.b16 %v7035
    %v7583 = vunpack.c.l.b16 %v7036
    %v7584 = vunpack.c.h.b16 %v7036
    %v7585 = vunpack.c.l.b16 %v7037
    %v7586 = vunpack.c.h.b16 %v7037
    %v7587 = vunpack.c.l.b16 %v7038
    %v7588 = vunpack.c.h.b16 %v7038
    %v7589 = vunpack.c.l.b16 %v7039
    %v7590 = vunpack.c.h.b16 %v7039
    %v7591 = vunpack.c.l.b16 %v7040
    %v7592 = vunpack.c.h.b16 %v7040
    %v7593 = vunpack.c.l.b16 %v7041
    %v7594 = vunpack.c.h.b16 %v7041
    %v7595 = vunpack.c.l.b16 %v7042
    %v7596 = vunpack.c.h.b16 %v7042
    %v7597 = vunpack.c.l.b16 %v7043
    %v7598 = vunpack.c.h.b16 %v7043
    %v7599 = vunpack.c.l.b16 %v7044
    %v7600 = vunpack.c.h.b16 %v7044
    %v7601 = vunpack.c.l.b16 %v7045
    %v7602 = vunpack.c.h.b16 %v7045
    %v7603 = vunpack.c.l.b16 %v7046
    %v7604 = vunpack.c.h.b16 %v7046
    %v7605 = vunpack.c.l.b16 %v7047
    %v7606 = vunpack.c.h.b16 %v7047
    %v7607 = vunpack.c.l.b16 %v7048
    %v7608 = vunpack.c.h.b16 %v7048
    %v7609 = vunpack.c.l.b16 %v7049
    %v7610 = vunpack.c.h.b16 %v7049
    %v7611 = vunpack.c.l.b16 %v7050
    %v7612 = vunpack.c.h.b16 %v7050
    %v7613 = vunpack.c.l.b16 %v7051
    %v7614 = vunpack.c.h.b16 %v7051
    %v7615 = vunpack.c.l.b16 %v7052
    %v7616 = vunpack.c.h.b16 %v7052
    %v7617 = vunpack.c.l.b16 %v7053
    %v7618 = vunpack.c.h.b16 %v7053
    %v7619 = vunpack.c.l.b16 %v7054
    %v7620 = vunpack.c.h.b16 %v7054
    %v7621 = vunpack.c.l.b16 %v7055
    %v7622 = vunpack.c.h.b16 %v7055
    %v7623 = vunpack.c.l.b16 %v7056
    %v7624 = vunpack.c.h.b16 %v7056
    %v7625 = vunpack.c.l.b16 %v7057
    %v7626 = vunpack.c.h.b16 %v7057
    %v7627 = vunpack.c.l.b16 %v7058
    %v7628 = vunpack.c.h.b16 %v7058
    %v7629 = vunpack.c.l.b16 %v7059
    %v7630 = vunpack.c.h.b16 %v7059
    %v7631 = vunpack.c.l.b16 %v7060
    %v7632 = vunpack.c.h.b16 %v7060
    %v7633 = vunpack.c.l.b16 %v7061
    %v7634 = vunpack.c.h.b16 %v7061
    %v7635 = vunpack.c.l.b16 %v7062
    %v7636 = vunpack.c.h.b16 %v7062
    %v7637 = vunpack.c.l.b16 %v7063
    %v7638 = vunpack.c.h.b16 %v7063
    %v7639 = vunpack.c.l.b16 %v7064
    %v7640 = vunpack.c.h.b16 %v7064
    %v7641 = vunpack.c.l.b16 %v7065
    %v7642 = vunpack.c.h.b16 %v7065
    %v7643 = vunpack.c.l.b16 %v7066
    %v7644 = vunpack.c.h.b16 %v7066
    %v7645 = vunpack.c.l.b16 %v7067
    %v7646 = vunpack.c.h.b16 %v7067
    %v7647 = vunpack.c.l.b16 %v7068
    %v7648 = vunpack.c.h.b16 %v7068
    %v7649 = vunpack.c.l.b16 %v7069
    %v7650 = vunpack.c.h.b16 %v7069
    %v7651 = vunpack.c.l.b16 %v7070
    %v7652 = vunpack.c.h.b16 %v7070
    %v7653 = vunpack.c.l.b16 %v7071
    %v7654 = vunpack.c.h.b16 %v7071
    %v7655 = vunpack.c.l.b16 %v7072
    %v7656 = vunpack.c.h.b16 %v7072
    %v7657 = vunpack.c.l.b16 %v7073
    %v7658 = vunpack.c.h.b16 %v7073
    %v7659 = vunpack.c.l.b16 %v7074
    %v7660 = vunpack.c.h.b16 %v7074
    %v7661 = vunpack.c.l.b16 %v7075
    %v7662 = vunpack.c.h.b16 %v7075
    %v7663 = vunpack.c.l.b16 %v7076
    %v7664 = vunpack.c.h.b16 %v7076
    %v7665 = vunpack.c.l.b16 %v7077
    %v7666 = vunpack.c.h.b16 %v7077
    %v7667 = vunpack.c.l.b16 %v7078
    %v7668 = vunpack.c.h.b16 %v7078
    %v7669 = vunpack.c.l.b16 %v7079
    %v7670 = vunpack.c.h.b16 %v7079
    %v7671 = vunpack.c.l.b16 %v7080
    %v7672 = vunpack.c.h.b16 %v7080
    %v7673 = vunpack.c.l.b16 %v7081
    %v7674 = vunpack.c.h.b16 %v7081
    %v7675 = vunpack.c.l.b16 %v7082
    %v7676 = vunpack.c.h.b16 %v7082
    %v7677 = vunpack.c.l.b16 %v7083
    %v7678 = vunpack.c.h.b16 %v7083
    %v7679 = vunpack.c.l.b16 %v7084
    %v7680 = vunpack.c.h.b16 %v7084
    %v7681 = vunpack.c.l.b16 %v7085
    %v7682 = vunpack.c.h.b16 %v7085
    %v7683 = vunpack.c.l.b16 %v7086
    %v7684 = vunpack.c.h.b16 %v7086
    %v7685 = vunpack.c.l.b16 %v7087
    %v7686 = vunpack.c.h.b16 %v7087
    %v7687 = vunpack.c.l.b16 %v7088
    %v7688 = vunpack.c.h.b16 %v7088
    %v7689 = vunpack.c.l.b16 %v7089
    %v7690 = vunpack.c.h.b16 %v7089
    %v7691 = vunpack.c.l.b16 %v7090
    %v7692 = vunpack.c.h.b16 %v7090
    %v7693 = vunpack.c.l.b16 %v7091
    %v7694 = vunpack.c.h.b16 %v7091
    %v7695 = vunpack.c.l.b16 %v7092
    %v7696 = vunpack.c.h.b16 %v7092
    %v7697 = vunpack.c.l.b16 %v7093
    %v7698 = vunpack.c.h.b16 %v7093
    %v7699 = vunpack.c.l.b16 %v7094
    %v7700 = vunpack.c.h.b16 %v7094
    %v7701 = vunpack.c.l.b16 %v7095
    %v7702 = vunpack.c.h.b16 %v7095
    %v7703 = vunpack.c.l.b16 %v7096
    %v7704 = vunpack.c.h.b16 %v7096
    %v7705 = vunpack.c.l.b16 %v7097
    %v7706 = vunpack.c.h.b16 %v7097
    %v7707 = vunpack.c.l.b16 %v7098
    %v7708 = vunpack.c.h.b16 %v7098
    %v7709 = vunpack.c.l.b16 %v7099
    %v7710 = vunpack.c.h.b16 %v7099
    %v7711 = vunpack.c.l.b16 %v7100
    %v7712 = vunpack.c.h.b16 %v7100
    %v7713 = vunpack.c.l.b16 %v7101
    %v7714 = vunpack.c.h.b16 %v7101
    %v7715 = vunpack.c.l.b16 %v7102
    %v7716 = vunpack.c.h.b16 %v7102
    %v7717 = vunpack.c.l.b16 %v7103
    %v7718 = vunpack.c.h.b16 %v7103
    %v7719 = vunpack.c.l.b16 %v7104
    %v7720 = vunpack.c.h.b16 %v7104
    %v7721 = vunpack.c.l.b16 %v7105
    %v7722 = vunpack.c.h.b16 %v7105
    %v7723 = vunpack.c.l.b16 %v7106
    %v7724 = vunpack.c.h.b16 %v7106
    %v7725 = vunpack.c.l.b16 %v7107
    %v7726 = vunpack.c.h.b16 %v7107
    %v7727 = vunpack.c.l.b16 %v7108
    %v7728 = vunpack.c.h.b16 %v7108
    %v7729 = vunpack.c.l.b16 %v7109
    %v7730 = vunpack.c.h.b16 %v7109
    %v7731 = vunpack.c.l.b16 %v7110
    %v7732 = vunpack.c.h.b16 %v7110
    %v7733 = vunpack.c.l.b16 %v7111
    %v7734 = vunpack.c.h.b16 %v7111
    %v7735 = vunpack.c.l.b16 %v7112
    %v7736 = vunpack.c.h.b16 %v7112
    %v7737 = vunpack.c.l.b16 %v7113
    %v7738 = vunpack.c.h.b16 %v7113
    %v7739 = vunpack.c.l.b16 %v7114
    %v7740 = vunpack.c.h.b16 %v7114
    %v7741 = vunpack.c.l.b16 %v7115
    %v7742 = vunpack.c.h.b16 %v7115
    %v7743 = vunpack.c.l.b16 %v7116
    %v7744 = vunpack.c.h.b16 %v7116
    %v7745 = vunpack.c.l.b16 %v7117
    %v7746 = vunpack.c.h.b16 %v7117
    %v7747 = vunpack.c.l.b16 %v7118
    %v7748 = vunpack.c.h.b16 %v7118
    %v7749 = vunpack.c.l.b16 %v7119
    %v7750 = vunpack.c.h.b16 %v7119
    %v7751 = vunpack.c.l.b16 %v7120
    %v7752 = vunpack.c.h.b16 %v7120
    %v7753 = vunpack.c.l.b16 %v7121
    %v7754 = vunpack.c.h.b16 %v7121
    %v7755 = vunpack.c.l.b16 %v7122
    %v7756 = vunpack.c.h.b16 %v7122
    %v7757 = vunpack.c.l.b16 %v7123
    %v7758 = vunpack.c.h.b16 %v7123
    %v7759 = vunpack.c.l.b16 %v7124
    %v7760 = vunpack.c.h.b16 %v7124
    %v7761 = vunpack.c.l.b16 %v7125
    %v7762 = vunpack.c.h.b16 %v7125
    %v7763 = vunpack.c.l.b16 %v7126
    %v7764 = vunpack.c.h.b16 %v7126
    %v7765 = vunpack.c.l.b16 %v7127
    %v7766 = vunpack.c.h.b16 %v7127
    %v7767 = vunpack.c.l.b16 %v7128
    %v7768 = vunpack.c.h.b16 %v7128
    %v7769 = vunpack.c.l.b16 %v7129
    %v7770 = vunpack.c.h.b16 %v7129
    %v7771 = vunpack.c.l.b16 %v7130
    %v7772 = vunpack.c.h.b16 %v7130
    %v7773 = vunpack.c.l.b16 %v7131
    %v7774 = vunpack.c.h.b16 %v7131
    %v7775 = vunpack.c.l.b16 %v7132
    %v7776 = vunpack.c.h.b16 %v7132
    %v7777 = vunpack.c.l.b16 %v7133
    %v7778 = vunpack.c.h.b16 %v7133
    %v7779 = vunpack.c.l.b16 %v7134
    %v7780 = vunpack.c.h.b16 %v7134
    %v7781 = vunpack.c.l.b16 %v7135
    %v7782 = vunpack.c.h.b16 %v7135
    %v7783 = vunpack.c.l.b16 %v7136
    %v7784 = vunpack.c.h.b16 %v7136
    %v7785 = vunpack.c.l.b16 %v7137
    %v7786 = vunpack.c.h.b16 %v7137
    %v7787 = vunpack.c.l.b16 %v7138
    %v7788 = vunpack.c.h.b16 %v7138
    %v7789 = vunpack.c.l.b16 %v7139
    %v7790 = vunpack.c.h.b16 %v7139
    %v7791 = vunpack.c.l.b16 %v7140
    %v7792 = vunpack.c.h.b16 %v7140
    %v7793 = vunpack.c.l.b16 %v7141
    %v7794 = vunpack.c.h.b16 %v7141
    %v7795 = vunpack.c.l.b16 %v7142
    %v7796 = vunpack.c.h.b16 %v7142
    %v7797 = vunpack.c.l.b16 %v7143
    %v7798 = vunpack.c.h.b16 %v7143
    %v7799 = vunpack.c.l.b16 %v7144
    %v7800 = vunpack.c.h.b16 %v7144
    %v7801 = vunpack.c.l.b16 %v7145
    %v7802 = vunpack.c.h.b16 %v7145
    %v7803 = vunpack.c.l.b16 %v7146
    %v7804 = vunpack.c.h.b16 %v7146
    %v7805 = vunpack.c.l.b16 %v7147
    %v7806 = vunpack.c.h.b16 %v7147
    %v7807 = vunpack.c.l.b16 %v7148
    %v7808 = vunpack.c.h.b16 %v7148
    %v7809 = vunpack.c.l.b16 %v7149
    %v7810 = vunpack.c.h.b16 %v7149
    %v7811 = vunpack.c.l.b16 %v7150
    %v7812 = vunpack.c.h.b16 %v7150
    %v7813 = vunpack.c.l.b16 %v7151
    %v7814 = vunpack.c.h.b16 %v7151
    %v7815 = vunpack.c.l.b16 %v7152
    %v7816 = vunpack.c.h.b16 %v7152
    %v7817 = vunpack.c.l.b16 %v7153
    %v7818 = vunpack.c.h.b16 %v7153
    %v7819 = vunpack.c.l.b16 %v7154
    %v7820 = vunpack.c.h.b16 %v7154
    %v7821 = vunpack.c.l.b16 %v7155
    %v7822 = vunpack.c.h.b16 %v7155
    %v7823 = vunpack.c.l.b16 %v7156
    %v7824 = vunpack.c.h.b16 %v7156
    %v7825 = vunpack.c.l.b16 %v7157
    %v7826 = vunpack.c.h.b16 %v7157
    %v7827 = vunpack.c.l.b16 %v7158
    %v7828 = vunpack.c.h.b16 %v7158
    %v7829 = vunpack.c.l.b16 %v7159
    %v7830 = vunpack.c.h.b16 %v7159
    %v7831 = vunpack.c.l.b16 %v7160
    %v7832 = vunpack.c.h.b16 %v7160
    %v7833 = vunpack.c.l.b16 %v7161
    %v7834 = vunpack.c.h.b16 %v7161
    %v7835 = vunpack.c.l.b16 %v7162
    %v7836 = vunpack.c.h.b16 %v7162
    %v7837 = vunpack.c.l.b16 %v7163
    %v7838 = vunpack.c.h.b16 %v7163
    %v7839 = vunpack.c.l.b16 %v7164
    %v7840 = vunpack.c.h.b16 %v7164
    %v7841 = vunpack.c.l.b16 %v7165
    %v7842 = vunpack.c.h.b16 %v7165
    %v7843 = vunpack.c.l.b16 %v7166
    %v7844 = vunpack.c.h.b16 %v7166
    %v7845 = vunpack.c.l.b16 %v7167
    %v7846 = vunpack.c.h.b16 %v7167
    %v7847 = vunpack.c.l.b16 %v7168
    %v7848 = vunpack.c.h.b16 %v7168
    %v7849 = vunpack.c.l.b16 %v7169
    %v7850 = vunpack.c.h.b16 %v7169
    %v7851 = vunpack.c.l.b16 %v7170
    %v7852 = vunpack.c.h.b16 %v7170
    %v7853 = vunpack.c.l.b16 %v7171
    %v7854 = vunpack.c.h.b16 %v7171
    %v7855 = vunpack.c.l.b16 %v7172
    %v7856 = vunpack.c.h.b16 %v7172
    %v7857 = vunpack.c.l.b16 %v7173
    %v7858 = vunpack.c.h.b16 %v7173
    %v7859 = vunpack.c.l.b16 %v7174
    %v7860 = vunpack.c.h.b16 %v7174
    %v7861 = vunpack.c.l.b16 %v7175
    %v7862 = vunpack.c.h.b16 %v7175
    %v7863 = vunpack.c.l.b16 %v7176
    %v7864 = vunpack.c.h.b16 %v7176
    %v7865 = vunpack.c.l.b16 %v7177
    %v7866 = vunpack.c.h.b16 %v7177
    %v7867 = vunpack.c.l.b16 %v7178
    %v7868 = vunpack.c.h.b16 %v7178
    %v7869 = vunpack.c.l.b16 %v7179
    %v7870 = vunpack.c.h.b16 %v7179
    %v7871 = vunpack.c.l.b16 %v7180
    %v7872 = vunpack.c.h.b16 %v7180
    %v7873 = vunpack.c.l.b16 %v7181
    %v7874 = vunpack.c.h.b16 %v7181
    %v7875 = vunpack.c.l.b16 %v7182
    %v7876 = vunpack.c.h.b16 %v7182
    %v7877 = vunpack.c.l.b16 %v7183
    %v7878 = vunpack.c.h.b16 %v7183
    %v7879 = vunpack.c.l.b16 %v7184
    %v7880 = vunpack.c.h.b16 %v7184
    %v7881 = vunpack.c.l.b16 %v7185
    %v7882 = vunpack.c.h.b16 %v7185
    %v7883 = vunpack.c.l.b16 %v7186
    %v7884 = vunpack.c.h.b16 %v7186
    %v7885 = vunpack.c.l.b16 %v7187
    %v7886 = vunpack.c.h.b16 %v7187
    %v7887 = vunpack.c.l.b16 %v7188
    %v7888 = vunpack.c.h.b16 %v7188
    %v7889 = vunpack.c.l.b16 %v7189
    %v7890 = vunpack.c.h.b16 %v7189
    %v7891 = vunpack.c.l.b16 %v7190
    %v7892 = vunpack.c.h.b16 %v7190
    %v7893 = vunpack.c.l.b16 %v7191
    %v7894 = vunpack.c.h.b16 %v7191
    %v7895 = vunpack.c.l.b16 %v7192
    %v7896 = vunpack.c.h.b16 %v7192
    %v7897 = vunpack.c.l.b16 %v7193
    %v7898 = vunpack.c.h.b16 %v7193
    %v7899 = vunpack.c.l.b16 %v7194
    %v7900 = vunpack.c.h.b16 %v7194
    %v7901 = vunpack.c.l.b16 %v7195
    %v7902 = vunpack.c.h.b16 %v7195
    %v7903 = vunpack.c.l.b16 %v7196
    %v7904 = vunpack.c.h.b16 %v7196
    %v7905 = vunpack.c.l.b16 %v7197
    %v7906 = vunpack.c.h.b16 %v7197
    %v7907 = vunpack.c.l.b16 %v7198
    %v7908 = vunpack.c.h.b16 %v7198
    %v7909 = vunpack.c.l.b16 %v7199
    %v7910 = vunpack.c.h.b16 %v7199
    %v7911 = vunpack.c.l.b16 %v7200
    %v7912 = vunpack.c.h.b16 %v7200
    %v7913 = vunpack.c.l.b16 %v7201
    %v7914 = vunpack.c.h.b16 %v7201
    %v7915 = vunpack.c.l.b16 %v7202
    %v7916 = vunpack.c.h.b16 %v7202
    %v7917 = vunpack.c.l.b16 %v7203
    %v7918 = vunpack.c.h.b16 %v7203
    %v7919 = vunpack.c.l.b16 %v7204
    %v7920 = vunpack.c.h.b16 %v7204
    %v7921 = vunpack.c.l.b16 %v7205
    %v7922 = vunpack.c.h.b16 %v7205
    %v7923 = vunpack.c.l.b16 %v7206
    %v7924 = vunpack.c.h.b16 %v7206
    %v7925 = vunpack.c.l.b16 %v7207
    %v7926 = vunpack.c.h.b16 %v7207
    %v7927 = vunpack.c.l.b16 %v7208
    %v7928 = vunpack.c.h.b16 %v7208
    %v7929 = vunpack.c.l.b16 %v7209
    %v7930 = vunpack.c.h.b16 %v7209
    %v7931 = vunpack.c.l.b16 %v7210
    %v7932 = vunpack.c.h.b16 %v7210
    %v7933 = vunpack.c.l.b16 %v7211
    %v7934 = vunpack.c.h.b16 %v7211
    %v7935 = vunpack.c.l.b16 %v7212
    %v7936 = vunpack.c.h.b16 %v7212
    %v7937 = vunpack.c.l.b16 %v7213
    %v7938 = vunpack.c.h.b16 %v7213
    %v7939 = vunpack.c.l.b16 %v7214
    %v7940 = vunpack.c.h.b16 %v7214
    %v7941 = vunpack.c.l.b16 %v7215
    %v7942 = vunpack.c.h.b16 %v7215
    %v7943 = vunpack.c.l.b16 %v7216
    %v7944 = vunpack.c.h.b16 %v7216
    %v7945 = vunpack.c.l.b16 %v7217
    %v7946 = vunpack.c.h.b16 %v7217
    %v7947 = vunpack.c.l.b16 %v7218
    %v7948 = vunpack.c.h.b16 %v7218
    %v7949 = vunpack.c.l.b16 %v7219
    %v7950 = vunpack.c.h.b16 %v7219
    %v7951 = vunpack.c.l.b16 %v7220
    %v7952 = vunpack.c.h.b16 %v7220
    %v7953 = vunpack.c.l.b16 %v7221
    %v7954 = vunpack.c.h.b16 %v7221
    %v7955 = vunpack.c.l.b16 %v7222
    %v7956 = vunpack.c.h.b16 %v7222
    %v7957 = vunpack.c.l.b16 %v7223
    %v7958 = vunpack.c.h.b16 %v7223
    %v7959 = vunpack.c.l.b16 %v7224
    %v7960 = vunpack.c.h.b16 %v7224
    %v7961 = vunpack.c.l.b16 %v7225
    %v7962 = vunpack.c.h.b16 %v7225
    %v7963 = vunpack.c.l.b16 %v7226
    %v7964 = vunpack.c.h.b16 %v7226
    %v7965 = vunpack.c.l.b16 %v7227
    %v7966 = vunpack.c.h.b16 %v7227
    %v7967 = vunpack.c.l.b16 %v7228
    %v7968 = vunpack.c.h.b16 %v7228
    %v7969 = vunpack.c.l.b16 %v7229
    %v7970 = vunpack.c.h.b16 %v7229
    %v7971 = vunpack.c.l.b16 %v7230
    %v7972 = vunpack.c.h.b16 %v7230
    %v7973 = vunpack.c.l.b16 %v7231
    %v7974 = vunpack.c.h.b16 %v7231
    %v7975 = vunpack.c.l.b16 %v7232
    %v7976 = vunpack.c.h.b16 %v7232
    %v7977 = vunpack.c.l.b16 %v7233
    %v7978 = vunpack.c.h.b16 %v7233
    %v7979 = vunpack.c.l.b16 %v7234
    %v7980 = vunpack.c.h.b16 %v7234
    %v7981 = vunpack.c.l.b16 %v7235
    %v7982 = vunpack.c.h.b16 %v7235
    %v7983 = vunpack.c.l.b16 %v7236
    %v7984 = vunpack.c.h.b16 %v7236
    %v7985 = vunpack.c.l.b16 %v7237
    %v7986 = vunpack.c.h.b16 %v7237
    %v7987 = vunpack.c.l.b16 %v7238
    %v7988 = vunpack.c.h.b16 %v7238
    %v7989 = vunpack.c.l.b16 %v7239
    %v7990 = vunpack.c.h.b16 %v7239
    %v7991 = vunpack.c.l.b16 %v7240
    %v7992 = vunpack.c.h.b16 %v7240
    %v7993 = vunpack.c.l.b16 %v7241
    %v7994 = vunpack.c.h.b16 %v7241
    %v7995 = vunpack.c.l.b16 %v7242
    %v7996 = vunpack.c.h.b16 %v7242
    %v7997 = vunpack.c.l.b16 %v7243
    %v7998 = vunpack.c.h.b16 %v7243
    %v7999 = vunpack.c.l.b16 %v7244
    %v8000 = vunpack.c.h.b16 %v7244
    %v8001 = vunpack.c.l.b16 %v7245
    %v8002 = vunpack.c.h.b16 %v7245
    %v8003 = vunpack.c.l.b16 %v7246
    %v8004 = vunpack.c.h.b16 %v7246
    %v8005 = vunpack.c.l.b16 %v7247
    %v8006 = vunpack.c.h.b16 %v7247
    %v8007 = vunpack.c.l.b16 %v7248
    %v8008 = vunpack.c.h.b16 %v7248
    %v8009 = vunpack.c.l.b16 %v7249
    %v8010 = vunpack.c.h.b16 %v7249
    %v8011 = vunpack.c.l.b16 %v7250
    %v8012 = vunpack.c.h.b16 %v7250
    %v8013 = vunpack.c.l.b16 %v7251
    %v8014 = vunpack.c.h.b16 %v7251
    %v8015 = vunpack.c.l.b16 %v7252
    %v8016 = vunpack.c.h.b16 %v7252
    %v8017 = vunpack.c.l.b16 %v7253
    %v8018 = vunpack.c.h.b16 %v7253
    %v8019 = vunpack.c.l.b16 %v7254
    %v8020 = vunpack.c.h.b16 %v7254
    %v8021 = vunpack.c.l.b16 %v7255
    %v8022 = vunpack.c.h.b16 %v7255
    %v8023 = vunpack.c.l.b16 %v7256
    %v8024 = vunpack.c.h.b16 %v7256
    %v8025 = vunpack.c.l.b16 %v7257
    %v8026 = vunpack.c.h.b16 %v7257
    %v8027 = vunpack.c.l.b16 %v7258
    %v8028 = vunpack.c.h.b16 %v7258
    %v8029 = vunpack.c.l.b16 %v7259
    %v8030 = vunpack.c.h.b16 %v7259
    %v8031 = vunpack.c.l.b16 %v7260
    %v8032 = vunpack.c.h.b16 %v7260
    %v8033 = vunpack.c.l.b16 %v7261
    %v8034 = vunpack.c.h.b16 %v7261
    %v8035 = vunpack.c.l.b16 %v7262
    %v8036 = vunpack.c.h.b16 %v7262
    %v8037 = vunpack.c.l.b16 %v7263
    %v8038 = vunpack.c.h.b16 %v7263
    %v8039 = vunpack.c.l.b16 %v7264
    %v8040 = vunpack.c.h.b16 %v7264
    %v8041 = vunpack.c.l.b16 %v7265
    %v8042 = vunpack.c.h.b16 %v7265
    %v8043 = vunpack.c.l.b16 %v7266
    %v8044 = vunpack.c.h.b16 %v7266
    %v8045 = vunpack.c.l.b16 %v7267
    %v8046 = vunpack.c.h.b16 %v7267
    %v8047 = vunpack.c.l.b16 %v7268
    %v8048 = vunpack.c.h.b16 %v7268
    %v8049 = vunpack.c.l.b16 %v7269
    %v8050 = vunpack.c.h.b16 %v7269
    %v8051 = vunpack.c.l.b16 %v7270
    %v8052 = vunpack.c.h.b16 %v7270
    %v8053 = vunpack.c.l.b16 %v7271
    %v8054 = vunpack.c.h.b16 %v7271
    %v8055 = vunpack.c.l.b16 %v7272
    %v8056 = vunpack.c.h.b16 %v7272
    %v8057 = vunpack.c.l.b16 %v7273
    %v8058 = vunpack.c.h.b16 %v7273
    %v8059 = vunpack.c.l.b16 %v7274
    %v8060 = vunpack.c.h.b16 %v7274
    %v8061 = vunpack.c.l.b16 %v7275
    %v8062 = vunpack.c.h.b16 %v7275
    %v8063 = vunpack.c.l.b16 %v7276
    %v8064 = vunpack.c.h.b16 %v7276
    %v8065 = vunpack.c.l.b16 %v7277
    %v8066 = vunpack.c.h.b16 %v7277
    %v8067 = vunpack.c.l.b16 %v7278
    %v8068 = vunpack.c.h.b16 %v7278
    %v8069 = vpack.c.b16 %v7561, %v7557
    %v8070 = vpack.c.b16 %v7562, %v7558
    %v8071 = vpack.c.b16 %v7563, %v7559
    %v8072 = vpack.c.b16 %v7564, %v7560
    %v8073 = vpack.c.b16 %v7569, %v7565
    %v8074 = vpack.c.b16 %v7570, %v7566
    %v8075 = vpack.c.b16 %v7571, %v7567
    %v8076 = vpack.c.b16 %v7572, %v7568
    %v8077 = vpack.c.b16 %v7577, %v7573
    %v8078 = vpack.c.b16 %v7578, %v7574
    %v8079 = vpack.c.b16 %v7579, %v7575
    %v8080 = vpack.c.b16 %v7580, %v7576
    %v8081 = vpack.c.b16 %v7585, %v7581
    %v8082 = vpack.c.b16 %v7586, %v7582
    %v8083 = vpack.c.b16 %v7587, %v7583
    %v8084 = vpack.c.b16 %v7588, %v7584
    %v8085 = vpack.c.b16 %v7593, %v7589
    %v8086 = vpack.c.b16 %v7594, %v7590
    %v8087 = vpack.c.b16 %v7595, %v7591
    %v8088 = vpack.c.b16 %v7596, %v7592
    %v8089 = vpack.c.b16 %v7601, %v7597
    %v8090 = vpack.c.b16 %v7602, %v7598
    %v8091 = vpack.c.b16 %v7603, %v7599
    %v8092 = vpack.c.b16 %v7604, %v7600
    %v8093 = vpack.c.b16 %v7609, %v7605
    %v8094 = vpack.c.b16 %v7610, %v7606
    %v8095 = vpack.c.b16 %v7611, %v7607
    %v8096 = vpack.c.b16 %v7612, %v7608
    %v8097 = vpack.c.b16 %v7617, %v7613
    %v8098 = vpack.c.b16 %v7618, %v7614
    %v8099 = vpack.c.b16 %v7619, %v7615
    %v8100 = vpack.c.b16 %v7620, %v7616
    %v8101 = vpack.c.b16 %v7625, %v7621
    %v8102 = vpack.c.b16 %v7626, %v7622
    %v8103 = vpack.c.b16 %v7627, %v7623
    %v8104 = vpack.c.b16 %v7628, %v7624
    %v8105 = vpack.c.b16 %v7633, %v7629
    %v8106 = vpack.c.b16 %v7634, %v7630
    %v8107 = vpack.c.b16 %v7635, %v7631
    %v8108 = vpack.c.b16 %v7636, %v7632
    %v8109 = vpack.c.b16 %v7641, %v7637
    %v8110 = vpack.c.b16 %v7642, %v7638
    %v8111 = vpack.c.b16 %v7643, %v7639
    %v8112 = vpack.c.b16 %v7644, %v7640
    %v8113 = vpack.c.b16 %v7649, %v7645
    %v8114 = vpack.c.b16 %v7650, %v7646
    %v8115 = vpack.c.b16 %v7651, %v7647
    %v8116 = vpack.c.b16 %v7652, %v7648
    %v8117 = vpack.c.b16 %v7657, %v7653
    %v8118 = vpack.c.b16 %v7658, %v7654
    %v8119 = vpack.c.b16 %v7659, %v7655
    %v8120 = vpack.c.b16 %v7660, %v7656
    %v8121 = vpack.c.b16 %v7665, %v7661
    %v8122 = vpack.c.b16 %v7666, %v7662
    %v8123 = vpack.c.b16 %v7667, %v7663
    %v8124 = vpack.c.b16 %v7668, %v7664
    %v8125 = vpack.c.b16 %v7673, %v7669
    %v8126 = vpack.c.b16 %v7674, %v7670
    %v8127 = vpack.c.b16 %v7675, %v7671
    %v8128 = vpack.c.b16 %v7676, %v7672
    %v8129 = vpack.c.b16 %v7681, %v7677
    %v8130 = vpack.c.b16 %v7682, %v7678
    %v8131 = vpack.c.b16 %v7683, %v7679
    %v8132 = vpack.c.b16 %v7684, %v7680
    %v8133 = vpack.c.b16 %v7689, %v7685
    %v8134 = vpack.c.b16 %v7690, %v7686
    %v8135 = vpack.c.b16 %v7691, %v7687
    %v8136 = vpack.c.b16 %v7692, %v7688
    %v8137 = vpack.c.b16 %v7697, %v7693
    %v8138 = vpack.c.b16 %v7698, %v7694
    %v8139 = vpack.c.b16 %v7699, %v7695
    %v8140 = vpack.c.b16 %v7700, %v7696
    %v8141 = vpack.c.b16 %v7705, %v7701
    %v8142 = vpack.c.b16 %v7706, %v7702
    %v8143 = vpack.c.b16 %v7707, %v7703
    %v8144 = vpack.c.b16 %v7708, %v7704
    %v8145 = vpack.c.b16 %v7713, %v7709
    %v8146 = vpack.c.b16 %v7714, %v7710
    %v8147 = vpack.c.b16 %v7715, %v7711
    %v8148 = vpack.c.b16 %v7716, %v7712
    %v8149 = vpack.c.b16 %v7721, %v7717
    %v8150 = vpack.c.b16 %v7722, %v7718
    %v8151 = vpack.c.b16 %v7723, %v7719
    %v8152 = vpack.c.b16 %v7724, %v7720
    %v8153 = vpack.c.b16 %v7729, %v7725
    %v8154 = vpack.c.b16 %v7730, %v7726
    %v8155 = vpack.c.b16 %v7731, %v7727
    %v8156 = vpack.c.b16 %v7732, %v7728
    %v8157 = vpack.c.b16 %v7737, %v7733
    %v8158 = vpack.c.b16 %v7738, %v7734
    %v8159 = vpack.c.b16 %v7739, %v7735
    %v8160 = vpack.c.b16 %v7740, %v7736
    %v8161 = vpack.c.b16 %v7745, %v7741
    %v8162 = vpack.c.b16 %v7746, %v7742
    %v8163 = vpack.c.b16 %v7747, %v7743
    %v8164 = vpack.c.b16 %v7748, %v7744
    %v8165 = vpack.c.b16 %v7753, %v7749
    %v8166 = vpack.c.b16 %v7754, %v7750
    %v8167 = vpack.c.b16 %v7755, %v7751
    %v8168 = vpack.c.b16 %v7756, %v7752
    %v8169 = vpack.c.b16 %v7761, %v7757
    %v8170 = vpack.c.b16 %v7762, %v7758
    %v8171 = vpack.c.b16 %v7763, %v7759
    %v8172 = vpack.c.b16 %v7764, %v7760
    %v8173 = vpack.c.b16 %v7769, %v7765
    %v8174 = vpack.c.b16 %v7770, %v7766
    %v8175 = vpack.c.b16 %v7771, %v7767
    %v8176 = vpack.c.b16 %v7772, %v7768
    %v8177 = vpack.c.b16 %v7777, %v7773
    %v8178 = vpack.c.b16 %v7778, %v7774
    %v8179 = vpack.c.b16 %v7779, %v7775
    %v8180 = vpack.c.b16 %v7780, %v7776
    %v8181 = vpack.c.b16 %v7785, %v7781
    %v8182 = vpack.c.b16 %v7786, %v7782
    %v8183 = vpack.c.b16 %v7787, %v7783
    %v8184 = vpack.c.b16 %v7788, %v7784
    %v8185 = vpack.c.b16 %v7793, %v7789
    %v8186 = vpack.c.b16 %v7794, %v7790
    %v8187 = vpack.c.b16 %v7795, %v7791
    %v8188 = vpack.c.b16 %v7796, %v7792
    %v8189 = vpack.c.b16 %v7801, %v7797
    %v8190 = vpack.c.b16 %v7802, %v7798
    %v8191 = vpack.c.b16 %v7803, %v7799
    %v8192 = vpack.c.b16 %v7804, %v7800
    %v8193 = vpack.c.b16 %v7809, %v7805
    %v8194 = vpack.c.b16 %v7810, %v7806
    %v8195 = vpack.c.b16 %v7811, %v7807
    %v8196 = vpack.c.b16 %v7812, %v7808
    %v8197 = vpack.c.b16 %v7817, %v7813
    %v8198 = vpack.c.b16 %v7818, %v7814
    %v8199 = vpack.c.b16 %v7819, %v7815
    %v8200 = vpack.c.b16 %v7820, %v7816
    %v8201 = vpack.c.b16 %v7825, %v7821
    %v8202 = vpack.c.b16 %v7826, %v7822
    %v8203 = vpack.c.b16 %v7827, %v7823
    %v8204 = vpack.c.b16 %v7828, %v7824
    %v8205 = vpack.c.b16 %v7833, %v7829
    %v8206 = vpack.c.b16 %v7834, %v7830
    %v8207 = vpack.c.b16 %v7835, %v7831
    %v8208 = vpack.c.b16 %v7836, %v7832
    %v8209 = vpack.c.b16 %v7841, %v7837
    %v8210 = vpack.c.b16 %v7842, %v7838
    %v8211 = vpack.c.b16 %v7843, %v7839
    %v8212 = vpack.c.b16 %v7844, %v7840
    %v8213 = vpack.c.b16 %v7849, %v7845
    %v8214 = vpack.c.b16 %v7850, %v7846
    %v8215 = vpack.c.b16 %v7851, %v7847
    %v8216 = vpack.c.b16 %v7852, %v7848
    %v8217 = vpack.c.b16 %v7857, %v7853
    %v8218 = vpack.c.b16 %v7858, %v7854
    %v8219 = vpack.c.b16 %v7859, %v7855
    %v8220 = vpack.c.b16 %v7860, %v7856
    %v8221 = vpack.c.b16 %v7865, %v7861
    %v8222 = vpack.c.b16 %v7866, %v7862
    %v8223 = vpack.c.b16 %v7867, %v7863
    %v8224 = vpack.c.b16 %v7868, %v7864
    %v8225 = vpack.c.b16 %v7873, %v7869
    %v8226 = vpack.c.b16 %v7874, %v7870
    %v8227 = vpack.c.b16 %v7875, %v7871
    %v8228 = vpack.c.b16 %v7876, %v7872
    %v8229 = vpack.c.b16 %v7881, %v7877
    %v8230 = vpack.c.b16 %v7882, %v7878
    %v8231 = vpack.c.b16 %v7883, %v7879
    %v8232 = vpack.c.b16 %v7884, %v7880
    %v8233 = vpack.c.b16 %v7889, %v7885
    %v8234 = vpack.c.b16 %v7890, %v7886
    %v8235 = vpack.c.b16 %v7891, %v7887
    %v8236 = vpack.c.b16 %v7892, %v7888
    %v8237 = vpack.c.b16 %v7897, %v7893
    %v8238 = vpack.c.b16 %v7898, %v7894
    %v8239 = vpack.c.b16 %v7899, %v7895
    %v8240 = vpack.c.b16 %v7900, %v7896
    %v8241 = vpack.c.b16 %v7905, %v7901
    %v8242 = vpack.c.b16 %v7906, %v7902
    %v8243 = vpack.c.b16 %v7907, %v7903
    %v8244 = vpack.c.b16 %v7908, %v7904
    %v8245 = vpack.c.b16 %v7913, %v7909
    %v8246 = vpack.c.b16 %v7914, %v7910
    %v8247 = vpack.c.b16 %v7915, %v7911
    %v8248 = vpack.c.b16 %v7916, %v7912
    %v8249 = vpack.c.b16 %v7921, %v7917
    %v8250 = vpack.c.b16 %v7922, %v7918
    %v8251 = vpack.c.b16 %v7923, %v7919
    %v8252 = vpack.c.b16 %v7924, %v7920
    %v8253 = vpack.c.b16 %v7929, %v7925
    %v8254 = vpack.c.b16 %v7930, %v7926
    %v8255 = vpack.c.b16 %v7931, %v7927
    %v8256 = vpack.c.b16 %v7932, %v7928
    %v8257 = vpack.c.b16 %v7937, %v7933
    %v8258 = vpack.c.b16 %v7938, %v7934
    %v8259 = vpack.c.b16 %v7939, %v7935
    %v8260 = vpack.c.b16 %v7940, %v7936
    %v8261 = vpack.c.b16 %v7945, %v7941
    %v8262 = vpack.c.b16 %v7946, %v7942
    %v8263 = vpack.c.b16 %v7947, %v7943
    %v8264 = vpack.c.b16 %v7948, %v7944
    %v8265 = vpack.c.b16 %v7953, %v7949
    %v8266 = vpack.c.b16 %v7954, %v7950
    %v8267 = vpack.c.b16 %v7955, %v7951
    %v8268 = vpack.c.b16 %v7956, %v7952
    %v8269 = vpack.c.b16 %v7961, %v7957
    %v8270 = vpack.c.b16 %v7962, %v7958
    %v8271 = vpack.c.b16 %v7963, %v7959
    %v8272 = vpack.c.b16 %v7964, %v7960
    %v8273 = vpack.c.b16 %v7969, %v7965
    %v8274 = vpack.c.b16 %v7970, %v7966
    %v8275 = vpack.c.b16 %v7971, %v7967
    %v8276 = vpack.c.b16 %v7972, %v7968
    %v8277 = vpack.c.b16 %v7977, %v7973
    %v8278 = vpack.c.b16 %v7978, %v7974
    %v8279 = vpack.c.b16 %v7979, %v7975
    %v8280 = vpack.c.b16 %v7980, %v7976
    %v8281 = vpack.c.b16 %v7985, %v7981
    %v8282 = vpack.c.b16 %v7986, %v7982
    %v8283 = vpack.c.b16 %v7987, %v7983
    %v8284 = vpack.c.b16 %v7988, %v7984
    %v8285 = vpack.c.b16 %v7993, %v7989
    %v8286 = vpack.c.b16 %v7994, %v7990
    %v8287 = vpack.c.b16 %v7995, %v7991
    %v8288 = vpack.c.b16 %v7996, %v7992
    %v8289 = vpack.c.b16 %v8001, %v7997
    %v8290 = vpack.c.b16 %v8002, %v7998
    %v8291 = vpack.c.b16 %v8003, %v7999
    %v8292 = vpack.c.b16 %v8004, %v8000
    %v8293 = vpack.c.b16 %v8009, %v8005
    %v8294 = vpack.c.b16 %v8010, %v8006
    %v8295 = vpack.c.b16 %v8011, %v8007
    %v8296 = vpack.c.b16 %v8012, %v8008
    %v8297 = vpack.c.b16 %v8017, %v8013
    %v8298 = vpack.c.b16 %v8018, %v8014
    %v8299 = vpack.c.b16 %v8019, %v8015
    %v8300 = vpack.c.b16 %v8020, %v8016
    %v8301 = vpack.c.b16 %v8025, %v8021
    %v8302 = vpack.c.b16 %v8026, %v8022
    %v8303 = vpack.c.b16 %v8027, %v8023
    %v8304 = vpack.c.b16 %v8028, %v8024
    %v8305 = vpack.c.b16 %v8033, %v8029
    %v8306 = vpack.c.b16 %v8034, %v8030
    %v8307 = vpack.c.b16 %v8035, %v8031
    %v8308 = vpack.c.b16 %v8036, %v8032
    %v8309 = vpack.c.b16 %v8041, %v8037
    %v8310 = vpack.c.b16 %v8042, %v8038
    %v8311 = vpack.c.b16 %v8043, %v8039
    %v8312 = vpack.c.b16 %v8044, %v8040
    %v8313 = vpack.c.b16 %v8049, %v8045
    %v8314 = vpack.c.b16 %v8050, %v8046
    %v8315 = vpack.c.b16 %v8051, %v8047
    %v8316 = vpack.c.b16 %v8052, %v8048
    %v8317 = vpack.c.b16 %v8057, %v8053
    %v8318 = vpack.c.b16 %v8058, %v8054
    %v8319 = vpack.c.b16 %v8059, %v8055
    %v8320 = vpack.c.b16 %v8060, %v8056
    %v8321 = vpack.c.b16 %v8065, %v8061
    %v8322 = vpack.c.b16 %v8066, %v8062
    %v8323 = vpack.c.b16 %v8067, %v8063
    %v8324 = vpack.c.b16 %v8068, %v8064
    %8581 = vmatprep.subr.bf16.mxu0 %v8098
    %8582 = vmatpush1.bf16.msra.mxu0 %v8097
    %8583 = vmatprep.subr.bf16.mxu0 %v8094
    %8584 = vmatpush1.bf16.msra.mxu0 %v8093
    %8585 = vmatprep.subr.bf16.mxu0 %v8090
    %8586 = vmatpush1.bf16.msra.mxu0 %v8089
    %8587 = vmatprep.subr.bf16.mxu0 %v8086
    %8588 = vmatpush1.bf16.msra.mxu0 %v8085
    %8589 = vmatprep.subr.bf16.mxu0 %v8082
    %8590 = vmatpush1.bf16.msra.mxu0 %v8081
    %8591 = vmatprep.subr.bf16.mxu0 %v8078
    %8592 = vmatpush1.bf16.msra.mxu0 %v8077
    %8593 = vmatprep.subr.bf16.mxu0 %v8074
    %8594 = vmatpush1.bf16.msra.mxu0 %v8073
    %8595 = vmatprep.subr.bf16.mxu0 %v8070
    %8596 = vmatpush1.bf16.msra.mxu0 %v8069
    %8597 = vmatprep.subr.bf16.mxu0 %v8130
    %8598 = vmatpush2.bf16.msra.mxu0 %v8129
    %8599 = vmatprep.subr.bf16.mxu0 %v8126
    %8600 = vmatpush2.bf16.msra.mxu0 %v8125
    %8601 = vmatprep.subr.bf16.mxu0 %v8122
    %8602 = vmatpush2.bf16.msra.mxu0 %v8121
    %8603 = vmatprep.subr.bf16.mxu0 %v8118
    %8604 = vmatpush2.bf16.msra.mxu0 %v8117
    %8605 = vmatprep.subr.bf16.mxu0 %v8114
    %8606 = vmatpush2.bf16.msra.mxu0 %v8113
    %8607 = vmatprep.subr.bf16.mxu0 %v8110
    %8608 = vmatpush2.bf16.msra.mxu0 %v8109
    %8609 = vmatprep.subr.bf16.mxu0 %v8106
    %8610 = vmatpush2.bf16.msra.mxu0 %v8105
    %8611 = vmatprep.subr.bf16.mxu0 %v8102
    %8612 = vmatpush2.bf16.msra.mxu0 %v8101
    %8613 = vmatprep.mubr.bf16.mxu0 %v6896
    %8614 = vmatmul.mubr.bf16.gmra.mxu0 %v6895
    %v8615 = vpop.f32.mrf.mxu0
    %v8616 = vadd.f32 %v7284, %v8615
    %v8617 = vpop.f32.mrf.mxu0
    %v8618 = vadd.f32 %v7288, %v8617
    %v8619 = vpop.f32.mrf.mxu0
    %v8620 = vadd.f32 %v7284, %v8619
    %v8621 = vpop.f32.mrf.mxu0
    %v8622 = vadd.f32 %v7288, %v8621
    %8623 = vmatprep.mubr.bf16.mxu0 %v6904
    %8624 = vmatmul.mubr.bf16.gmra.mxu0 %v6903
    %v8625 = vpop.f32.mrf.mxu0
    %v8626 = vadd.f32 %v7284, %v8625
    %v8627 = vpop.f32.mrf.mxu0
    %v8628 = vadd.f32 %v7288, %v8627
    %v8629 = vpop.f32.mrf.mxu0
    %v8630 = vadd.f32 %v7284, %v8629
    %v8631 = vpop.f32.mrf.mxu0
    %v8632 = vadd.f32 %v7288, %v8631
    %8633 = vmatprep.mubr.bf16.mxu0 %v6912
    %8634 = vmatmul.mubr.bf16.gmra.mxu0 %v6911
    %v8635 = vpop.f32.mrf.mxu0
    %v8636 = vadd.f32 %v7284, %v8635
    %v8637 = vpop.f32.mrf.mxu0
    %v8638 = vadd.f32 %v7288, %v8637
    %v8639 = vpop.f32.mrf.mxu0
    %v8640 = vadd.f32 %v7284, %v8639
    %v8641 = vpop.f32.mrf.mxu0
    %v8642 = vadd.f32 %v7288, %v8641
    %8643 = vmatprep.mubr.bf16.mxu0 %v6920
    %8644 = vmatmul.mubr.bf16.gmra.mxu0 %v6919
    %v8645 = vpop.f32.mrf.mxu0
    %v8646 = vadd.f32 %v7284, %v8645
    %v8647 = vpop.f32.mrf.mxu0
    %v8648 = vadd.f32 %v7288, %v8647
    %v8649 = vpop.f32.mrf.mxu0
    %v8650 = vadd.f32 %v7284, %v8649
    %v8651 = vpop.f32.mrf.mxu0
    %v8652 = vadd.f32 %v7288, %v8651
    %8653 = vmatprep.mubr.bf16.mxu0 %v6928
    %8654 = vmatmul.mubr.bf16.gmra.mxu0 %v6927
    %v8655 = vpop.f32.mrf.mxu0
    %v8656 = vadd.f32 %v7284, %v8655
    %v8657 = vpop.f32.mrf.mxu0
    %v8658 = vadd.f32 %v7288, %v8657
    %v8659 = vpop.f32.mrf.mxu0
    %v8660 = vadd.f32 %v7284, %v8659
    %v8661 = vpop.f32.mrf.mxu0
    %v8662 = vadd.f32 %v7288, %v8661
    %8663 = vmatprep.mubr.bf16.mxu0 %v6936
    %8664 = vmatmul.mubr.bf16.gmra.mxu0 %v6935
    %v8665 = vpop.f32.mrf.mxu0
    %v8666 = vadd.f32 %v7284, %v8665
    %v8667 = vpop.f32.mrf.mxu0
    %v8668 = vadd.f32 %v7288, %v8667
    %v8669 = vpop.f32.mrf.mxu0
    %v8670 = vadd.f32 %v7284, %v8669
    %v8671 = vpop.f32.mrf.mxu0
    %v8672 = vadd.f32 %v7288, %v8671
    %8673 = vmatprep.mubr.bf16.mxu0 %v6944
    %8674 = vmatmul.mubr.bf16.gmra.mxu0 %v6943
    %v8675 = vpop.f32.mrf.mxu0
    %v8676 = vadd.f32 %v7284, %v8675
    %v8677 = vpop.f32.mrf.mxu0
    %v8678 = vadd.f32 %v7288, %v8677
    %v8679 = vpop.f32.mrf.mxu0
    %v8680 = vadd.f32 %v7284, %v8679
    %v8681 = vpop.f32.mrf.mxu0
    %v8682 = vadd.f32 %v7288, %v8681
    %8683 = vmatprep.mubr.bf16.mxu0 %v6952
    %8684 = vmatmul.mubr.bf16.gmra.mxu0 %v6951
    %v8685 = vpop.f32.mrf.mxu0
    %v8686 = vadd.f32 %v7284, %v8685
    %v8687 = vpop.f32.mrf.mxu0
    %v8688 = vadd.f32 %v7288, %v8687
    %v8689 = vpop.f32.mrf.mxu0
    %v8690 = vadd.f32 %v7284, %v8689
    %v8691 = vpop.f32.mrf.mxu0
    %v8692 = vadd.f32 %v7288, %v8691
    %8693 = vmatprep.mubr.bf16.mxu0 %v6960
    %8694 = vmatmul.mubr.bf16.gmra.mxu0 %v6959
    %v8695 = vpop.f32.mrf.mxu0
    %v8696 = vadd.f32 %v7284, %v8695
    %v8697 = vpop.f32.mrf.mxu0
    %v8698 = vadd.f32 %v7288, %v8697
    %v8699 = vpop.f32.mrf.mxu0
    %v8700 = vadd.f32 %v7284, %v8699
    %v8701 = vpop.f32.mrf.mxu0
    %v8702 = vadd.f32 %v7288, %v8701
    %8703 = vmatprep.mubr.bf16.mxu0 %v6968
    %8704 = vmatmul.mubr.bf16.gmra.mxu0 %v6967
    %v8705 = vpop.f32.mrf.mxu0
    %v8706 = vadd.f32 %v7284, %v8705
    %v8707 = vpop.f32.mrf.mxu0
    %v8708 = vadd.f32 %v7288, %v8707
    %v8709 = vpop.f32.mrf.mxu0
    %v8710 = vadd.f32 %v7284, %v8709
    %v8711 = vpop.f32.mrf.mxu0
    %v8712 = vadd.f32 %v7288, %v8711
    %8713 = vmatprep.mubr.bf16.mxu0 %v6976
    %8714 = vmatmul.mubr.bf16.gmra.mxu0 %v6975
    %v8715 = vpop.f32.mrf.mxu0
    %v8716 = vadd.f32 %v7284, %v8715
    %v8717 = vpop.f32.mrf.mxu0
    %v8718 = vadd.f32 %v7288, %v8717
    %v8719 = vpop.f32.mrf.mxu0
    %v8720 = vadd.f32 %v7284, %v8719
    %v8721 = vpop.f32.mrf.mxu0
    %v8722 = vadd.f32 %v7288, %v8721
    %8723 = vmatprep.mubr.bf16.mxu0 %v6984
    %8724 = vmatmul.mubr.bf16.gmra.mxu0 %v6983
    %v8725 = vpop.f32.mrf.mxu0
    %v8726 = vadd.f32 %v7284, %v8725
    %v8727 = vpop.f32.mrf.mxu0
    %v8728 = vadd.f32 %v7288, %v8727
    %v8729 = vpop.f32.mrf.mxu0
    %v8730 = vadd.f32 %v7284, %v8729
    %v8731 = vpop.f32.mrf.mxu0
    %v8732 = vadd.f32 %v7288, %v8731
    %8733 = vmatprep.mubr.bf16.mxu0 %v6992
    %8734 = vmatmul.mubr.bf16.gmra.mxu0 %v6991
    %v8735 = vpop.f32.mrf.mxu0
    %v8736 = vadd.f32 %v7284, %v8735
    %v8737 = vpop.f32.mrf.mxu0
    %v8738 = vadd.f32 %v7288, %v8737
    %v8739 = vpop.f32.mrf.mxu0
    %v8740 = vadd.f32 %v7284, %v8739
    %v8741 = vpop.f32.mrf.mxu0
    %v8742 = vadd.f32 %v7288, %v8741
    %8743 = vmatprep.mubr.bf16.mxu0 %v7000
    %8744 = vmatmul.mubr.bf16.gmra.mxu0 %v6999
    %v8745 = vpop.f32.mrf.mxu0
    %v8746 = vadd.f32 %v7284, %v8745
    %v8747 = vpop.f32.mrf.mxu0
    %v8748 = vadd.f32 %v7288, %v8747
    %v8749 = vpop.f32.mrf.mxu0
    %v8750 = vadd.f32 %v7284, %v8749
    %v8751 = vpop.f32.mrf.mxu0
    %v8752 = vadd.f32 %v7288, %v8751
    %8753 = vmatprep.mubr.bf16.mxu0 %v7008
    %8754 = vmatmul.mubr.bf16.gmra.mxu0 %v7007
    %v8755 = vpop.f32.mrf.mxu0
    %v8756 = vadd.f32 %v7284, %v8755
    %v8757 = vpop.f32.mrf.mxu0
    %v8758 = vadd.f32 %v7288, %v8757
    %v8759 = vpop.f32.mrf.mxu0
    %v8760 = vadd.f32 %v7284, %v8759
    %v8761 = vpop.f32.mrf.mxu0
    %v8762 = vadd.f32 %v7288, %v8761
    %8763 = vmatprep.mubr.bf16.mxu0 %v7016
    %8764 = vmatmul.mubr.bf16.gmra.mxu0 %v7015
    %v8765 = vpop.f32.mrf.mxu0
    %v8766 = vadd.f32 %v7284, %v8765
    %v8767 = vpop.f32.mrf.mxu0
    %v8768 = vadd.f32 %v7288, %v8767
    %v8769 = vpop.f32.mrf.mxu0
    %v8770 = vadd.f32 %v7284, %v8769
    %v8771 = vpop.f32.mrf.mxu0
    %v8772 = vadd.f32 %v7288, %v8771
    %8773 = vdwg.mxu0
    %8774 = vmatprep.subr.bf16.mxu0 %v8162
    %8775 = vmatpush1.bf16.msra.mxu0 %v8161
    %8776 = vmatprep.subr.bf16.mxu0 %v8158
    %8777 = vmatpush1.bf16.msra.mxu0 %v8157
    %8778 = vmatprep.subr.bf16.mxu0 %v8154
    %8779 = vmatpush1.bf16.msra.mxu0 %v8153
    %8780 = vmatprep.subr.bf16.mxu0 %v8150
    %8781 = vmatpush1.bf16.msra.mxu0 %v8149
    %8782 = vmatprep.subr.bf16.mxu0 %v8146
    %8783 = vmatpush1.bf16.msra.mxu0 %v8145
    %8784 = vmatprep.subr.bf16.mxu0 %v8142
    %8785 = vmatpush1.bf16.msra.mxu0 %v8141
    %8786 = vmatprep.subr.bf16.mxu0 %v8138
    %8787 = vmatpush1.bf16.msra.mxu0 %v8137
    %8788 = vmatprep.subr.bf16.mxu0 %v8134
    %8789 = vmatpush1.bf16.msra.mxu0 %v8133
    %8790 = vmatprep.subr.bf16.mxu0 %v8194
    %8791 = vmatpush2.bf16.msra.mxu0 %v8193
    %8792 = vmatprep.subr.bf16.mxu0 %v8190
    %8793 = vmatpush2.bf16.msra.mxu0 %v8189
    %8794 = vmatprep.subr.bf16.mxu0 %v8186
    %8795 = vmatpush2.bf16.msra.mxu0 %v8185
    %8796 = vmatprep.subr.bf16.mxu0 %v8182
    %8797 = vmatpush2.bf16.msra.mxu0 %v8181
    %8798 = vmatprep.subr.bf16.mxu0 %v8178
    %8799 = vmatpush2.bf16.msra.mxu0 %v8177
    %8800 = vmatprep.subr.bf16.mxu0 %v8174
    %8801 = vmatpush2.bf16.msra.mxu0 %v8173
    %8802 = vmatprep.subr.bf16.mxu0 %v8170
    %8803 = vmatpush2.bf16.msra.mxu0 %v8169
    %8804 = vmatprep.subr.bf16.mxu0 %v8166
    %8805 = vmatpush2.bf16.msra.mxu0 %v8165
    %8806 = vmatprep.mubr.bf16.mxu0 %v6898
    %8807 = vmatmul.mubr.bf16.gmra.mxu0 %v6897
    %v8808 = vpop.f32.mrf.mxu0
    %v8809 = vadd.f32 %v8616, %v8808
    %v8810 = vpop.f32.mrf.mxu0
    %v8811 = vadd.f32 %v8618, %v8810
    %v8812 = vpop.f32.mrf.mxu0
    %v8813 = vadd.f32 %v8620, %v8812
    %v8814 = vpop.f32.mrf.mxu0
    %v8815 = vadd.f32 %v8622, %v8814
    %8816 = vmatprep.mubr.bf16.mxu0 %v6906
    %8817 = vmatmul.mubr.bf16.gmra.mxu0 %v6905
    %v8818 = vpop.f32.mrf.mxu0
    %v8819 = vadd.f32 %v8626, %v8818
    %v8820 = vpop.f32.mrf.mxu0
    %v8821 = vadd.f32 %v8628, %v8820
    %v8822 = vpop.f32.mrf.mxu0
    %v8823 = vadd.f32 %v8630, %v8822
    %v8824 = vpop.f32.mrf.mxu0
    %v8825 = vadd.f32 %v8632, %v8824
    %8826 = vmatprep.mubr.bf16.mxu0 %v6914
    %8827 = vmatmul.mubr.bf16.gmra.mxu0 %v6913
    %v8828 = vpop.f32.mrf.mxu0
    %v8829 = vadd.f32 %v8636, %v8828
    %v8830 = vpop.f32.mrf.mxu0
    %v8831 = vadd.f32 %v8638, %v8830
    %v8832 = vpop.f32.mrf.mxu0
    %v8833 = vadd.f32 %v8640, %v8832
    %v8834 = vpop.f32.mrf.mxu0
    %v8835 = vadd.f32 %v8642, %v8834
    %8836 = vmatprep.mubr.bf16.mxu0 %v6922
    %8837 = vmatmul.mubr.bf16.gmra.mxu0 %v6921
    %v8838 = vpop.f32.mrf.mxu0
    %v8839 = vadd.f32 %v8646, %v8838
    %v8840 = vpop.f32.mrf.mxu0
    %v8841 = vadd.f32 %v8648, %v8840
    %v8842 = vpop.f32.mrf.mxu0
    %v8843 = vadd.f32 %v8650, %v8842
    %v8844 = vpop.f32.mrf.mxu0
    %v8845 = vadd.f32 %v8652, %v8844
    %8846 = vmatprep.mubr.bf16.mxu0 %v6930
    %8847 = vmatmul.mubr.bf16.gmra.mxu0 %v6929
    %v8848 = vpop.f32.mrf.mxu0
    %v8849 = vadd.f32 %v8656, %v8848
    %v8850 = vpop.f32.mrf.mxu0
    %v8851 = vadd.f32 %v8658, %v8850
    %v8852 = vpop.f32.mrf.mxu0
    %v8853 = vadd.f32 %v8660, %v8852
    %v8854 = vpop.f32.mrf.mxu0
    %v8855 = vadd.f32 %v8662, %v8854
    %8856 = vmatprep.mubr.bf16.mxu0 %v6938
    %8857 = vmatmul.mubr.bf16.gmra.mxu0 %v6937
    %v8858 = vpop.f32.mrf.mxu0
    %v8859 = vadd.f32 %v8666, %v8858
    %v8860 = vpop.f32.mrf.mxu0
    %v8861 = vadd.f32 %v8668, %v8860
    %v8862 = vpop.f32.mrf.mxu0
    %v8863 = vadd.f32 %v8670, %v8862
    %v8864 = vpop.f32.mrf.mxu0
    %v8865 = vadd.f32 %v8672, %v8864
    %8866 = vmatprep.mubr.bf16.mxu0 %v6946
    %8867 = vmatmul.mubr.bf16.gmra.mxu0 %v6945
    %v8868 = vpop.f32.mrf.mxu0
    %v8869 = vadd.f32 %v8676, %v8868
    %v8870 = vpop.f32.mrf.mxu0
    %v8871 = vadd.f32 %v8678, %v8870
    %v8872 = vpop.f32.mrf.mxu0
    %v8873 = vadd.f32 %v8680, %v8872
    %v8874 = vpop.f32.mrf.mxu0
    %v8875 = vadd.f32 %v8682, %v8874
    %8876 = vmatprep.mubr.bf16.mxu0 %v6954
    %8877 = vmatmul.mubr.bf16.gmra.mxu0 %v6953
    %v8878 = vpop.f32.mrf.mxu0
    %v8879 = vadd.f32 %v8686, %v8878
    %v8880 = vpop.f32.mrf.mxu0
    %v8881 = vadd.f32 %v8688, %v8880
    %v8882 = vpop.f32.mrf.mxu0
    %v8883 = vadd.f32 %v8690, %v8882
    %v8884 = vpop.f32.mrf.mxu0
    %v8885 = vadd.f32 %v8692, %v8884
    %8886 = vmatprep.mubr.bf16.mxu0 %v6962
    %8887 = vmatmul.mubr.bf16.gmra.mxu0 %v6961
    %v8888 = vpop.f32.mrf.mxu0
    %v8889 = vadd.f32 %v8696, %v8888
    %v8890 = vpop.f32.mrf.mxu0
    %v8891 = vadd.f32 %v8698, %v8890
    %v8892 = vpop.f32.mrf.mxu0
    %v8893 = vadd.f32 %v8700, %v8892
    %v8894 = vpop.f32.mrf.mxu0
    %v8895 = vadd.f32 %v8702, %v8894
    %8896 = vmatprep.mubr.bf16.mxu0 %v6970
    %8897 = vmatmul.mubr.bf16.gmra.mxu0 %v6969
    %v8898 = vpop.f32.mrf.mxu0
    %v8899 = vadd.f32 %v8706, %v8898
    %v8900 = vpop.f32.mrf.mxu0
    %v8901 = vadd.f32 %v8708, %v8900
    %v8902 = vpop.f32.mrf.mxu0
    %v8903 = vadd.f32 %v8710, %v8902
    %v8904 = vpop.f32.mrf.mxu0
    %v8905 = vadd.f32 %v8712, %v8904
    %8906 = vmatprep.mubr.bf16.mxu0 %v6978
    %8907 = vmatmul.mubr.bf16.gmra.mxu0 %v6977
    %v8908 = vpop.f32.mrf.mxu0
    %v8909 = vadd.f32 %v8716, %v8908
    %v8910 = vpop.f32.mrf.mxu0
    %v8911 = vadd.f32 %v8718, %v8910
    %v8912 = vpop.f32.mrf.mxu0
    %v8913 = vadd.f32 %v8720, %v8912
    %v8914 = vpop.f32.mrf.mxu0
    %v8915 = vadd.f32 %v8722, %v8914
    %8916 = vmatprep.mubr.bf16.mxu0 %v6986
    %8917 = vmatmul.mubr.bf16.gmra.mxu0 %v6985
    %v8918 = vpop.f32.mrf.mxu0
    %v8919 = vadd.f32 %v8726, %v8918
    %v8920 = vpop.f32.mrf.mxu0
    %v8921 = vadd.f32 %v8728, %v8920
    %v8922 = vpop.f32.mrf.mxu0
    %v8923 = vadd.f32 %v8730, %v8922
    %v8924 = vpop.f32.mrf.mxu0
    %v8925 = vadd.f32 %v8732, %v8924
    %8926 = vmatprep.mubr.bf16.mxu0 %v6994
    %8927 = vmatmul.mubr.bf16.gmra.mxu0 %v6993
    %v8928 = vpop.f32.mrf.mxu0
    %v8929 = vadd.f32 %v8736, %v8928
    %v8930 = vpop.f32.mrf.mxu0
    %v8931 = vadd.f32 %v8738, %v8930
    %v8932 = vpop.f32.mrf.mxu0
    %v8933 = vadd.f32 %v8740, %v8932
    %v8934 = vpop.f32.mrf.mxu0
    %v8935 = vadd.f32 %v8742, %v8934
    %8936 = vmatprep.mubr.bf16.mxu0 %v7002
    %8937 = vmatmul.mubr.bf16.gmra.mxu0 %v7001
    %v8938 = vpop.f32.mrf.mxu0
    %v8939 = vadd.f32 %v8746, %v8938
    %v8940 = vpop.f32.mrf.mxu0
    %v8941 = vadd.f32 %v8748, %v8940
    %v8942 = vpop.f32.mrf.mxu0
    %v8943 = vadd.f32 %v8750, %v8942
    %v8944 = vpop.f32.mrf.mxu0
    %v8945 = vadd.f32 %v8752, %v8944
    %8946 = vmatprep.mubr.bf16.mxu0 %v7010
    %8947 = vmatmul.mubr.bf16.gmra.mxu0 %v7009
    %v8948 = vpop.f32.mrf.mxu0
    %v8949 = vadd.f32 %v8756, %v8948
    %v8950 = vpop.f32.mrf.mxu0
    %v8951 = vadd.f32 %v8758, %v8950
    %v8952 = vpop.f32.mrf.mxu0
    %v8953 = vadd.f32 %v8760, %v8952
    %v8954 = vpop.f32.mrf.mxu0
    %v8955 = vadd.f32 %v8762, %v8954
    %8956 = vmatprep.mubr.bf16.mxu0 %v7018
    %8957 = vmatmul.mubr.bf16.gmra.mxu0 %v7017
    %v8958 = vpop.f32.mrf.mxu0
    %v8959 = vadd.f32 %v8766, %v8958
    %v8960 = vpop.f32.mrf.mxu0
    %v8961 = vadd.f32 %v8768, %v8960
    %v8962 = vpop.f32.mrf.mxu0
    %v8963 = vadd.f32 %v8770, %v8962
    %v8964 = vpop.f32.mrf.mxu0
    %v8965 = vadd.f32 %v8772, %v8964
    %8966 = vdwg.mxu0
    %8967 = vmatprep.subr.bf16.mxu0 %v8226
    %8968 = vmatpush1.bf16.msra.mxu0 %v8225
    %8969 = vmatprep.subr.bf16.mxu0 %v8222
    %8970 = vmatpush1.bf16.msra.mxu0 %v8221
    %8971 = vmatprep.subr.bf16.mxu0 %v8218
    %8972 = vmatpush1.bf16.msra.mxu0 %v8217
    %8973 = vmatprep.subr.bf16.mxu0 %v8214
    %8974 = vmatpush1.bf16.msra.mxu0 %v8213
    %8975 = vmatprep.subr.bf16.mxu0 %v8210
    %8976 = vmatpush1.bf16.msra.mxu0 %v8209
    %8977 = vmatprep.subr.bf16.mxu0 %v8206
    %8978 = vmatpush1.bf16.msra.mxu0 %v8205
    %8979 = vmatprep.subr.bf16.mxu0 %v8202
    %8980 = vmatpush1.bf16.msra.mxu0 %v8201
    %8981 = vmatprep.subr.bf16.mxu0 %v8198
    %8982 = vmatpush1.bf16.msra.mxu0 %v8197
    %8983 = vmatprep.subr.bf16.mxu0 %v8258
    %8984 = vmatpush2.bf16.msra.mxu0 %v8257
    %8985 = vmatprep.subr.bf16.mxu0 %v8254
    %8986 = vmatpush2.bf16.msra.mxu0 %v8253
    %8987 = vmatprep.subr.bf16.mxu0 %v8250
    %8988 = vmatpush2.bf16.msra.mxu0 %v8249
    %8989 = vmatprep.subr.bf16.mxu0 %v8246
    %8990 = vmatpush2.bf16.msra.mxu0 %v8245
    %8991 = vmatprep.subr.bf16.mxu0 %v8242
    %8992 = vmatpush2.bf16.msra.mxu0 %v8241
    %8993 = vmatprep.subr.bf16.mxu0 %v8238
    %8994 = vmatpush2.bf16.msra.mxu0 %v8237
    %8995 = vmatprep.subr.bf16.mxu0 %v8234
    %8996 = vmatpush2.bf16.msra.mxu0 %v8233
    %8997 = vmatprep.subr.bf16.mxu0 %v8230
    %8998 = vmatpush2.bf16.msra.mxu0 %v8229
    %8999 = vmatprep.mubr.bf16.mxu0 %v6900
    %9000 = vmatmul.mubr.bf16.gmra.mxu0 %v6899
    %v9001 = vpop.f32.mrf.mxu0
    %v9002 = vadd.f32 %v8809, %v9001
    %v9003 = vpop.f32.mrf.mxu0
    %v9004 = vadd.f32 %v8811, %v9003
    %v9005 = vpop.f32.mrf.mxu0
    %v9006 = vadd.f32 %v8813, %v9005
    %v9007 = vpop.f32.mrf.mxu0
    %v9008 = vadd.f32 %v8815, %v9007
    %9009 = vmatprep.mubr.bf16.mxu0 %v6908
    %9010 = vmatmul.mubr.bf16.gmra.mxu0 %v6907
    %v9011 = vpop.f32.mrf.mxu0
    %v9012 = vadd.f32 %v8819, %v9011
    %v9013 = vpop.f32.mrf.mxu0
    %v9014 = vadd.f32 %v8821, %v9013
    %v9015 = vpop.f32.mrf.mxu0
    %v9016 = vadd.f32 %v8823, %v9015
    %v9017 = vpop.f32.mrf.mxu0
    %v9018 = vadd.f32 %v8825, %v9017
    %9019 = vmatprep.mubr.bf16.mxu0 %v6916
    %9020 = vmatmul.mubr.bf16.gmra.mxu0 %v6915
    %v9021 = vpop.f32.mrf.mxu0
    %v9022 = vadd.f32 %v8829, %v9021
    %v9023 = vpop.f32.mrf.mxu0
    %v9024 = vadd.f32 %v8831, %v9023
    %v9025 = vpop.f32.mrf.mxu0
    %v9026 = vadd.f32 %v8833, %v9025
    %v9027 = vpop.f32.mrf.mxu0
    %v9028 = vadd.f32 %v8835, %v9027
    %9029 = vmatprep.mubr.bf16.mxu0 %v6924
    %9030 = vmatmul.mubr.bf16.gmra.mxu0 %v6923
    %v9031 = vpop.f32.mrf.mxu0
    %v9032 = vadd.f32 %v8839, %v9031
    %v9033 = vpop.f32.mrf.mxu0
    %v9034 = vadd.f32 %v8841, %v9033
    %v9035 = vpop.f32.mrf.mxu0
    %v9036 = vadd.f32 %v8843, %v9035
    %v9037 = vpop.f32.mrf.mxu0
    %v9038 = vadd.f32 %v8845, %v9037
    %9039 = vmatprep.mubr.bf16.mxu0 %v6932
    %9040 = vmatmul.mubr.bf16.gmra.mxu0 %v6931
    %v9041 = vpop.f32.mrf.mxu0
    %v9042 = vadd.f32 %v8849, %v9041
    %v9043 = vpop.f32.mrf.mxu0
    %v9044 = vadd.f32 %v8851, %v9043
    %v9045 = vpop.f32.mrf.mxu0
    %v9046 = vadd.f32 %v8853, %v9045
    %v9047 = vpop.f32.mrf.mxu0
    %v9048 = vadd.f32 %v8855, %v9047
    %9049 = vmatprep.mubr.bf16.mxu0 %v6940
    %9050 = vmatmul.mubr.bf16.gmra.mxu0 %v6939
    %v9051 = vpop.f32.mrf.mxu0
    %v9052 = vadd.f32 %v8859, %v9051
    %v9053 = vpop.f32.mrf.mxu0
    %v9054 = vadd.f32 %v8861, %v9053
    %v9055 = vpop.f32.mrf.mxu0
    %v9056 = vadd.f32 %v8863, %v9055
    %v9057 = vpop.f32.mrf.mxu0
    %v9058 = vadd.f32 %v8865, %v9057
    %9059 = vmatprep.mubr.bf16.mxu0 %v6948
    %9060 = vmatmul.mubr.bf16.gmra.mxu0 %v6947
    %v9061 = vpop.f32.mrf.mxu0
    %v9062 = vadd.f32 %v8869, %v9061
    %v9063 = vpop.f32.mrf.mxu0
    %v9064 = vadd.f32 %v8871, %v9063
    %v9065 = vpop.f32.mrf.mxu0
    %v9066 = vadd.f32 %v8873, %v9065
    %v9067 = vpop.f32.mrf.mxu0
    %v9068 = vadd.f32 %v8875, %v9067
    %9069 = vmatprep.mubr.bf16.mxu0 %v6956
    %9070 = vmatmul.mubr.bf16.gmra.mxu0 %v6955
    %v9071 = vpop.f32.mrf.mxu0
    %v9072 = vadd.f32 %v8879, %v9071
    %v9073 = vpop.f32.mrf.mxu0
    %v9074 = vadd.f32 %v8881, %v9073
    %v9075 = vpop.f32.mrf.mxu0
    %v9076 = vadd.f32 %v8883, %v9075
    %v9077 = vpop.f32.mrf.mxu0
    %v9078 = vadd.f32 %v8885, %v9077
    %9079 = vmatprep.mubr.bf16.mxu0 %v6964
    %9080 = vmatmul.mubr.bf16.gmra.mxu0 %v6963
    %v9081 = vpop.f32.mrf.mxu0
    %v9082 = vadd.f32 %v8889, %v9081
    %v9083 = vpop.f32.mrf.mxu0
    %v9084 = vadd.f32 %v8891, %v9083
    %v9085 = vpop.f32.mrf.mxu0
    %v9086 = vadd.f32 %v8893, %v9085
    %v9087 = vpop.f32.mrf.mxu0
    %v9088 = vadd.f32 %v8895, %v9087
    %9089 = vmatprep.mubr.bf16.mxu0 %v6972
    %9090 = vmatmul.mubr.bf16.gmra.mxu0 %v6971
    %v9091 = vpop.f32.mrf.mxu0
    %v9092 = vadd.f32 %v8899, %v9091
    %v9093 = vpop.f32.mrf.mxu0
    %v9094 = vadd.f32 %v8901, %v9093
    %v9095 = vpop.f32.mrf.mxu0
    %v9096 = vadd.f32 %v8903, %v9095
    %v9097 = vpop.f32.mrf.mxu0
    %v9098 = vadd.f32 %v8905, %v9097
    %9099 = vmatprep.mubr.bf16.mxu0 %v6980
    %9100 = vmatmul.mubr.bf16.gmra.mxu0 %v6979
    %v9101 = vpop.f32.mrf.mxu0
    %v9102 = vadd.f32 %v8909, %v9101
    %v9103 = vpop.f32.mrf.mxu0
    %v9104 = vadd.f32 %v8911, %v9103
    %v9105 = vpop.f32.mrf.mxu0
    %v9106 = vadd.f32 %v8913, %v9105
    %v9107 = vpop.f32.mrf.mxu0
    %v9108 = vadd.f32 %v8915, %v9107
    %9109 = vmatprep.mubr.bf16.mxu0 %v6988
    %9110 = vmatmul.mubr.bf16.gmra.mxu0 %v6987
    %v9111 = vpop.f32.mrf.mxu0
    %v9112 = vadd.f32 %v8919, %v9111
    %v9113 = vpop.f32.mrf.mxu0
    %v9114 = vadd.f32 %v8921, %v9113
    %v9115 = vpop.f32.mrf.mxu0
    %v9116 = vadd.f32 %v8923, %v9115
    %v9117 = vpop.f32.mrf.mxu0
    %v9118 = vadd.f32 %v8925, %v9117
    %9119 = vmatprep.mubr.bf16.mxu0 %v6996
    %9120 = vmatmul.mubr.bf16.gmra.mxu0 %v6995
    %v9121 = vpop.f32.mrf.mxu0
    %v9122 = vadd.f32 %v8929, %v9121
    %v9123 = vpop.f32.mrf.mxu0
    %v9124 = vadd.f32 %v8931, %v9123
    %v9125 = vpop.f32.mrf.mxu0
    %v9126 = vadd.f32 %v8933, %v9125
    %v9127 = vpop.f32.mrf.mxu0
    %v9128 = vadd.f32 %v8935, %v9127
    %9129 = vmatprep.mubr.bf16.mxu0 %v7004
    %9130 = vmatmul.mubr.bf16.gmra.mxu0 %v7003
    %v9131 = vpop.f32.mrf.mxu0
    %v9132 = vadd.f32 %v8939, %v9131
    %v9133 = vpop.f32.mrf.mxu0
    %v9134 = vadd.f32 %v8941, %v9133
    %v9135 = vpop.f32.mrf.mxu0
    %v9136 = vadd.f32 %v8943, %v9135
    %v9137 = vpop.f32.mrf.mxu0
    %v9138 = vadd.f32 %v8945, %v9137
    %9139 = vmatprep.mubr.bf16.mxu0 %v7012
    %9140 = vmatmul.mubr.bf16.gmra.mxu0 %v7011
    %v9141 = vpop.f32.mrf.mxu0
    %v9142 = vadd.f32 %v8949, %v9141
    %v9143 = vpop.f32.mrf.mxu0
    %v9144 = vadd.f32 %v8951, %v9143
    %v9145 = vpop.f32.mrf.mxu0
    %v9146 = vadd.f32 %v8953, %v9145
    %v9147 = vpop.f32.mrf.mxu0
    %v9148 = vadd.f32 %v8955, %v9147
    %9149 = vmatprep.mubr.bf16.mxu0 %v7020
    %9150 = vmatmul.mubr.bf16.gmra.mxu0 %v7019
    %v9151 = vpop.f32.mrf.mxu0
    %v9152 = vadd.f32 %v8959, %v9151
    %v9153 = vpop.f32.mrf.mxu0
    %v9154 = vadd.f32 %v8961, %v9153
    %v9155 = vpop.f32.mrf.mxu0
    %v9156 = vadd.f32 %v8963, %v9155
    %v9157 = vpop.f32.mrf.mxu0
    %v9158 = vadd.f32 %v8965, %v9157
    %9159 = vdwg.mxu0
    %9160 = vmatprep.subr.bf16.mxu0 %v8290
    %9161 = vmatpush1.bf16.msra.mxu0 %v8289
    %9162 = vmatprep.subr.bf16.mxu0 %v8286
    %9163 = vmatpush1.bf16.msra.mxu0 %v8285
    %9164 = vmatprep.subr.bf16.mxu0 %v8282
    %9165 = vmatpush1.bf16.msra.mxu0 %v8281
    %9166 = vmatprep.subr.bf16.mxu0 %v8278
    %9167 = vmatpush1.bf16.msra.mxu0 %v8277
    %9168 = vmatprep.subr.bf16.mxu0 %v8274
    %9169 = vmatpush1.bf16.msra.mxu0 %v8273
    %9170 = vmatprep.subr.bf16.mxu0 %v8270
    %9171 = vmatpush1.bf16.msra.mxu0 %v8269
    %9172 = vmatprep.subr.bf16.mxu0 %v8266
    %9173 = vmatpush1.bf16.msra.mxu0 %v8265
    %9174 = vmatprep.subr.bf16.mxu0 %v8262
    %9175 = vmatpush1.bf16.msra.mxu0 %v8261
    %9176 = vmatprep.subr.bf16.mxu0 %v8322
    %9177 = vmatpush2.bf16.msra.mxu0 %v8321
    %9178 = vmatprep.subr.bf16.mxu0 %v8318
    %9179 = vmatpush2.bf16.msra.mxu0 %v8317
    %9180 = vmatprep.subr.bf16.mxu0 %v8314
    %9181 = vmatpush2.bf16.msra.mxu0 %v8313
    %9182 = vmatprep.subr.bf16.mxu0 %v8310
    %9183 = vmatpush2.bf16.msra.mxu0 %v8309
    %9184 = vmatprep.subr.bf16.mxu0 %v8306
    %9185 = vmatpush2.bf16.msra.mxu0 %v8305
    %9186 = vmatprep.subr.bf16.mxu0 %v8302
    %9187 = vmatpush2.bf16.msra.mxu0 %v8301
    %9188 = vmatprep.subr.bf16.mxu0 %v8298
    %9189 = vmatpush2.bf16.msra.mxu0 %v8297
    %9190 = vmatprep.subr.bf16.mxu0 %v8294
    %9191 = vmatpush2.bf16.msra.mxu0 %v8293
    %9192 = vmatprep.mubr.bf16.mxu0 %v6902
    %9193 = vmatmul.mubr.bf16.gmra.mxu0 %v6901
    %v9194 = vpop.f32.mrf.mxu0
    %v9195 = vadd.f32 %v9002, %v9194
    %v9196 = vpop.f32.mrf.mxu0
    %v9197 = vadd.f32 %v9004, %v9196
    %v9198 = vpop.f32.mrf.mxu0
    %v9199 = vadd.f32 %v9006, %v9198
    %v9200 = vpop.f32.mrf.mxu0
    %v9201 = vadd.f32 %v9008, %v9200
    %9202 = vmatprep.mubr.bf16.mxu0 %v6910
    %9203 = vmatmul.mubr.bf16.gmra.mxu0 %v6909
    %v9204 = vpop.f32.mrf.mxu0
    %v9205 = vadd.f32 %v9012, %v9204
    %v9206 = vpop.f32.mrf.mxu0
    %v9207 = vadd.f32 %v9014, %v9206
    %v9208 = vpop.f32.mrf.mxu0
    %v9209 = vadd.f32 %v9016, %v9208
    %v9210 = vpop.f32.mrf.mxu0
    %v9211 = vadd.f32 %v9018, %v9210
    %9212 = vmatprep.mubr.bf16.mxu0 %v6918
    %9213 = vmatmul.mubr.bf16.gmra.mxu0 %v6917
    %v9214 = vpop.f32.mrf.mxu0
    %v9215 = vadd.f32 %v9022, %v9214
    %v9216 = vpop.f32.mrf.mxu0
    %v9217 = vadd.f32 %v9024, %v9216
    %v9218 = vpop.f32.mrf.mxu0
    %v9219 = vadd.f32 %v9026, %v9218
    %v9220 = vpop.f32.mrf.mxu0
    %v9221 = vadd.f32 %v9028, %v9220
    %9222 = vmatprep.mubr.bf16.mxu0 %v6926
    %9223 = vmatmul.mubr.bf16.gmra.mxu0 %v6925
    %v9224 = vpop.f32.mrf.mxu0
    %v9225 = vadd.f32 %v9032, %v9224
    %v9226 = vpop.f32.mrf.mxu0
    %v9227 = vadd.f32 %v9034, %v9226
    %v9228 = vpop.f32.mrf.mxu0
    %v9229 = vadd.f32 %v9036, %v9228
    %v9230 = vpop.f32.mrf.mxu0
    %v9231 = vadd.f32 %v9038, %v9230
    %9232 = vmatprep.mubr.bf16.mxu0 %v6934
    %9233 = vmatmul.mubr.bf16.gmra.mxu0 %v6933
    %v9234 = vpop.f32.mrf.mxu0
    %v9235 = vadd.f32 %v9042, %v9234
    %v9236 = vpop.f32.mrf.mxu0
    %v9237 = vadd.f32 %v9044, %v9236
    %v9238 = vpop.f32.mrf.mxu0
    %v9239 = vadd.f32 %v9046, %v9238
    %v9240 = vpop.f32.mrf.mxu0
    %v9241 = vadd.f32 %v9048, %v9240
    %9242 = vmatprep.mubr.bf16.mxu0 %v6942
    %9243 = vmatmul.mubr.bf16.gmra.mxu0 %v6941
    %v9244 = vpop.f32.mrf.mxu0
    %v9245 = vadd.f32 %v9052, %v9244
    %v9246 = vpop.f32.mrf.mxu0
    %v9247 = vadd.f32 %v9054, %v9246
    %v9248 = vpop.f32.mrf.mxu0
    %v9249 = vadd.f32 %v9056, %v9248
    %v9250 = vpop.f32.mrf.mxu0
    %v9251 = vadd.f32 %v9058, %v9250
    %9252 = vmatprep.mubr.bf16.mxu0 %v6950
    %9253 = vmatmul.mubr.bf16.gmra.mxu0 %v6949
    %v9254 = vpop.f32.mrf.mxu0
    %v9255 = vadd.f32 %v9062, %v9254
    %v9256 = vpop.f32.mrf.mxu0
    %v9257 = vadd.f32 %v9064, %v9256
    %v9258 = vpop.f32.mrf.mxu0
    %v9259 = vadd.f32 %v9066, %v9258
    %v9260 = vpop.f32.mrf.mxu0
    %v9261 = vadd.f32 %v9068, %v9260
    %9262 = vmatprep.mubr.bf16.mxu0 %v6958
    %9263 = vmatmul.mubr.bf16.gmra.mxu0 %v6957
    %v9264 = vpop.f32.mrf.mxu0
    %v9265 = vadd.f32 %v9072, %v9264
    %v9266 = vpop.f32.mrf.mxu0
    %v9267 = vadd.f32 %v9074, %v9266
    %v9268 = vpop.f32.mrf.mxu0
    %v9269 = vadd.f32 %v9076, %v9268
    %v9270 = vpop.f32.mrf.mxu0
    %v9271 = vadd.f32 %v9078, %v9270
    %9272 = vmatprep.mubr.bf16.mxu0 %v6966
    %9273 = vmatmul.mubr.bf16.gmra.mxu0 %v6965
    %v9274 = vpop.f32.mrf.mxu0
    %v9275 = vadd.f32 %v9082, %v9274
    %v9276 = vpop.f32.mrf.mxu0
    %v9277 = vadd.f32 %v9084, %v9276
    %v9278 = vpop.f32.mrf.mxu0
    %v9279 = vadd.f32 %v9086, %v9278
    %v9280 = vpop.f32.mrf.mxu0
    %v9281 = vadd.f32 %v9088, %v9280
    %9282 = vmatprep.mubr.bf16.mxu0 %v6974
    %9283 = vmatmul.mubr.bf16.gmra.mxu0 %v6973
    %v9284 = vpop.f32.mrf.mxu0
    %v9285 = vadd.f32 %v9092, %v9284
    %v9286 = vpop.f32.mrf.mxu0
    %v9287 = vadd.f32 %v9094, %v9286
    %v9288 = vpop.f32.mrf.mxu0
    %v9289 = vadd.f32 %v9096, %v9288
    %v9290 = vpop.f32.mrf.mxu0
    %v9291 = vadd.f32 %v9098, %v9290
    %9292 = vmatprep.mubr.bf16.mxu0 %v6982
    %9293 = vmatmul.mubr.bf16.gmra.mxu0 %v6981
    %v9294 = vpop.f32.mrf.mxu0
    %v9295 = vadd.f32 %v9102, %v9294
    %v9296 = vpop.f32.mrf.mxu0
    %v9297 = vadd.f32 %v9104, %v9296
    %v9298 = vpop.f32.mrf.mxu0
    %v9299 = vadd.f32 %v9106, %v9298
    %v9300 = vpop.f32.mrf.mxu0
    %v9301 = vadd.f32 %v9108, %v9300
    %9302 = vmatprep.mubr.bf16.mxu0 %v6990
    %9303 = vmatmul.mubr.bf16.gmra.mxu0 %v6989
    %v9304 = vpop.f32.mrf.mxu0
    %v9305 = vadd.f32 %v9112, %v9304
    %v9306 = vpop.f32.mrf.mxu0
    %v9307 = vadd.f32 %v9114, %v9306
    %v9308 = vpop.f32.mrf.mxu0
    %v9309 = vadd.f32 %v9116, %v9308
    %v9310 = vpop.f32.mrf.mxu0
    %v9311 = vadd.f32 %v9118, %v9310
    %9312 = vmatprep.mubr.bf16.mxu0 %v6998
    %9313 = vmatmul.mubr.bf16.gmra.mxu0 %v6997
    %v9314 = vpop.f32.mrf.mxu0
    %v9315 = vadd.f32 %v9122, %v9314
    %v9316 = vpop.f32.mrf.mxu0
    %v9317 = vadd.f32 %v9124, %v9316
    %v9318 = vpop.f32.mrf.mxu0
    %v9319 = vadd.f32 %v9126, %v9318
    %v9320 = vpop.f32.mrf.mxu0
    %v9321 = vadd.f32 %v9128, %v9320
    %9322 = vmatprep.mubr.bf16.mxu0 %v7006
    %9323 = vmatmul.mubr.bf16.gmra.mxu0 %v7005
    %v9324 = vpop.f32.mrf.mxu0
    %v9325 = vadd.f32 %v9132, %v9324
    %v9326 = vpop.f32.mrf.mxu0
    %v9327 = vadd.f32 %v9134, %v9326
    %v9328 = vpop.f32.mrf.mxu0
    %v9329 = vadd.f32 %v9136, %v9328
    %v9330 = vpop.f32.mrf.mxu0
    %v9331 = vadd.f32 %v9138, %v9330
    %9332 = vmatprep.mubr.bf16.mxu0 %v7014
    %9333 = vmatmul.mubr.bf16.gmra.mxu0 %v7013
    %v9334 = vpop.f32.mrf.mxu0
    %v9335 = vadd.f32 %v9142, %v9334
    %v9336 = vpop.f32.mrf.mxu0
    %v9337 = vadd.f32 %v9144, %v9336
    %v9338 = vpop.f32.mrf.mxu0
    %v9339 = vadd.f32 %v9146, %v9338
    %v9340 = vpop.f32.mrf.mxu0
    %v9341 = vadd.f32 %v9148, %v9340
    %9342 = vmatprep.mubr.bf16.mxu0 %v7022
    %9343 = vmatmul.mubr.bf16.gmra.mxu0 %v7021
    %v9344 = vpop.f32.mrf.mxu0
    %v9345 = vadd.f32 %v9152, %v9344
    %v9346 = vpop.f32.mrf.mxu0
    %v9347 = vadd.f32 %v9154, %v9346
    %v9348 = vpop.f32.mrf.mxu0
    %v9349 = vadd.f32 %v9156, %v9348
    %v9350 = vpop.f32.mrf.mxu0
    %v9351 = vadd.f32 %v9158, %v9350
    %9352 = vdwg.mxu0
    %9353 = vmatprep.subr.bf16.mxu0 %v8100
    %9354 = vmatpush1.bf16.msra.mxu0 %v8099
    %9355 = vmatprep.subr.bf16.mxu0 %v8096
    %9356 = vmatpush1.bf16.msra.mxu0 %v8095
    %9357 = vmatprep.subr.bf16.mxu0 %v8092
    %9358 = vmatpush1.bf16.msra.mxu0 %v8091
    %9359 = vmatprep.subr.bf16.mxu0 %v8088
    %9360 = vmatpush1.bf16.msra.mxu0 %v8087
    %9361 = vmatprep.subr.bf16.mxu0 %v8084
    %9362 = vmatpush1.bf16.msra.mxu0 %v8083
    %9363 = vmatprep.subr.bf16.mxu0 %v8080
    %9364 = vmatpush1.bf16.msra.mxu0 %v8079
    %9365 = vmatprep.subr.bf16.mxu0 %v8076
    %9366 = vmatpush1.bf16.msra.mxu0 %v8075
    %9367 = vmatprep.subr.bf16.mxu0 %v8072
    %9368 = vmatpush1.bf16.msra.mxu0 %v8071
    %9369 = vmatprep.subr.bf16.mxu0 %v8132
    %9370 = vmatpush2.bf16.msra.mxu0 %v8131
    %9371 = vmatprep.subr.bf16.mxu0 %v8128
    %9372 = vmatpush2.bf16.msra.mxu0 %v8127
    %9373 = vmatprep.subr.bf16.mxu0 %v8124
    %9374 = vmatpush2.bf16.msra.mxu0 %v8123
    %9375 = vmatprep.subr.bf16.mxu0 %v8120
    %9376 = vmatpush2.bf16.msra.mxu0 %v8119
    %9377 = vmatprep.subr.bf16.mxu0 %v8116
    %9378 = vmatpush2.bf16.msra.mxu0 %v8115
    %9379 = vmatprep.subr.bf16.mxu0 %v8112
    %9380 = vmatpush2.bf16.msra.mxu0 %v8111
    %9381 = vmatprep.subr.bf16.mxu0 %v8108
    %9382 = vmatpush2.bf16.msra.mxu0 %v8107
    %9383 = vmatprep.subr.bf16.mxu0 %v8104
    %9384 = vmatpush2.bf16.msra.mxu0 %v8103
    %9385 = vmatprep.mubr.bf16.mxu0 %v6896
    %9386 = vmatmul.mubr.bf16.gmra.mxu0 %v6895
    %v9387 = vpop.f32.mrf.mxu0
    %v9388 = vadd.f32 %v7292, %v9387
    %v9389 = vpop.f32.mrf.mxu0
    %v9390 = vadd.f32 %v7296, %v9389
    %v9391 = vpop.f32.mrf.mxu0
    %v9392 = vadd.f32 %v7292, %v9391
    %v9393 = vpop.f32.mrf.mxu0
    %v9394 = vadd.f32 %v7296, %v9393
    %9395 = vmatprep.mubr.bf16.mxu0 %v6904
    %9396 = vmatmul.mubr.bf16.gmra.mxu0 %v6903
    %v9397 = vpop.f32.mrf.mxu0
    %v9398 = vadd.f32 %v7292, %v9397
    %v9399 = vpop.f32.mrf.mxu0
    %v9400 = vadd.f32 %v7296, %v9399
    %v9401 = vpop.f32.mrf.mxu0
    %v9402 = vadd.f32 %v7292, %v9401
    %v9403 = vpop.f32.mrf.mxu0
    %v9404 = vadd.f32 %v7296, %v9403
    %9405 = vmatprep.mubr.bf16.mxu0 %v6912
    %9406 = vmatmul.mubr.bf16.gmra.mxu0 %v6911
    %v9407 = vpop.f32.mrf.mxu0
    %v9408 = vadd.f32 %v7292, %v9407
    %v9409 = vpop.f32.mrf.mxu0
    %v9410 = vadd.f32 %v7296, %v9409
    %v9411 = vpop.f32.mrf.mxu0
    %v9412 = vadd.f32 %v7292, %v9411
    %v9413 = vpop.f32.mrf.mxu0
    %v9414 = vadd.f32 %v7296, %v9413
    %9415 = vmatprep.mubr.bf16.mxu0 %v6920
    %9416 = vmatmul.mubr.bf16.gmra.mxu0 %v6919
    %v9417 = vpop.f32.mrf.mxu0
    %v9418 = vadd.f32 %v7292, %v9417
    %v9419 = vpop.f32.mrf.mxu0
    %v9420 = vadd.f32 %v7296, %v9419
    %v9421 = vpop.f32.mrf.mxu0
    %v9422 = vadd.f32 %v7292, %v9421
    %v9423 = vpop.f32.mrf.mxu0
    %v9424 = vadd.f32 %v7296, %v9423
    %9425 = vmatprep.mubr.bf16.mxu0 %v6928
    %9426 = vmatmul.mubr.bf16.gmra.mxu0 %v6927
    %v9427 = vpop.f32.mrf.mxu0
    %v9428 = vadd.f32 %v7292, %v9427
    %v9429 = vpop.f32.mrf.mxu0
    %v9430 = vadd.f32 %v7296, %v9429
    %v9431 = vpop.f32.mrf.mxu0
    %v9432 = vadd.f32 %v7292, %v9431
    %v9433 = vpop.f32.mrf.mxu0
    %v9434 = vadd.f32 %v7296, %v9433
    %9435 = vmatprep.mubr.bf16.mxu0 %v6936
    %9436 = vmatmul.mubr.bf16.gmra.mxu0 %v6935
    %v9437 = vpop.f32.mrf.mxu0
    %v9438 = vadd.f32 %v7292, %v9437
    %v9439 = vpop.f32.mrf.mxu0
    %v9440 = vadd.f32 %v7296, %v9439
    %v9441 = vpop.f32.mrf.mxu0
    %v9442 = vadd.f32 %v7292, %v9441
    %v9443 = vpop.f32.mrf.mxu0
    %v9444 = vadd.f32 %v7296, %v9443
    %9445 = vmatprep.mubr.bf16.mxu0 %v6944
    %9446 = vmatmul.mubr.bf16.gmra.mxu0 %v6943
    %v9447 = vpop.f32.mrf.mxu0
    %v9448 = vadd.f32 %v7292, %v9447
    %v9449 = vpop.f32.mrf.mxu0
    %v9450 = vadd.f32 %v7296, %v9449
    %v9451 = vpop.f32.mrf.mxu0
    %v9452 = vadd.f32 %v7292, %v9451
    %v9453 = vpop.f32.mrf.mxu0
    %v9454 = vadd.f32 %v7296, %v9453
    %9455 = vmatprep.mubr.bf16.mxu0 %v6952
    %9456 = vmatmul.mubr.bf16.gmra.mxu0 %v6951
    %v9457 = vpop.f32.mrf.mxu0
    %v9458 = vadd.f32 %v7292, %v9457
    %v9459 = vpop.f32.mrf.mxu0
    %v9460 = vadd.f32 %v7296, %v9459
    %v9461 = vpop.f32.mrf.mxu0
    %v9462 = vadd.f32 %v7292, %v9461
    %v9463 = vpop.f32.mrf.mxu0
    %v9464 = vadd.f32 %v7296, %v9463
    %9465 = vmatprep.mubr.bf16.mxu0 %v6960
    %9466 = vmatmul.mubr.bf16.gmra.mxu0 %v6959
    %v9467 = vpop.f32.mrf.mxu0
    %v9468 = vadd.f32 %v7292, %v9467
    %v9469 = vpop.f32.mrf.mxu0
    %v9470 = vadd.f32 %v7296, %v9469
    %v9471 = vpop.f32.mrf.mxu0
    %v9472 = vadd.f32 %v7292, %v9471
    %v9473 = vpop.f32.mrf.mxu0
    %v9474 = vadd.f32 %v7296, %v9473
    %9475 = vmatprep.mubr.bf16.mxu0 %v6968
    %9476 = vmatmul.mubr.bf16.gmra.mxu0 %v6967
    %v9477 = vpop.f32.mrf.mxu0
    %v9478 = vadd.f32 %v7292, %v9477
    %v9479 = vpop.f32.mrf.mxu0
    %v9480 = vadd.f32 %v7296, %v9479
    %v9481 = vpop.f32.mrf.mxu0
    %v9482 = vadd.f32 %v7292, %v9481
    %v9483 = vpop.f32.mrf.mxu0
    %v9484 = vadd.f32 %v7296, %v9483
    %9485 = vmatprep.mubr.bf16.mxu0 %v6976
    %9486 = vmatmul.mubr.bf16.gmra.mxu0 %v6975
    %v9487 = vpop.f32.mrf.mxu0
    %v9488 = vadd.f32 %v7292, %v9487
    %v9489 = vpop.f32.mrf.mxu0
    %v9490 = vadd.f32 %v7296, %v9489
    %v9491 = vpop.f32.mrf.mxu0
    %v9492 = vadd.f32 %v7292, %v9491
    %v9493 = vpop.f32.mrf.mxu0
    %v9494 = vadd.f32 %v7296, %v9493
    %9495 = vmatprep.mubr.bf16.mxu0 %v6984
    %9496 = vmatmul.mubr.bf16.gmra.mxu0 %v6983
    %v9497 = vpop.f32.mrf.mxu0
    %v9498 = vadd.f32 %v7292, %v9497
    %v9499 = vpop.f32.mrf.mxu0
    %v9500 = vadd.f32 %v7296, %v9499
    %v9501 = vpop.f32.mrf.mxu0
    %v9502 = vadd.f32 %v7292, %v9501
    %v9503 = vpop.f32.mrf.mxu0
    %v9504 = vadd.f32 %v7296, %v9503
    %9505 = vmatprep.mubr.bf16.mxu0 %v6992
    %9506 = vmatmul.mubr.bf16.gmra.mxu0 %v6991
    %v9507 = vpop.f32.mrf.mxu0
    %v9508 = vadd.f32 %v7292, %v9507
    %v9509 = vpop.f32.mrf.mxu0
    %v9510 = vadd.f32 %v7296, %v9509
    %v9511 = vpop.f32.mrf.mxu0
    %v9512 = vadd.f32 %v7292, %v9511
    %v9513 = vpop.f32.mrf.mxu0
    %v9514 = vadd.f32 %v7296, %v9513
    %9515 = vmatprep.mubr.bf16.mxu0 %v7000
    %9516 = vmatmul.mubr.bf16.gmra.mxu0 %v6999
    %v9517 = vpop.f32.mrf.mxu0
    %v9518 = vadd.f32 %v7292, %v9517
    %v9519 = vpop.f32.mrf.mxu0
    %v9520 = vadd.f32 %v7296, %v9519
    %v9521 = vpop.f32.mrf.mxu0
    %v9522 = vadd.f32 %v7292, %v9521
    %v9523 = vpop.f32.mrf.mxu0
    %v9524 = vadd.f32 %v7296, %v9523
    %9525 = vmatprep.mubr.bf16.mxu0 %v7008
    %9526 = vmatmul.mubr.bf16.gmra.mxu0 %v7007
    %v9527 = vpop.f32.mrf.mxu0
    %v9528 = vadd.f32 %v7292, %v9527
    %v9529 = vpop.f32.mrf.mxu0
    %v9530 = vadd.f32 %v7296, %v9529
    %v9531 = vpop.f32.mrf.mxu0
    %v9532 = vadd.f32 %v7292, %v9531
    %v9533 = vpop.f32.mrf.mxu0
    %v9534 = vadd.f32 %v7296, %v9533
    %9535 = vmatprep.mubr.bf16.mxu0 %v7016
    %9536 = vmatmul.mubr.bf16.gmra.mxu0 %v7015
    %v9537 = vpop.f32.mrf.mxu0
    %v9538 = vadd.f32 %v7292, %v9537
    %v9539 = vpop.f32.mrf.mxu0
    %v9540 = vadd.f32 %v7296, %v9539
    %v9541 = vpop.f32.mrf.mxu0
    %v9542 = vadd.f32 %v7292, %v9541
    %v9543 = vpop.f32.mrf.mxu0
    %v9544 = vadd.f32 %v7296, %v9543
    %9545 = vdwg.mxu0
    %9546 = vmatprep.subr.bf16.mxu0 %v8164
    %9547 = vmatpush1.bf16.msra.mxu0 %v8163
    %9548 = vmatprep.subr.bf16.mxu0 %v8160
    %9549 = vmatpush1.bf16.msra.mxu0 %v8159
    %9550 = vmatprep.subr.bf16.mxu0 %v8156
    %9551 = vmatpush1.bf16.msra.mxu0 %v8155
    %9552 = vmatprep.subr.bf16.mxu0 %v8152
    %9553 = vmatpush1.bf16.msra.mxu0 %v8151
    %9554 = vmatprep.subr.bf16.mxu0 %v8148
    %9555 = vmatpush1.bf16.msra.mxu0 %v8147
    %9556 = vmatprep.subr.bf16.mxu0 %v8144
    %9557 = vmatpush1.bf16.msra.mxu0 %v8143
    %9558 = vmatprep.subr.bf16.mxu0 %v8140
    %9559 = vmatpush1.bf16.msra.mxu0 %v8139
    %9560 = vmatprep.subr.bf16.mxu0 %v8136
    %9561 = vmatpush1.bf16.msra.mxu0 %v8135
    %9562 = vmatprep.subr.bf16.mxu0 %v8196
    %9563 = vmatpush2.bf16.msra.mxu0 %v8195
    %9564 = vmatprep.subr.bf16.mxu0 %v8192
    %9565 = vmatpush2.bf16.msra.mxu0 %v8191
    %9566 = vmatprep.subr.bf16.mxu0 %v8188
    %9567 = vmatpush2.bf16.msra.mxu0 %v8187
    %9568 = vmatprep.subr.bf16.mxu0 %v8184
    %9569 = vmatpush2.bf16.msra.mxu0 %v8183
    %9570 = vmatprep.subr.bf16.mxu0 %v8180
    %9571 = vmatpush2.bf16.msra.mxu0 %v8179
    %9572 = vmatprep.subr.bf16.mxu0 %v8176
    %9573 = vmatpush2.bf16.msra.mxu0 %v8175
    %9574 = vmatprep.subr.bf16.mxu0 %v8172
    %9575 = vmatpush2.bf16.msra.mxu0 %v8171
    %9576 = vmatprep.subr.bf16.mxu0 %v8168
    %9577 = vmatpush2.bf16.msra.mxu0 %v8167
    %9578 = vmatprep.mubr.bf16.mxu0 %v6898
    %9579 = vmatmul.mubr.bf16.gmra.mxu0 %v6897
    %v9580 = vpop.f32.mrf.mxu0
    %v9581 = vadd.f32 %v9388, %v9580
    %v9582 = vpop.f32.mrf.mxu0
    %v9583 = vadd.f32 %v9390, %v9582
    %v9584 = vpop.f32.mrf.mxu0
    %v9585 = vadd.f32 %v9392, %v9584
    %v9586 = vpop.f32.mrf.mxu0
    %v9587 = vadd.f32 %v9394, %v9586
    %9588 = vmatprep.mubr.bf16.mxu0 %v6906
    %9589 = vmatmul.mubr.bf16.gmra.mxu0 %v6905
    %v9590 = vpop.f32.mrf.mxu0
    %v9591 = vadd.f32 %v9398, %v9590
    %v9592 = vpop.f32.mrf.mxu0
    %v9593 = vadd.f32 %v9400, %v9592
    %v9594 = vpop.f32.mrf.mxu0
    %v9595 = vadd.f32 %v9402, %v9594
    %v9596 = vpop.f32.mrf.mxu0
    %v9597 = vadd.f32 %v9404, %v9596
    %9598 = vmatprep.mubr.bf16.mxu0 %v6914
    %9599 = vmatmul.mubr.bf16.gmra.mxu0 %v6913
    %v9600 = vpop.f32.mrf.mxu0
    %v9601 = vadd.f32 %v9408, %v9600
    %v9602 = vpop.f32.mrf.mxu0
    %v9603 = vadd.f32 %v9410, %v9602
    %v9604 = vpop.f32.mrf.mxu0
    %v9605 = vadd.f32 %v9412, %v9604
    %v9606 = vpop.f32.mrf.mxu0
    %v9607 = vadd.f32 %v9414, %v9606
    %9608 = vmatprep.mubr.bf16.mxu0 %v6922
    %9609 = vmatmul.mubr.bf16.gmra.mxu0 %v6921
    %v9610 = vpop.f32.mrf.mxu0
    %v9611 = vadd.f32 %v9418, %v9610
    %v9612 = vpop.f32.mrf.mxu0
    %v9613 = vadd.f32 %v9420, %v9612
    %v9614 = vpop.f32.mrf.mxu0
    %v9615 = vadd.f32 %v9422, %v9614
    %v9616 = vpop.f32.mrf.mxu0
    %v9617 = vadd.f32 %v9424, %v9616
    %9618 = vmatprep.mubr.bf16.mxu0 %v6930
    %9619 = vmatmul.mubr.bf16.gmra.mxu0 %v6929
    %v9620 = vpop.f32.mrf.mxu0
    %v9621 = vadd.f32 %v9428, %v9620
    %v9622 = vpop.f32.mrf.mxu0
    %v9623 = vadd.f32 %v9430, %v9622
    %v9624 = vpop.f32.mrf.mxu0
    %v9625 = vadd.f32 %v9432, %v9624
    %v9626 = vpop.f32.mrf.mxu0
    %v9627 = vadd.f32 %v9434, %v9626
    %9628 = vmatprep.mubr.bf16.mxu0 %v6938
    %9629 = vmatmul.mubr.bf16.gmra.mxu0 %v6937
    %v9630 = vpop.f32.mrf.mxu0
    %v9631 = vadd.f32 %v9438, %v9630
    %v9632 = vpop.f32.mrf.mxu0
    %v9633 = vadd.f32 %v9440, %v9632
    %v9634 = vpop.f32.mrf.mxu0
    %v9635 = vadd.f32 %v9442, %v9634
    %v9636 = vpop.f32.mrf.mxu0
    %v9637 = vadd.f32 %v9444, %v9636
    %9638 = vmatprep.mubr.bf16.mxu0 %v6946
    %9639 = vmatmul.mubr.bf16.gmra.mxu0 %v6945
    %v9640 = vpop.f32.mrf.mxu0
    %v9641 = vadd.f32 %v9448, %v9640
    %v9642 = vpop.f32.mrf.mxu0
    %v9643 = vadd.f32 %v9450, %v9642
    %v9644 = vpop.f32.mrf.mxu0
    %v9645 = vadd.f32 %v9452, %v9644
    %v9646 = vpop.f32.mrf.mxu0
    %v9647 = vadd.f32 %v9454, %v9646
    %9648 = vmatprep.mubr.bf16.mxu0 %v6954
    %9649 = vmatmul.mubr.bf16.gmra.mxu0 %v6953
    %v9650 = vpop.f32.mrf.mxu0
    %v9651 = vadd.f32 %v9458, %v9650
    %v9652 = vpop.f32.mrf.mxu0
    %v9653 = vadd.f32 %v9460, %v9652
    %v9654 = vpop.f32.mrf.mxu0
    %v9655 = vadd.f32 %v9462, %v9654
    %v9656 = vpop.f32.mrf.mxu0
    %v9657 = vadd.f32 %v9464, %v9656
    %9658 = vmatprep.mubr.bf16.mxu0 %v6962
    %9659 = vmatmul.mubr.bf16.gmra.mxu0 %v6961
    %v9660 = vpop.f32.mrf.mxu0
    %v9661 = vadd.f32 %v9468, %v9660
    %v9662 = vpop.f32.mrf.mxu0
    %v9663 = vadd.f32 %v9470, %v9662
    %v9664 = vpop.f32.mrf.mxu0
    %v9665 = vadd.f32 %v9472, %v9664
    %v9666 = vpop.f32.mrf.mxu0
    %v9667 = vadd.f32 %v9474, %v9666
    %9668 = vmatprep.mubr.bf16.mxu0 %v6970
    %9669 = vmatmul.mubr.bf16.gmra.mxu0 %v6969
    %v9670 = vpop.f32.mrf.mxu0
    %v9671 = vadd.f32 %v9478, %v9670
    %v9672 = vpop.f32.mrf.mxu0
    %v9673 = vadd.f32 %v9480, %v9672
    %v9674 = vpop.f32.mrf.mxu0
    %v9675 = vadd.f32 %v9482, %v9674
    %v9676 = vpop.f32.mrf.mxu0
    %v9677 = vadd.f32 %v9484, %v9676
    %9678 = vmatprep.mubr.bf16.mxu0 %v6978
    %9679 = vmatmul.mubr.bf16.gmra.mxu0 %v6977
    %v9680 = vpop.f32.mrf.mxu0
    %v9681 = vadd.f32 %v9488, %v9680
    %v9682 = vpop.f32.mrf.mxu0
    %v9683 = vadd.f32 %v9490, %v9682
    %v9684 = vpop.f32.mrf.mxu0
    %v9685 = vadd.f32 %v9492, %v9684
    %v9686 = vpop.f32.mrf.mxu0
    %v9687 = vadd.f32 %v9494, %v9686
    %9688 = vmatprep.mubr.bf16.mxu0 %v6986
    %9689 = vmatmul.mubr.bf16.gmra.mxu0 %v6985
    %v9690 = vpop.f32.mrf.mxu0
    %v9691 = vadd.f32 %v9498, %v9690
    %v9692 = vpop.f32.mrf.mxu0
    %v9693 = vadd.f32 %v9500, %v9692
    %v9694 = vpop.f32.mrf.mxu0
    %v9695 = vadd.f32 %v9502, %v9694
    %v9696 = vpop.f32.mrf.mxu0
    %v9697 = vadd.f32 %v9504, %v9696
    %9698 = vmatprep.mubr.bf16.mxu0 %v6994
    %9699 = vmatmul.mubr.bf16.gmra.mxu0 %v6993
    %v9700 = vpop.f32.mrf.mxu0
    %v9701 = vadd.f32 %v9508, %v9700
    %v9702 = vpop.f32.mrf.mxu0
    %v9703 = vadd.f32 %v9510, %v9702
    %v9704 = vpop.f32.mrf.mxu0
    %v9705 = vadd.f32 %v9512, %v9704
    %v9706 = vpop.f32.mrf.mxu0
    %v9707 = vadd.f32 %v9514, %v9706
    %9708 = vmatprep.mubr.bf16.mxu0 %v7002
    %9709 = vmatmul.mubr.bf16.gmra.mxu0 %v7001
    %v9710 = vpop.f32.mrf.mxu0
    %v9711 = vadd.f32 %v9518, %v9710
    %v9712 = vpop.f32.mrf.mxu0
    %v9713 = vadd.f32 %v9520, %v9712
    %v9714 = vpop.f32.mrf.mxu0
    %v9715 = vadd.f32 %v9522, %v9714
    %v9716 = vpop.f32.mrf.mxu0
    %v9717 = vadd.f32 %v9524, %v9716
    %9718 = vmatprep.mubr.bf16.mxu0 %v7010
    %9719 = vmatmul.mubr.bf16.gmra.mxu0 %v7009
    %v9720 = vpop.f32.mrf.mxu0
    %v9721 = vadd.f32 %v9528, %v9720
    %v9722 = vpop.f32.mrf.mxu0
    %v9723 = vadd.f32 %v9530, %v9722
    %v9724 = vpop.f32.mrf.mxu0
    %v9725 = vadd.f32 %v9532, %v9724
    %v9726 = vpop.f32.mrf.mxu0
    %v9727 = vadd.f32 %v9534, %v9726
    %9728 = vmatprep.mubr.bf16.mxu0 %v7018
    %9729 = vmatmul.mubr.bf16.gmra.mxu0 %v7017
    %v9730 = vpop.f32.mrf.mxu0
    %v9731 = vadd.f32 %v9538, %v9730
    %v9732 = vpop.f32.mrf.mxu0
    %v9733 = vadd.f32 %v9540, %v9732
    %v9734 = vpop.f32.mrf.mxu0
    %v9735 = vadd.f32 %v9542, %v9734
    %v9736 = vpop.f32.mrf.mxu0
    %v9737 = vadd.f32 %v9544, %v9736
    %9738 = vdwg.mxu0
    %9739 = vmatprep.subr.bf16.mxu0 %v8228
    %9740 = vmatpush1.bf16.msra.mxu0 %v8227
    %9741 = vmatprep.subr.bf16.mxu0 %v8224
    %9742 = vmatpush1.bf16.msra.mxu0 %v8223
    %9743 = vmatprep.subr.bf16.mxu0 %v8220
    %9744 = vmatpush1.bf16.msra.mxu0 %v8219
    %9745 = vmatprep.subr.bf16.mxu0 %v8216
    %9746 = vmatpush1.bf16.msra.mxu0 %v8215
    %9747 = vmatprep.subr.bf16.mxu0 %v8212
    %9748 = vmatpush1.bf16.msra.mxu0 %v8211
    %9749 = vmatprep.subr.bf16.mxu0 %v8208
    %9750 = vmatpush1.bf16.msra.mxu0 %v8207
    %9751 = vmatprep.subr.bf16.mxu0 %v8204
    %9752 = vmatpush1.bf16.msra.mxu0 %v8203
    %9753 = vmatprep.subr.bf16.mxu0 %v8200
    %9754 = vmatpush1.bf16.msra.mxu0 %v8199
    %9755 = vmatprep.subr.bf16.mxu0 %v8260
    %9756 = vmatpush2.bf16.msra.mxu0 %v8259
    %9757 = vmatprep.subr.bf16.mxu0 %v8256
    %9758 = vmatpush2.bf16.msra.mxu0 %v8255
    %9759 = vmatprep.subr.bf16.mxu0 %v8252
    %9760 = vmatpush2.bf16.msra.mxu0 %v8251
    %9761 = vmatprep.subr.bf16.mxu0 %v8248
    %9762 = vmatpush2.bf16.msra.mxu0 %v8247
    %9763 = vmatprep.subr.bf16.mxu0 %v8244
    %9764 = vmatpush2.bf16.msra.mxu0 %v8243
    %9765 = vmatprep.subr.bf16.mxu0 %v8240
    %9766 = vmatpush2.bf16.msra.mxu0 %v8239
    %9767 = vmatprep.subr.bf16.mxu0 %v8236
    %9768 = vmatpush2.bf16.msra.mxu0 %v8235
    %9769 = vmatprep.subr.bf16.mxu0 %v8232
    %9770 = vmatpush2.bf16.msra.mxu0 %v8231
    %9771 = vmatprep.mubr.bf16.mxu0 %v6900
    %9772 = vmatmul.mubr.bf16.gmra.mxu0 %v6899
    %v9773 = vpop.f32.mrf.mxu0
    %v9774 = vadd.f32 %v9581, %v9773
    %v9775 = vpop.f32.mrf.mxu0
    %v9776 = vadd.f32 %v9583, %v9775
    %v9777 = vpop.f32.mrf.mxu0
    %v9778 = vadd.f32 %v9585, %v9777
    %v9779 = vpop.f32.mrf.mxu0
    %v9780 = vadd.f32 %v9587, %v9779
    %9781 = vmatprep.mubr.bf16.mxu0 %v6908
    %9782 = vmatmul.mubr.bf16.gmra.mxu0 %v6907
    %v9783 = vpop.f32.mrf.mxu0
    %v9784 = vadd.f32 %v9591, %v9783
    %v9785 = vpop.f32.mrf.mxu0
    %v9786 = vadd.f32 %v9593, %v9785
    %v9787 = vpop.f32.mrf.mxu0
    %v9788 = vadd.f32 %v9595, %v9787
    %v9789 = vpop.f32.mrf.mxu0
    %v9790 = vadd.f32 %v9597, %v9789
    %9791 = vmatprep.mubr.bf16.mxu0 %v6916
    %9792 = vmatmul.mubr.bf16.gmra.mxu0 %v6915
    %v9793 = vpop.f32.mrf.mxu0
    %v9794 = vadd.f32 %v9601, %v9793
    %v9795 = vpop.f32.mrf.mxu0
    %v9796 = vadd.f32 %v9603, %v9795
    %v9797 = vpop.f32.mrf.mxu0
    %v9798 = vadd.f32 %v9605, %v9797
    %v9799 = vpop.f32.mrf.mxu0
    %v9800 = vadd.f32 %v9607, %v9799
    %9801 = vmatprep.mubr.bf16.mxu0 %v6924
    %9802 = vmatmul.mubr.bf16.gmra.mxu0 %v6923
    %v9803 = vpop.f32.mrf.mxu0
    %v9804 = vadd.f32 %v9611, %v9803
    %v9805 = vpop.f32.mrf.mxu0
    %v9806 = vadd.f32 %v9613, %v9805
    %v9807 = vpop.f32.mrf.mxu0
    %v9808 = vadd.f32 %v9615, %v9807
    %v9809 = vpop.f32.mrf.mxu0
    %v9810 = vadd.f32 %v9617, %v9809
    %9811 = vmatprep.mubr.bf16.mxu0 %v6932
    %9812 = vmatmul.mubr.bf16.gmra.mxu0 %v6931
    %v9813 = vpop.f32.mrf.mxu0
    %v9814 = vadd.f32 %v9621, %v9813
    %v9815 = vpop.f32.mrf.mxu0
    %v9816 = vadd.f32 %v9623, %v9815
    %v9817 = vpop.f32.mrf.mxu0
    %v9818 = vadd.f32 %v9625, %v9817
    %v9819 = vpop.f32.mrf.mxu0
    %v9820 = vadd.f32 %v9627, %v9819
    %9821 = vmatprep.mubr.bf16.mxu0 %v6940
    %9822 = vmatmul.mubr.bf16.gmra.mxu0 %v6939
    %v9823 = vpop.f32.mrf.mxu0
    %v9824 = vadd.f32 %v9631, %v9823
    %v9825 = vpop.f32.mrf.mxu0
    %v9826 = vadd.f32 %v9633, %v9825
    %v9827 = vpop.f32.mrf.mxu0
    %v9828 = vadd.f32 %v9635, %v9827
    %v9829 = vpop.f32.mrf.mxu0
    %v9830 = vadd.f32 %v9637, %v9829
    %9831 = vmatprep.mubr.bf16.mxu0 %v6948
    %9832 = vmatmul.mubr.bf16.gmra.mxu0 %v6947
    %v9833 = vpop.f32.mrf.mxu0
    %v9834 = vadd.f32 %v9641, %v9833
    %v9835 = vpop.f32.mrf.mxu0
    %v9836 = vadd.f32 %v9643, %v9835
    %v9837 = vpop.f32.mrf.mxu0
    %v9838 = vadd.f32 %v9645, %v9837
    %v9839 = vpop.f32.mrf.mxu0
    %v9840 = vadd.f32 %v9647, %v9839
    %9841 = vmatprep.mubr.bf16.mxu0 %v6956
    %9842 = vmatmul.mubr.bf16.gmra.mxu0 %v6955
    %v9843 = vpop.f32.mrf.mxu0
    %v9844 = vadd.f32 %v9651, %v9843
    %v9845 = vpop.f32.mrf.mxu0
    %v9846 = vadd.f32 %v9653, %v9845
    %v9847 = vpop.f32.mrf.mxu0
    %v9848 = vadd.f32 %v9655, %v9847
    %v9849 = vpop.f32.mrf.mxu0
    %v9850 = vadd.f32 %v9657, %v9849
    %9851 = vmatprep.mubr.bf16.mxu0 %v6964
    %9852 = vmatmul.mubr.bf16.gmra.mxu0 %v6963
    %v9853 = vpop.f32.mrf.mxu0
    %v9854 = vadd.f32 %v9661, %v9853
    %v9855 = vpop.f32.mrf.mxu0
    %v9856 = vadd.f32 %v9663, %v9855
    %v9857 = vpop.f32.mrf.mxu0
    %v9858 = vadd.f32 %v9665, %v9857
    %v9859 = vpop.f32.mrf.mxu0
    %v9860 = vadd.f32 %v9667, %v9859
    %9861 = vmatprep.mubr.bf16.mxu0 %v6972
    %9862 = vmatmul.mubr.bf16.gmra.mxu0 %v6971
    %v9863 = vpop.f32.mrf.mxu0
    %v9864 = vadd.f32 %v9671, %v9863
    %v9865 = vpop.f32.mrf.mxu0
    %v9866 = vadd.f32 %v9673, %v9865
    %v9867 = vpop.f32.mrf.mxu0
    %v9868 = vadd.f32 %v9675, %v9867
    %v9869 = vpop.f32.mrf.mxu0
    %v9870 = vadd.f32 %v9677, %v9869
    %9871 = vmatprep.mubr.bf16.mxu0 %v6980
    %9872 = vmatmul.mubr.bf16.gmra.mxu0 %v6979
    %v9873 = vpop.f32.mrf.mxu0
    %v9874 = vadd.f32 %v9681, %v9873
    %v9875 = vpop.f32.mrf.mxu0
    %v9876 = vadd.f32 %v9683, %v9875
    %v9877 = vpop.f32.mrf.mxu0
    %v9878 = vadd.f32 %v9685, %v9877
    %v9879 = vpop.f32.mrf.mxu0
    %v9880 = vadd.f32 %v9687, %v9879
    %9881 = vmatprep.mubr.bf16.mxu0 %v6988
    %9882 = vmatmul.mubr.bf16.gmra.mxu0 %v6987
    %v9883 = vpop.f32.mrf.mxu0
    %v9884 = vadd.f32 %v9691, %v9883
    %v9885 = vpop.f32.mrf.mxu0
    %v9886 = vadd.f32 %v9693, %v9885
    %v9887 = vpop.f32.mrf.mxu0
    %v9888 = vadd.f32 %v9695, %v9887
    %v9889 = vpop.f32.mrf.mxu0
    %v9890 = vadd.f32 %v9697, %v9889
    %9891 = vmatprep.mubr.bf16.mxu0 %v6996
    %9892 = vmatmul.mubr.bf16.gmra.mxu0 %v6995
    %v9893 = vpop.f32.mrf.mxu0
    %v9894 = vadd.f32 %v9701, %v9893
    %v9895 = vpop.f32.mrf.mxu0
    %v9896 = vadd.f32 %v9703, %v9895
    %v9897 = vpop.f32.mrf.mxu0
    %v9898 = vadd.f32 %v9705, %v9897
    %v9899 = vpop.f32.mrf.mxu0
    %v9900 = vadd.f32 %v9707, %v9899
    %9901 = vmatprep.mubr.bf16.mxu0 %v7004
    %9902 = vmatmul.mubr.bf16.gmra.mxu0 %v7003
    %v9903 = vpop.f32.mrf.mxu0
    %v9904 = vadd.f32 %v9711, %v9903
    %v9905 = vpop.f32.mrf.mxu0
    %v9906 = vadd.f32 %v9713, %v9905
    %v9907 = vpop.f32.mrf.mxu0
    %v9908 = vadd.f32 %v9715, %v9907
    %v9909 = vpop.f32.mrf.mxu0
    %v9910 = vadd.f32 %v9717, %v9909
    %9911 = vmatprep.mubr.bf16.mxu0 %v7012
    %9912 = vmatmul.mubr.bf16.gmra.mxu0 %v7011
    %v9913 = vpop.f32.mrf.mxu0
    %v9914 = vadd.f32 %v9721, %v9913
    %v9915 = vpop.f32.mrf.mxu0
    %v9916 = vadd.f32 %v9723, %v9915
    %v9917 = vpop.f32.mrf.mxu0
    %v9918 = vadd.f32 %v9725, %v9917
    %v9919 = vpop.f32.mrf.mxu0
    %v9920 = vadd.f32 %v9727, %v9919
    %9921 = vmatprep.mubr.bf16.mxu0 %v7020
    %9922 = vmatmul.mubr.bf16.gmra.mxu0 %v7019
    %v9923 = vpop.f32.mrf.mxu0
    %v9924 = vadd.f32 %v9731, %v9923
    %v9925 = vpop.f32.mrf.mxu0
    %v9926 = vadd.f32 %v9733, %v9925
    %v9927 = vpop.f32.mrf.mxu0
    %v9928 = vadd.f32 %v9735, %v9927
    %v9929 = vpop.f32.mrf.mxu0
    %v9930 = vadd.f32 %v9737, %v9929
    %9931 = vdwg.mxu0
    %9932 = vmatprep.subr.bf16.mxu0 %v8292
    %9933 = vmatpush1.bf16.msra.mxu0 %v8291
    %9934 = vmatprep.subr.bf16.mxu0 %v8288
    %9935 = vmatpush1.bf16.msra.mxu0 %v8287
    %9936 = vmatprep.subr.bf16.mxu0 %v8284
    %9937 = vmatpush1.bf16.msra.mxu0 %v8283
    %9938 = vmatprep.subr.bf16.mxu0 %v8280
    %9939 = vmatpush1.bf16.msra.mxu0 %v8279
    %9940 = vmatprep.subr.bf16.mxu0 %v8276
    %9941 = vmatpush1.bf16.msra.mxu0 %v8275
    %9942 = vmatprep.subr.bf16.mxu0 %v8272
    %9943 = vmatpush1.bf16.msra.mxu0 %v8271
    %9944 = vmatprep.subr.bf16.mxu0 %v8268
    %9945 = vmatpush1.bf16.msra.mxu0 %v8267
    %9946 = vmatprep.subr.bf16.mxu0 %v8264
    %9947 = vmatpush1.bf16.msra.mxu0 %v8263
    %9948 = vmatprep.subr.bf16.mxu0 %v8324
    %9949 = vmatpush2.bf16.msra.mxu0 %v8323
    %9950 = vmatprep.subr.bf16.mxu0 %v8320
    %9951 = vmatpush2.bf16.msra.mxu0 %v8319
    %9952 = vmatprep.subr.bf16.mxu0 %v8316
    %9953 = vmatpush2.bf16.msra.mxu0 %v8315
    %9954 = vmatprep.subr.bf16.mxu0 %v8312
    %9955 = vmatpush2.bf16.msra.mxu0 %v8311
    %9956 = vmatprep.subr.bf16.mxu0 %v8308
    %9957 = vmatpush2.bf16.msra.mxu0 %v8307
    %9958 = vmatprep.subr.bf16.mxu0 %v8304
    %9959 = vmatpush2.bf16.msra.mxu0 %v8303
    %9960 = vmatprep.subr.bf16.mxu0 %v8300
    %9961 = vmatpush2.bf16.msra.mxu0 %v8299
    %9962 = vmatprep.subr.bf16.mxu0 %v8296
    %9963 = vmatpush2.bf16.msra.mxu0 %v8295
    %9964 = vmatprep.mubr.bf16.mxu0 %v6902
    %9965 = vmatmul.mubr.bf16.gmra.mxu0 %v6901
    %v9966 = vpop.f32.mrf.mxu0
    %v9967 = vadd.f32 %v9774, %v9966
    %v9968 = vpop.f32.mrf.mxu0
    %v9969 = vadd.f32 %v9776, %v9968
    %v9970 = vpop.f32.mrf.mxu0
    %v9971 = vadd.f32 %v9778, %v9970
    %v9972 = vpop.f32.mrf.mxu0
    %v9973 = vadd.f32 %v9780, %v9972
    %9974 = vmatprep.mubr.bf16.mxu0 %v6910
    %9975 = vmatmul.mubr.bf16.gmra.mxu0 %v6909
    %v9976 = vpop.f32.mrf.mxu0
    %v9977 = vadd.f32 %v9784, %v9976
    %v9978 = vpop.f32.mrf.mxu0
    %v9979 = vadd.f32 %v9786, %v9978
    %v9980 = vpop.f32.mrf.mxu0
    %v9981 = vadd.f32 %v9788, %v9980
    %v9982 = vpop.f32.mrf.mxu0
    %v9983 = vadd.f32 %v9790, %v9982
    %9984 = vmatprep.mubr.bf16.mxu0 %v6918
    %9985 = vmatmul.mubr.bf16.gmra.mxu0 %v6917
    %v9986 = vpop.f32.mrf.mxu0
    %v9987 = vadd.f32 %v9794, %v9986
    %v9988 = vpop.f32.mrf.mxu0
    %v9989 = vadd.f32 %v9796, %v9988
    %v9990 = vpop.f32.mrf.mxu0
    %v9991 = vadd.f32 %v9798, %v9990
    %v9992 = vpop.f32.mrf.mxu0
    %v9993 = vadd.f32 %v9800, %v9992
    %9994 = vmatprep.mubr.bf16.mxu0 %v6926
    %9995 = vmatmul.mubr.bf16.gmra.mxu0 %v6925
    %v9996 = vpop.f32.mrf.mxu0
    %v9997 = vadd.f32 %v9804, %v9996
    %v9998 = vpop.f32.mrf.mxu0
    %v9999 = vadd.f32 %v9806, %v9998
    %v10000 = vpop.f32.mrf.mxu0
    %v10001 = vadd.f32 %v9808, %v10000
    %v10002 = vpop.f32.mrf.mxu0
    %v10003 = vadd.f32 %v9810, %v10002
    %10004 = vmatprep.mubr.bf16.mxu0 %v6934
    %10005 = vmatmul.mubr.bf16.gmra.mxu0 %v6933
    %v10006 = vpop.f32.mrf.mxu0
    %v10007 = vadd.f32 %v9814, %v10006
    %v10008 = vpop.f32.mrf.mxu0
    %v10009 = vadd.f32 %v9816, %v10008
    %v10010 = vpop.f32.mrf.mxu0
    %v10011 = vadd.f32 %v9818, %v10010
    %v10012 = vpop.f32.mrf.mxu0
    %v10013 = vadd.f32 %v9820, %v10012
    %10014 = vmatprep.mubr.bf16.mxu0 %v6942
    %10015 = vmatmul.mubr.bf16.gmra.mxu0 %v6941
    %v10016 = vpop.f32.mrf.mxu0
    %v10017 = vadd.f32 %v9824, %v10016
    %v10018 = vpop.f32.mrf.mxu0
    %v10019 = vadd.f32 %v9826, %v10018
    %v10020 = vpop.f32.mrf.mxu0
    %v10021 = vadd.f32 %v9828, %v10020
    %v10022 = vpop.f32.mrf.mxu0
    %v10023 = vadd.f32 %v9830, %v10022
    %10024 = vmatprep.mubr.bf16.mxu0 %v6950
    %10025 = vmatmul.mubr.bf16.gmra.mxu0 %v6949
    %v10026 = vpop.f32.mrf.mxu0
    %v10027 = vadd.f32 %v9834, %v10026
    %v10028 = vpop.f32.mrf.mxu0
    %v10029 = vadd.f32 %v9836, %v10028
    %v10030 = vpop.f32.mrf.mxu0
    %v10031 = vadd.f32 %v9838, %v10030
    %v10032 = vpop.f32.mrf.mxu0
    %v10033 = vadd.f32 %v9840, %v10032
    %10034 = vmatprep.mubr.bf16.mxu0 %v6958
    %10035 = vmatmul.mubr.bf16.gmra.mxu0 %v6957
    %v10036 = vpop.f32.mrf.mxu0
    %v10037 = vadd.f32 %v9844, %v10036
    %v10038 = vpop.f32.mrf.mxu0
    %v10039 = vadd.f32 %v9846, %v10038
    %v10040 = vpop.f32.mrf.mxu0
    %v10041 = vadd.f32 %v9848, %v10040
    %v10042 = vpop.f32.mrf.mxu0
    %v10043 = vadd.f32 %v9850, %v10042
    %10044 = vmatprep.mubr.bf16.mxu0 %v6966
    %10045 = vmatmul.mubr.bf16.gmra.mxu0 %v6965
    %v10046 = vpop.f32.mrf.mxu0
    %v10047 = vadd.f32 %v9854, %v10046
    %v10048 = vpop.f32.mrf.mxu0
    %v10049 = vadd.f32 %v9856, %v10048
    %v10050 = vpop.f32.mrf.mxu0
    %v10051 = vadd.f32 %v9858, %v10050
    %v10052 = vpop.f32.mrf.mxu0
    %v10053 = vadd.f32 %v9860, %v10052
    %10054 = vmatprep.mubr.bf16.mxu0 %v6974
    %10055 = vmatmul.mubr.bf16.gmra.mxu0 %v6973
    %v10056 = vpop.f32.mrf.mxu0
    %v10057 = vadd.f32 %v9864, %v10056
    %v10058 = vpop.f32.mrf.mxu0
    %v10059 = vadd.f32 %v9866, %v10058
    %v10060 = vpop.f32.mrf.mxu0
    %v10061 = vadd.f32 %v9868, %v10060
    %v10062 = vpop.f32.mrf.mxu0
    %v10063 = vadd.f32 %v9870, %v10062
    %10064 = vmatprep.mubr.bf16.mxu0 %v6982
    %10065 = vmatmul.mubr.bf16.gmra.mxu0 %v6981
    %v10066 = vpop.f32.mrf.mxu0
    %v10067 = vadd.f32 %v9874, %v10066
    %v10068 = vpop.f32.mrf.mxu0
    %v10069 = vadd.f32 %v9876, %v10068
    %v10070 = vpop.f32.mrf.mxu0
    %v10071 = vadd.f32 %v9878, %v10070
    %v10072 = vpop.f32.mrf.mxu0
    %v10073 = vadd.f32 %v9880, %v10072
    %10074 = vmatprep.mubr.bf16.mxu0 %v6990
    %10075 = vmatmul.mubr.bf16.gmra.mxu0 %v6989
    %v10076 = vpop.f32.mrf.mxu0
    %v10077 = vadd.f32 %v9884, %v10076
    %v10078 = vpop.f32.mrf.mxu0
    %v10079 = vadd.f32 %v9886, %v10078
    %v10080 = vpop.f32.mrf.mxu0
    %v10081 = vadd.f32 %v9888, %v10080
    %v10082 = vpop.f32.mrf.mxu0
    %v10083 = vadd.f32 %v9890, %v10082
    %10084 = vmatprep.mubr.bf16.mxu0 %v6998
    %10085 = vmatmul.mubr.bf16.gmra.mxu0 %v6997
    %v10086 = vpop.f32.mrf.mxu0
    %v10087 = vadd.f32 %v9894, %v10086
    %v10088 = vpop.f32.mrf.mxu0
    %v10089 = vadd.f32 %v9896, %v10088
    %v10090 = vpop.f32.mrf.mxu0
    %v10091 = vadd.f32 %v9898, %v10090
    %v10092 = vpop.f32.mrf.mxu0
    %v10093 = vadd.f32 %v9900, %v10092
    %10094 = vmatprep.mubr.bf16.mxu0 %v7006
    %10095 = vmatmul.mubr.bf16.gmra.mxu0 %v7005
    %v10096 = vpop.f32.mrf.mxu0
    %v10097 = vadd.f32 %v9904, %v10096
    %v10098 = vpop.f32.mrf.mxu0
    %v10099 = vadd.f32 %v9906, %v10098
    %v10100 = vpop.f32.mrf.mxu0
    %v10101 = vadd.f32 %v9908, %v10100
    %v10102 = vpop.f32.mrf.mxu0
    %v10103 = vadd.f32 %v9910, %v10102
    %10104 = vmatprep.mubr.bf16.mxu0 %v7014
    %10105 = vmatmul.mubr.bf16.gmra.mxu0 %v7013
    %v10106 = vpop.f32.mrf.mxu0
    %v10107 = vadd.f32 %v9914, %v10106
    %v10108 = vpop.f32.mrf.mxu0
    %v10109 = vadd.f32 %v9916, %v10108
    %v10110 = vpop.f32.mrf.mxu0
    %v10111 = vadd.f32 %v9918, %v10110
    %v10112 = vpop.f32.mrf.mxu0
    %v10113 = vadd.f32 %v9920, %v10112
    %10114 = vmatprep.mubr.bf16.mxu0 %v7022
    %10115 = vmatmul.mubr.bf16.gmra.mxu0 %v7021
    %v10116 = vpop.f32.mrf.mxu0
    %v10117 = vadd.f32 %v9924, %v10116
    %v10118 = vpop.f32.mrf.mxu0
    %v10119 = vadd.f32 %v9926, %v10118
    %v10120 = vpop.f32.mrf.mxu0
    %v10121 = vadd.f32 %v9928, %v10120
    %v10122 = vpop.f32.mrf.mxu0
    %v10123 = vadd.f32 %v9930, %v10122
    %10124 = vdwg.mxu0
    %v10125 = vmax.f32 %v9195, 0.0
    %v10126 = vmax.f32 %v9197, 0.0
    %v10127 = vmax.f32 %v9967, 0.0
    %v10128 = vmax.f32 %v9969, 0.0
    %v10129 = vmax.f32 %v9199, 0.0
    %v10130 = vmax.f32 %v9201, 0.0
    %v10131 = vmax.f32 %v9971, 0.0
    %v10132 = vmax.f32 %v9973, 0.0
    %v10133 = vmax.f32 %v9205, 0.0
    %v10134 = vmax.f32 %v9207, 0.0
    %v10135 = vmax.f32 %v9977, 0.0
    %v10136 = vmax.f32 %v9979, 0.0
    %v10137 = vmax.f32 %v9209, 0.0
    %v10138 = vmax.f32 %v9211, 0.0
    %v10139 = vmax.f32 %v9981, 0.0
    %v10140 = vmax.f32 %v9983, 0.0
    %v10141 = vmax.f32 %v9215, 0.0
    %v10142 = vmax.f32 %v9217, 0.0
    %v10143 = vmax.f32 %v9987, 0.0
    %v10144 = vmax.f32 %v9989, 0.0
    %v10145 = vmax.f32 %v9219, 0.0
    %v10146 = vmax.f32 %v9221, 0.0
    %v10147 = vmax.f32 %v9991, 0.0
    %v10148 = vmax.f32 %v9993, 0.0
    %v10149 = vmax.f32 %v9225, 0.0
    %v10150 = vmax.f32 %v9227, 0.0
    %v10151 = vmax.f32 %v9997, 0.0
    %v10152 = vmax.f32 %v9999, 0.0
    %v10153 = vmax.f32 %v9229, 0.0
    %v10154 = vmax.f32 %v9231, 0.0
    %v10155 = vmax.f32 %v10001, 0.0
    %v10156 = vmax.f32 %v10003, 0.0
    %v10157 = vmax.f32 %v9235, 0.0
    %v10158 = vmax.f32 %v9237, 0.0
    %v10159 = vmax.f32 %v10007, 0.0
    %v10160 = vmax.f32 %v10009, 0.0
    %v10161 = vmax.f32 %v9239, 0.0
    %v10162 = vmax.f32 %v9241, 0.0
    %v10163 = vmax.f32 %v10011, 0.0
    %v10164 = vmax.f32 %v10013, 0.0
    %v10165 = vmax.f32 %v9245, 0.0
    %v10166 = vmax.f32 %v9247, 0.0
    %v10167 = vmax.f32 %v10017, 0.0
    %v10168 = vmax.f32 %v10019, 0.0
    %v10169 = vmax.f32 %v9249, 0.0
    %v10170 = vmax.f32 %v9251, 0.0
    %v10171 = vmax.f32 %v10021, 0.0
    %v10172 = vmax.f32 %v10023, 0.0
    %v10173 = vmax.f32 %v9255, 0.0
    %v10174 = vmax.f32 %v9257, 0.0
    %v10175 = vmax.f32 %v10027, 0.0
    %v10176 = vmax.f32 %v10029, 0.0
    %v10177 = vmax.f32 %v9259, 0.0
    %v10178 = vmax.f32 %v9261, 0.0
    %v10179 = vmax.f32 %v10031, 0.0
    %v10180 = vmax.f32 %v10033, 0.0
    %v10181 = vmax.f32 %v9265, 0.0
    %v10182 = vmax.f32 %v9267, 0.0
    %v10183 = vmax.f32 %v10037, 0.0
    %v10184 = vmax.f32 %v10039, 0.0
    %v10185 = vmax.f32 %v9269, 0.0
    %v10186 = vmax.f32 %v9271, 0.0
    %v10187 = vmax.f32 %v10041, 0.0
    %v10188 = vmax.f32 %v10043, 0.0
    %v10189 = vmax.f32 %v9275, 0.0
    %v10190 = vmax.f32 %v9277, 0.0
    %v10191 = vmax.f32 %v10047, 0.0
    %v10192 = vmax.f32 %v10049, 0.0
    %v10193 = vmax.f32 %v9279, 0.0
    %v10194 = vmax.f32 %v9281, 0.0
    %v10195 = vmax.f32 %v10051, 0.0
    %v10196 = vmax.f32 %v10053, 0.0
    %v10197 = vmax.f32 %v9285, 0.0
    %v10198 = vmax.f32 %v9287, 0.0
    %v10199 = vmax.f32 %v10057, 0.0
    %v10200 = vmax.f32 %v10059, 0.0
    %v10201 = vmax.f32 %v9289, 0.0
    %v10202 = vmax.f32 %v9291, 0.0
    %v10203 = vmax.f32 %v10061, 0.0
    %v10204 = vmax.f32 %v10063, 0.0
    %v10205 = vmax.f32 %v9295, 0.0
    %v10206 = vmax.f32 %v9297, 0.0
    %v10207 = vmax.f32 %v10067, 0.0
    %v10208 = vmax.f32 %v10069, 0.0
    %v10209 = vmax.f32 %v9299, 0.0
    %v10210 = vmax.f32 %v9301, 0.0
    %v10211 = vmax.f32 %v10071, 0.0
    %v10212 = vmax.f32 %v10073, 0.0
    %v10213 = vmax.f32 %v9305, 0.0
    %v10214 = vmax.f32 %v9307, 0.0
    %v10215 = vmax.f32 %v10077, 0.0
    %v10216 = vmax.f32 %v10079, 0.0
    %v10217 = vmax.f32 %v9309, 0.0
    %v10218 = vmax.f32 %v9311, 0.0
    %v10219 = vmax.f32 %v10081, 0.0
    %v10220 = vmax.f32 %v10083, 0.0
    %v10221 = vmax.f32 %v9315, 0.0
    %v10222 = vmax.f32 %v9317, 0.0
    %v10223 = vmax.f32 %v10087, 0.0
    %v10224 = vmax.f32 %v10089, 0.0
    %v10225 = vmax.f32 %v9319, 0.0
    %v10226 = vmax.f32 %v9321, 0.0
    %v10227 = vmax.f32 %v10091, 0.0
    %v10228 = vmax.f32 %v10093, 0.0
    %v10229 = vmax.f32 %v9325, 0.0
    %v10230 = vmax.f32 %v9327, 0.0
    %v10231 = vmax.f32 %v10097, 0.0
    %v10232 = vmax.f32 %v10099, 0.0
    %v10233 = vmax.f32 %v9329, 0.0
    %v10234 = vmax.f32 %v9331, 0.0
    %v10235 = vmax.f32 %v10101, 0.0
    %v10236 = vmax.f32 %v10103, 0.0
    %v10237 = vmax.f32 %v9335, 0.0
    %v10238 = vmax.f32 %v9337, 0.0
    %v10239 = vmax.f32 %v10107, 0.0
    %v10240 = vmax.f32 %v10109, 0.0
    %v10241 = vmax.f32 %v9339, 0.0
    %v10242 = vmax.f32 %v9341, 0.0
    %v10243 = vmax.f32 %v10111, 0.0
    %v10244 = vmax.f32 %v10113, 0.0
    %v10245 = vmax.f32 %v9345, 0.0
    %v10246 = vmax.f32 %v9347, 0.0
    %v10247 = vmax.f32 %v10117, 0.0
    %v10248 = vmax.f32 %v10119, 0.0
    %v10249 = vmax.f32 %v9349, 0.0
    %v10250 = vmax.f32 %v9351, 0.0
    %v10251 = vmax.f32 %v10121, 0.0
    %v10252 = vmax.f32 %v10123, 0.0
    %v10253 = vpack.c.bf16 %v10129, %v10125
    %v10254 = vpack.c.bf16 %v10130, %v10126
    %v10255 = vpack.c.bf16 %v10131, %v10127
    %v10256 = vpack.c.bf16 %v10132, %v10128
    %v10257 = vpack.c.bf16 %v10137, %v10133
    %v10258 = vpack.c.bf16 %v10138, %v10134
    %v10259 = vpack.c.bf16 %v10139, %v10135
    %v10260 = vpack.c.bf16 %v10140, %v10136
    %v10261 = vpack.c.bf16 %v10145, %v10141
    %v10262 = vpack.c.bf16 %v10146, %v10142
    %v10263 = vpack.c.bf16 %v10147, %v10143
    %v10264 = vpack.c.bf16 %v10148, %v10144
    %v10265 = vpack.c.bf16 %v10153, %v10149
    %v10266 = vpack.c.bf16 %v10154, %v10150
    %v10267 = vpack.c.bf16 %v10155, %v10151
    %v10268 = vpack.c.bf16 %v10156, %v10152
    %v10269 = vpack.c.bf16 %v10161, %v10157
    %v10270 = vpack.c.bf16 %v10162, %v10158
    %v10271 = vpack.c.bf16 %v10163, %v10159
    %v10272 = vpack.c.bf16 %v10164, %v10160
    %v10273 = vpack.c.bf16 %v10169, %v10165
    %v10274 = vpack.c.bf16 %v10170, %v10166
    %v10275 = vpack.c.bf16 %v10171, %v10167
    %v10276 = vpack.c.bf16 %v10172, %v10168
    %v10277 = vpack.c.bf16 %v10177, %v10173
    %v10278 = vpack.c.bf16 %v10178, %v10174
    %v10279 = vpack.c.bf16 %v10179, %v10175
    %v10280 = vpack.c.bf16 %v10180, %v10176
    %v10281 = vpack.c.bf16 %v10185, %v10181
    %v10282 = vpack.c.bf16 %v10186, %v10182
    %v10283 = vpack.c.bf16 %v10187, %v10183
    %v10284 = vpack.c.bf16 %v10188, %v10184
    %v10285 = vpack.c.bf16 %v10193, %v10189
    %v10286 = vpack.c.bf16 %v10194, %v10190
    %v10287 = vpack.c.bf16 %v10195, %v10191
    %v10288 = vpack.c.bf16 %v10196, %v10192
    %v10289 = vpack.c.bf16 %v10201, %v10197
    %v10290 = vpack.c.bf16 %v10202, %v10198
    %v10291 = vpack.c.bf16 %v10203, %v10199
    %v10292 = vpack.c.bf16 %v10204, %v10200
    %v10293 = vpack.c.bf16 %v10209, %v10205
    %v10294 = vpack.c.bf16 %v10210, %v10206
    %v10295 = vpack.c.bf16 %v10211, %v10207
    %v10296 = vpack.c.bf16 %v10212, %v10208
    %v10297 = vpack.c.bf16 %v10217, %v10213
    %v10298 = vpack.c.bf16 %v10218, %v10214
    %v10299 = vpack.c.bf16 %v10219, %v10215
    %v10300 = vpack.c.bf16 %v10220, %v10216
    %v10301 = vpack.c.bf16 %v10225, %v10221
    %v10302 = vpack.c.bf16 %v10226, %v10222
    %v10303 = vpack.c.bf16 %v10227, %v10223
    %v10304 = vpack.c.bf16 %v10228, %v10224
    %v10305 = vpack.c.bf16 %v10233, %v10229
    %v10306 = vpack.c.bf16 %v10234, %v10230
    %v10307 = vpack.c.bf16 %v10235, %v10231
    %v10308 = vpack.c.bf16 %v10236, %v10232
    %v10309 = vpack.c.bf16 %v10241, %v10237
    %v10310 = vpack.c.bf16 %v10242, %v10238
    %v10311 = vpack.c.bf16 %v10243, %v10239
    %v10312 = vpack.c.bf16 %v10244, %v10240
    %v10313 = vpack.c.bf16 %v10249, %v10245
    %v10314 = vpack.c.bf16 %v10250, %v10246
    %v10315 = vpack.c.bf16 %v10251, %v10247
    %v10316 = vpack.c.bf16 %v10252, %v10248
    %v10317 = vld [vmem:[#allocation11] sm:$0xf]
    %v10318 = vld [vmem:[#allocation11 + $0x4] sm:$0xf]
    %v10319 = vld [vmem:[#allocation11 + $0x8] sm:$0xf]
    %v10320 = vld [vmem:[#allocation11 + $0xc] sm:$0xf]
    %v10321 = vld [vmem:[#allocation11 + $0x10] sm:$0xf]
    %v10322 = vld [vmem:[#allocation11 + $0x14] sm:$0xf]
    %v10323 = vld [vmem:[#allocation11 + $0x18] sm:$0xf]
    %v10324 = vld [vmem:[#allocation11 + $0x1c] sm:$0xf]
    %v10325 = vld [vmem:[#allocation11 + $0x20] sm:$0xf]
    %v10326 = vld [vmem:[#allocation11 + $0x24] sm:$0xf]
    %v10327 = vld [vmem:[#allocation11 + $0x28] sm:$0xf]
    %v10328 = vld [vmem:[#allocation11 + $0x2c] sm:$0xf]
    %v10329 = vld [vmem:[#allocation11 + $0x30] sm:$0xf]
    %v10330 = vld [vmem:[#allocation11 + $0x34] sm:$0xf]
    %v10331 = vld [vmem:[#allocation11 + $0x38] sm:$0xf]
    %v10332 = vld [vmem:[#allocation11 + $0x3c] sm:$0xf]
    %v10333 = vld [vmem:[#allocation11 + $0x40] sm:$0xf]
    %v10334 = vld [vmem:[#allocation11 + $0x44] sm:$0xf]
    %v10335 = vld [vmem:[#allocation11 + $0x48] sm:$0xf]
    %v10336 = vld [vmem:[#allocation11 + $0x4c] sm:$0xf]
    %v10337 = vld [vmem:[#allocation11 + $0x50] sm:$0xf]
    %v10338 = vld [vmem:[#allocation11 + $0x54] sm:$0xf]
    %v10339 = vld [vmem:[#allocation11 + $0x58] sm:$0xf]
    %v10340 = vld [vmem:[#allocation11 + $0x5c] sm:$0xf]
    %v10341 = vld [vmem:[#allocation11 + $0x60] sm:$0xf]
    %v10342 = vld [vmem:[#allocation11 + $0x64] sm:$0xf]
    %v10343 = vld [vmem:[#allocation11 + $0x68] sm:$0xf]
    %v10344 = vld [vmem:[#allocation11 + $0x6c] sm:$0xf]
    %v10345 = vld [vmem:[#allocation11 + $0x70] sm:$0xf]
    %v10346 = vld [vmem:[#allocation11 + $0x74] sm:$0xf]
    %v10347 = vld [vmem:[#allocation11 + $0x78] sm:$0xf]
    %v10348 = vld [vmem:[#allocation11 + $0x7c] sm:$0xf]
    %v10349 = vld [vmem:[#allocation11 + $0x80] sm:$0xf]
    %v10350 = vld [vmem:[#allocation11 + $0x84] sm:$0xf]
    %v10351 = vld [vmem:[#allocation11 + $0x88] sm:$0xf]
    %v10352 = vld [vmem:[#allocation11 + $0x8c] sm:$0xf]
    %v10353 = vld [vmem:[#allocation11 + $0x90] sm:$0xf]
    %v10354 = vld [vmem:[#allocation11 + $0x94] sm:$0xf]
    %v10355 = vld [vmem:[#allocation11 + $0x98] sm:$0xf]
    %v10356 = vld [vmem:[#allocation11 + $0x9c] sm:$0xf]
    %v10357 = vld [vmem:[#allocation11 + $0xa0] sm:$0xf]
    %v10358 = vld [vmem:[#allocation11 + $0xa4] sm:$0xf]
    %v10359 = vld [vmem:[#allocation11 + $0xa8] sm:$0xf]
    %v10360 = vld [vmem:[#allocation11 + $0xac] sm:$0xf]
    %v10361 = vld [vmem:[#allocation11 + $0xb0] sm:$0xf]
    %v10362 = vld [vmem:[#allocation11 + $0xb4] sm:$0xf]
    %v10363 = vld [vmem:[#allocation11 + $0xb8] sm:$0xf]
    %v10364 = vld [vmem:[#allocation11 + $0xbc] sm:$0xf]
    %v10365 = vld [vmem:[#allocation11 + $0xc0] sm:$0xf]
    %v10366 = vld [vmem:[#allocation11 + $0xc4] sm:$0xf]
    %v10367 = vld [vmem:[#allocation11 + $0xc8] sm:$0xf]
    %v10368 = vld [vmem:[#allocation11 + $0xcc] sm:$0xf]
    %v10369 = vld [vmem:[#allocation11 + $0xd0] sm:$0xf]
    %v10370 = vld [vmem:[#allocation11 + $0xd4] sm:$0xf]
    %v10371 = vld [vmem:[#allocation11 + $0xd8] sm:$0xf]
    %v10372 = vld [vmem:[#allocation11 + $0xdc] sm:$0xf]
    %v10373 = vld [vmem:[#allocation11 + $0xe0] sm:$0xf]
    %v10374 = vld [vmem:[#allocation11 + $0xe4] sm:$0xf]
    %v10375 = vld [vmem:[#allocation11 + $0xe8] sm:$0xf]
    %v10376 = vld [vmem:[#allocation11 + $0xec] sm:$0xf]
    %v10377 = vld [vmem:[#allocation11 + $0xf0] sm:$0xf]
    %v10378 = vld [vmem:[#allocation11 + $0xf4] sm:$0xf]
    %v10379 = vld [vmem:[#allocation11 + $0xf8] sm:$0xf]
    %v10380 = vld [vmem:[#allocation11 + $0xfc] sm:$0xf]
    %v10381 = vld [vmem:[#allocation13] sm:$0x1]
    %v10383 = vlaneseq
    %v10384 = vshrl.u32 %v10383, 7
    %v10385 = vsub.s32 0, %v10384
    %v10386 = vrot.slane %v10381, %v10385
    %v10452 = vunpack.c.l.b16 %v10317
    %v10453 = vunpack.c.l.b16 %v10318
    %v10454 = vunpack.c.l.b16 %v10319
    %v10455 = vunpack.c.l.b16 %v10320
    %v10456 = vunpack.c.l.b16 %v10321
    %v10457 = vunpack.c.l.b16 %v10322
    %v10458 = vunpack.c.l.b16 %v10323
    %v10459 = vunpack.c.l.b16 %v10324
    %v10460 = vunpack.c.l.b16 %v10325
    %v10461 = vunpack.c.l.b16 %v10326
    %v10462 = vunpack.c.l.b16 %v10327
    %v10463 = vunpack.c.l.b16 %v10328
    %v10464 = vunpack.c.l.b16 %v10329
    %v10465 = vunpack.c.l.b16 %v10330
    %v10466 = vunpack.c.l.b16 %v10331
    %v10467 = vunpack.c.l.b16 %v10332
    %v10468 = vunpack.c.l.b16 %v10333
    %v10469 = vunpack.c.l.b16 %v10334
    %v10470 = vunpack.c.l.b16 %v10335
    %v10471 = vunpack.c.l.b16 %v10336
    %v10472 = vunpack.c.l.b16 %v10337
    %v10473 = vunpack.c.l.b16 %v10338
    %v10474 = vunpack.c.l.b16 %v10339
    %v10475 = vunpack.c.l.b16 %v10340
    %v10476 = vunpack.c.l.b16 %v10341
    %v10477 = vunpack.c.l.b16 %v10342
    %v10478 = vunpack.c.l.b16 %v10343
    %v10479 = vunpack.c.l.b16 %v10344
    %v10480 = vunpack.c.l.b16 %v10345
    %v10481 = vunpack.c.l.b16 %v10346
    %v10482 = vunpack.c.l.b16 %v10347
    %v10483 = vunpack.c.l.b16 %v10348
    %v10484 = vunpack.c.l.b16 %v10349
    %v10485 = vunpack.c.l.b16 %v10350
    %v10486 = vunpack.c.l.b16 %v10351
    %v10487 = vunpack.c.l.b16 %v10352
    %v10488 = vunpack.c.l.b16 %v10353
    %v10489 = vunpack.c.l.b16 %v10354
    %v10490 = vunpack.c.l.b16 %v10355
    %v10491 = vunpack.c.l.b16 %v10356
    %v10492 = vunpack.c.l.b16 %v10357
    %v10493 = vunpack.c.l.b16 %v10358
    %v10494 = vunpack.c.l.b16 %v10359
    %v10495 = vunpack.c.l.b16 %v10360
    %v10496 = vunpack.c.l.b16 %v10361
    %v10497 = vunpack.c.l.b16 %v10362
    %v10498 = vunpack.c.l.b16 %v10363
    %v10499 = vunpack.c.l.b16 %v10364
    %v10500 = vunpack.c.l.b16 %v10365
    %v10501 = vunpack.c.l.b16 %v10366
    %v10502 = vunpack.c.l.b16 %v10367
    %v10503 = vunpack.c.l.b16 %v10368
    %v10504 = vunpack.c.l.b16 %v10369
    %v10505 = vunpack.c.l.b16 %v10370
    %v10506 = vunpack.c.l.b16 %v10371
    %v10507 = vunpack.c.l.b16 %v10372
    %v10508 = vunpack.c.l.b16 %v10373
    %v10509 = vunpack.c.l.b16 %v10374
    %v10510 = vunpack.c.l.b16 %v10375
    %v10511 = vunpack.c.l.b16 %v10376
    %v10512 = vunpack.c.l.b16 %v10377
    %v10513 = vunpack.c.l.b16 %v10378
    %v10514 = vunpack.c.l.b16 %v10379
    %v10515 = vunpack.c.l.b16 %v10380
    %v10516 = vpack.c.b16 %v10453, %v10452
    %v10517 = vpack.c.b16 %v10455, %v10454
    %v10518 = vpack.c.b16 %v10457, %v10456
    %v10519 = vpack.c.b16 %v10459, %v10458
    %v10520 = vpack.c.b16 %v10461, %v10460
    %v10521 = vpack.c.b16 %v10463, %v10462
    %v10522 = vpack.c.b16 %v10465, %v10464
    %v10523 = vpack.c.b16 %v10467, %v10466
    %v10524 = vpack.c.b16 %v10469, %v10468
    %v10525 = vpack.c.b16 %v10471, %v10470
    %v10526 = vpack.c.b16 %v10473, %v10472
    %v10527 = vpack.c.b16 %v10475, %v10474
    %v10528 = vpack.c.b16 %v10477, %v10476
    %v10529 = vpack.c.b16 %v10479, %v10478
    %v10530 = vpack.c.b16 %v10481, %v10480
    %v10531 = vpack.c.b16 %v10483, %v10482
    %v10532 = vpack.c.b16 %v10485, %v10484
    %v10533 = vpack.c.b16 %v10487, %v10486
    %v10534 = vpack.c.b16 %v10489, %v10488
    %v10535 = vpack.c.b16 %v10491, %v10490
    %v10536 = vpack.c.b16 %v10493, %v10492
    %v10537 = vpack.c.b16 %v10495, %v10494
    %v10538 = vpack.c.b16 %v10497, %v10496
    %v10539 = vpack.c.b16 %v10499, %v10498
    %v10540 = vpack.c.b16 %v10501, %v10500
    %v10541 = vpack.c.b16 %v10503, %v10502
    %v10542 = vpack.c.b16 %v10505, %v10504
    %v10543 = vpack.c.b16 %v10507, %v10506
    %v10544 = vpack.c.b16 %v10509, %v10508
    %v10545 = vpack.c.b16 %v10511, %v10510
    %v10546 = vpack.c.b16 %v10513, %v10512
    %v10547 = vpack.c.b16 %v10515, %v10514
    %10580 = vmatprep.subr.bf16.mxu0 0
    %10581 = vmatpush1.bf16.msra.mxu0 %v10523
    %10582 = vmatprep.subr.bf16.mxu0 0
    %10583 = vmatpush1.bf16.msra.mxu0 %v10522
    %10584 = vmatprep.subr.bf16.mxu0 0
    %10585 = vmatpush1.bf16.msra.mxu0 %v10521
    %10586 = vmatprep.subr.bf16.mxu0 0
    %10587 = vmatpush1.bf16.msra.mxu0 %v10520
    %10588 = vmatprep.subr.bf16.mxu0 0
    %10589 = vmatpush1.bf16.msra.mxu0 %v10519
    %10590 = vmatprep.subr.bf16.mxu0 0
    %10591 = vmatpush1.bf16.msra.mxu0 %v10518
    %10592 = vmatprep.subr.bf16.mxu0 0
    %10593 = vmatpush1.bf16.msra.mxu0 %v10517
    %10594 = vmatprep.subr.bf16.mxu0 0
    %10595 = vmatpush1.bf16.msra.mxu0 %v10516
    %10596 = vmatprep.subr.bf16.mxu0 0
    %10597 = vmatpush2.bf16.msra.mxu0 %v10531
    %10598 = vmatprep.subr.bf16.mxu0 0
    %10599 = vmatpush2.bf16.msra.mxu0 %v10530
    %10600 = vmatprep.subr.bf16.mxu0 0
    %10601 = vmatpush2.bf16.msra.mxu0 %v10529
    %10602 = vmatprep.subr.bf16.mxu0 0
    %10603 = vmatpush2.bf16.msra.mxu0 %v10528
    %10604 = vmatprep.subr.bf16.mxu0 0
    %10605 = vmatpush2.bf16.msra.mxu0 %v10527
    %10606 = vmatprep.subr.bf16.mxu0 0
    %10607 = vmatpush2.bf16.msra.mxu0 %v10526
    %10608 = vmatprep.subr.bf16.mxu0 0
    %10609 = vmatpush2.bf16.msra.mxu0 %v10525
    %10610 = vmatprep.subr.bf16.mxu0 0
    %10611 = vmatpush2.bf16.msra.mxu0 %v10524
    %10612 = vmatprep.mubr.bf16.mxu0 %v10254
    %10613 = vmatmul.mubr.bf16.gmra.mxu0 %v10253
    %v10614 = vpop.f32.mrf.mxu0
    %v10615 = vadd.f32 %v10386, %v10614
    %v10616 = vpop.f32.mrf.mxu0
    %v10617 = vpop.f32.mrf.mxu0
    %v10618 = vadd.f32 %v10386, %v10617
    %v10619 = vpop.f32.mrf.mxu0
    %10620 = vmatprep.mubr.bf16.mxu0 %v10258
    %10621 = vmatmul.mubr.bf16.gmra.mxu0 %v10257
    %v10622 = vpop.f32.mrf.mxu0
    %v10623 = vadd.f32 %v10386, %v10622
    %v10624 = vpop.f32.mrf.mxu0
    %v10625 = vpop.f32.mrf.mxu0
    %v10626 = vadd.f32 %v10386, %v10625
    %v10627 = vpop.f32.mrf.mxu0
    %10628 = vmatprep.mubr.bf16.mxu0 %v10262
    %10629 = vmatmul.mubr.bf16.gmra.mxu0 %v10261
    %v10630 = vpop.f32.mrf.mxu0
    %v10631 = vadd.f32 %v10386, %v10630
    %v10632 = vpop.f32.mrf.mxu0
    %v10633 = vpop.f32.mrf.mxu0
    %v10634 = vadd.f32 %v10386, %v10633
    %v10635 = vpop.f32.mrf.mxu0
    %10636 = vmatprep.mubr.bf16.mxu0 %v10266
    %10637 = vmatmul.mubr.bf16.gmra.mxu0 %v10265
    %v10638 = vpop.f32.mrf.mxu0
    %v10639 = vadd.f32 %v10386, %v10638
    %v10640 = vpop.f32.mrf.mxu0
    %v10641 = vpop.f32.mrf.mxu0
    %v10642 = vadd.f32 %v10386, %v10641
    %v10643 = vpop.f32.mrf.mxu0
    %10644 = vmatprep.mubr.bf16.mxu0 %v10270
    %10645 = vmatmul.mubr.bf16.gmra.mxu0 %v10269
    %v10646 = vpop.f32.mrf.mxu0
    %v10647 = vadd.f32 %v10386, %v10646
    %v10648 = vpop.f32.mrf.mxu0
    %v10649 = vpop.f32.mrf.mxu0
    %v10650 = vadd.f32 %v10386, %v10649
    %v10651 = vpop.f32.mrf.mxu0
    %10652 = vmatprep.mubr.bf16.mxu0 %v10274
    %10653 = vmatmul.mubr.bf16.gmra.mxu0 %v10273
    %v10654 = vpop.f32.mrf.mxu0
    %v10655 = vadd.f32 %v10386, %v10654
    %v10656 = vpop.f32.mrf.mxu0
    %v10657 = vpop.f32.mrf.mxu0
    %v10658 = vadd.f32 %v10386, %v10657
    %v10659 = vpop.f32.mrf.mxu0
    %10660 = vmatprep.mubr.bf16.mxu0 %v10278
    %10661 = vmatmul.mubr.bf16.gmra.mxu0 %v10277
    %v10662 = vpop.f32.mrf.mxu0
    %v10663 = vadd.f32 %v10386, %v10662
    %v10664 = vpop.f32.mrf.mxu0
    %v10665 = vpop.f32.mrf.mxu0
    %v10666 = vadd.f32 %v10386, %v10665
    %v10667 = vpop.f32.mrf.mxu0
    %10668 = vmatprep.mubr.bf16.mxu0 %v10282
    %10669 = vmatmul.mubr.bf16.gmra.mxu0 %v10281
    %v10670 = vpop.f32.mrf.mxu0
    %v10671 = vadd.f32 %v10386, %v10670
    %v10672 = vpop.f32.mrf.mxu0
    %v10673 = vpop.f32.mrf.mxu0
    %v10674 = vadd.f32 %v10386, %v10673
    %v10675 = vpop.f32.mrf.mxu0
    %10676 = vmatprep.mubr.bf16.mxu0 %v10286
    %10677 = vmatmul.mubr.bf16.gmra.mxu0 %v10285
    %v10678 = vpop.f32.mrf.mxu0
    %v10679 = vadd.f32 %v10386, %v10678
    %v10680 = vpop.f32.mrf.mxu0
    %v10681 = vpop.f32.mrf.mxu0
    %v10682 = vadd.f32 %v10386, %v10681
    %v10683 = vpop.f32.mrf.mxu0
    %10684 = vmatprep.mubr.bf16.mxu0 %v10290
    %10685 = vmatmul.mubr.bf16.gmra.mxu0 %v10289
    %v10686 = vpop.f32.mrf.mxu0
    %v10687 = vadd.f32 %v10386, %v10686
    %v10688 = vpop.f32.mrf.mxu0
    %v10689 = vpop.f32.mrf.mxu0
    %v10690 = vadd.f32 %v10386, %v10689
    %v10691 = vpop.f32.mrf.mxu0
    %10692 = vmatprep.mubr.bf16.mxu0 %v10294
    %10693 = vmatmul.mubr.bf16.gmra.mxu0 %v10293
    %v10694 = vpop.f32.mrf.mxu0
    %v10695 = vadd.f32 %v10386, %v10694
    %v10696 = vpop.f32.mrf.mxu0
    %v10697 = vpop.f32.mrf.mxu0
    %v10698 = vadd.f32 %v10386, %v10697
    %v10699 = vpop.f32.mrf.mxu0
    %10700 = vmatprep.mubr.bf16.mxu0 %v10298
    %10701 = vmatmul.mubr.bf16.gmra.mxu0 %v10297
    %v10702 = vpop.f32.mrf.mxu0
    %v10703 = vadd.f32 %v10386, %v10702
    %v10704 = vpop.f32.mrf.mxu0
    %v10705 = vpop.f32.mrf.mxu0
    %v10706 = vadd.f32 %v10386, %v10705
    %v10707 = vpop.f32.mrf.mxu0
    %10708 = vmatprep.mubr.bf16.mxu0 %v10302
    %10709 = vmatmul.mubr.bf16.gmra.mxu0 %v10301
    %v10710 = vpop.f32.mrf.mxu0
    %v10711 = vadd.f32 %v10386, %v10710
    %v10712 = vpop.f32.mrf.mxu0
    %v10713 = vpop.f32.mrf.mxu0
    %v10714 = vadd.f32 %v10386, %v10713
    %v10715 = vpop.f32.mrf.mxu0
    %10716 = vmatprep.mubr.bf16.mxu0 %v10306
    %10717 = vmatmul.mubr.bf16.gmra.mxu0 %v10305
    %v10718 = vpop.f32.mrf.mxu0
    %v10719 = vadd.f32 %v10386, %v10718
    %v10720 = vpop.f32.mrf.mxu0
    %v10721 = vpop.f32.mrf.mxu0
    %v10722 = vadd.f32 %v10386, %v10721
    %v10723 = vpop.f32.mrf.mxu0
    %10724 = vmatprep.mubr.bf16.mxu0 %v10310
    %10725 = vmatmul.mubr.bf16.gmra.mxu0 %v10309
    %v10726 = vpop.f32.mrf.mxu0
    %v10727 = vadd.f32 %v10386, %v10726
    %v10728 = vpop.f32.mrf.mxu0
    %v10729 = vpop.f32.mrf.mxu0
    %v10730 = vadd.f32 %v10386, %v10729
    %v10731 = vpop.f32.mrf.mxu0
    %10732 = vmatprep.mubr.bf16.mxu0 %v10314
    %10733 = vmatmul.mubr.bf16.gmra.mxu0 %v10313
    %v10734 = vpop.f32.mrf.mxu0
    %v10735 = vadd.f32 %v10386, %v10734
    %v10736 = vpop.f32.mrf.mxu0
    %v10737 = vpop.f32.mrf.mxu0
    %v10738 = vadd.f32 %v10386, %v10737
    %v10739 = vpop.f32.mrf.mxu0
    %10740 = vdwg.mxu0
    %10741 = vmatprep.subr.bf16.mxu0 0
    %10742 = vmatpush1.bf16.msra.mxu0 %v10539
    %10743 = vmatprep.subr.bf16.mxu0 0
    %10744 = vmatpush1.bf16.msra.mxu0 %v10538
    %10745 = vmatprep.subr.bf16.mxu0 0
    %10746 = vmatpush1.bf16.msra.mxu0 %v10537
    %10747 = vmatprep.subr.bf16.mxu0 0
    %10748 = vmatpush1.bf16.msra.mxu0 %v10536
    %10749 = vmatprep.subr.bf16.mxu0 0
    %10750 = vmatpush1.bf16.msra.mxu0 %v10535
    %10751 = vmatprep.subr.bf16.mxu0 0
    %10752 = vmatpush1.bf16.msra.mxu0 %v10534
    %10753 = vmatprep.subr.bf16.mxu0 0
    %10754 = vmatpush1.bf16.msra.mxu0 %v10533
    %10755 = vmatprep.subr.bf16.mxu0 0
    %10756 = vmatpush1.bf16.msra.mxu0 %v10532
    %10757 = vmatprep.subr.bf16.mxu0 0
    %10758 = vmatpush2.bf16.msra.mxu0 %v10547
    %10759 = vmatprep.subr.bf16.mxu0 0
    %10760 = vmatpush2.bf16.msra.mxu0 %v10546
    %10761 = vmatprep.subr.bf16.mxu0 0
    %10762 = vmatpush2.bf16.msra.mxu0 %v10545
    %10763 = vmatprep.subr.bf16.mxu0 0
    %10764 = vmatpush2.bf16.msra.mxu0 %v10544
    %10765 = vmatprep.subr.bf16.mxu0 0
    %10766 = vmatpush2.bf16.msra.mxu0 %v10543
    %10767 = vmatprep.subr.bf16.mxu0 0
    %10768 = vmatpush2.bf16.msra.mxu0 %v10542
    %10769 = vmatprep.subr.bf16.mxu0 0
    %10770 = vmatpush2.bf16.msra.mxu0 %v10541
    %10771 = vmatprep.subr.bf16.mxu0 0
    %10772 = vmatpush2.bf16.msra.mxu0 %v10540
    %10773 = vmatprep.mubr.bf16.mxu0 %v10256
    %10774 = vmatmul.mubr.bf16.gmra.mxu0 %v10255
    %v10775 = vpop.f32.mrf.mxu0
    %v10776 = vadd.f32 %v10615, %v10775
    %v10777 = vpop.f32.mrf.mxu0
    %v10778 = vpop.f32.mrf.mxu0
    %v10779 = vadd.f32 %v10618, %v10778
    %v10780 = vpop.f32.mrf.mxu0
    %10781 = vmatprep.mubr.bf16.mxu0 %v10260
    %10782 = vmatmul.mubr.bf16.gmra.mxu0 %v10259
    %v10783 = vpop.f32.mrf.mxu0
    %v10784 = vadd.f32 %v10623, %v10783
    %v10785 = vpop.f32.mrf.mxu0
    %v10786 = vpop.f32.mrf.mxu0
    %v10787 = vadd.f32 %v10626, %v10786
    %v10788 = vpop.f32.mrf.mxu0
    %10789 = vmatprep.mubr.bf16.mxu0 %v10264
    %10790 = vmatmul.mubr.bf16.gmra.mxu0 %v10263
    %v10791 = vpop.f32.mrf.mxu0
    %v10792 = vadd.f32 %v10631, %v10791
    %v10793 = vpop.f32.mrf.mxu0
    %v10794 = vpop.f32.mrf.mxu0
    %v10795 = vadd.f32 %v10634, %v10794
    %v10796 = vpop.f32.mrf.mxu0
    %10797 = vmatprep.mubr.bf16.mxu0 %v10268
    %10798 = vmatmul.mubr.bf16.gmra.mxu0 %v10267
    %v10799 = vpop.f32.mrf.mxu0
    %v10800 = vadd.f32 %v10639, %v10799
    %v10801 = vpop.f32.mrf.mxu0
    %v10802 = vpop.f32.mrf.mxu0
    %v10803 = vadd.f32 %v10642, %v10802
    %v10804 = vpop.f32.mrf.mxu0
    %10805 = vmatprep.mubr.bf16.mxu0 %v10272
    %10806 = vmatmul.mubr.bf16.gmra.mxu0 %v10271
    %v10807 = vpop.f32.mrf.mxu0
    %v10808 = vadd.f32 %v10647, %v10807
    %v10809 = vpop.f32.mrf.mxu0
    %v10810 = vpop.f32.mrf.mxu0
    %v10811 = vadd.f32 %v10650, %v10810
    %v10812 = vpop.f32.mrf.mxu0
    %10813 = vmatprep.mubr.bf16.mxu0 %v10276
    %10814 = vmatmul.mubr.bf16.gmra.mxu0 %v10275
    %v10815 = vpop.f32.mrf.mxu0
    %v10816 = vadd.f32 %v10655, %v10815
    %v10817 = vpop.f32.mrf.mxu0
    %v10818 = vpop.f32.mrf.mxu0
    %v10819 = vadd.f32 %v10658, %v10818
    %v10820 = vpop.f32.mrf.mxu0
    %10821 = vmatprep.mubr.bf16.mxu0 %v10280
    %10822 = vmatmul.mubr.bf16.gmra.mxu0 %v10279
    %v10823 = vpop.f32.mrf.mxu0
    %v10824 = vadd.f32 %v10663, %v10823
    %v10825 = vpop.f32.mrf.mxu0
    %v10826 = vpop.f32.mrf.mxu0
    %v10827 = vadd.f32 %v10666, %v10826
    %v10828 = vpop.f32.mrf.mxu0
    %10829 = vmatprep.mubr.bf16.mxu0 %v10284
    %10830 = vmatmul.mubr.bf16.gmra.mxu0 %v10283
    %v10831 = vpop.f32.mrf.mxu0
    %v10832 = vadd.f32 %v10671, %v10831
    %v10833 = vpop.f32.mrf.mxu0
    %v10834 = vpop.f32.mrf.mxu0
    %v10835 = vadd.f32 %v10674, %v10834
    %v10836 = vpop.f32.mrf.mxu0
    %10837 = vmatprep.mubr.bf16.mxu0 %v10288
    %10838 = vmatmul.mubr.bf16.gmra.mxu0 %v10287
    %v10839 = vpop.f32.mrf.mxu0
    %v10840 = vadd.f32 %v10679, %v10839
    %v10841 = vpop.f32.mrf.mxu0
    %v10842 = vpop.f32.mrf.mxu0
    %v10843 = vadd.f32 %v10682, %v10842
    %v10844 = vpop.f32.mrf.mxu0
    %10845 = vmatprep.mubr.bf16.mxu0 %v10292
    %10846 = vmatmul.mubr.bf16.gmra.mxu0 %v10291
    %v10847 = vpop.f32.mrf.mxu0
    %v10848 = vadd.f32 %v10687, %v10847
    %v10849 = vpop.f32.mrf.mxu0
    %v10850 = vpop.f32.mrf.mxu0
    %v10851 = vadd.f32 %v10690, %v10850
    %v10852 = vpop.f32.mrf.mxu0
    %10853 = vmatprep.mubr.bf16.mxu0 %v10296
    %10854 = vmatmul.mubr.bf16.gmra.mxu0 %v10295
    %v10855 = vpop.f32.mrf.mxu0
    %v10856 = vadd.f32 %v10695, %v10855
    %v10857 = vpop.f32.mrf.mxu0
    %v10858 = vpop.f32.mrf.mxu0
    %v10859 = vadd.f32 %v10698, %v10858
    %v10860 = vpop.f32.mrf.mxu0
    %10861 = vmatprep.mubr.bf16.mxu0 %v10300
    %10862 = vmatmul.mubr.bf16.gmra.mxu0 %v10299
    %v10863 = vpop.f32.mrf.mxu0
    %v10864 = vadd.f32 %v10703, %v10863
    %v10865 = vpop.f32.mrf.mxu0
    %v10866 = vpop.f32.mrf.mxu0
    %v10867 = vadd.f32 %v10706, %v10866
    %v10868 = vpop.f32.mrf.mxu0
    %10869 = vmatprep.mubr.bf16.mxu0 %v10304
    %10870 = vmatmul.mubr.bf16.gmra.mxu0 %v10303
    %v10871 = vpop.f32.mrf.mxu0
    %v10872 = vadd.f32 %v10711, %v10871
    %v10873 = vpop.f32.mrf.mxu0
    %v10874 = vpop.f32.mrf.mxu0
    %v10875 = vadd.f32 %v10714, %v10874
    %v10876 = vpop.f32.mrf.mxu0
    %10877 = vmatprep.mubr.bf16.mxu0 %v10308
    %10878 = vmatmul.mubr.bf16.gmra.mxu0 %v10307
    %v10879 = vpop.f32.mrf.mxu0
    %v10880 = vadd.f32 %v10719, %v10879
    %v10881 = vpop.f32.mrf.mxu0
    %v10882 = vpop.f32.mrf.mxu0
    %v10883 = vadd.f32 %v10722, %v10882
    %v10884 = vpop.f32.mrf.mxu0
    %10885 = vmatprep.mubr.bf16.mxu0 %v10312
    %10886 = vmatmul.mubr.bf16.gmra.mxu0 %v10311
    %v10887 = vpop.f32.mrf.mxu0
    %v10888 = vadd.f32 %v10727, %v10887
    %v10889 = vpop.f32.mrf.mxu0
    %v10890 = vpop.f32.mrf.mxu0
    %v10891 = vadd.f32 %v10730, %v10890
    %v10892 = vpop.f32.mrf.mxu0
    %10893 = vmatprep.mubr.bf16.mxu0 %v10316
    %10894 = vmatmul.mubr.bf16.gmra.mxu0 %v10315
    %v10895 = vpop.f32.mrf.mxu0
    %v10896 = vadd.f32 %v10735, %v10895
    %v10897 = vpop.f32.mrf.mxu0
    %v10898 = vpop.f32.mrf.mxu0
    %v10899 = vadd.f32 %v10738, %v10898
    %v10900 = vpop.f32.mrf.mxu0
    %10901 = vdwg.mxu0
    %v10902 = vxor.u32 %v10776, 2147483648
    %v10903 = vxor.u32 %v10779, 2147483648
    %v10904 = vxor.u32 %v10784, 2147483648
    %v10905 = vxor.u32 %v10787, 2147483648
    %v10906 = vxor.u32 %v10792, 2147483648
    %v10907 = vxor.u32 %v10795, 2147483648
    %v10908 = vxor.u32 %v10800, 2147483648
    %v10909 = vxor.u32 %v10803, 2147483648
    %v10910 = vxor.u32 %v10808, 2147483648
    %v10911 = vxor.u32 %v10811, 2147483648
    %v10912 = vxor.u32 %v10816, 2147483648
    %v10913 = vxor.u32 %v10819, 2147483648
    %v10914 = vxor.u32 %v10824, 2147483648
    %v10915 = vxor.u32 %v10827, 2147483648
    %v10916 = vxor.u32 %v10832, 2147483648
    %v10917 = vxor.u32 %v10835, 2147483648
    %v10918 = vxor.u32 %v10840, 2147483648
    %v10919 = vxor.u32 %v10843, 2147483648
    %v10920 = vxor.u32 %v10848, 2147483648
    %v10921 = vxor.u32 %v10851, 2147483648
    %v10922 = vxor.u32 %v10856, 2147483648
    %v10923 = vxor.u32 %v10859, 2147483648
    %v10924 = vxor.u32 %v10864, 2147483648
    %v10925 = vxor.u32 %v10867, 2147483648
    %v10926 = vxor.u32 %v10872, 2147483648
    %v10927 = vxor.u32 %v10875, 2147483648
    %v10928 = vxor.u32 %v10880, 2147483648
    %v10929 = vxor.u32 %v10883, 2147483648
    %v10930 = vxor.u32 %v10888, 2147483648
    %v10931 = vxor.u32 %v10891, 2147483648
    %v10932 = vxor.u32 %v10896, 2147483648
    %v10933 = vxor.u32 %v10899, 2147483648
    %v10934 = vmul.f32 %v10902, 1.442695
    %v10935 = vpow.pop %v10934
    %v10936 = vmul.f32 %v10903, 1.442695
    %v10937 = vpow.pop %v10936
    %v10938 = vmul.f32 %v10904, 1.442695
    %v10939 = vpow.pop %v10938
    %v10940 = vmul.f32 %v10905, 1.442695
    %v10941 = vpow.pop %v10940
    %v10942 = vmul.f32 %v10906, 1.442695
    %v10943 = vpow.pop %v10942
    %v10944 = vmul.f32 %v10907, 1.442695
    %v10945 = vpow.pop %v10944
    %v10946 = vmul.f32 %v10908, 1.442695
    %v10947 = vpow.pop %v10946
    %v10948 = vmul.f32 %v10909, 1.442695
    %v10949 = vpow.pop %v10948
    %v10950 = vmul.f32 %v10910, 1.442695
    %v10951 = vpow.pop %v10950
    %v10952 = vmul.f32 %v10911, 1.442695
    %v10953 = vpow.pop %v10952
    %v10954 = vmul.f32 %v10912, 1.442695
    %v10955 = vpow.pop %v10954
    %v10956 = vmul.f32 %v10913, 1.442695
    %v10957 = vpow.pop %v10956
    %v10958 = vmul.f32 %v10914, 1.442695
    %v10959 = vpow.pop %v10958
    %v10960 = vmul.f32 %v10915, 1.442695
    %v10961 = vpow.pop %v10960
    %v10962 = vmul.f32 %v10916, 1.442695
    %v10963 = vpow.pop %v10962
    %v10964 = vmul.f32 %v10917, 1.442695
    %v10965 = vpow.pop %v10964
    %v10966 = vmul.f32 %v10918, 1.442695
    %v10967 = vpow.pop %v10966
    %v10968 = vmul.f32 %v10919, 1.442695
    %v10969 = vpow.pop %v10968
    %v10970 = vmul.f32 %v10920, 1.442695
    %v10971 = vpow.pop %v10970
    %v10972 = vmul.f32 %v10921, 1.442695
    %v10973 = vpow.pop %v10972
    %v10974 = vmul.f32 %v10922, 1.442695
    %v10975 = vpow.pop %v10974
    %v10976 = vmul.f32 %v10923, 1.442695
    %v10977 = vpow.pop %v10976
    %v10978 = vmul.f32 %v10924, 1.442695
    %v10979 = vpow.pop %v10978
    %v10980 = vmul.f32 %v10925, 1.442695
    %v10981 = vpow.pop %v10980
    %v10982 = vmul.f32 %v10926, 1.442695
    %v10983 = vpow.pop %v10982
    %v10984 = vmul.f32 %v10927, 1.442695
    %v10985 = vpow.pop %v10984
    %v10986 = vmul.f32 %v10928, 1.442695
    %v10987 = vpow.pop %v10986
    %v10988 = vmul.f32 %v10929, 1.442695
    %v10989 = vpow.pop %v10988
    %v10990 = vmul.f32 %v10930, 1.442695
    %v10991 = vpow.pop %v10990
    %v10992 = vmul.f32 %v10931, 1.442695
    %v10993 = vpow.pop %v10992
    %v10994 = vmul.f32 %v10932, 1.442695
    %v10995 = vpow.pop %v10994
    %v10996 = vmul.f32 %v10933, 1.442695
    %v10997 = vpow.pop %v10996
    %v10998 = vadd.f32 %v10935, 1.0
    %v10999 = vadd.f32 %v10937, 1.0
    %v11000 = vadd.f32 %v10939, 1.0
    %v11001 = vadd.f32 %v10941, 1.0
    %v11002 = vadd.f32 %v10943, 1.0
    %v11003 = vadd.f32 %v10945, 1.0
    %v11004 = vadd.f32 %v10947, 1.0
    %v11005 = vadd.f32 %v10949, 1.0
    %v11006 = vadd.f32 %v10951, 1.0
    %v11007 = vadd.f32 %v10953, 1.0
    %v11008 = vadd.f32 %v10955, 1.0
    %v11009 = vadd.f32 %v10957, 1.0
    %v11010 = vadd.f32 %v10959, 1.0
    %v11011 = vadd.f32 %v10961, 1.0
    %v11012 = vadd.f32 %v10963, 1.0
    %v11013 = vadd.f32 %v10965, 1.0
    %v11014 = vadd.f32 %v10967, 1.0
    %v11015 = vadd.f32 %v10969, 1.0
    %v11016 = vadd.f32 %v10971, 1.0
    %v11017 = vadd.f32 %v10973, 1.0
    %v11018 = vadd.f32 %v10975, 1.0
    %v11019 = vadd.f32 %v10977, 1.0
    %v11020 = vadd.f32 %v10979, 1.0
    %v11021 = vadd.f32 %v10981, 1.0
    %v11022 = vadd.f32 %v10983, 1.0
    %v11023 = vadd.f32 %v10985, 1.0
    %v11024 = vadd.f32 %v10987, 1.0
    %v11025 = vadd.f32 %v10989, 1.0
    %v11026 = vadd.f32 %v10991, 1.0
    %v11027 = vadd.f32 %v10993, 1.0
    %v11028 = vadd.f32 %v10995, 1.0
    %v11029 = vadd.f32 %v10997, 1.0
    %v11030 = vrcp.pop %v10998
    %v11031 = vmul.f32 1.0, %v11030
    %v11032 = vrcp.pop %v10999
    %v11033 = vmul.f32 1.0, %v11032
    %v11034 = vrcp.pop %v11000
    %v11035 = vmul.f32 1.0, %v11034
    %v11036 = vrcp.pop %v11001
    %v11037 = vmul.f32 1.0, %v11036
    %v11038 = vrcp.pop %v11002
    %v11039 = vmul.f32 1.0, %v11038
    %v11040 = vrcp.pop %v11003
    %v11041 = vmul.f32 1.0, %v11040
    %v11042 = vrcp.pop %v11004
    %v11043 = vmul.f32 1.0, %v11042
    %v11044 = vrcp.pop %v11005
    %v11045 = vmul.f32 1.0, %v11044
    %v11046 = vrcp.pop %v11006
    %v11047 = vmul.f32 1.0, %v11046
    %v11048 = vrcp.pop %v11007
    %v11049 = vmul.f32 1.0, %v11048
    %v11050 = vrcp.pop %v11008
    %v11051 = vmul.f32 1.0, %v11050
    %v11052 = vrcp.pop %v11009
    %v11053 = vmul.f32 1.0, %v11052
    %v11054 = vrcp.pop %v11010
    %v11055 = vmul.f32 1.0, %v11054
    %v11056 = vrcp.pop %v11011
    %v11057 = vmul.f32 1.0, %v11056
    %v11058 = vrcp.pop %v11012
    %v11059 = vmul.f32 1.0, %v11058
    %v11060 = vrcp.pop %v11013
    %v11061 = vmul.f32 1.0, %v11060
    %v11062 = vrcp.pop %v11014
    %v11063 = vmul.f32 1.0, %v11062
    %v11064 = vrcp.pop %v11015
    %v11065 = vmul.f32 1.0, %v11064
    %v11066 = vrcp.pop %v11016
    %v11067 = vmul.f32 1.0, %v11066
    %v11068 = vrcp.pop %v11017
    %v11069 = vmul.f32 1.0, %v11068
    %v11070 = vrcp.pop %v11018
    %v11071 = vmul.f32 1.0, %v11070
    %v11072 = vrcp.pop %v11019
    %v11073 = vmul.f32 1.0, %v11072
    %v11074 = vrcp.pop %v11020
    %v11075 = vmul.f32 1.0, %v11074
    %v11076 = vrcp.pop %v11021
    %v11077 = vmul.f32 1.0, %v11076
    %v11078 = vrcp.pop %v11022
    %v11079 = vmul.f32 1.0, %v11078
    %v11080 = vrcp.pop %v11023
    %v11081 = vmul.f32 1.0, %v11080
    %v11082 = vrcp.pop %v11024
    %v11083 = vmul.f32 1.0, %v11082
    %v11084 = vrcp.pop %v11025
    %v11085 = vmul.f32 1.0, %v11084
    %v11086 = vrcp.pop %v11026
    %v11087 = vmul.f32 1.0, %v11086
    %v11088 = vrcp.pop %v11027
    %v11089 = vmul.f32 1.0, %v11088
    %v11090 = vrcp.pop %v11028
    %v11091 = vmul.f32 1.0, %v11090
    %v11092 = vrcp.pop %v11029
    %v11093 = vmul.f32 1.0, %v11092
    %11094 = vst [vmem:[#allocation14] sm:$0xff] %v11031
    %11095 = vst [vmem:[#allocation14 + $0x8] sm:$0xff] %v11033
    %11096 = vst [vmem:[#allocation14 + $0x10] sm:$0xff] %v11035
    %11097 = vst [vmem:[#allocation14 + $0x18] sm:$0xff] %v11037
    %11098 = vst [vmem:[#allocation14 + $0x20] sm:$0xff] %v11039
    %11099 = vst [vmem:[#allocation14 + $0x28] sm:$0xff] %v11041
    %11100 = vst [vmem:[#allocation14 + $0x30] sm:$0xff] %v11043
    %11101 = vst [vmem:[#allocation14 + $0x38] sm:$0xff] %v11045
    %11102 = vst [vmem:[#allocation14 + $0x40] sm:$0xff] %v11047
    %11103 = vst [vmem:[#allocation14 + $0x48] sm:$0xff] %v11049
    %11104 = vst [vmem:[#allocation14 + $0x50] sm:$0xff] %v11051
    %11105 = vst [vmem:[#allocation14 + $0x58] sm:$0xff] %v11053
    %11106 = vst [vmem:[#allocation14 + $0x60] sm:$0xff] %v11055
    %11107 = vst [vmem:[#allocation14 + $0x68] sm:$0xff] %v11057
    %11108 = vst [vmem:[#allocation14 + $0x70] sm:$0xff] %v11059
    %11109 = vst [vmem:[#allocation14 + $0x78] sm:$0xff] %v11061
    %11110 = vst [vmem:[#allocation14 + $0x80] sm:$0xff] %v11063
    %11111 = vst [vmem:[#allocation14 + $0x88] sm:$0xff] %v11065
    %11112 = vst [vmem:[#allocation14 + $0x90] sm:$0xff] %v11067
    %11113 = vst [vmem:[#allocation14 + $0x98] sm:$0xff] %v11069
    %11114 = vst [vmem:[#allocation14 + $0xa0] sm:$0xff] %v11071
    %11115 = vst [vmem:[#allocation14 + $0xa8] sm:$0xff] %v11073
    %11116 = vst [vmem:[#allocation14 + $0xb0] sm:$0xff] %v11075
    %11117 = vst [vmem:[#allocation14 + $0xb8] sm:$0xff] %v11077
    %11118 = vst [vmem:[#allocation14 + $0xc0] sm:$0xff] %v11079
    %11119 = vst [vmem:[#allocation14 + $0xc8] sm:$0xff] %v11081
    %11120 = vst [vmem:[#allocation14 + $0xd0] sm:$0xff] %v11083
    %11121 = vst [vmem:[#allocation14 + $0xd8] sm:$0xff] %v11085
    %11122 = vst [vmem:[#allocation14 + $0xe0] sm:$0xff] %v11087
    %11123 = vst [vmem:[#allocation14 + $0xe8] sm:$0xff] %v11089
    %11124 = vst [vmem:[#allocation14 + $0xf0] sm:$0xff] %v11091
    %11125 = vst [vmem:[#allocation14 + $0xf8] sm:$0xff] %v11093
    // Predicated region
    $region58: #{tpu_custom_call.1} parent=1 // pred_check
      _
    $region59: #{tpu_custom_call.1} parent=1 // pred_check_branch
      %11127 = sbr.rel (0) target = $region61
    $region60: #{tpu_custom_call.1} parent=1 // pred_region
      %s11129 = ssub.s32 4096, 4096
      %11130 = vsyncadd [#allocation4], %s11129
      %s11131 = sshll.u32 [#allocation14], 4
      %s11132 = int_to_ptr.vmem [resolvable:$true] %s11131
      %11137 = dma.vmem_to_hbm [thread:$0]  %s11132, 4096, %s7, [#allocation4], 128, 128, 8
    $region61: #{tpu_custom_call.1} parent=1 // pred_fallthru
      _
    // Predicated region
    $region62: #{tpu_custom_call.1} parent=1 // pred_check
      _
    $region63: #{tpu_custom_call.1} parent=1 // pred_check_branch
      %11139 = sbr.rel (0) target = $region65
    $region64: #{tpu_custom_call.1} parent=1 // pred_region
      %11140 = dma.done [#allocation4], 4096
    $region65: #{tpu_custom_call.1} parent=1 // pred_fallthru
      _
    %11141 = vsyncpa [#allocation3], 1
    %11142 = vsyncpa [#allocation6], 1
    %11143 = vsyncpa [#allocation9], 1
    %11144 = vsyncpa [#allocation12], 1
    %11145 = vsyncpa [#allocation4], 1

</llo_original>
